<compile_context>
chip_gen: v7x
topology: tpu7x:2x2x1
jax: 0.10.0
libtpu: 0.0.40
codegen_flags: <defaults>
</compile_context>

<pallas_src>
from types import SimpleNamespace

import numpy as np
import jax
import jax.numpy as jnp
from jax.experimental import pallas as pl
from jax.experimental.pallas import tpu as pltpu


def _round_up(x, m):
    return ((x + m - 1) // m) * m


def _bert_embeddings_kernel(word_ids_ref, age_ids_ref, seg_ids_ref, posi_ids_ref,
                            word_tbl_ref, age_tbl_ref, posi_tbl_ref,
                            gamma_ref, beta_ref, out_ref):
    """One token-tile: 4 embedding gathers + sum + LayerNorm, fully fused.

    *_ids_ref : VMEM (TILE, 1) int32
    *_tbl_ref : VMEM (V, H) float32 (resident, revisited every step)
    gamma/beta: VMEM (1, H) float32
    out_ref   : VMEM (TILE, H) float32
    """
    tile = out_ref.shape[0]

    def lookup(ids_ref, tbl_ref):
        # One-hot row gather on the MXU (otherwise idle in this mem-bound op).
        v = tbl_ref.shape[0]
        onehot = (jax.lax.broadcasted_iota(jnp.int32, (tile, v), 1)
                  == ids_ref[...]).astype(jnp.float32)
        return jnp.dot(onehot, tbl_ref[...],
                       preferred_element_type=jnp.float32,
                       precision=jax.lax.Precision.HIGHEST)

    emb = (lookup(word_ids_ref, word_tbl_ref)
           + lookup(seg_ids_ref, posi_tbl_ref)   # reference: seg ids -> posi table
           + lookup(age_ids_ref, age_tbl_ref)
           + lookup(posi_ids_ref, posi_tbl_ref))

    # BertLayerNorm over hidden (lane) axis: XLU reduction + EUP rsqrt.
    mean = jnp.mean(emb, axis=-1, keepdims=True)
    centered = emb - mean
    var = jnp.mean(centered * centered, axis=-1, keepdims=True)
    normed = centered * jax.lax.rsqrt(var + 1e-12)
    out_ref[...] = (normed * gamma_ref[...] + beta_ref[...]).astype(out_ref.dtype)


def _embeddings_pallas(word_ids, age_ids, seg_ids, posi_ids,
                       word_tbl, age_tbl, posi_tbl, gamma, beta,
                       *, tile_tokens=512):
    """ids: flat (N,) int32 each; tables (V, H) f32; gamma/beta (H,) f32."""
    n = word_ids.shape[0]
    h = word_tbl.shape[1]
    assert tile_tokens % 8 == 0
    tile = min(tile_tokens, _round_up(n, 8))
    n_pad = _round_up(n, tile)
    grid = n_pad // tile

    def prep_ids(x):
        x = x.astype(jnp.int32)
        if n_pad != n:
            x = jnp.pad(x, (0, n_pad - n))   # pad with id 0 (always valid)
        return x.reshape(n_pad, 1)

    ids2d = [prep_ids(x) for x in (word_ids, age_ids, seg_ids, posi_ids)]
    gamma2d = gamma.reshape(1, h).astype(jnp.float32)
    beta2d = beta.reshape(1, h).astype(jnp.float32)

    id_spec = pl.BlockSpec((tile, 1), lambda i: (i, 0))
    full = lambda shape: pl.BlockSpec(shape, lambda i: (0, 0))

    out = pl.pallas_call(
        _bert_embeddings_kernel,
        out_shape=jax.ShapeDtypeStruct((n_pad, h), jnp.float32),
        grid=(grid,),
        in_specs=[
            id_spec, id_spec, id_spec, id_spec,        # word, age, seg, posi ids
            full(word_tbl.shape),                      # word table (VMEM resident)
            full(age_tbl.shape),                       # age table
            full(posi_tbl.shape),                      # positional table
            full((1, h)),                              # LayerNorm gamma
            full((1, h)),                              # LayerNorm beta
        ],
        out_specs=pl.BlockSpec((tile, h), lambda i: (i, 0)),
        compiler_params=pltpu.CompilerParams(
            dimension_semantics=("parallel",)),
    )(*ids2d, word_tbl, age_tbl, posi_tbl, gamma2d, beta2d)

    return out[:n]


def _init_posi_embedding(max_position_embedding, hidden_size):
    """Vectorized replica of the reference sinusoidal init."""
    pos = np.arange(max_position_embedding, dtype=np.float32)[:, None]
    idx = np.arange(hidden_size, dtype=np.float32)[None, :]
    angle = pos / np.power(10000.0, 2.0 * idx / hidden_size)
    even = (np.arange(hidden_size)[None, :] % 2) == 0
    table = np.where(even, np.sin(angle), np.cos(angle)).astype(np.float32)
    return jnp.asarray(table)


class BertEmbeddings:
    """JAX/Pallas mirror of the PyTorch BertEmbeddings module (BEHRT)."""

    def __init__(self, config, key):
        self.config = config
        h = config.hidden_size
        k1, k2, k3 = jax.random.split(key, 3)
        self.word_embeddings = jax.random.normal(k1, (config.vocab_size, h), jnp.float32)
        # Built for parameter parity; the reference forward never reads it
        # (it looks seg_ids up in the positional table).
        self.segment_embeddings = jax.random.normal(k2, (config.seg_vocab_size, h), jnp.float32)
        self.age_embeddings = jax.random.normal(k3, (config.age_vocab_size, h), jnp.float32)
        self.posi_embeddings = _init_posi_embedding(config.max_position_embeddings, h)
        self.ln_gamma = jnp.ones((h,), jnp.float32)
        self.ln_beta = jnp.zeros((h,), jnp.float32)
        self.tile_tokens = int(getattr(config, "tile_tokens", 512))
        if getattr(config, "concat_embeddings", False):
            # TODO(synk): concat path (catmap Linear + tanh) not implemented.
            raise NotImplementedError("concat_embeddings path not implemented")

    def forward(self, word_ids, age_ids=None, seg_ids=None, posi_ids=None, age=True):
        if seg_ids is None:
            seg_ids = jnp.zeros_like(word_ids)
        if age_ids is None:
            age_ids = jnp.zeros_like(word_ids)
        if posi_ids is None:
            posi_ids = jnp.zeros_like(word_ids)
        b, s = word_ids.shape
        flat = lambda x: x.reshape(-1)
        out = _embeddings_pallas(
            flat(word_ids), flat(age_ids), flat(seg_ids), flat(posi_ids),
            self.word_embeddings, self.age_embeddings, self.posi_embeddings,
            self.ln_gamma, self.ln_beta,
            tile_tokens=self.tile_tokens)
        # Dropout is identity at inference. TODO(synk): training-mode dropout
        # would use pltpu.prng_seed/prng_random_bits inside the kernel.
        return out.reshape(b, s, self.config.hidden_size)

    __call__ = forward


if __name__ == "__main__":
    config = SimpleNamespace(
        vocab_size=64, seg_vocab_size=2, age_vocab_size=32,
        max_position_embeddings=160, hidden_size=128,
        hidden_dropout_prob=0.1, concat_embeddings=False,
        tile_tokens=128,   # small tile so the demo exercises a multi-step grid
    )
    key = jax.random.PRNGKey(0)
    pkey, wkey, akey, skey = jax.random.split(key, 4)
    module = BertEmbeddings(config, pkey)

    batch, seq = 2, 128
    word_ids = jax.random.randint(wkey, (batch, seq), 0, config.vocab_size)
    age_ids = jax.random.randint(akey, (batch, seq), 0, config.age_vocab_size)
    seg_ids = jax.random.randint(skey, (batch, seq), 0, config.seg_vocab_size)
    posi_ids = jnp.broadcast_to(jnp.arange(seq, dtype=jnp.int32), (batch, seq))

    out = module(word_ids, age_ids=age_ids, seg_ids=seg_ids, posi_ids=posi_ids)
    out = jax.block_until_ready(out)

    # Pure-JAX reference with identical semantics (gather + sum + LayerNorm).
    def reference(word_ids, age_ids, seg_ids, posi_ids):
        w = module.word_embeddings[word_ids]
        a = module.age_embeddings[age_ids]
        p = module.posi_embeddings[posi_ids]
        s = module.posi_embeddings[seg_ids]   # seg ids use the positional table
        e = w + s + a + p
        mu = e.mean(-1, keepdims=True)
        var = ((e - mu) ** 2).mean(-1, keepdims=True)
        return (e - mu) / jnp.sqrt(var + 1e-12) * module.ln_gamma + module.ln_beta

    ref = reference(word_ids, age_ids, seg_ids, posi_ids)
    assert out.shape == (batch, seq, config.hidden_size)
    err = float(jnp.max(jnp.abs(out - ref)))
    assert bool(jnp.allclose(out, ref, atol=1e-2, rtol=1e-2)), f"max abs err {err}"
    print("KERNEL_OK")
</pallas_src>

<mosaic_0001>
module attributes {stable_mosaic.version = 11 : i64} {
  func.func @_bert_embeddings_kernel(%arg0: i32, %arg1: memref<128x1xi32, #tpu.memory_space<vmem>>, %arg2: memref<128x1xi32, #tpu.memory_space<vmem>>, %arg3: memref<128x1xi32, #tpu.memory_space<vmem>>, %arg4: memref<128x1xi32, #tpu.memory_space<vmem>>, %arg5: memref<64x128xf32, #tpu.memory_space<vmem>>, %arg6: memref<32x128xf32, #tpu.memory_space<vmem>>, %arg7: memref<160x128xf32, #tpu.memory_space<vmem>>, %arg8: memref<1x128xf32, #tpu.memory_space<vmem>>, %arg9: memref<1x128xf32, #tpu.memory_space<vmem>>, %arg10: memref<128x128xf32, #tpu.memory_space<vmem>>) attributes {dimension_semantics = [#tpu.dimension_semantics<parallel>], iteration_bounds = array<i64: 2>, scalar_prefetch = 0 : i64, scratch_operands = 0 : i64, tpu.core_type = #tpu.core_type<tc>, window_params = [{transform_indices = @transform_0, window_bounds = array<i64: 128, 1>}, {transform_indices = @transform_1, window_bounds = array<i64: 128, 1>}, {transform_indices = @transform_2, window_bounds = array<i64: 128, 1>}, {transform_indices = @transform_3, window_bounds = array<i64: 128, 1>}, {pipeline_mode = #tpu.pipeline_mode<synchronous>, transform_indices = @transform_4, window_bounds = array<i64: 64, 128>}, {pipeline_mode = #tpu.pipeline_mode<synchronous>, transform_indices = @transform_5, window_bounds = array<i64: 32, 128>}, {pipeline_mode = #tpu.pipeline_mode<synchronous>, transform_indices = @transform_6, window_bounds = array<i64: 160, 128>}, {pipeline_mode = #tpu.pipeline_mode<synchronous>, transform_indices = @transform_7, window_bounds = array<i64: 1, 128>}, {pipeline_mode = #tpu.pipeline_mode<synchronous>, transform_indices = @transform_8, window_bounds = array<i64: 1, 128>}, {transform_indices = @transform_9, window_bounds = array<i64: 128, 128>}]} {
    %0 = tpu.iota {dimensions = array<i32: 1>} : vector<128x64xi32>
    %c0 = arith.constant 0 : index
    %c0_0 = arith.constant 0 : index
    %1 = vector.load %arg1[%c0, %c0_0] : memref<128x1xi32, #tpu.memory_space<vmem>>, vector<128x1xi32>
    %2 = vector.broadcast %1 : vector<128x1xi32> to vector<128x64xi32>
    %3 = arith.cmpi eq, %0, %2 : vector<128x64xi32>
    %4 = arith.extui %3 : vector<128x64xi1> to vector<128x64xi32>
    %5 = arith.sitofp %4 : vector<128x64xi32> to vector<128x64xf32>
    %c0_1 = arith.constant 0 : index
    %c0_2 = arith.constant 0 : index
    %6 = vector.load %arg5[%c0_1, %c0_2] : memref<64x128xf32, #tpu.memory_space<vmem>>, vector<64x128xf32>
    %cst = arith.constant dense<0.000000e+00> : vector<128x128xf32>
    %7 = tpu.matmul %5, %6, %cst {dimension_numbers = #tpu.dot_dimension_numbers<[1], [0], [0], [1], [0, 0, 1, 1], [], []>, precision = #tpu.contract_precision<fp32>} : vector<128x64xf32>, vector<64x128xf32>, vector<128x128xf32> -> vector<128x128xf32>
    %8 = tpu.iota {dimensions = array<i32: 1>} : vector<128x160xi32>
    %c0_3 = arith.constant 0 : index
    %c0_4 = arith.constant 0 : index
    %9 = vector.load %arg3[%c0_3, %c0_4] : memref<128x1xi32, #tpu.memory_space<vmem>>, vector<128x1xi32>
    %10 = vector.broadcast %9 : vector<128x1xi32> to vector<128x160xi32>
    %11 = arith.cmpi eq, %8, %10 : vector<128x160xi32>
    %12 = arith.extui %11 : vector<128x160xi1> to vector<128x160xi32>
    %13 = arith.sitofp %12 : vector<128x160xi32> to vector<128x160xf32>
    %c0_5 = arith.constant 0 : index
    %c0_6 = arith.constant 0 : index
    %14 = vector.load %arg7[%c0_5, %c0_6] : memref<160x128xf32, #tpu.memory_space<vmem>>, vector<160x128xf32>
    %cst_7 = arith.constant dense<0.000000e+00> : vector<128x128xf32>
    %15 = tpu.matmul %13, %14, %cst_7 {dimension_numbers = #tpu.dot_dimension_numbers<[1], [0], [0], [1], [0, 0, 1, 1], [], []>, precision = #tpu.contract_precision<fp32>} : vector<128x160xf32>, vector<160x128xf32>, vector<128x128xf32> -> vector<128x128xf32>
    %16 = arith.addf %7, %15 : vector<128x128xf32>
    %17 = tpu.iota {dimensions = array<i32: 1>} : vector<128x32xi32>
    %c0_8 = arith.constant 0 : index
    %c0_9 = arith.constant 0 : index
    %18 = vector.load %arg2[%c0_8, %c0_9] : memref<128x1xi32, #tpu.memory_space<vmem>>, vector<128x1xi32>
    %19 = vector.broadcast %18 : vector<128x1xi32> to vector<128x32xi32>
    %20 = arith.cmpi eq, %17, %19 : vector<128x32xi32>
    %21 = arith.extui %20 : vector<128x32xi1> to vector<128x32xi32>
    %22 = arith.sitofp %21 : vector<128x32xi32> to vector<128x32xf32>
    %c0_10 = arith.constant 0 : index
    %c0_11 = arith.constant 0 : index
    %23 = vector.load %arg6[%c0_10, %c0_11] : memref<32x128xf32, #tpu.memory_space<vmem>>, vector<32x128xf32>
    %cst_12 = arith.constant dense<0.000000e+00> : vector<128x128xf32>
    %24 = tpu.matmul %22, %23, %cst_12 {dimension_numbers = #tpu.dot_dimension_numbers<[1], [0], [0], [1], [0, 0, 1, 1], [], []>, precision = #tpu.contract_precision<fp32>} : vector<128x32xf32>, vector<32x128xf32>, vector<128x128xf32> -> vector<128x128xf32>
    %25 = arith.addf %16, %24 : vector<128x128xf32>
    %26 = tpu.iota {dimensions = array<i32: 1>} : vector<128x160xi32>
    %c0_13 = arith.constant 0 : index
    %c0_14 = arith.constant 0 : index
    %27 = vector.load %arg4[%c0_13, %c0_14] : memref<128x1xi32, #tpu.memory_space<vmem>>, vector<128x1xi32>
    %28 = vector.broadcast %27 : vector<128x1xi32> to vector<128x160xi32>
    %29 = arith.cmpi eq, %26, %28 : vector<128x160xi32>
    %30 = arith.extui %29 : vector<128x160xi1> to vector<128x160xi32>
    %31 = arith.sitofp %30 : vector<128x160xi32> to vector<128x160xf32>
    %c0_15 = arith.constant 0 : index
    %c0_16 = arith.constant 0 : index
    %32 = vector.load %arg7[%c0_15, %c0_16] : memref<160x128xf32, #tpu.memory_space<vmem>>, vector<160x128xf32>
    %cst_17 = arith.constant dense<0.000000e+00> : vector<128x128xf32>
    %33 = tpu.matmul %31, %32, %cst_17 {dimension_numbers = #tpu.dot_dimension_numbers<[1], [0], [0], [1], [0, 0, 1, 1], [], []>, precision = #tpu.contract_precision<fp32>} : vector<128x160xf32>, vector<160x128xf32>, vector<128x128xf32> -> vector<128x128xf32>
    %34 = arith.addf %25, %33 : vector<128x128xf32>
    %cst_18 = arith.constant dense<0.000000e+00> : vector<128xf32>
    %35 = vector.multi_reduction <add>, %34, %cst_18 [1] : vector<128x128xf32> to vector<128xf32>
    %36 = vector.shape_cast %35 : vector<128xf32> to vector<128x1xf32>
    %cst_19 = arith.constant 1.280000e+02 : f32
    %37 = vector.broadcast %cst_19 : f32 to vector<128x1xf32>
    %38 = arith.divf %36, %37 : vector<128x1xf32>
    %39 = vector.broadcast %38 : vector<128x1xf32> to vector<128x128xf32>
    %40 = arith.subf %34, %39 : vector<128x128xf32>
    %41 = arith.mulf %40, %40 : vector<128x128xf32>
    %cst_20 = arith.constant dense<0.000000e+00> : vector<128xf32>
    %42 = vector.multi_reduction <add>, %41, %cst_20 [1] : vector<128x128xf32> to vector<128xf32>
    %43 = vector.shape_cast %42 : vector<128xf32> to vector<128x1xf32>
    %cst_21 = arith.constant 1.280000e+02 : f32
    %44 = vector.broadcast %cst_21 : f32 to vector<128x1xf32>
    %45 = arith.divf %43, %44 : vector<128x1xf32>
    %cst_22 = arith.constant 9.99999996E-13 : f32
    %46 = vector.broadcast %cst_22 : f32 to vector<128x1xf32>
    %47 = arith.addf %45, %46 : vector<128x1xf32>
    %48 = math.rsqrt %47 : vector<128x1xf32>
    %49 = vector.broadcast %48 : vector<128x1xf32> to vector<128x128xf32>
    %50 = arith.mulf %40, %49 : vector<128x128xf32>
    %c0_23 = arith.constant 0 : index
    %c0_24 = arith.constant 0 : index
    %51 = vector.load %arg8[%c0_23, %c0_24] : memref<1x128xf32, #tpu.memory_space<vmem>>, vector<1x128xf32>
    %52 = vector.broadcast %51 : vector<1x128xf32> to vector<128x128xf32>
    %53 = arith.mulf %50, %52 : vector<128x128xf32>
    %c0_25 = arith.constant 0 : index
    %c0_26 = arith.constant 0 : index
    %54 = vector.load %arg9[%c0_25, %c0_26] : memref<1x128xf32, #tpu.memory_space<vmem>>, vector<1x128xf32>
    %55 = vector.broadcast %54 : vector<1x128xf32> to vector<128x128xf32>
    %56 = arith.addf %53, %55 : vector<128x128xf32>
    %c0_27 = arith.constant 0 : index
    %c0_28 = arith.constant 0 : index
    %57 = vector.load %arg10[%c0_27, %c0_28] : memref<128x128xf32, #tpu.memory_space<vmem>>, vector<128x128xf32>
    tpu.vector_store %arg10[%c0_27, %c0_28], %56 {strides = array<i32>} : memref<128x128xf32, #tpu.memory_space<vmem>>, vector<128x128xf32>,
    return
  }
  func.func @transform_0(%arg0: i32) -> (i32, i32) {
    %c0_i32 = arith.constant 0 : i32
    %c0_i32_0 = arith.constant 0 : i32
    return %arg0, %c0_i32 : i32, i32
  }
  func.func @transform_1(%arg0: i32) -> (i32, i32) {
    %c0_i32 = arith.constant 0 : i32
    %c0_i32_0 = arith.constant 0 : i32
    return %arg0, %c0_i32 : i32, i32
  }
  func.func @transform_2(%arg0: i32) -> (i32, i32) {
    %c0_i32 = arith.constant 0 : i32
    %c0_i32_0 = arith.constant 0 : i32
    return %arg0, %c0_i32 : i32, i32
  }
  func.func @transform_3(%arg0: i32) -> (i32, i32) {
    %c0_i32 = arith.constant 0 : i32
    %c0_i32_0 = arith.constant 0 : i32
    return %arg0, %c0_i32 : i32, i32
  }
  func.func @transform_4(%arg0: i32) -> (i32, i32) {
    %c0_i32 = arith.constant 0 : i32
    %c0_i32_0 = arith.constant 0 : i32
    %c0_i32_1 = arith.constant 0 : i32
    return %c0_i32, %c0_i32_0 : i32, i32
  }
  func.func @transform_5(%arg0: i32) -> (i32, i32) {
    %c0_i32 = arith.constant 0 : i32
    %c0_i32_0 = arith.constant 0 : i32
    %c0_i32_1 = arith.constant 0 : i32
    return %c0_i32, %c0_i32_0 : i32, i32
  }
  func.func @transform_6(%arg0: i32) -> (i32, i32) {
    %c0_i32 = arith.constant 0 : i32
    %c0_i32_0 = arith.constant 0 : i32
    %c0_i32_1 = arith.constant 0 : i32
    return %c0_i32, %c0_i32_0 : i32, i32
  }
  func.func @transform_7(%arg0: i32) -> (i32, i32) {
    %c0_i32 = arith.constant 0 : i32
    %c0_i32_0 = arith.constant 0 : i32
    %c0_i32_1 = arith.constant 0 : i32
    return %c0_i32, %c0_i32_0 : i32, i32
  }
  func.func @transform_8(%arg0: i32) -> (i32, i32) {
    %c0_i32 = arith.constant 0 : i32
    %c0_i32_0 = arith.constant 0 : i32
    %c0_i32_1 = arith.constant 0 : i32
    return %c0_i32, %c0_i32_0 : i32, i32
  }
  func.func @transform_9(%arg0: i32) -> (i32, i32) {
    %c0_i32 = arith.constant 0 : i32
    %c0_i32_0 = arith.constant 0 : i32
    return %arg0, %c0_i32 : i32, i32
  }
}

</mosaic_0001>

<llo_original>
// kernel: tpu_custom_call.1
$region0: #{tpu_custom_call.1}
  #allocation0 [shape = 'u32[]', space=smem, size = 0x4, offset = 0x4, fixed_abs, tag = 'smem constant byte address 0x4 - core index']
  #allocation1 [shape = 'u32[144,128]{1,0:T(1,128)}', space=vmem, size = 0x12000, scoped, tag = 'internal scratch']
  %s0 = inlined_call_operand.vmem [shape: s32[256,1], index: 0, kind: input, shape index: {}]
  %s1 = inlined_call_operand.vmem [shape: s32[256,1], index: 1, kind: input, shape index: {}]
  %s2 = inlined_call_operand.vmem [shape: s32[256,1], index: 2, kind: input, shape index: {}]
  %s3 = inlined_call_operand.vmem [shape: s32[256,1], index: 3, kind: input, shape index: {}]
  %s4 = inlined_call_operand.vmem [shape: f32[64,128], index: 4, kind: input, shape index: {}]
  %s5 = inlined_call_operand.vmem [shape: f32[32,128], index: 5, kind: input, shape index: {}]
  %s6 = inlined_call_operand.vmem [shape: f32[160,128], index: 6, kind: input, shape index: {}]
  %s7 = inlined_call_operand.vmem [shape: f32[1,128], index: 7, kind: input, shape index: {}]
  %s8 = inlined_call_operand.vmem [shape: f32[1,128], index: 8, kind: input, shape index: {}]
  %s9 = inlined_call_operand.hbm [shape: f32[256,128], index: 9, kind: output, shape index: {}]
  %s10 = sld [smem:[#allocation0]]
  $region69: #{tpu_custom_call.1} parent=0
    _
  %s12 = ssub.s32 1, %s10
  %s13 = scalar_select 0, %s12, %s10
  $region1: #{tpu_custom_call.1} parent=0
    #allocation2 [shape = 'u8[131072]{0}', space=vmem, size = 0x20000, scoped, tag = 'output window, operand 0']
    #allocation3 [shape = 's32[2]{0}', space=sflag, size = 0x8, scoped, tag = 'scoped memory for tpu_custom_call.1']
    %14 = vsyncpa [#allocation3], 0
    %s15 = scalar_lea.sflag [#allocation3], 1
    %16 = vsyncpa %s15, 0
    loop: start=0, step=1, limit=4
    $region2: #{tpu_custom_call.1} parent=1 // loop_pre_header
      _
    $region3: #{tpu_custom_call.1} parent=1 // loop_header
      %s18 = sphi 0, %s22
      %p19 = scmp.ge.s32.totalorder %s18, 4
      %s28 = sphi 0, %s30
      %s31 = sphi 0, %s28
      %s32 = sphi 0, %s31
      %s48 = sphi 0, %s32
      %s54 = sphi 0, %s56
      %s57 = sphi 0, %s54
      %s58 = sphi 0, %s57
      %s74 = sphi 0, %s58
      %s80 = sphi 0, %s82
      %s83 = sphi 0, %s80
      %s84 = sphi 0, %s83
      %s100 = sphi 0, %s84
      %s106 = sphi 0, %s108
      %s109 = sphi 0, %s106
      %s110 = sphi 0, %s109
      %s126 = sphi 0, %s110
      %s130 = sphi 0, %s130
      %s132 = sphi 0, %s130
      %s133 = sphi 0, %s132
      %s147 = sphi 0, %s133
      %s151 = sphi 0, %s151
      %s153 = sphi 0, %s151
      %s154 = sphi 0, %s153
      %s168 = sphi 0, %s154
      %s172 = sphi 0, %s172
      %s174 = sphi 0, %s172
      %s175 = sphi 0, %s174
      %s189 = sphi 0, %s175
      %s193 = sphi 0, %s193
      %s195 = sphi 0, %s193
      %s196 = sphi 0, %s195
      %s210 = sphi 0, %s196
      %s214 = sphi 0, %s214
      %s216 = sphi 0, %s214
      %s217 = sphi 0, %s216
      %s231 = sphi 0, %s217
      %s237 = sphi 0, %s239
      %s240 = sphi 0, %s237
      %s241 = sphi 0, %s240
      %s257 = sphi 0, %s241
    $region4: #{tpu_custom_call.1} parent=1 // loop_header_branch
      %21 = sbr.rel (%p19) target = $region8
    $region5: #{tpu_custom_call.1} parent=1 // loop_body
      %s23 = ssub.s32 %s18, 1
      %s24 = ssub.s32 %s18, 2
      %s25 = sadd.s32 %s18, 1
      %s26 = ssub.s32 %s18, %s25
      %p27 = scmp.eq.s32.totalorder %s26, 0
      %s29 = sadd.s32 %s28, 1
      %s30 = scalar_select %p27, %s28, %s29
      %p33 = pneg %p27
      %p34 = scmp.eq.s32.totalorder %s18, 1
      %p35 = por %p33, %p34
      %p36 = scmp.ne.s32.totalorder %s28, %s31
      %p37 = scmp.eq.s32.totalorder %s18, 0
      %p38 = por %p36, %p37
      %p39 = scmp.ne.s32.totalorder %s28, %s31
      %p40 = scmp.eq.s32.totalorder %s23, 1
      %p41 = por %p39, %p40
      %p42 = scmp.ne.s32.totalorder %s31, %s32
      %p43 = scmp.eq.s32.totalorder %s23, 0
      %p44 = por %p42, %p43
      %p45 = scmp.ne.s32.totalorder %s31, %s32
      %p46 = scmp.eq.s32.totalorder %s24, 1
      %p47 = por %p45, %p46
      %p49 = scmp.ne.s32.totalorder %s32, %s48
      %p50 = scmp.eq.s32.totalorder %s24, 0
      %p51 = por %p49, %p50
      %s52 = ssub.s32 %s18, %s25
      %p53 = scmp.eq.s32.totalorder %s52, 0
      %s55 = sadd.s32 %s54, 1
      %s56 = scalar_select %p53, %s54, %s55
      %p59 = pneg %p53
      %p60 = scmp.eq.s32.totalorder %s18, 1
      %p61 = por %p59, %p60
      %p62 = scmp.ne.s32.totalorder %s54, %s57
      %p63 = scmp.eq.s32.totalorder %s18, 0
      %p64 = por %p62, %p63
      %p65 = scmp.ne.s32.totalorder %s54, %s57
      %p66 = scmp.eq.s32.totalorder %s23, 1
      %p67 = por %p65, %p66
      %p68 = scmp.ne.s32.totalorder %s57, %s58
      %p69 = scmp.eq.s32.totalorder %s23, 0
      %p70 = por %p68, %p69
      %p71 = scmp.ne.s32.totalorder %s57, %s58
      %p72 = scmp.eq.s32.totalorder %s24, 1
      %p73 = por %p71, %p72
      %p75 = scmp.ne.s32.totalorder %s58, %s74
      %p76 = scmp.eq.s32.totalorder %s24, 0
      %p77 = por %p75, %p76
      %s78 = ssub.s32 %s18, %s25
      %p79 = scmp.eq.s32.totalorder %s78, 0
      %s81 = sadd.s32 %s80, 1
      %s82 = scalar_select %p79, %s80, %s81
      %p85 = pneg %p79
      %p86 = scmp.eq.s32.totalorder %s18, 1
      %p87 = por %p85, %p86
      %p88 = scmp.ne.s32.totalorder %s80, %s83
      %p89 = scmp.eq.s32.totalorder %s18, 0
      %p90 = por %p88, %p89
      %p91 = scmp.ne.s32.totalorder %s80, %s83
      %p92 = scmp.eq.s32.totalorder %s23, 1
      %p93 = por %p91, %p92
      %p94 = scmp.ne.s32.totalorder %s83, %s84
      %p95 = scmp.eq.s32.totalorder %s23, 0
      %p96 = por %p94, %p95
      %p97 = scmp.ne.s32.totalorder %s83, %s84
      %p98 = scmp.eq.s32.totalorder %s24, 1
      %p99 = por %p97, %p98
      %p101 = scmp.ne.s32.totalorder %s84, %s100
      %p102 = scmp.eq.s32.totalorder %s24, 0
      %p103 = por %p101, %p102
      %s104 = ssub.s32 %s18, %s25
      %p105 = scmp.eq.s32.totalorder %s104, 0
      %s107 = sadd.s32 %s106, 1
      %s108 = scalar_select %p105, %s106, %s107
      %p111 = pneg %p105
      %p112 = scmp.eq.s32.totalorder %s18, 1
      %p113 = por %p111, %p112
      %p114 = scmp.ne.s32.totalorder %s106, %s109
      %p115 = scmp.eq.s32.totalorder %s18, 0
      %p116 = por %p114, %p115
      %p117 = scmp.ne.s32.totalorder %s106, %s109
      %p118 = scmp.eq.s32.totalorder %s23, 1
      %p119 = por %p117, %p118
      %p120 = scmp.ne.s32.totalorder %s109, %s110
      %p121 = scmp.eq.s32.totalorder %s23, 0
      %p122 = por %p120, %p121
      %p123 = scmp.ne.s32.totalorder %s109, %s110
      %p124 = scmp.eq.s32.totalorder %s24, 1
      %p125 = por %p123, %p124
      %p127 = scmp.ne.s32.totalorder %s110, %s126
      %p128 = scmp.eq.s32.totalorder %s24, 0
      %p129 = por %p127, %p128
      %s131 = sadd.s32 %s130, 1
      %p134 = scmp.eq.s32.totalorder %s18, 1
      %p135 = scmp.ne.s32.totalorder %s130, %s132
      %p136 = scmp.eq.s32.totalorder %s18, 0
      %p137 = por %p135, %p136
      %p138 = scmp.ne.s32.totalorder %s130, %s132
      %p139 = scmp.eq.s32.totalorder %s23, 1
      %p140 = por %p138, %p139
      %p141 = scmp.ne.s32.totalorder %s132, %s133
      %p142 = scmp.eq.s32.totalorder %s23, 0
      %p143 = por %p141, %p142
      %p144 = scmp.ne.s32.totalorder %s132, %s133
      %p145 = scmp.eq.s32.totalorder %s24, 1
      %p146 = por %p144, %p145
      %p148 = scmp.ne.s32.totalorder %s133, %s147
      %p149 = scmp.eq.s32.totalorder %s24, 0
      %p150 = por %p148, %p149
      %s152 = sadd.s32 %s151, 1
      %p155 = scmp.eq.s32.totalorder %s18, 1
      %p156 = scmp.ne.s32.totalorder %s151, %s153
      %p157 = scmp.eq.s32.totalorder %s18, 0
      %p158 = por %p156, %p157
      %p159 = scmp.ne.s32.totalorder %s151, %s153
      %p160 = scmp.eq.s32.totalorder %s23, 1
      %p161 = por %p159, %p160
      %p162 = scmp.ne.s32.totalorder %s153, %s154
      %p163 = scmp.eq.s32.totalorder %s23, 0
      %p164 = por %p162, %p163
      %p165 = scmp.ne.s32.totalorder %s153, %s154
      %p166 = scmp.eq.s32.totalorder %s24, 1
      %p167 = por %p165, %p166
      %p169 = scmp.ne.s32.totalorder %s154, %s168
      %p170 = scmp.eq.s32.totalorder %s24, 0
      %p171 = por %p169, %p170
      %s173 = sadd.s32 %s172, 1
      %p176 = scmp.eq.s32.totalorder %s18, 1
      %p177 = scmp.ne.s32.totalorder %s172, %s174
      %p178 = scmp.eq.s32.totalorder %s18, 0
      %p179 = por %p177, %p178
      %p180 = scmp.ne.s32.totalorder %s172, %s174
      %p181 = scmp.eq.s32.totalorder %s23, 1
      %p182 = por %p180, %p181
      %p183 = scmp.ne.s32.totalorder %s174, %s175
      %p184 = scmp.eq.s32.totalorder %s23, 0
      %p185 = por %p183, %p184
      %p186 = scmp.ne.s32.totalorder %s174, %s175
      %p187 = scmp.eq.s32.totalorder %s24, 1
      %p188 = por %p186, %p187
      %p190 = scmp.ne.s32.totalorder %s175, %s189
      %p191 = scmp.eq.s32.totalorder %s24, 0
      %p192 = por %p190, %p191
      %s194 = sadd.s32 %s193, 1
      %p197 = scmp.eq.s32.totalorder %s18, 1
      %p198 = scmp.ne.s32.totalorder %s193, %s195
      %p199 = scmp.eq.s32.totalorder %s18, 0
      %p200 = por %p198, %p199
      %p201 = scmp.ne.s32.totalorder %s193, %s195
      %p202 = scmp.eq.s32.totalorder %s23, 1
      %p203 = por %p201, %p202
      %p204 = scmp.ne.s32.totalorder %s195, %s196
      %p205 = scmp.eq.s32.totalorder %s23, 0
      %p206 = por %p204, %p205
      %p207 = scmp.ne.s32.totalorder %s195, %s196
      %p208 = scmp.eq.s32.totalorder %s24, 1
      %p209 = por %p207, %p208
      %p211 = scmp.ne.s32.totalorder %s196, %s210
      %p212 = scmp.eq.s32.totalorder %s24, 0
      %p213 = por %p211, %p212
      %s215 = sadd.s32 %s214, 1
      %p218 = scmp.eq.s32.totalorder %s18, 1
      %p219 = scmp.ne.s32.totalorder %s214, %s216
      %p220 = scmp.eq.s32.totalorder %s18, 0
      %p221 = por %p219, %p220
      %p222 = scmp.ne.s32.totalorder %s214, %s216
      %p223 = scmp.eq.s32.totalorder %s23, 1
      %p224 = por %p222, %p223
      %p225 = scmp.ne.s32.totalorder %s216, %s217
      %p226 = scmp.eq.s32.totalorder %s23, 0
      %p227 = por %p225, %p226
      %p228 = scmp.ne.s32.totalorder %s216, %s217
      %p229 = scmp.eq.s32.totalorder %s24, 1
      %p230 = por %p228, %p229
      %p232 = scmp.ne.s32.totalorder %s217, %s231
      %p233 = scmp.eq.s32.totalorder %s24, 0
      %p234 = por %p232, %p233
      %s235 = ssub.s32 %s18, %s25
      %p236 = scmp.eq.s32.totalorder %s235, 0
      %s238 = sadd.s32 %s237, 1
      %s239 = scalar_select %p236, %s237, %s238
      %p242 = pneg %p236
      %p243 = scmp.eq.s32.totalorder %s18, 1
      %p244 = por %p242, %p243
      %p245 = scmp.ne.s32.totalorder %s237, %s240
      %p246 = scmp.eq.s32.totalorder %s18, 0
      %p247 = por %p245, %p246
      %p248 = scmp.ne.s32.totalorder %s237, %s240
      %p249 = scmp.eq.s32.totalorder %s23, 1
      %p250 = por %p248, %p249
      %p251 = scmp.ne.s32.totalorder %s240, %s241
      %p252 = scmp.eq.s32.totalorder %s23, 0
      %p253 = por %p251, %p252
      %p254 = scmp.ne.s32.totalorder %s240, %s241
      %p255 = scmp.eq.s32.totalorder %s24, 1
      %p256 = por %p254, %p255
      %p258 = scmp.ne.s32.totalorder %s241, %s257
      %p259 = scmp.eq.s32.totalorder %s24, 0
      %p260 = por %p258, %p259
      %p261 = scmp.le.s32.totalorder 1, %s18
      %p262 = scmp.lt.s32.totalorder %s18, 3
      %p263 = pnand %p261, %p262
      %p264 = pneg %p263
      // Predicated region
      $region9: #{tpu_custom_call.1} parent=5 // pred_check
        _
      $region10: #{tpu_custom_call.1} parent=5 // pred_check_branch
        %266 = sbr.rel (%p263) target = $region12
      $region11: #{tpu_custom_call.1} parent=5 // pred_region
        %s267 = ssub.s32 %s18, 1
        // Predicated region
        $region13: #{tpu_custom_call.1} parent=11 // pred_check
          %p268 = pneg %p143
        $region14: #{tpu_custom_call.1} parent=11 // pred_check_branch
          %270 = sbr.rel (%p268) target = $region16
        $region15: #{tpu_custom_call.1} parent=11 // pred_region
          _
        $region16: #{tpu_custom_call.1} parent=11 // pred_fallthru
          _
        // Predicated region
        $region17: #{tpu_custom_call.1} parent=11 // pred_check
          %p271 = pneg %p164
        $region18: #{tpu_custom_call.1} parent=11 // pred_check_branch
          %273 = sbr.rel (%p271) target = $region20
        $region19: #{tpu_custom_call.1} parent=11 // pred_region
          _
        $region20: #{tpu_custom_call.1} parent=11 // pred_fallthru
          _
        // Predicated region
        $region21: #{tpu_custom_call.1} parent=11 // pred_check
          %p274 = pneg %p185
        $region22: #{tpu_custom_call.1} parent=11 // pred_check_branch
          %276 = sbr.rel (%p274) target = $region24
        $region23: #{tpu_custom_call.1} parent=11 // pred_region
          _
        $region24: #{tpu_custom_call.1} parent=11 // pred_fallthru
          _
        // Predicated region
        $region25: #{tpu_custom_call.1} parent=11 // pred_check
          %p277 = pneg %p206
        $region26: #{tpu_custom_call.1} parent=11 // pred_check_branch
          %279 = sbr.rel (%p277) target = $region28
        $region27: #{tpu_custom_call.1} parent=11 // pred_region
          _
        $region28: #{tpu_custom_call.1} parent=11 // pred_fallthru
          _
        // Predicated region
        $region29: #{tpu_custom_call.1} parent=11 // pred_check
          %p280 = pneg %p227
        $region30: #{tpu_custom_call.1} parent=11 // pred_check_branch
          %282 = sbr.rel (%p280) target = $region32
        $region31: #{tpu_custom_call.1} parent=11 // pred_region
          _
        $region32: #{tpu_custom_call.1} parent=11 // pred_fallthru
          _
      $region12: #{tpu_custom_call.1} parent=5 // pred_fallthru
        _
      %p283 = scmp.lt.s32.totalorder %s18, 2
      // Predicated region
      $region33: #{tpu_custom_call.1} parent=5 // pred_check
        %p284 = pneg %p283
      $region34: #{tpu_custom_call.1} parent=5 // pred_check_branch
        %286 = sbr.rel (%p284) target = $region36
      $region35: #{tpu_custom_call.1} parent=5 // pred_region
        // Predicated region
        $region37: #{tpu_custom_call.1} parent=35 // pred_check
          %p287 = pneg %p38
        $region38: #{tpu_custom_call.1} parent=35 // pred_check_branch
          %289 = sbr.rel (%p287) target = $region40
        $region39: #{tpu_custom_call.1} parent=35 // pred_region
          %s290 = smul.u32 16, %s18
          %p291 = scmp.lt.s32.totalorder %s290, 31
          %s292 = scalar_select %p291, %s290, 31
          %s293 = smul.addr %s292, 8
          %s294 = scalar_lea.vmem %s0, %s293
          %s295 = smul.u32 16, %s18
        $region40: #{tpu_custom_call.1} parent=35 // pred_fallthru
          _
        // Predicated region
        $region41: #{tpu_custom_call.1} parent=35 // pred_check
          %p296 = pneg %p64
        $region42: #{tpu_custom_call.1} parent=35 // pred_check_branch
          %298 = sbr.rel (%p296) target = $region44
        $region43: #{tpu_custom_call.1} parent=35 // pred_region
          %s299 = smul.u32 16, %s18
          %p300 = scmp.lt.s32.totalorder %s299, 31
          %s301 = scalar_select %p300, %s299, 31
          %s302 = smul.addr %s301, 8
          %s303 = scalar_lea.vmem %s1, %s302
          %s304 = smul.u32 16, %s18
        $region44: #{tpu_custom_call.1} parent=35 // pred_fallthru
          _
        // Predicated region
        $region45: #{tpu_custom_call.1} parent=35 // pred_check
          %p305 = pneg %p90
        $region46: #{tpu_custom_call.1} parent=35 // pred_check_branch
          %307 = sbr.rel (%p305) target = $region48
        $region47: #{tpu_custom_call.1} parent=35 // pred_region
          %s308 = smul.u32 16, %s18
          %p309 = scmp.lt.s32.totalorder %s308, 31
          %s310 = scalar_select %p309, %s308, 31
          %s311 = smul.addr %s310, 8
          %s312 = scalar_lea.vmem %s2, %s311
          %s313 = smul.u32 16, %s18
        $region48: #{tpu_custom_call.1} parent=35 // pred_fallthru
          _
        // Predicated region
        $region49: #{tpu_custom_call.1} parent=35 // pred_check
          %p314 = pneg %p116
        $region50: #{tpu_custom_call.1} parent=35 // pred_check_branch
          %316 = sbr.rel (%p314) target = $region52
        $region51: #{tpu_custom_call.1} parent=35 // pred_region
          %s317 = smul.u32 16, %s18
          %p318 = scmp.lt.s32.totalorder %s317, 31
          %s319 = scalar_select %p318, %s317, 31
          %s320 = smul.addr %s319, 8
          %s321 = scalar_lea.vmem %s3, %s320
          %s322 = smul.u32 16, %s18
        $region52: #{tpu_custom_call.1} parent=35 // pred_fallthru
          _
      $region36: #{tpu_custom_call.1} parent=5 // pred_fallthru
        _
      %p323 = scmp.le.s32.totalorder 1, %s18
      %p324 = scmp.lt.s32.totalorder %s18, 3
      %p325 = pnand %p323, %p324
      %p326 = pneg %p325
      // Predicated region
      $region53: #{tpu_custom_call.1} parent=5 // pred_check
        _
      $region54: #{tpu_custom_call.1} parent=5 // pred_check_branch
        %328 = sbr.rel (%p325) target = $region56
      $region55: #{tpu_custom_call.1} parent=5 // pred_region
        %s329 = ssub.s32 %s18, 1
        %s330 = smul.u32 16, %s23
        %p331 = scmp.lt.s32.totalorder %s330, 31
        %s332 = scalar_select %p331, %s330, 31
        %s333 = smul.addr %s332, 8
        %s334 = scalar_lea.vmem %s0, %s333
        %p335 = pneg %p44
        %p336 = pneg %p41
        %s337 = smul.u32 16, %s23
        %p338 = scmp.lt.s32.totalorder %s337, 31
        %s339 = scalar_select %p338, %s337, 31
        %s340 = smul.addr %s339, 8
        %s341 = scalar_lea.vmem %s1, %s340
        %p342 = pneg %p70
        %p343 = pneg %p67
        %s344 = smul.u32 16, %s23
        %p345 = scmp.lt.s32.totalorder %s344, 31
        %s346 = scalar_select %p345, %s344, 31
        %s347 = smul.addr %s346, 8
        %s348 = scalar_lea.vmem %s2, %s347
        %p349 = pneg %p96
        %p350 = pneg %p93
        %s351 = smul.u32 16, %s23
        %p352 = scmp.lt.s32.totalorder %s351, 31
        %s353 = scalar_select %p352, %s351, 31
        %s354 = smul.addr %s353, 8
        %s355 = scalar_lea.vmem %s3, %s354
        %p356 = pneg %p122
        %p357 = pneg %p119
        %p358 = pneg %p143
        %p359 = pneg %p140
        %p360 = pneg %p164
        %p361 = pneg %p161
        %p362 = pneg %p185
        %p363 = pneg %p182
        %p364 = pneg %p206
        %p365 = pneg %p203
        %p366 = pneg %p227
        %p367 = pneg %p224
        %p368 = pneg %p253
        %p369 = pneg %p250
        %s370 = sand.u32 %s240, 1
        %s371 = scalar_lea.sflag [#allocation3], %s370
        %s372 = sand.u32 %s240, 1
        %s373 = smul.addr %s372, 128
        %s374 = scalar_lea.vmem [#allocation2], %s373
        %s375 = smul.u32 16, %s23
        %p376 = scmp.lt.s32.totalorder %s375, 31
        %s377 = scalar_select %p376, %s375, 31
        %s378 = smul.addr %s377, 8
        %s379 = scalar_lea.vmem %s0, %s378
        %s380 = smul.u32 16, %s23
        %s381 = smul.u32 16, %s23
        %p382 = scmp.lt.s32.totalorder %s381, 31
        %s383 = scalar_select %p382, %s381, 31
        %s384 = smul.addr %s383, 8
        %s385 = scalar_lea.vmem %s1, %s384
        %s386 = smul.u32 16, %s23
        %s387 = smul.u32 16, %s23
        %p388 = scmp.lt.s32.totalorder %s387, 31
        %s389 = scalar_select %p388, %s387, 31
        %s390 = smul.addr %s389, 8
        %s391 = scalar_lea.vmem %s2, %s390
        %s392 = smul.u32 16, %s23
        %s393 = smul.u32 16, %s23
        %p394 = scmp.lt.s32.totalorder %s393, 31
        %s395 = scalar_select %p394, %s393, 31
        %s396 = smul.addr %s395, 8
        %s397 = scalar_lea.vmem %s3, %s396
        %s398 = smul.u32 16, %s23
        %s399 = smul.u32 16, %s23
        %v400 = vlaneseq
        %v401 = vand.u32 %v400, 127
        %v402 = vld [vmem:[%s379] sm:$0xff]
        %v403 = vld [vmem:[%s379 + $0x8] sm:$0xff]
        %v404 = vld [vmem:[%s379 + $0x10] sm:$0xff]
        %v405 = vld [vmem:[%s379 + $0x18] sm:$0xff]
        %v406 = vld [vmem:[%s379 + $0x20] sm:$0xff]
        %v407 = vld [vmem:[%s379 + $0x28] sm:$0xff]
        %v408 = vld [vmem:[%s379 + $0x30] sm:$0xff]
        %v409 = vld [vmem:[%s379 + $0x38] sm:$0xff]
        %v410 = vld [vmem:[%s379 + $0x40] sm:$0xff]
        %v411 = vld [vmem:[%s379 + $0x48] sm:$0xff]
        %v412 = vld [vmem:[%s379 + $0x50] sm:$0xff]
        %v413 = vld [vmem:[%s379 + $0x58] sm:$0xff]
        %v414 = vld [vmem:[%s379 + $0x60] sm:$0xff]
        %v415 = vld [vmem:[%s379 + $0x68] sm:$0xff]
        %v416 = vld [vmem:[%s379 + $0x70] sm:$0xff]
        %v417 = vld [vmem:[%s379 + $0x78] sm:$0xff]
        %418 = vset.pattern.permute.xlu0 0
        %419 = vperm.xlu0 %418, %v402
        %v420 = vpop.permute.xlu0 %419
        %421 = vset.pattern.permute.xlu0 0
        %422 = vperm.xlu0 %421, %v403
        %v423 = vpop.permute.xlu0 %422
        %424 = vset.pattern.permute.xlu0 0
        %425 = vperm.xlu0 %424, %v404
        %v426 = vpop.permute.xlu0 %425
        %427 = vset.pattern.permute.xlu0 0
        %428 = vperm.xlu0 %427, %v405
        %v429 = vpop.permute.xlu0 %428
        %430 = vset.pattern.permute.xlu0 0
        %431 = vperm.xlu0 %430, %v406
        %v432 = vpop.permute.xlu0 %431
        %433 = vset.pattern.permute.xlu0 0
        %434 = vperm.xlu0 %433, %v407
        %v435 = vpop.permute.xlu0 %434
        %436 = vset.pattern.permute.xlu0 0
        %437 = vperm.xlu0 %436, %v408
        %v438 = vpop.permute.xlu0 %437
        %439 = vset.pattern.permute.xlu0 0
        %440 = vperm.xlu0 %439, %v409
        %v441 = vpop.permute.xlu0 %440
        %442 = vset.pattern.permute.xlu0 0
        %443 = vperm.xlu0 %442, %v410
        %v444 = vpop.permute.xlu0 %443
        %445 = vset.pattern.permute.xlu0 0
        %446 = vperm.xlu0 %445, %v411
        %v447 = vpop.permute.xlu0 %446
        %448 = vset.pattern.permute.xlu0 0
        %449 = vperm.xlu0 %448, %v412
        %v450 = vpop.permute.xlu0 %449
        %451 = vset.pattern.permute.xlu0 0
        %452 = vperm.xlu0 %451, %v413
        %v453 = vpop.permute.xlu0 %452
        %454 = vset.pattern.permute.xlu0 0
        %455 = vperm.xlu0 %454, %v414
        %v456 = vpop.permute.xlu0 %455
        %457 = vset.pattern.permute.xlu0 0
        %458 = vperm.xlu0 %457, %v415
        %v459 = vpop.permute.xlu0 %458
        %460 = vset.pattern.permute.xlu0 0
        %461 = vperm.xlu0 %460, %v416
        %v462 = vpop.permute.xlu0 %461
        %463 = vset.pattern.permute.xlu0 0
        %464 = vperm.xlu0 %463, %v417
        %v465 = vpop.permute.xlu0 %464
        %vm466 = vcmp.eq.s32.totalorder %v401, %v420
        %vm467 = vcmp.eq.s32.totalorder %v401, %v423
        %vm468 = vcmp.eq.s32.totalorder %v401, %v426
        %vm469 = vcmp.eq.s32.totalorder %v401, %v429
        %vm470 = vcmp.eq.s32.totalorder %v401, %v432
        %vm471 = vcmp.eq.s32.totalorder %v401, %v435
        %vm472 = vcmp.eq.s32.totalorder %v401, %v438
        %vm473 = vcmp.eq.s32.totalorder %v401, %v441
        %vm474 = vcmp.eq.s32.totalorder %v401, %v444
        %vm475 = vcmp.eq.s32.totalorder %v401, %v447
        %vm476 = vcmp.eq.s32.totalorder %v401, %v450
        %vm477 = vcmp.eq.s32.totalorder %v401, %v453
        %vm478 = vcmp.eq.s32.totalorder %v401, %v456
        %vm479 = vcmp.eq.s32.totalorder %v401, %v459
        %vm480 = vcmp.eq.s32.totalorder %v401, %v462
        %vm481 = vcmp.eq.s32.totalorder %v401, %v465
        %v482 = vsel %vm466, 1, 0
        %v483 = vsel %vm467, 1, 0
        %v484 = vsel %vm468, 1, 0
        %v485 = vsel %vm469, 1, 0
        %v486 = vsel %vm470, 1, 0
        %v487 = vsel %vm471, 1, 0
        %v488 = vsel %vm472, 1, 0
        %v489 = vsel %vm473, 1, 0
        %v490 = vsel %vm474, 1, 0
        %v491 = vsel %vm475, 1, 0
        %v492 = vsel %vm476, 1, 0
        %v493 = vsel %vm477, 1, 0
        %v494 = vsel %vm478, 1, 0
        %v495 = vsel %vm479, 1, 0
        %v496 = vsel %vm480, 1, 0
        %v497 = vsel %vm481, 1, 0
        %v498 = vcvt.s32.f32 %v482
        %v499 = vcvt.s32.f32 %v483
        %v500 = vcvt.s32.f32 %v484
        %v501 = vcvt.s32.f32 %v485
        %v502 = vcvt.s32.f32 %v486
        %v503 = vcvt.s32.f32 %v487
        %v504 = vcvt.s32.f32 %v488
        %v505 = vcvt.s32.f32 %v489
        %v506 = vcvt.s32.f32 %v490
        %v507 = vcvt.s32.f32 %v491
        %v508 = vcvt.s32.f32 %v492
        %v509 = vcvt.s32.f32 %v493
        %v510 = vcvt.s32.f32 %v494
        %v511 = vcvt.s32.f32 %v495
        %v512 = vcvt.s32.f32 %v496
        %v513 = vcvt.s32.f32 %v497
        %v514 = vld [vmem:[%s4] sm:$0xff]
        %v515 = vld [vmem:[%s4 + $0x8] sm:$0xff]
        %v516 = vld [vmem:[%s4 + $0x10] sm:$0xff]
        %v517 = vld [vmem:[%s4 + $0x18] sm:$0xff]
        %v518 = vld [vmem:[%s4 + $0x20] sm:$0xff]
        %v519 = vld [vmem:[%s4 + $0x28] sm:$0xff]
        %v520 = vld [vmem:[%s4 + $0x30] sm:$0xff]
        %v521 = vld [vmem:[%s4 + $0x38] sm:$0xff]
        %v522 = vadd.s32 %v401, 128
        %v523 = vld [vmem:[%s391] sm:$0xff]
        %v524 = vld [vmem:[%s391 + $0x8] sm:$0xff]
        %v525 = vld [vmem:[%s391 + $0x10] sm:$0xff]
        %v526 = vld [vmem:[%s391 + $0x18] sm:$0xff]
        %v527 = vld [vmem:[%s391 + $0x20] sm:$0xff]
        %v528 = vld [vmem:[%s391 + $0x28] sm:$0xff]
        %v529 = vld [vmem:[%s391 + $0x30] sm:$0xff]
        %v530 = vld [vmem:[%s391 + $0x38] sm:$0xff]
        %v531 = vld [vmem:[%s391 + $0x40] sm:$0xff]
        %v532 = vld [vmem:[%s391 + $0x48] sm:$0xff]
        %v533 = vld [vmem:[%s391 + $0x50] sm:$0xff]
        %v534 = vld [vmem:[%s391 + $0x58] sm:$0xff]
        %v535 = vld [vmem:[%s391 + $0x60] sm:$0xff]
        %v536 = vld [vmem:[%s391 + $0x68] sm:$0xff]
        %v537 = vld [vmem:[%s391 + $0x70] sm:$0xff]
        %v538 = vld [vmem:[%s391 + $0x78] sm:$0xff]
        %539 = vset.pattern.permute.xlu0 0
        %540 = vperm.xlu0 %539, %v523
        %v541 = vpop.permute.xlu0 %540
        %542 = vset.pattern.permute.xlu0 0
        %543 = vperm.xlu0 %542, %v524
        %v544 = vpop.permute.xlu0 %543
        %545 = vset.pattern.permute.xlu0 0
        %546 = vperm.xlu0 %545, %v525
        %v547 = vpop.permute.xlu0 %546
        %548 = vset.pattern.permute.xlu0 0
        %549 = vperm.xlu0 %548, %v526
        %v550 = vpop.permute.xlu0 %549
        %551 = vset.pattern.permute.xlu0 0
        %552 = vperm.xlu0 %551, %v527
        %v553 = vpop.permute.xlu0 %552
        %554 = vset.pattern.permute.xlu0 0
        %555 = vperm.xlu0 %554, %v528
        %v556 = vpop.permute.xlu0 %555
        %557 = vset.pattern.permute.xlu0 0
        %558 = vperm.xlu0 %557, %v529
        %v559 = vpop.permute.xlu0 %558
        %560 = vset.pattern.permute.xlu0 0
        %561 = vperm.xlu0 %560, %v530
        %v562 = vpop.permute.xlu0 %561
        %563 = vset.pattern.permute.xlu0 0
        %564 = vperm.xlu0 %563, %v531
        %v565 = vpop.permute.xlu0 %564
        %566 = vset.pattern.permute.xlu0 0
        %567 = vperm.xlu0 %566, %v532
        %v568 = vpop.permute.xlu0 %567
        %569 = vset.pattern.permute.xlu0 0
        %570 = vperm.xlu0 %569, %v533
        %v571 = vpop.permute.xlu0 %570
        %572 = vset.pattern.permute.xlu0 0
        %573 = vperm.xlu0 %572, %v534
        %v574 = vpop.permute.xlu0 %573
        %575 = vset.pattern.permute.xlu0 0
        %576 = vperm.xlu0 %575, %v535
        %v577 = vpop.permute.xlu0 %576
        %578 = vset.pattern.permute.xlu0 0
        %579 = vperm.xlu0 %578, %v536
        %v580 = vpop.permute.xlu0 %579
        %581 = vset.pattern.permute.xlu0 0
        %582 = vperm.xlu0 %581, %v537
        %v583 = vpop.permute.xlu0 %582
        %584 = vset.pattern.permute.xlu0 0
        %585 = vperm.xlu0 %584, %v538
        %v586 = vpop.permute.xlu0 %585
        %vm587 = vcmp.eq.s32.totalorder %v401, %v541
        %vm588 = vcmp.eq.s32.totalorder %v522, %v541
        %vm589 = vcmp.eq.s32.totalorder %v401, %v544
        %vm590 = vcmp.eq.s32.totalorder %v522, %v544
        %vm591 = vcmp.eq.s32.totalorder %v401, %v547
        %vm592 = vcmp.eq.s32.totalorder %v522, %v547
        %vm593 = vcmp.eq.s32.totalorder %v401, %v550
        %vm594 = vcmp.eq.s32.totalorder %v522, %v550
        %vm595 = vcmp.eq.s32.totalorder %v401, %v553
        %vm596 = vcmp.eq.s32.totalorder %v522, %v553
        %vm597 = vcmp.eq.s32.totalorder %v401, %v556
        %vm598 = vcmp.eq.s32.totalorder %v522, %v556
        %vm599 = vcmp.eq.s32.totalorder %v401, %v559
        %vm600 = vcmp.eq.s32.totalorder %v522, %v559
        %vm601 = vcmp.eq.s32.totalorder %v401, %v562
        %vm602 = vcmp.eq.s32.totalorder %v522, %v562
        %vm603 = vcmp.eq.s32.totalorder %v401, %v565
        %vm604 = vcmp.eq.s32.totalorder %v522, %v565
        %vm605 = vcmp.eq.s32.totalorder %v401, %v568
        %vm606 = vcmp.eq.s32.totalorder %v522, %v568
        %vm607 = vcmp.eq.s32.totalorder %v401, %v571
        %vm608 = vcmp.eq.s32.totalorder %v522, %v571
        %vm609 = vcmp.eq.s32.totalorder %v401, %v574
        %vm610 = vcmp.eq.s32.totalorder %v522, %v574
        %vm611 = vcmp.eq.s32.totalorder %v401, %v577
        %vm612 = vcmp.eq.s32.totalorder %v522, %v577
        %vm613 = vcmp.eq.s32.totalorder %v401, %v580
        %vm614 = vcmp.eq.s32.totalorder %v522, %v580
        %vm615 = vcmp.eq.s32.totalorder %v401, %v583
        %vm616 = vcmp.eq.s32.totalorder %v522, %v583
        %vm617 = vcmp.eq.s32.totalorder %v401, %v586
        %vm618 = vcmp.eq.s32.totalorder %v522, %v586
        %v619 = vsel %vm587, 1, 0
        %v620 = vsel %vm588, 1, 0
        %v621 = vsel %vm589, 1, 0
        %v622 = vsel %vm590, 1, 0
        %v623 = vsel %vm591, 1, 0
        %v624 = vsel %vm592, 1, 0
        %v625 = vsel %vm593, 1, 0
        %v626 = vsel %vm594, 1, 0
        %v627 = vsel %vm595, 1, 0
        %v628 = vsel %vm596, 1, 0
        %v629 = vsel %vm597, 1, 0
        %v630 = vsel %vm598, 1, 0
        %v631 = vsel %vm599, 1, 0
        %v632 = vsel %vm600, 1, 0
        %v633 = vsel %vm601, 1, 0
        %v634 = vsel %vm602, 1, 0
        %v635 = vsel %vm603, 1, 0
        %v636 = vsel %vm604, 1, 0
        %v637 = vsel %vm605, 1, 0
        %v638 = vsel %vm606, 1, 0
        %v639 = vsel %vm607, 1, 0
        %v640 = vsel %vm608, 1, 0
        %v641 = vsel %vm609, 1, 0
        %v642 = vsel %vm610, 1, 0
        %v643 = vsel %vm611, 1, 0
        %v644 = vsel %vm612, 1, 0
        %v645 = vsel %vm613, 1, 0
        %v646 = vsel %vm614, 1, 0
        %v647 = vsel %vm615, 1, 0
        %v648 = vsel %vm616, 1, 0
        %v649 = vsel %vm617, 1, 0
        %v650 = vsel %vm618, 1, 0
        %v651 = vcvt.s32.f32 %v619
        %v652 = vcvt.s32.f32 %v620
        %v653 = vcvt.s32.f32 %v621
        %v654 = vcvt.s32.f32 %v622
        %v655 = vcvt.s32.f32 %v623
        %v656 = vcvt.s32.f32 %v624
        %v657 = vcvt.s32.f32 %v625
        %v658 = vcvt.s32.f32 %v626
        %v659 = vcvt.s32.f32 %v627
        %v660 = vcvt.s32.f32 %v628
        %v661 = vcvt.s32.f32 %v629
        %v662 = vcvt.s32.f32 %v630
        %v663 = vcvt.s32.f32 %v631
        %v664 = vcvt.s32.f32 %v632
        %v665 = vcvt.s32.f32 %v633
        %v666 = vcvt.s32.f32 %v634
        %v667 = vcvt.s32.f32 %v635
        %v668 = vcvt.s32.f32 %v636
        %v669 = vcvt.s32.f32 %v637
        %v670 = vcvt.s32.f32 %v638
        %v671 = vcvt.s32.f32 %v639
        %v672 = vcvt.s32.f32 %v640
        %v673 = vcvt.s32.f32 %v641
        %v674 = vcvt.s32.f32 %v642
        %v675 = vcvt.s32.f32 %v643
        %v676 = vcvt.s32.f32 %v644
        %v677 = vcvt.s32.f32 %v645
        %v678 = vcvt.s32.f32 %v646
        %v679 = vcvt.s32.f32 %v647
        %v680 = vcvt.s32.f32 %v648
        %v681 = vcvt.s32.f32 %v649
        %v682 = vcvt.s32.f32 %v650
        %v683 = vld [vmem:[%s6] sm:$0xff]
        %v684 = vld [vmem:[%s6 + $0x8] sm:$0xff]
        %v685 = vld [vmem:[%s6 + $0x10] sm:$0xff]
        %v686 = vld [vmem:[%s6 + $0x18] sm:$0xff]
        %v687 = vld [vmem:[%s6 + $0x20] sm:$0xff]
        %v688 = vld [vmem:[%s6 + $0x28] sm:$0xff]
        %v689 = vld [vmem:[%s6 + $0x30] sm:$0xff]
        %v690 = vld [vmem:[%s6 + $0x38] sm:$0xff]
        %v691 = vld [vmem:[%s6 + $0x40] sm:$0xff]
        %v692 = vld [vmem:[%s6 + $0x48] sm:$0xff]
        %v693 = vld [vmem:[%s6 + $0x50] sm:$0xff]
        %v694 = vld [vmem:[%s6 + $0x58] sm:$0xff]
        %v695 = vld [vmem:[%s6 + $0x60] sm:$0xff]
        %v696 = vld [vmem:[%s6 + $0x68] sm:$0xff]
        %v697 = vld [vmem:[%s6 + $0x70] sm:$0xff]
        %v698 = vld [vmem:[%s6 + $0x78] sm:$0xff]
        %v699 = vld [vmem:[%s6 + $0x80] sm:$0xff]
        %v700 = vld [vmem:[%s6 + $0x88] sm:$0xff]
        %v701 = vld [vmem:[%s6 + $0x90] sm:$0xff]
        %v702 = vld [vmem:[%s6 + $0x98] sm:$0xff]
        %vm703 = vcmask 261120
        %v705 = vsel %vm703, %v652, 0
        %v708 = vsel %vm703, %v654, 0
        %v711 = vsel %vm703, %v656, 0
        %v714 = vsel %vm703, %v658, 0
        %v717 = vsel %vm703, %v660, 0
        %v720 = vsel %vm703, %v662, 0
        %v723 = vsel %vm703, %v664, 0
        %v726 = vsel %vm703, %v666, 0
        %v729 = vsel %vm703, %v668, 0
        %v732 = vsel %vm703, %v670, 0
        %v735 = vsel %vm703, %v672, 0
        %v738 = vsel %vm703, %v674, 0
        %v741 = vsel %vm703, %v676, 0
        %v744 = vsel %vm703, %v678, 0
        %v747 = vsel %vm703, %v680, 0
        %v750 = vsel %vm703, %v682, 0
        %752 = vmatprep.subr.mxu0 0.0
        %v753 = vand.u32 %v683, 4294901760
        %754 = vmatpush1.msra.mxu0 %v753
        %755 = vmatprep.subr.mxu0 0.0
        %v756 = vand.u32 %v684, 4294901760
        %757 = vmatpush1.msra.mxu0 %v756
        %758 = vmatprep.subr.mxu0 0.0
        %v759 = vand.u32 %v685, 4294901760
        %760 = vmatpush1.msra.mxu0 %v759
        %761 = vmatprep.subr.mxu0 0.0
        %v762 = vand.u32 %v686, 4294901760
        %763 = vmatpush1.msra.mxu0 %v762
        %764 = vmatprep.subr.mxu0 0.0
        %v765 = vand.u32 %v687, 4294901760
        %766 = vmatpush1.msra.mxu0 %v765
        %767 = vmatprep.subr.mxu0 0.0
        %v768 = vand.u32 %v688, 4294901760
        %769 = vmatpush1.msra.mxu0 %v768
        %770 = vmatprep.subr.mxu0 0.0
        %v771 = vand.u32 %v689, 4294901760
        %772 = vmatpush1.msra.mxu0 %v771
        %773 = vmatprep.subr.mxu0 0.0
        %v774 = vand.u32 %v690, 4294901760
        %775 = vmatpush1.msra.mxu0 %v774
        %776 = vmatprep.subr.mxu0 0.0
        %v777 = vand.u32 %v691, 4294901760
        %778 = vmatpush1.msra.mxu0 %v777
        %779 = vmatprep.subr.mxu0 0.0
        %v780 = vand.u32 %v692, 4294901760
        %781 = vmatpush1.msra.mxu0 %v780
        %782 = vmatprep.subr.mxu0 0.0
        %v783 = vand.u32 %v693, 4294901760
        %784 = vmatpush1.msra.mxu0 %v783
        %785 = vmatprep.subr.mxu0 0.0
        %v786 = vand.u32 %v694, 4294901760
        %787 = vmatpush1.msra.mxu0 %v786
        %788 = vmatprep.subr.mxu0 0.0
        %v789 = vand.u32 %v695, 4294901760
        %790 = vmatpush1.msra.mxu0 %v789
        %791 = vmatprep.subr.mxu0 0.0
        %v792 = vand.u32 %v696, 4294901760
        %793 = vmatpush1.msra.mxu0 %v792
        %794 = vmatprep.subr.mxu0 0.0
        %v795 = vand.u32 %v697, 4294901760
        %796 = vmatpush1.msra.mxu0 %v795
        %797 = vmatprep.subr.mxu0 0.0
        %v798 = vand.u32 %v698, 4294901760
        %799 = vmatpush1.msra.mxu0 %v798
        %800 = vmatprep.subr.mxu0 0.0
        %v801 = vand.u32 %v699, 4294901760
        %802 = vmatpush1.msra.mxu0 %v801
        %803 = vmatprep.subr.mxu0 0.0
        %v804 = vand.u32 %v700, 4294901760
        %805 = vmatpush1.msra.mxu0 %v804
        %806 = vmatprep.subr.mxu0 0.0
        %v807 = vand.u32 %v701, 4294901760
        %808 = vmatpush1.msra.mxu0 %v807
        %809 = vmatprep.subr.mxu0 0.0
        %v810 = vand.u32 %v702, 4294901760
        %811 = vmatpush1.msra.mxu0 %v810
        %812 = vmatprep.subr.mxu0 0.0
        %813 = vmatpush1.msra.mxu0 0.0
        %814 = vmatprep.subr.mxu0 0.0
        %815 = vmatpush1.msra.mxu0 0.0
        %816 = vmatprep.subr.mxu0 0.0
        %817 = vmatpush1.msra.mxu0 0.0
        %818 = vmatprep.subr.mxu0 0.0
        %819 = vmatpush1.msra.mxu0 0.0
        %820 = vmatprep.subr.mxu0 0.0
        %821 = vmatpush1.msra.mxu0 0.0
        %822 = vmatprep.subr.mxu0 0.0
        %823 = vmatpush1.msra.mxu0 0.0
        %824 = vmatprep.subr.mxu0 0.0
        %825 = vmatpush1.msra.mxu0 0.0
        %826 = vmatprep.subr.mxu0 0.0
        %827 = vmatpush1.msra.mxu0 0.0
        %828 = vmatprep.subr.mxu0 0.0
        %829 = vmatpush1.msra.mxu0 0.0
        %830 = vmatprep.subr.mxu0 0.0
        %831 = vmatpush1.msra.mxu0 0.0
        %832 = vmatprep.subr.mxu0 0.0
        %833 = vmatpush1.msra.mxu0 0.0
        %834 = vmatprep.subr.mxu0 0.0
        %835 = vmatpush1.msra.mxu0 0.0
        %v836 = vand.u32 %v705, 4294901760
        %v837 = vsub.f32 %v705, %v836
        %v838 = vand.u32 %v837, 4294901760
        %v839 = vsub.f32 %v837, %v838
        %v840 = vand.u32 %v839, 4294901760
        %841 = vmatprep.mubr.f32.mxu0 %v840
        %v842 = vand.u32 %v651, 4294901760
        %v843 = vsub.f32 %v651, %v842
        %v844 = vand.u32 %v843, 4294901760
        %v845 = vsub.f32 %v843, %v844
        %v846 = vand.u32 %v845, 4294901760
        %847 = vmatmul.mubr.f32.gmra.mrb[0].mxu0 %v846
        %v848 = vpop.f32.mrb[0].mxu0
        %v849 = vadd.f32 0.0, %v848
        %v850 = vpop.f32.mrb[0].mxu0
        %v851 = vand.u32 %v708, 4294901760
        %v852 = vsub.f32 %v708, %v851
        %v853 = vand.u32 %v852, 4294901760
        %v854 = vsub.f32 %v852, %v853
        %v855 = vand.u32 %v854, 4294901760
        %856 = vmatprep.mubr.f32.mxu0 %v855
        %v857 = vand.u32 %v653, 4294901760
        %v858 = vsub.f32 %v653, %v857
        %v859 = vand.u32 %v858, 4294901760
        %v860 = vsub.f32 %v858, %v859
        %v861 = vand.u32 %v860, 4294901760
        %862 = vmatmul.mubr.f32.gmra.mrb[0].mxu0 %v861
        %v863 = vpop.f32.mrb[0].mxu0
        %v864 = vadd.f32 0.0, %v863
        %v865 = vpop.f32.mrb[0].mxu0
        %v866 = vand.u32 %v711, 4294901760
        %v867 = vsub.f32 %v711, %v866
        %v868 = vand.u32 %v867, 4294901760
        %v869 = vsub.f32 %v867, %v868
        %v870 = vand.u32 %v869, 4294901760
        %871 = vmatprep.mubr.f32.mxu0 %v870
        %v872 = vand.u32 %v655, 4294901760
        %v873 = vsub.f32 %v655, %v872
        %v874 = vand.u32 %v873, 4294901760
        %v875 = vsub.f32 %v873, %v874
        %v876 = vand.u32 %v875, 4294901760
        %877 = vmatmul.mubr.f32.gmra.mrb[0].mxu0 %v876
        %v878 = vpop.f32.mrb[0].mxu0
        %v879 = vadd.f32 0.0, %v878
        %v880 = vpop.f32.mrb[0].mxu0
        %v881 = vand.u32 %v714, 4294901760
        %v882 = vsub.f32 %v714, %v881
        %v883 = vand.u32 %v882, 4294901760
        %v884 = vsub.f32 %v882, %v883
        %v885 = vand.u32 %v884, 4294901760
        %886 = vmatprep.mubr.f32.mxu0 %v885
        %v887 = vand.u32 %v657, 4294901760
        %v888 = vsub.f32 %v657, %v887
        %v889 = vand.u32 %v888, 4294901760
        %v890 = vsub.f32 %v888, %v889
        %v891 = vand.u32 %v890, 4294901760
        %892 = vmatmul.mubr.f32.gmra.mrb[0].mxu0 %v891
        %v893 = vpop.f32.mrb[0].mxu0
        %v894 = vadd.f32 0.0, %v893
        %v895 = vpop.f32.mrb[0].mxu0
        %v896 = vand.u32 %v717, 4294901760
        %v897 = vsub.f32 %v717, %v896
        %v898 = vand.u32 %v897, 4294901760
        %v899 = vsub.f32 %v897, %v898
        %v900 = vand.u32 %v899, 4294901760
        %901 = vmatprep.mubr.f32.mxu0 %v900
        %v902 = vand.u32 %v659, 4294901760
        %v903 = vsub.f32 %v659, %v902
        %v904 = vand.u32 %v903, 4294901760
        %v905 = vsub.f32 %v903, %v904
        %v906 = vand.u32 %v905, 4294901760
        %907 = vmatmul.mubr.f32.gmra.mrb[0].mxu0 %v906
        %v908 = vpop.f32.mrb[0].mxu0
        %v909 = vadd.f32 0.0, %v908
        %v910 = vpop.f32.mrb[0].mxu0
        %v911 = vand.u32 %v720, 4294901760
        %v912 = vsub.f32 %v720, %v911
        %v913 = vand.u32 %v912, 4294901760
        %v914 = vsub.f32 %v912, %v913
        %v915 = vand.u32 %v914, 4294901760
        %916 = vmatprep.mubr.f32.mxu0 %v915
        %v917 = vand.u32 %v661, 4294901760
        %v918 = vsub.f32 %v661, %v917
        %v919 = vand.u32 %v918, 4294901760
        %v920 = vsub.f32 %v918, %v919
        %v921 = vand.u32 %v920, 4294901760
        %922 = vmatmul.mubr.f32.gmra.mrb[0].mxu0 %v921
        %v923 = vpop.f32.mrb[0].mxu0
        %v924 = vadd.f32 0.0, %v923
        %v925 = vpop.f32.mrb[0].mxu0
        %v926 = vand.u32 %v723, 4294901760
        %v927 = vsub.f32 %v723, %v926
        %v928 = vand.u32 %v927, 4294901760
        %v929 = vsub.f32 %v927, %v928
        %v930 = vand.u32 %v929, 4294901760
        %931 = vmatprep.mubr.f32.mxu0 %v930
        %v932 = vand.u32 %v663, 4294901760
        %v933 = vsub.f32 %v663, %v932
        %v934 = vand.u32 %v933, 4294901760
        %v935 = vsub.f32 %v933, %v934
        %v936 = vand.u32 %v935, 4294901760
        %937 = vmatmul.mubr.f32.gmra.mrb[0].mxu0 %v936
        %v938 = vpop.f32.mrb[0].mxu0
        %v939 = vadd.f32 0.0, %v938
        %v940 = vpop.f32.mrb[0].mxu0
        %v941 = vand.u32 %v726, 4294901760
        %v942 = vsub.f32 %v726, %v941
        %v943 = vand.u32 %v942, 4294901760
        %v944 = vsub.f32 %v942, %v943
        %v945 = vand.u32 %v944, 4294901760
        %946 = vmatprep.mubr.f32.mxu0 %v945
        %v947 = vand.u32 %v665, 4294901760
        %v948 = vsub.f32 %v665, %v947
        %v949 = vand.u32 %v948, 4294901760
        %v950 = vsub.f32 %v948, %v949
        %v951 = vand.u32 %v950, 4294901760
        %952 = vmatmul.mubr.f32.gmra.mrb[0].mxu0 %v951
        %v953 = vpop.f32.mrb[0].mxu0
        %v954 = vadd.f32 0.0, %v953
        %v955 = vpop.f32.mrb[0].mxu0
        %v956 = vand.u32 %v729, 4294901760
        %v957 = vsub.f32 %v729, %v956
        %v958 = vand.u32 %v957, 4294901760
        %v959 = vsub.f32 %v957, %v958
        %v960 = vand.u32 %v959, 4294901760
        %961 = vmatprep.mubr.f32.mxu0 %v960
        %v962 = vand.u32 %v667, 4294901760
        %v963 = vsub.f32 %v667, %v962
        %v964 = vand.u32 %v963, 4294901760
        %v965 = vsub.f32 %v963, %v964
        %v966 = vand.u32 %v965, 4294901760
        %967 = vmatmul.mubr.f32.gmra.mrb[0].mxu0 %v966
        %v968 = vpop.f32.mrb[0].mxu0
        %v969 = vadd.f32 0.0, %v968
        %v970 = vpop.f32.mrb[0].mxu0
        %v971 = vand.u32 %v732, 4294901760
        %v972 = vsub.f32 %v732, %v971
        %v973 = vand.u32 %v972, 4294901760
        %v974 = vsub.f32 %v972, %v973
        %v975 = vand.u32 %v974, 4294901760
        %976 = vmatprep.mubr.f32.mxu0 %v975
        %v977 = vand.u32 %v669, 4294901760
        %v978 = vsub.f32 %v669, %v977
        %v979 = vand.u32 %v978, 4294901760
        %v980 = vsub.f32 %v978, %v979
        %v981 = vand.u32 %v980, 4294901760
        %982 = vmatmul.mubr.f32.gmra.mrb[0].mxu0 %v981
        %v983 = vpop.f32.mrb[0].mxu0
        %v984 = vadd.f32 0.0, %v983
        %v985 = vpop.f32.mrb[0].mxu0
        %v986 = vand.u32 %v735, 4294901760
        %v987 = vsub.f32 %v735, %v986
        %v988 = vand.u32 %v987, 4294901760
        %v989 = vsub.f32 %v987, %v988
        %v990 = vand.u32 %v989, 4294901760
        %991 = vmatprep.mubr.f32.mxu0 %v990
        %v992 = vand.u32 %v671, 4294901760
        %v993 = vsub.f32 %v671, %v992
        %v994 = vand.u32 %v993, 4294901760
        %v995 = vsub.f32 %v993, %v994
        %v996 = vand.u32 %v995, 4294901760
        %997 = vmatmul.mubr.f32.gmra.mrb[0].mxu0 %v996
        %v998 = vpop.f32.mrb[0].mxu0
        %v999 = vadd.f32 0.0, %v998
        %v1000 = vpop.f32.mrb[0].mxu0
        %v1001 = vand.u32 %v738, 4294901760
        %v1002 = vsub.f32 %v738, %v1001
        %v1003 = vand.u32 %v1002, 4294901760
        %v1004 = vsub.f32 %v1002, %v1003
        %v1005 = vand.u32 %v1004, 4294901760
        %1006 = vmatprep.mubr.f32.mxu0 %v1005
        %v1007 = vand.u32 %v673, 4294901760
        %v1008 = vsub.f32 %v673, %v1007
        %v1009 = vand.u32 %v1008, 4294901760
        %v1010 = vsub.f32 %v1008, %v1009
        %v1011 = vand.u32 %v1010, 4294901760
        %1012 = vmatmul.mubr.f32.gmra.mrb[0].mxu0 %v1011
        %v1013 = vpop.f32.mrb[0].mxu0
        %v1014 = vadd.f32 0.0, %v1013
        %v1015 = vpop.f32.mrb[0].mxu0
        %v1016 = vand.u32 %v741, 4294901760
        %v1017 = vsub.f32 %v741, %v1016
        %v1018 = vand.u32 %v1017, 4294901760
        %v1019 = vsub.f32 %v1017, %v1018
        %v1020 = vand.u32 %v1019, 4294901760
        %1021 = vmatprep.mubr.f32.mxu0 %v1020
        %v1022 = vand.u32 %v675, 4294901760
        %v1023 = vsub.f32 %v675, %v1022
        %v1024 = vand.u32 %v1023, 4294901760
        %v1025 = vsub.f32 %v1023, %v1024
        %v1026 = vand.u32 %v1025, 4294901760
        %1027 = vmatmul.mubr.f32.gmra.mrb[0].mxu0 %v1026
        %v1028 = vpop.f32.mrb[0].mxu0
        %v1029 = vadd.f32 0.0, %v1028
        %v1030 = vpop.f32.mrb[0].mxu0
        %v1031 = vand.u32 %v744, 4294901760
        %v1032 = vsub.f32 %v744, %v1031
        %v1033 = vand.u32 %v1032, 4294901760
        %v1034 = vsub.f32 %v1032, %v1033
        %v1035 = vand.u32 %v1034, 4294901760
        %1036 = vmatprep.mubr.f32.mxu0 %v1035
        %v1037 = vand.u32 %v677, 4294901760
        %v1038 = vsub.f32 %v677, %v1037
        %v1039 = vand.u32 %v1038, 4294901760
        %v1040 = vsub.f32 %v1038, %v1039
        %v1041 = vand.u32 %v1040, 4294901760
        %1042 = vmatmul.mubr.f32.gmra.mrb[0].mxu0 %v1041
        %v1043 = vpop.f32.mrb[0].mxu0
        %v1044 = vadd.f32 0.0, %v1043
        %v1045 = vpop.f32.mrb[0].mxu0
        %v1046 = vand.u32 %v747, 4294901760
        %v1047 = vsub.f32 %v747, %v1046
        %v1048 = vand.u32 %v1047, 4294901760
        %v1049 = vsub.f32 %v1047, %v1048
        %v1050 = vand.u32 %v1049, 4294901760
        %1051 = vmatprep.mubr.f32.mxu0 %v1050
        %v1052 = vand.u32 %v679, 4294901760
        %v1053 = vsub.f32 %v679, %v1052
        %v1054 = vand.u32 %v1053, 4294901760
        %v1055 = vsub.f32 %v1053, %v1054
        %v1056 = vand.u32 %v1055, 4294901760
        %1057 = vmatmul.mubr.f32.gmra.mrb[0].mxu0 %v1056
        %v1058 = vpop.f32.mrb[0].mxu0
        %v1059 = vadd.f32 0.0, %v1058
        %v1060 = vpop.f32.mrb[0].mxu0
        %v1061 = vand.u32 %v750, 4294901760
        %v1062 = vsub.f32 %v750, %v1061
        %v1063 = vand.u32 %v1062, 4294901760
        %v1064 = vsub.f32 %v1062, %v1063
        %v1065 = vand.u32 %v1064, 4294901760
        %1066 = vmatprep.mubr.f32.mxu0 %v1065
        %v1067 = vand.u32 %v681, 4294901760
        %v1068 = vsub.f32 %v681, %v1067
        %v1069 = vand.u32 %v1068, 4294901760
        %v1070 = vsub.f32 %v1068, %v1069
        %v1071 = vand.u32 %v1070, 4294901760
        %1072 = vmatmul.mubr.f32.gmra.mrb[0].mxu0 %v1071
        %v1073 = vpop.f32.mrb[0].mxu0
        %v1074 = vadd.f32 0.0, %v1073
        %v1075 = vpop.f32.mrb[0].mxu0
        %1076 = vdwg.mxu0
        %1077 = vmatprep.subr.mxu0 0.0
        %v1078 = vand.u32 %v683, 4294901760
        %v1079 = vsub.f32 %v683, %v1078
        %v1080 = vand.u32 %v1079, 4294901760
        %v1081 = vsub.f32 %v1079, %v1080
        %v1082 = vand.u32 %v1081, 4294901760
        %1083 = vmatpush1.msra.mxu0 %v1082
        %1084 = vmatprep.subr.mxu0 0.0
        %v1085 = vand.u32 %v684, 4294901760
        %v1086 = vsub.f32 %v684, %v1085
        %v1087 = vand.u32 %v1086, 4294901760
        %v1088 = vsub.f32 %v1086, %v1087
        %v1089 = vand.u32 %v1088, 4294901760
        %1090 = vmatpush1.msra.mxu0 %v1089
        %1091 = vmatprep.subr.mxu0 0.0
        %v1092 = vand.u32 %v685, 4294901760
        %v1093 = vsub.f32 %v685, %v1092
        %v1094 = vand.u32 %v1093, 4294901760
        %v1095 = vsub.f32 %v1093, %v1094
        %v1096 = vand.u32 %v1095, 4294901760
        %1097 = vmatpush1.msra.mxu0 %v1096
        %1098 = vmatprep.subr.mxu0 0.0
        %v1099 = vand.u32 %v686, 4294901760
        %v1100 = vsub.f32 %v686, %v1099
        %v1101 = vand.u32 %v1100, 4294901760
        %v1102 = vsub.f32 %v1100, %v1101
        %v1103 = vand.u32 %v1102, 4294901760
        %1104 = vmatpush1.msra.mxu0 %v1103
        %1105 = vmatprep.subr.mxu0 0.0
        %v1106 = vand.u32 %v687, 4294901760
        %v1107 = vsub.f32 %v687, %v1106
        %v1108 = vand.u32 %v1107, 4294901760
        %v1109 = vsub.f32 %v1107, %v1108
        %v1110 = vand.u32 %v1109, 4294901760
        %1111 = vmatpush1.msra.mxu0 %v1110
        %1112 = vmatprep.subr.mxu0 0.0
        %v1113 = vand.u32 %v688, 4294901760
        %v1114 = vsub.f32 %v688, %v1113
        %v1115 = vand.u32 %v1114, 4294901760
        %v1116 = vsub.f32 %v1114, %v1115
        %v1117 = vand.u32 %v1116, 4294901760
        %1118 = vmatpush1.msra.mxu0 %v1117
        %1119 = vmatprep.subr.mxu0 0.0
        %v1120 = vand.u32 %v689, 4294901760
        %v1121 = vsub.f32 %v689, %v1120
        %v1122 = vand.u32 %v1121, 4294901760
        %v1123 = vsub.f32 %v1121, %v1122
        %v1124 = vand.u32 %v1123, 4294901760
        %1125 = vmatpush1.msra.mxu0 %v1124
        %1126 = vmatprep.subr.mxu0 0.0
        %v1127 = vand.u32 %v690, 4294901760
        %v1128 = vsub.f32 %v690, %v1127
        %v1129 = vand.u32 %v1128, 4294901760
        %v1130 = vsub.f32 %v1128, %v1129
        %v1131 = vand.u32 %v1130, 4294901760
        %1132 = vmatpush1.msra.mxu0 %v1131
        %1133 = vmatprep.subr.mxu0 0.0
        %v1134 = vand.u32 %v691, 4294901760
        %v1135 = vsub.f32 %v691, %v1134
        %v1136 = vand.u32 %v1135, 4294901760
        %v1137 = vsub.f32 %v1135, %v1136
        %v1138 = vand.u32 %v1137, 4294901760
        %1139 = vmatpush1.msra.mxu0 %v1138
        %1140 = vmatprep.subr.mxu0 0.0
        %v1141 = vand.u32 %v692, 4294901760
        %v1142 = vsub.f32 %v692, %v1141
        %v1143 = vand.u32 %v1142, 4294901760
        %v1144 = vsub.f32 %v1142, %v1143
        %v1145 = vand.u32 %v1144, 4294901760
        %1146 = vmatpush1.msra.mxu0 %v1145
        %1147 = vmatprep.subr.mxu0 0.0
        %v1148 = vand.u32 %v693, 4294901760
        %v1149 = vsub.f32 %v693, %v1148
        %v1150 = vand.u32 %v1149, 4294901760
        %v1151 = vsub.f32 %v1149, %v1150
        %v1152 = vand.u32 %v1151, 4294901760
        %1153 = vmatpush1.msra.mxu0 %v1152
        %1154 = vmatprep.subr.mxu0 0.0
        %v1155 = vand.u32 %v694, 4294901760
        %v1156 = vsub.f32 %v694, %v1155
        %v1157 = vand.u32 %v1156, 4294901760
        %v1158 = vsub.f32 %v1156, %v1157
        %v1159 = vand.u32 %v1158, 4294901760
        %1160 = vmatpush1.msra.mxu0 %v1159
        %1161 = vmatprep.subr.mxu0 0.0
        %v1162 = vand.u32 %v695, 4294901760
        %v1163 = vsub.f32 %v695, %v1162
        %v1164 = vand.u32 %v1163, 4294901760
        %v1165 = vsub.f32 %v1163, %v1164
        %v1166 = vand.u32 %v1165, 4294901760
        %1167 = vmatpush1.msra.mxu0 %v1166
        %1168 = vmatprep.subr.mxu0 0.0
        %v1169 = vand.u32 %v696, 4294901760
        %v1170 = vsub.f32 %v696, %v1169
        %v1171 = vand.u32 %v1170, 4294901760
        %v1172 = vsub.f32 %v1170, %v1171
        %v1173 = vand.u32 %v1172, 4294901760
        %1174 = vmatpush1.msra.mxu0 %v1173
        %1175 = vmatprep.subr.mxu0 0.0
        %v1176 = vand.u32 %v697, 4294901760
        %v1177 = vsub.f32 %v697, %v1176
        %v1178 = vand.u32 %v1177, 4294901760
        %v1179 = vsub.f32 %v1177, %v1178
        %v1180 = vand.u32 %v1179, 4294901760
        %1181 = vmatpush1.msra.mxu0 %v1180
        %1182 = vmatprep.subr.mxu0 0.0
        %v1183 = vand.u32 %v698, 4294901760
        %v1184 = vsub.f32 %v698, %v1183
        %v1185 = vand.u32 %v1184, 4294901760
        %v1186 = vsub.f32 %v1184, %v1185
        %v1187 = vand.u32 %v1186, 4294901760
        %1188 = vmatpush1.msra.mxu0 %v1187
        %1189 = vmatprep.subr.mxu0 0.0
        %v1190 = vand.u32 %v699, 4294901760
        %v1191 = vsub.f32 %v699, %v1190
        %v1192 = vand.u32 %v1191, 4294901760
        %v1193 = vsub.f32 %v1191, %v1192
        %v1194 = vand.u32 %v1193, 4294901760
        %1195 = vmatpush1.msra.mxu0 %v1194
        %1196 = vmatprep.subr.mxu0 0.0
        %v1197 = vand.u32 %v700, 4294901760
        %v1198 = vsub.f32 %v700, %v1197
        %v1199 = vand.u32 %v1198, 4294901760
        %v1200 = vsub.f32 %v1198, %v1199
        %v1201 = vand.u32 %v1200, 4294901760
        %1202 = vmatpush1.msra.mxu0 %v1201
        %1203 = vmatprep.subr.mxu0 0.0
        %v1204 = vand.u32 %v701, 4294901760
        %v1205 = vsub.f32 %v701, %v1204
        %v1206 = vand.u32 %v1205, 4294901760
        %v1207 = vsub.f32 %v1205, %v1206
        %v1208 = vand.u32 %v1207, 4294901760
        %1209 = vmatpush1.msra.mxu0 %v1208
        %1210 = vmatprep.subr.mxu0 0.0
        %v1211 = vand.u32 %v702, 4294901760
        %v1212 = vsub.f32 %v702, %v1211
        %v1213 = vand.u32 %v1212, 4294901760
        %v1214 = vsub.f32 %v1212, %v1213
        %v1215 = vand.u32 %v1214, 4294901760
        %1216 = vmatpush1.msra.mxu0 %v1215
        %1217 = vmatprep.subr.mxu0 0.0
        %1218 = vmatpush1.msra.mxu0 0.0
        %1219 = vmatprep.subr.mxu0 0.0
        %1220 = vmatpush1.msra.mxu0 0.0
        %1221 = vmatprep.subr.mxu0 0.0
        %1222 = vmatpush1.msra.mxu0 0.0
        %1223 = vmatprep.subr.mxu0 0.0
        %1224 = vmatpush1.msra.mxu0 0.0
        %1225 = vmatprep.subr.mxu0 0.0
        %1226 = vmatpush1.msra.mxu0 0.0
        %1227 = vmatprep.subr.mxu0 0.0
        %1228 = vmatpush1.msra.mxu0 0.0
        %1229 = vmatprep.subr.mxu0 0.0
        %1230 = vmatpush1.msra.mxu0 0.0
        %1231 = vmatprep.subr.mxu0 0.0
        %1232 = vmatpush1.msra.mxu0 0.0
        %1233 = vmatprep.subr.mxu0 0.0
        %1234 = vmatpush1.msra.mxu0 0.0
        %1235 = vmatprep.subr.mxu0 0.0
        %1236 = vmatpush1.msra.mxu0 0.0
        %1237 = vmatprep.subr.mxu0 0.0
        %1238 = vmatpush1.msra.mxu0 0.0
        %1239 = vmatprep.subr.mxu0 0.0
        %1240 = vmatpush1.msra.mxu0 0.0
        %v1241 = vand.u32 %v705, 4294901760
        %1242 = vmatprep.mubr.f32.mxu0 %v1241
        %v1243 = vand.u32 %v651, 4294901760
        %1244 = vmatmul.mubr.f32.gmra.mrb[0].mxu0 %v1243
        %v1245 = vpop.f32.mrb[0].mxu0
        %v1246 = vadd.f32 %v849, %v1245
        %v1247 = vpop.f32.mrb[0].mxu0
        %v1248 = vand.u32 %v708, 4294901760
        %1249 = vmatprep.mubr.f32.mxu0 %v1248
        %v1250 = vand.u32 %v653, 4294901760
        %1251 = vmatmul.mubr.f32.gmra.mrb[0].mxu0 %v1250
        %v1252 = vpop.f32.mrb[0].mxu0
        %v1253 = vadd.f32 %v864, %v1252
        %v1254 = vpop.f32.mrb[0].mxu0
        %v1255 = vand.u32 %v711, 4294901760
        %1256 = vmatprep.mubr.f32.mxu0 %v1255
        %v1257 = vand.u32 %v655, 4294901760
        %1258 = vmatmul.mubr.f32.gmra.mrb[0].mxu0 %v1257
        %v1259 = vpop.f32.mrb[0].mxu0
        %v1260 = vadd.f32 %v879, %v1259
        %v1261 = vpop.f32.mrb[0].mxu0
        %v1262 = vand.u32 %v714, 4294901760
        %1263 = vmatprep.mubr.f32.mxu0 %v1262
        %v1264 = vand.u32 %v657, 4294901760
        %1265 = vmatmul.mubr.f32.gmra.mrb[0].mxu0 %v1264
        %v1266 = vpop.f32.mrb[0].mxu0
        %v1267 = vadd.f32 %v894, %v1266
        %v1268 = vpop.f32.mrb[0].mxu0
        %v1269 = vand.u32 %v717, 4294901760
        %1270 = vmatprep.mubr.f32.mxu0 %v1269
        %v1271 = vand.u32 %v659, 4294901760
        %1272 = vmatmul.mubr.f32.gmra.mrb[0].mxu0 %v1271
        %v1273 = vpop.f32.mrb[0].mxu0
        %v1274 = vadd.f32 %v909, %v1273
        %v1275 = vpop.f32.mrb[0].mxu0
        %v1276 = vand.u32 %v720, 4294901760
        %1277 = vmatprep.mubr.f32.mxu0 %v1276
        %v1278 = vand.u32 %v661, 4294901760
        %1279 = vmatmul.mubr.f32.gmra.mrb[0].mxu0 %v1278
        %v1280 = vpop.f32.mrb[0].mxu0
        %v1281 = vadd.f32 %v924, %v1280
        %v1282 = vpop.f32.mrb[0].mxu0
        %v1283 = vand.u32 %v723, 4294901760
        %1284 = vmatprep.mubr.f32.mxu0 %v1283
        %v1285 = vand.u32 %v663, 4294901760
        %1286 = vmatmul.mubr.f32.gmra.mrb[0].mxu0 %v1285
        %v1287 = vpop.f32.mrb[0].mxu0
        %v1288 = vadd.f32 %v939, %v1287
        %v1289 = vpop.f32.mrb[0].mxu0
        %v1290 = vand.u32 %v726, 4294901760
        %1291 = vmatprep.mubr.f32.mxu0 %v1290
        %v1292 = vand.u32 %v665, 4294901760
        %1293 = vmatmul.mubr.f32.gmra.mrb[0].mxu0 %v1292
        %v1294 = vpop.f32.mrb[0].mxu0
        %v1295 = vadd.f32 %v954, %v1294
        %v1296 = vpop.f32.mrb[0].mxu0
        %v1297 = vand.u32 %v729, 4294901760
        %1298 = vmatprep.mubr.f32.mxu0 %v1297
        %v1299 = vand.u32 %v667, 4294901760
        %1300 = vmatmul.mubr.f32.gmra.mrb[0].mxu0 %v1299
        %v1301 = vpop.f32.mrb[0].mxu0
        %v1302 = vadd.f32 %v969, %v1301
        %v1303 = vpop.f32.mrb[0].mxu0
        %v1304 = vand.u32 %v732, 4294901760
        %1305 = vmatprep.mubr.f32.mxu0 %v1304
        %v1306 = vand.u32 %v669, 4294901760
        %1307 = vmatmul.mubr.f32.gmra.mrb[0].mxu0 %v1306
        %v1308 = vpop.f32.mrb[0].mxu0
        %v1309 = vadd.f32 %v984, %v1308
        %v1310 = vpop.f32.mrb[0].mxu0
        %v1311 = vand.u32 %v735, 4294901760
        %1312 = vmatprep.mubr.f32.mxu0 %v1311
        %v1313 = vand.u32 %v671, 4294901760
        %1314 = vmatmul.mubr.f32.gmra.mrb[0].mxu0 %v1313
        %v1315 = vpop.f32.mrb[0].mxu0
        %v1316 = vadd.f32 %v999, %v1315
        %v1317 = vpop.f32.mrb[0].mxu0
        %v1318 = vand.u32 %v738, 4294901760
        %1319 = vmatprep.mubr.f32.mxu0 %v1318
        %v1320 = vand.u32 %v673, 4294901760
        %1321 = vmatmul.mubr.f32.gmra.mrb[0].mxu0 %v1320
        %v1322 = vpop.f32.mrb[0].mxu0
        %v1323 = vadd.f32 %v1014, %v1322
        %v1324 = vpop.f32.mrb[0].mxu0
        %v1325 = vand.u32 %v741, 4294901760
        %1326 = vmatprep.mubr.f32.mxu0 %v1325
        %v1327 = vand.u32 %v675, 4294901760
        %1328 = vmatmul.mubr.f32.gmra.mrb[0].mxu0 %v1327
        %v1329 = vpop.f32.mrb[0].mxu0
        %v1330 = vadd.f32 %v1029, %v1329
        %v1331 = vpop.f32.mrb[0].mxu0
        %v1332 = vand.u32 %v744, 4294901760
        %1333 = vmatprep.mubr.f32.mxu0 %v1332
        %v1334 = vand.u32 %v677, 4294901760
        %1335 = vmatmul.mubr.f32.gmra.mrb[0].mxu0 %v1334
        %v1336 = vpop.f32.mrb[0].mxu0
        %v1337 = vadd.f32 %v1044, %v1336
        %v1338 = vpop.f32.mrb[0].mxu0
        %v1339 = vand.u32 %v747, 4294901760
        %1340 = vmatprep.mubr.f32.mxu0 %v1339
        %v1341 = vand.u32 %v679, 4294901760
        %1342 = vmatmul.mubr.f32.gmra.mrb[0].mxu0 %v1341
        %v1343 = vpop.f32.mrb[0].mxu0
        %v1344 = vadd.f32 %v1059, %v1343
        %v1345 = vpop.f32.mrb[0].mxu0
        %v1346 = vand.u32 %v750, 4294901760
        %1347 = vmatprep.mubr.f32.mxu0 %v1346
        %v1348 = vand.u32 %v681, 4294901760
        %1349 = vmatmul.mubr.f32.gmra.mrb[0].mxu0 %v1348
        %v1350 = vpop.f32.mrb[0].mxu0
        %v1351 = vadd.f32 %v1074, %v1350
        %v1352 = vpop.f32.mrb[0].mxu0
        %1353 = vdwg.mxu0
        %1354 = vmatprep.subr.mxu0 0.0
        %v1355 = vand.u32 %v683, 4294901760
        %v1356 = vsub.f32 %v683, %v1355
        %1357 = vmatpush1.msra.mxu0 %v1356
        %1358 = vmatprep.subr.mxu0 0.0
        %v1359 = vand.u32 %v684, 4294901760
        %v1360 = vsub.f32 %v684, %v1359
        %1361 = vmatpush1.msra.mxu0 %v1360
        %1362 = vmatprep.subr.mxu0 0.0
        %v1363 = vand.u32 %v685, 4294901760
        %v1364 = vsub.f32 %v685, %v1363
        %1365 = vmatpush1.msra.mxu0 %v1364
        %1366 = vmatprep.subr.mxu0 0.0
        %v1367 = vand.u32 %v686, 4294901760
        %v1368 = vsub.f32 %v686, %v1367
        %1369 = vmatpush1.msra.mxu0 %v1368
        %1370 = vmatprep.subr.mxu0 0.0
        %v1371 = vand.u32 %v687, 4294901760
        %v1372 = vsub.f32 %v687, %v1371
        %1373 = vmatpush1.msra.mxu0 %v1372
        %1374 = vmatprep.subr.mxu0 0.0
        %v1375 = vand.u32 %v688, 4294901760
        %v1376 = vsub.f32 %v688, %v1375
        %1377 = vmatpush1.msra.mxu0 %v1376
        %1378 = vmatprep.subr.mxu0 0.0
        %v1379 = vand.u32 %v689, 4294901760
        %v1380 = vsub.f32 %v689, %v1379
        %1381 = vmatpush1.msra.mxu0 %v1380
        %1382 = vmatprep.subr.mxu0 0.0
        %v1383 = vand.u32 %v690, 4294901760
        %v1384 = vsub.f32 %v690, %v1383
        %1385 = vmatpush1.msra.mxu0 %v1384
        %1386 = vmatprep.subr.mxu0 0.0
        %v1387 = vand.u32 %v691, 4294901760
        %v1388 = vsub.f32 %v691, %v1387
        %1389 = vmatpush1.msra.mxu0 %v1388
        %1390 = vmatprep.subr.mxu0 0.0
        %v1391 = vand.u32 %v692, 4294901760
        %v1392 = vsub.f32 %v692, %v1391
        %1393 = vmatpush1.msra.mxu0 %v1392
        %1394 = vmatprep.subr.mxu0 0.0
        %v1395 = vand.u32 %v693, 4294901760
        %v1396 = vsub.f32 %v693, %v1395
        %1397 = vmatpush1.msra.mxu0 %v1396
        %1398 = vmatprep.subr.mxu0 0.0
        %v1399 = vand.u32 %v694, 4294901760
        %v1400 = vsub.f32 %v694, %v1399
        %1401 = vmatpush1.msra.mxu0 %v1400
        %1402 = vmatprep.subr.mxu0 0.0
        %v1403 = vand.u32 %v695, 4294901760
        %v1404 = vsub.f32 %v695, %v1403
        %1405 = vmatpush1.msra.mxu0 %v1404
        %1406 = vmatprep.subr.mxu0 0.0
        %v1407 = vand.u32 %v696, 4294901760
        %v1408 = vsub.f32 %v696, %v1407
        %1409 = vmatpush1.msra.mxu0 %v1408
        %1410 = vmatprep.subr.mxu0 0.0
        %v1411 = vand.u32 %v697, 4294901760
        %v1412 = vsub.f32 %v697, %v1411
        %1413 = vmatpush1.msra.mxu0 %v1412
        %1414 = vmatprep.subr.mxu0 0.0
        %v1415 = vand.u32 %v698, 4294901760
        %v1416 = vsub.f32 %v698, %v1415
        %1417 = vmatpush1.msra.mxu0 %v1416
        %1418 = vmatprep.subr.mxu0 0.0
        %v1419 = vand.u32 %v699, 4294901760
        %v1420 = vsub.f32 %v699, %v1419
        %1421 = vmatpush1.msra.mxu0 %v1420
        %1422 = vmatprep.subr.mxu0 0.0
        %v1423 = vand.u32 %v700, 4294901760
        %v1424 = vsub.f32 %v700, %v1423
        %1425 = vmatpush1.msra.mxu0 %v1424
        %1426 = vmatprep.subr.mxu0 0.0
        %v1427 = vand.u32 %v701, 4294901760
        %v1428 = vsub.f32 %v701, %v1427
        %1429 = vmatpush1.msra.mxu0 %v1428
        %1430 = vmatprep.subr.mxu0 0.0
        %v1431 = vand.u32 %v702, 4294901760
        %v1432 = vsub.f32 %v702, %v1431
        %1433 = vmatpush1.msra.mxu0 %v1432
        %1434 = vmatprep.subr.mxu0 0.0
        %1435 = vmatpush1.msra.mxu0 0.0
        %1436 = vmatprep.subr.mxu0 0.0
        %1437 = vmatpush1.msra.mxu0 0.0
        %1438 = vmatprep.subr.mxu0 0.0
        %1439 = vmatpush1.msra.mxu0 0.0
        %1440 = vmatprep.subr.mxu0 0.0
        %1441 = vmatpush1.msra.mxu0 0.0
        %1442 = vmatprep.subr.mxu0 0.0
        %1443 = vmatpush1.msra.mxu0 0.0
        %1444 = vmatprep.subr.mxu0 0.0
        %1445 = vmatpush1.msra.mxu0 0.0
        %1446 = vmatprep.subr.mxu0 0.0
        %1447 = vmatpush1.msra.mxu0 0.0
        %1448 = vmatprep.subr.mxu0 0.0
        %1449 = vmatpush1.msra.mxu0 0.0
        %1450 = vmatprep.subr.mxu0 0.0
        %1451 = vmatpush1.msra.mxu0 0.0
        %1452 = vmatprep.subr.mxu0 0.0
        %1453 = vmatpush1.msra.mxu0 0.0
        %1454 = vmatprep.subr.mxu0 0.0
        %1455 = vmatpush1.msra.mxu0 0.0
        %1456 = vmatprep.subr.mxu0 0.0
        %1457 = vmatpush1.msra.mxu0 0.0
        %v1458 = vand.u32 %v705, 4294901760
        %v1459 = vsub.f32 %v705, %v1458
        %1460 = vmatprep.mubr.f32.mxu0 %v1459
        %v1461 = vand.u32 %v651, 4294901760
        %v1462 = vsub.f32 %v651, %v1461
        %1463 = vmatmul.mubr.f32.gmra.mrb[0].mxu0 %v1462
        %v1464 = vpop.f32.mrb[0].mxu0
        %v1465 = vadd.f32 %v1246, %v1464
        %v1466 = vpop.f32.mrb[0].mxu0
        %v1467 = vand.u32 %v708, 4294901760
        %v1468 = vsub.f32 %v708, %v1467
        %1469 = vmatprep.mubr.f32.mxu0 %v1468
        %v1470 = vand.u32 %v653, 4294901760
        %v1471 = vsub.f32 %v653, %v1470
        %1472 = vmatmul.mubr.f32.gmra.mrb[0].mxu0 %v1471
        %v1473 = vpop.f32.mrb[0].mxu0
        %v1474 = vadd.f32 %v1253, %v1473
        %v1475 = vpop.f32.mrb[0].mxu0
        %v1476 = vand.u32 %v711, 4294901760
        %v1477 = vsub.f32 %v711, %v1476
        %1478 = vmatprep.mubr.f32.mxu0 %v1477
        %v1479 = vand.u32 %v655, 4294901760
        %v1480 = vsub.f32 %v655, %v1479
        %1481 = vmatmul.mubr.f32.gmra.mrb[0].mxu0 %v1480
        %v1482 = vpop.f32.mrb[0].mxu0
        %v1483 = vadd.f32 %v1260, %v1482
        %v1484 = vpop.f32.mrb[0].mxu0
        %v1485 = vand.u32 %v714, 4294901760
        %v1486 = vsub.f32 %v714, %v1485
        %1487 = vmatprep.mubr.f32.mxu0 %v1486
        %v1488 = vand.u32 %v657, 4294901760
        %v1489 = vsub.f32 %v657, %v1488
        %1490 = vmatmul.mubr.f32.gmra.mrb[0].mxu0 %v1489
        %v1491 = vpop.f32.mrb[0].mxu0
        %v1492 = vadd.f32 %v1267, %v1491
        %v1493 = vpop.f32.mrb[0].mxu0
        %v1494 = vand.u32 %v717, 4294901760
        %v1495 = vsub.f32 %v717, %v1494
        %1496 = vmatprep.mubr.f32.mxu0 %v1495
        %v1497 = vand.u32 %v659, 4294901760
        %v1498 = vsub.f32 %v659, %v1497
        %1499 = vmatmul.mubr.f32.gmra.mrb[0].mxu0 %v1498
        %v1500 = vpop.f32.mrb[0].mxu0
        %v1501 = vadd.f32 %v1274, %v1500
        %v1502 = vpop.f32.mrb[0].mxu0
        %v1503 = vand.u32 %v720, 4294901760
        %v1504 = vsub.f32 %v720, %v1503
        %1505 = vmatprep.mubr.f32.mxu0 %v1504
        %v1506 = vand.u32 %v661, 4294901760
        %v1507 = vsub.f32 %v661, %v1506
        %1508 = vmatmul.mubr.f32.gmra.mrb[0].mxu0 %v1507
        %v1509 = vpop.f32.mrb[0].mxu0
        %v1510 = vadd.f32 %v1281, %v1509
        %v1511 = vpop.f32.mrb[0].mxu0
        %v1512 = vand.u32 %v723, 4294901760
        %v1513 = vsub.f32 %v723, %v1512
        %1514 = vmatprep.mubr.f32.mxu0 %v1513
        %v1515 = vand.u32 %v663, 4294901760
        %v1516 = vsub.f32 %v663, %v1515
        %1517 = vmatmul.mubr.f32.gmra.mrb[0].mxu0 %v1516
        %v1518 = vpop.f32.mrb[0].mxu0
        %v1519 = vadd.f32 %v1288, %v1518
        %v1520 = vpop.f32.mrb[0].mxu0
        %v1521 = vand.u32 %v726, 4294901760
        %v1522 = vsub.f32 %v726, %v1521
        %1523 = vmatprep.mubr.f32.mxu0 %v1522
        %v1524 = vand.u32 %v665, 4294901760
        %v1525 = vsub.f32 %v665, %v1524
        %1526 = vmatmul.mubr.f32.gmra.mrb[0].mxu0 %v1525
        %v1527 = vpop.f32.mrb[0].mxu0
        %v1528 = vadd.f32 %v1295, %v1527
        %v1529 = vpop.f32.mrb[0].mxu0
        %v1530 = vand.u32 %v729, 4294901760
        %v1531 = vsub.f32 %v729, %v1530
        %1532 = vmatprep.mubr.f32.mxu0 %v1531
        %v1533 = vand.u32 %v667, 4294901760
        %v1534 = vsub.f32 %v667, %v1533
        %1535 = vmatmul.mubr.f32.gmra.mrb[0].mxu0 %v1534
        %v1536 = vpop.f32.mrb[0].mxu0
        %v1537 = vadd.f32 %v1302, %v1536
        %v1538 = vpop.f32.mrb[0].mxu0
        %v1539 = vand.u32 %v732, 4294901760
        %v1540 = vsub.f32 %v732, %v1539
        %1541 = vmatprep.mubr.f32.mxu0 %v1540
        %v1542 = vand.u32 %v669, 4294901760
        %v1543 = vsub.f32 %v669, %v1542
        %1544 = vmatmul.mubr.f32.gmra.mrb[0].mxu0 %v1543
        %v1545 = vpop.f32.mrb[0].mxu0
        %v1546 = vadd.f32 %v1309, %v1545
        %v1547 = vpop.f32.mrb[0].mxu0
        %v1548 = vand.u32 %v735, 4294901760
        %v1549 = vsub.f32 %v735, %v1548
        %1550 = vmatprep.mubr.f32.mxu0 %v1549
        %v1551 = vand.u32 %v671, 4294901760
        %v1552 = vsub.f32 %v671, %v1551
        %1553 = vmatmul.mubr.f32.gmra.mrb[0].mxu0 %v1552
        %v1554 = vpop.f32.mrb[0].mxu0
        %v1555 = vadd.f32 %v1316, %v1554
        %v1556 = vpop.f32.mrb[0].mxu0
        %v1557 = vand.u32 %v738, 4294901760
        %v1558 = vsub.f32 %v738, %v1557
        %1559 = vmatprep.mubr.f32.mxu0 %v1558
        %v1560 = vand.u32 %v673, 4294901760
        %v1561 = vsub.f32 %v673, %v1560
        %1562 = vmatmul.mubr.f32.gmra.mrb[0].mxu0 %v1561
        %v1563 = vpop.f32.mrb[0].mxu0
        %v1564 = vadd.f32 %v1323, %v1563
        %v1565 = vpop.f32.mrb[0].mxu0
        %v1566 = vand.u32 %v741, 4294901760
        %v1567 = vsub.f32 %v741, %v1566
        %1568 = vmatprep.mubr.f32.mxu0 %v1567
        %v1569 = vand.u32 %v675, 4294901760
        %v1570 = vsub.f32 %v675, %v1569
        %1571 = vmatmul.mubr.f32.gmra.mrb[0].mxu0 %v1570
        %v1572 = vpop.f32.mrb[0].mxu0
        %v1573 = vadd.f32 %v1330, %v1572
        %v1574 = vpop.f32.mrb[0].mxu0
        %v1575 = vand.u32 %v744, 4294901760
        %v1576 = vsub.f32 %v744, %v1575
        %1577 = vmatprep.mubr.f32.mxu0 %v1576
        %v1578 = vand.u32 %v677, 4294901760
        %v1579 = vsub.f32 %v677, %v1578
        %1580 = vmatmul.mubr.f32.gmra.mrb[0].mxu0 %v1579
        %v1581 = vpop.f32.mrb[0].mxu0
        %v1582 = vadd.f32 %v1337, %v1581
        %v1583 = vpop.f32.mrb[0].mxu0
        %v1584 = vand.u32 %v747, 4294901760
        %v1585 = vsub.f32 %v747, %v1584
        %1586 = vmatprep.mubr.f32.mxu0 %v1585
        %v1587 = vand.u32 %v679, 4294901760
        %v1588 = vsub.f32 %v679, %v1587
        %1589 = vmatmul.mubr.f32.gmra.mrb[0].mxu0 %v1588
        %v1590 = vpop.f32.mrb[0].mxu0
        %v1591 = vadd.f32 %v1344, %v1590
        %v1592 = vpop.f32.mrb[0].mxu0
        %v1593 = vand.u32 %v750, 4294901760
        %v1594 = vsub.f32 %v750, %v1593
        %1595 = vmatprep.mubr.f32.mxu0 %v1594
        %v1596 = vand.u32 %v681, 4294901760
        %v1597 = vsub.f32 %v681, %v1596
        %1598 = vmatmul.mubr.f32.gmra.mrb[0].mxu0 %v1597
        %v1599 = vpop.f32.mrb[0].mxu0
        %v1600 = vadd.f32 %v1351, %v1599
        %v1601 = vpop.f32.mrb[0].mxu0
        %1602 = vdwg.mxu0
        %1603 = vmatprep.subr.mxu0 0.0
        %v1604 = vand.u32 %v683, 4294901760
        %1605 = vmatpush1.msra.mxu0 %v1604
        %1606 = vmatprep.subr.mxu0 0.0
        %v1607 = vand.u32 %v684, 4294901760
        %1608 = vmatpush1.msra.mxu0 %v1607
        %1609 = vmatprep.subr.mxu0 0.0
        %v1610 = vand.u32 %v685, 4294901760
        %1611 = vmatpush1.msra.mxu0 %v1610
        %1612 = vmatprep.subr.mxu0 0.0
        %v1613 = vand.u32 %v686, 4294901760
        %1614 = vmatpush1.msra.mxu0 %v1613
        %1615 = vmatprep.subr.mxu0 0.0
        %v1616 = vand.u32 %v687, 4294901760
        %1617 = vmatpush1.msra.mxu0 %v1616
        %1618 = vmatprep.subr.mxu0 0.0
        %v1619 = vand.u32 %v688, 4294901760
        %1620 = vmatpush1.msra.mxu0 %v1619
        %1621 = vmatprep.subr.mxu0 0.0
        %v1622 = vand.u32 %v689, 4294901760
        %1623 = vmatpush1.msra.mxu0 %v1622
        %1624 = vmatprep.subr.mxu0 0.0
        %v1625 = vand.u32 %v690, 4294901760
        %1626 = vmatpush1.msra.mxu0 %v1625
        %1627 = vmatprep.subr.mxu0 0.0
        %v1628 = vand.u32 %v691, 4294901760
        %1629 = vmatpush1.msra.mxu0 %v1628
        %1630 = vmatprep.subr.mxu0 0.0
        %v1631 = vand.u32 %v692, 4294901760
        %1632 = vmatpush1.msra.mxu0 %v1631
        %1633 = vmatprep.subr.mxu0 0.0
        %v1634 = vand.u32 %v693, 4294901760
        %1635 = vmatpush1.msra.mxu0 %v1634
        %1636 = vmatprep.subr.mxu0 0.0
        %v1637 = vand.u32 %v694, 4294901760
        %1638 = vmatpush1.msra.mxu0 %v1637
        %1639 = vmatprep.subr.mxu0 0.0
        %v1640 = vand.u32 %v695, 4294901760
        %1641 = vmatpush1.msra.mxu0 %v1640
        %1642 = vmatprep.subr.mxu0 0.0
        %v1643 = vand.u32 %v696, 4294901760
        %1644 = vmatpush1.msra.mxu0 %v1643
        %1645 = vmatprep.subr.mxu0 0.0
        %v1646 = vand.u32 %v697, 4294901760
        %1647 = vmatpush1.msra.mxu0 %v1646
        %1648 = vmatprep.subr.mxu0 0.0
        %v1649 = vand.u32 %v698, 4294901760
        %1650 = vmatpush1.msra.mxu0 %v1649
        %1651 = vmatprep.subr.mxu0 0.0
        %v1652 = vand.u32 %v699, 4294901760
        %1653 = vmatpush1.msra.mxu0 %v1652
        %1654 = vmatprep.subr.mxu0 0.0
        %v1655 = vand.u32 %v700, 4294901760
        %1656 = vmatpush1.msra.mxu0 %v1655
        %1657 = vmatprep.subr.mxu0 0.0
        %v1658 = vand.u32 %v701, 4294901760
        %1659 = vmatpush1.msra.mxu0 %v1658
        %1660 = vmatprep.subr.mxu0 0.0
        %v1661 = vand.u32 %v702, 4294901760
        %1662 = vmatpush1.msra.mxu0 %v1661
        %1663 = vmatprep.subr.mxu0 0.0
        %1664 = vmatpush1.msra.mxu0 0.0
        %1665 = vmatprep.subr.mxu0 0.0
        %1666 = vmatpush1.msra.mxu0 0.0
        %1667 = vmatprep.subr.mxu0 0.0
        %1668 = vmatpush1.msra.mxu0 0.0
        %1669 = vmatprep.subr.mxu0 0.0
        %1670 = vmatpush1.msra.mxu0 0.0
        %1671 = vmatprep.subr.mxu0 0.0
        %1672 = vmatpush1.msra.mxu0 0.0
        %1673 = vmatprep.subr.mxu0 0.0
        %1674 = vmatpush1.msra.mxu0 0.0
        %1675 = vmatprep.subr.mxu0 0.0
        %1676 = vmatpush1.msra.mxu0 0.0
        %1677 = vmatprep.subr.mxu0 0.0
        %1678 = vmatpush1.msra.mxu0 0.0
        %1679 = vmatprep.subr.mxu0 0.0
        %1680 = vmatpush1.msra.mxu0 0.0
        %1681 = vmatprep.subr.mxu0 0.0
        %1682 = vmatpush1.msra.mxu0 0.0
        %1683 = vmatprep.subr.mxu0 0.0
        %1684 = vmatpush1.msra.mxu0 0.0
        %1685 = vmatprep.subr.mxu0 0.0
        %1686 = vmatpush1.msra.mxu0 0.0
        %v1687 = vand.u32 %v705, 4294901760
        %v1688 = vsub.f32 %v705, %v1687
        %v1689 = vand.u32 %v1688, 4294901760
        %1690 = vmatprep.mubr.f32.mxu0 %v1689
        %v1691 = vand.u32 %v651, 4294901760
        %v1692 = vsub.f32 %v651, %v1691
        %v1693 = vand.u32 %v1692, 4294901760
        %1694 = vmatmul.mubr.f32.gmra.mrb[0].mxu0 %v1693
        %v1695 = vpop.f32.mrb[0].mxu0
        %v1696 = vadd.f32 %v1465, %v1695
        %v1697 = vpop.f32.mrb[0].mxu0
        %v1698 = vand.u32 %v708, 4294901760
        %v1699 = vsub.f32 %v708, %v1698
        %v1700 = vand.u32 %v1699, 4294901760
        %1701 = vmatprep.mubr.f32.mxu0 %v1700
        %v1702 = vand.u32 %v653, 4294901760
        %v1703 = vsub.f32 %v653, %v1702
        %v1704 = vand.u32 %v1703, 4294901760
        %1705 = vmatmul.mubr.f32.gmra.mrb[0].mxu0 %v1704
        %v1706 = vpop.f32.mrb[0].mxu0
        %v1707 = vadd.f32 %v1474, %v1706
        %v1708 = vpop.f32.mrb[0].mxu0
        %v1709 = vand.u32 %v711, 4294901760
        %v1710 = vsub.f32 %v711, %v1709
        %v1711 = vand.u32 %v1710, 4294901760
        %1712 = vmatprep.mubr.f32.mxu0 %v1711
        %v1713 = vand.u32 %v655, 4294901760
        %v1714 = vsub.f32 %v655, %v1713
        %v1715 = vand.u32 %v1714, 4294901760
        %1716 = vmatmul.mubr.f32.gmra.mrb[0].mxu0 %v1715
        %v1717 = vpop.f32.mrb[0].mxu0
        %v1718 = vadd.f32 %v1483, %v1717
        %v1719 = vpop.f32.mrb[0].mxu0
        %v1720 = vand.u32 %v714, 4294901760
        %v1721 = vsub.f32 %v714, %v1720
        %v1722 = vand.u32 %v1721, 4294901760
        %1723 = vmatprep.mubr.f32.mxu0 %v1722
        %v1724 = vand.u32 %v657, 4294901760
        %v1725 = vsub.f32 %v657, %v1724
        %v1726 = vand.u32 %v1725, 4294901760
        %1727 = vmatmul.mubr.f32.gmra.mrb[0].mxu0 %v1726
        %v1728 = vpop.f32.mrb[0].mxu0
        %v1729 = vadd.f32 %v1492, %v1728
        %v1730 = vpop.f32.mrb[0].mxu0
        %v1731 = vand.u32 %v717, 4294901760
        %v1732 = vsub.f32 %v717, %v1731
        %v1733 = vand.u32 %v1732, 4294901760
        %1734 = vmatprep.mubr.f32.mxu0 %v1733
        %v1735 = vand.u32 %v659, 4294901760
        %v1736 = vsub.f32 %v659, %v1735
        %v1737 = vand.u32 %v1736, 4294901760
        %1738 = vmatmul.mubr.f32.gmra.mrb[0].mxu0 %v1737
        %v1739 = vpop.f32.mrb[0].mxu0
        %v1740 = vadd.f32 %v1501, %v1739
        %v1741 = vpop.f32.mrb[0].mxu0
        %v1742 = vand.u32 %v720, 4294901760
        %v1743 = vsub.f32 %v720, %v1742
        %v1744 = vand.u32 %v1743, 4294901760
        %1745 = vmatprep.mubr.f32.mxu0 %v1744
        %v1746 = vand.u32 %v661, 4294901760
        %v1747 = vsub.f32 %v661, %v1746
        %v1748 = vand.u32 %v1747, 4294901760
        %1749 = vmatmul.mubr.f32.gmra.mrb[0].mxu0 %v1748
        %v1750 = vpop.f32.mrb[0].mxu0
        %v1751 = vadd.f32 %v1510, %v1750
        %v1752 = vpop.f32.mrb[0].mxu0
        %v1753 = vand.u32 %v723, 4294901760
        %v1754 = vsub.f32 %v723, %v1753
        %v1755 = vand.u32 %v1754, 4294901760
        %1756 = vmatprep.mubr.f32.mxu0 %v1755
        %v1757 = vand.u32 %v663, 4294901760
        %v1758 = vsub.f32 %v663, %v1757
        %v1759 = vand.u32 %v1758, 4294901760
        %1760 = vmatmul.mubr.f32.gmra.mrb[0].mxu0 %v1759
        %v1761 = vpop.f32.mrb[0].mxu0
        %v1762 = vadd.f32 %v1519, %v1761
        %v1763 = vpop.f32.mrb[0].mxu0
        %v1764 = vand.u32 %v726, 4294901760
        %v1765 = vsub.f32 %v726, %v1764
        %v1766 = vand.u32 %v1765, 4294901760
        %1767 = vmatprep.mubr.f32.mxu0 %v1766
        %v1768 = vand.u32 %v665, 4294901760
        %v1769 = vsub.f32 %v665, %v1768
        %v1770 = vand.u32 %v1769, 4294901760
        %1771 = vmatmul.mubr.f32.gmra.mrb[0].mxu0 %v1770
        %v1772 = vpop.f32.mrb[0].mxu0
        %v1773 = vadd.f32 %v1528, %v1772
        %v1774 = vpop.f32.mrb[0].mxu0
        %v1775 = vand.u32 %v729, 4294901760
        %v1776 = vsub.f32 %v729, %v1775
        %v1777 = vand.u32 %v1776, 4294901760
        %1778 = vmatprep.mubr.f32.mxu0 %v1777
        %v1779 = vand.u32 %v667, 4294901760
        %v1780 = vsub.f32 %v667, %v1779
        %v1781 = vand.u32 %v1780, 4294901760
        %1782 = vmatmul.mubr.f32.gmra.mrb[0].mxu0 %v1781
        %v1783 = vpop.f32.mrb[0].mxu0
        %v1784 = vadd.f32 %v1537, %v1783
        %v1785 = vpop.f32.mrb[0].mxu0
        %v1786 = vand.u32 %v732, 4294901760
        %v1787 = vsub.f32 %v732, %v1786
        %v1788 = vand.u32 %v1787, 4294901760
        %1789 = vmatprep.mubr.f32.mxu0 %v1788
        %v1790 = vand.u32 %v669, 4294901760
        %v1791 = vsub.f32 %v669, %v1790
        %v1792 = vand.u32 %v1791, 4294901760
        %1793 = vmatmul.mubr.f32.gmra.mrb[0].mxu0 %v1792
        %v1794 = vpop.f32.mrb[0].mxu0
        %v1795 = vadd.f32 %v1546, %v1794
        %v1796 = vpop.f32.mrb[0].mxu0
        %v1797 = vand.u32 %v735, 4294901760
        %v1798 = vsub.f32 %v735, %v1797
        %v1799 = vand.u32 %v1798, 4294901760
        %1800 = vmatprep.mubr.f32.mxu0 %v1799
        %v1801 = vand.u32 %v671, 4294901760
        %v1802 = vsub.f32 %v671, %v1801
        %v1803 = vand.u32 %v1802, 4294901760
        %1804 = vmatmul.mubr.f32.gmra.mrb[0].mxu0 %v1803
        %v1805 = vpop.f32.mrb[0].mxu0
        %v1806 = vadd.f32 %v1555, %v1805
        %v1807 = vpop.f32.mrb[0].mxu0
        %v1808 = vand.u32 %v738, 4294901760
        %v1809 = vsub.f32 %v738, %v1808
        %v1810 = vand.u32 %v1809, 4294901760
        %1811 = vmatprep.mubr.f32.mxu0 %v1810
        %v1812 = vand.u32 %v673, 4294901760
        %v1813 = vsub.f32 %v673, %v1812
        %v1814 = vand.u32 %v1813, 4294901760
        %1815 = vmatmul.mubr.f32.gmra.mrb[0].mxu0 %v1814
        %v1816 = vpop.f32.mrb[0].mxu0
        %v1817 = vadd.f32 %v1564, %v1816
        %v1818 = vpop.f32.mrb[0].mxu0
        %v1819 = vand.u32 %v741, 4294901760
        %v1820 = vsub.f32 %v741, %v1819
        %v1821 = vand.u32 %v1820, 4294901760
        %1822 = vmatprep.mubr.f32.mxu0 %v1821
        %v1823 = vand.u32 %v675, 4294901760
        %v1824 = vsub.f32 %v675, %v1823
        %v1825 = vand.u32 %v1824, 4294901760
        %1826 = vmatmul.mubr.f32.gmra.mrb[0].mxu0 %v1825
        %v1827 = vpop.f32.mrb[0].mxu0
        %v1828 = vadd.f32 %v1573, %v1827
        %v1829 = vpop.f32.mrb[0].mxu0
        %v1830 = vand.u32 %v744, 4294901760
        %v1831 = vsub.f32 %v744, %v1830
        %v1832 = vand.u32 %v1831, 4294901760
        %1833 = vmatprep.mubr.f32.mxu0 %v1832
        %v1834 = vand.u32 %v677, 4294901760
        %v1835 = vsub.f32 %v677, %v1834
        %v1836 = vand.u32 %v1835, 4294901760
        %1837 = vmatmul.mubr.f32.gmra.mrb[0].mxu0 %v1836
        %v1838 = vpop.f32.mrb[0].mxu0
        %v1839 = vadd.f32 %v1582, %v1838
        %v1840 = vpop.f32.mrb[0].mxu0
        %v1841 = vand.u32 %v747, 4294901760
        %v1842 = vsub.f32 %v747, %v1841
        %v1843 = vand.u32 %v1842, 4294901760
        %1844 = vmatprep.mubr.f32.mxu0 %v1843
        %v1845 = vand.u32 %v679, 4294901760
        %v1846 = vsub.f32 %v679, %v1845
        %v1847 = vand.u32 %v1846, 4294901760
        %1848 = vmatmul.mubr.f32.gmra.mrb[0].mxu0 %v1847
        %v1849 = vpop.f32.mrb[0].mxu0
        %v1850 = vadd.f32 %v1591, %v1849
        %v1851 = vpop.f32.mrb[0].mxu0
        %v1852 = vand.u32 %v750, 4294901760
        %v1853 = vsub.f32 %v750, %v1852
        %v1854 = vand.u32 %v1853, 4294901760
        %1855 = vmatprep.mubr.f32.mxu0 %v1854
        %v1856 = vand.u32 %v681, 4294901760
        %v1857 = vsub.f32 %v681, %v1856
        %v1858 = vand.u32 %v1857, 4294901760
        %1859 = vmatmul.mubr.f32.gmra.mrb[0].mxu0 %v1858
        %v1860 = vpop.f32.mrb[0].mxu0
        %v1861 = vadd.f32 %v1600, %v1860
        %v1862 = vpop.f32.mrb[0].mxu0
        %1863 = vdwg.mxu0
        %1864 = vmatprep.subr.mxu0 0.0
        %v1865 = vand.u32 %v683, 4294901760
        %v1866 = vsub.f32 %v683, %v1865
        %v1867 = vand.u32 %v1866, 4294901760
        %1868 = vmatpush1.msra.mxu0 %v1867
        %1869 = vmatprep.subr.mxu0 0.0
        %v1870 = vand.u32 %v684, 4294901760
        %v1871 = vsub.f32 %v684, %v1870
        %v1872 = vand.u32 %v1871, 4294901760
        %1873 = vmatpush1.msra.mxu0 %v1872
        %1874 = vmatprep.subr.mxu0 0.0
        %v1875 = vand.u32 %v685, 4294901760
        %v1876 = vsub.f32 %v685, %v1875
        %v1877 = vand.u32 %v1876, 4294901760
        %1878 = vmatpush1.msra.mxu0 %v1877
        %1879 = vmatprep.subr.mxu0 0.0
        %v1880 = vand.u32 %v686, 4294901760
        %v1881 = vsub.f32 %v686, %v1880
        %v1882 = vand.u32 %v1881, 4294901760
        %1883 = vmatpush1.msra.mxu0 %v1882
        %1884 = vmatprep.subr.mxu0 0.0
        %v1885 = vand.u32 %v687, 4294901760
        %v1886 = vsub.f32 %v687, %v1885
        %v1887 = vand.u32 %v1886, 4294901760
        %1888 = vmatpush1.msra.mxu0 %v1887
        %1889 = vmatprep.subr.mxu0 0.0
        %v1890 = vand.u32 %v688, 4294901760
        %v1891 = vsub.f32 %v688, %v1890
        %v1892 = vand.u32 %v1891, 4294901760
        %1893 = vmatpush1.msra.mxu0 %v1892
        %1894 = vmatprep.subr.mxu0 0.0
        %v1895 = vand.u32 %v689, 4294901760
        %v1896 = vsub.f32 %v689, %v1895
        %v1897 = vand.u32 %v1896, 4294901760
        %1898 = vmatpush1.msra.mxu0 %v1897
        %1899 = vmatprep.subr.mxu0 0.0
        %v1900 = vand.u32 %v690, 4294901760
        %v1901 = vsub.f32 %v690, %v1900
        %v1902 = vand.u32 %v1901, 4294901760
        %1903 = vmatpush1.msra.mxu0 %v1902
        %1904 = vmatprep.subr.mxu0 0.0
        %v1905 = vand.u32 %v691, 4294901760
        %v1906 = vsub.f32 %v691, %v1905
        %v1907 = vand.u32 %v1906, 4294901760
        %1908 = vmatpush1.msra.mxu0 %v1907
        %1909 = vmatprep.subr.mxu0 0.0
        %v1910 = vand.u32 %v692, 4294901760
        %v1911 = vsub.f32 %v692, %v1910
        %v1912 = vand.u32 %v1911, 4294901760
        %1913 = vmatpush1.msra.mxu0 %v1912
        %1914 = vmatprep.subr.mxu0 0.0
        %v1915 = vand.u32 %v693, 4294901760
        %v1916 = vsub.f32 %v693, %v1915
        %v1917 = vand.u32 %v1916, 4294901760
        %1918 = vmatpush1.msra.mxu0 %v1917
        %1919 = vmatprep.subr.mxu0 0.0
        %v1920 = vand.u32 %v694, 4294901760
        %v1921 = vsub.f32 %v694, %v1920
        %v1922 = vand.u32 %v1921, 4294901760
        %1923 = vmatpush1.msra.mxu0 %v1922
        %1924 = vmatprep.subr.mxu0 0.0
        %v1925 = vand.u32 %v695, 4294901760
        %v1926 = vsub.f32 %v695, %v1925
        %v1927 = vand.u32 %v1926, 4294901760
        %1928 = vmatpush1.msra.mxu0 %v1927
        %1929 = vmatprep.subr.mxu0 0.0
        %v1930 = vand.u32 %v696, 4294901760
        %v1931 = vsub.f32 %v696, %v1930
        %v1932 = vand.u32 %v1931, 4294901760
        %1933 = vmatpush1.msra.mxu0 %v1932
        %1934 = vmatprep.subr.mxu0 0.0
        %v1935 = vand.u32 %v697, 4294901760
        %v1936 = vsub.f32 %v697, %v1935
        %v1937 = vand.u32 %v1936, 4294901760
        %1938 = vmatpush1.msra.mxu0 %v1937
        %1939 = vmatprep.subr.mxu0 0.0
        %v1940 = vand.u32 %v698, 4294901760
        %v1941 = vsub.f32 %v698, %v1940
        %v1942 = vand.u32 %v1941, 4294901760
        %1943 = vmatpush1.msra.mxu0 %v1942
        %1944 = vmatprep.subr.mxu0 0.0
        %v1945 = vand.u32 %v699, 4294901760
        %v1946 = vsub.f32 %v699, %v1945
        %v1947 = vand.u32 %v1946, 4294901760
        %1948 = vmatpush1.msra.mxu0 %v1947
        %1949 = vmatprep.subr.mxu0 0.0
        %v1950 = vand.u32 %v700, 4294901760
        %v1951 = vsub.f32 %v700, %v1950
        %v1952 = vand.u32 %v1951, 4294901760
        %1953 = vmatpush1.msra.mxu0 %v1952
        %1954 = vmatprep.subr.mxu0 0.0
        %v1955 = vand.u32 %v701, 4294901760
        %v1956 = vsub.f32 %v701, %v1955
        %v1957 = vand.u32 %v1956, 4294901760
        %1958 = vmatpush1.msra.mxu0 %v1957
        %1959 = vmatprep.subr.mxu0 0.0
        %v1960 = vand.u32 %v702, 4294901760
        %v1961 = vsub.f32 %v702, %v1960
        %v1962 = vand.u32 %v1961, 4294901760
        %1963 = vmatpush1.msra.mxu0 %v1962
        %1964 = vmatprep.subr.mxu0 0.0
        %1965 = vmatpush1.msra.mxu0 0.0
        %1966 = vmatprep.subr.mxu0 0.0
        %1967 = vmatpush1.msra.mxu0 0.0
        %1968 = vmatprep.subr.mxu0 0.0
        %1969 = vmatpush1.msra.mxu0 0.0
        %1970 = vmatprep.subr.mxu0 0.0
        %1971 = vmatpush1.msra.mxu0 0.0
        %1972 = vmatprep.subr.mxu0 0.0
        %1973 = vmatpush1.msra.mxu0 0.0
        %1974 = vmatprep.subr.mxu0 0.0
        %1975 = vmatpush1.msra.mxu0 0.0
        %1976 = vmatprep.subr.mxu0 0.0
        %1977 = vmatpush1.msra.mxu0 0.0
        %1978 = vmatprep.subr.mxu0 0.0
        %1979 = vmatpush1.msra.mxu0 0.0
        %1980 = vmatprep.subr.mxu0 0.0
        %1981 = vmatpush1.msra.mxu0 0.0
        %1982 = vmatprep.subr.mxu0 0.0
        %1983 = vmatpush1.msra.mxu0 0.0
        %1984 = vmatprep.subr.mxu0 0.0
        %1985 = vmatpush1.msra.mxu0 0.0
        %1986 = vmatprep.subr.mxu0 0.0
        %1987 = vmatpush1.msra.mxu0 0.0
        %v1988 = vand.u32 %v705, 4294901760
        %1989 = vmatprep.mubr.f32.mxu0 %v1988
        %v1990 = vand.u32 %v651, 4294901760
        %1991 = vmatmul.mubr.f32.gmra.mrb[0].mxu0 %v1990
        %v1992 = vpop.f32.mrb[0].mxu0
        %v1993 = vadd.f32 %v1696, %v1992
        %v1994 = vpop.f32.mrb[0].mxu0
        %v1995 = vand.u32 %v708, 4294901760
        %1996 = vmatprep.mubr.f32.mxu0 %v1995
        %v1997 = vand.u32 %v653, 4294901760
        %1998 = vmatmul.mubr.f32.gmra.mrb[0].mxu0 %v1997
        %v1999 = vpop.f32.mrb[0].mxu0
        %v2000 = vadd.f32 %v1707, %v1999
        %v2001 = vpop.f32.mrb[0].mxu0
        %v2002 = vand.u32 %v711, 4294901760
        %2003 = vmatprep.mubr.f32.mxu0 %v2002
        %v2004 = vand.u32 %v655, 4294901760
        %2005 = vmatmul.mubr.f32.gmra.mrb[0].mxu0 %v2004
        %v2006 = vpop.f32.mrb[0].mxu0
        %v2007 = vadd.f32 %v1718, %v2006
        %v2008 = vpop.f32.mrb[0].mxu0
        %v2009 = vand.u32 %v714, 4294901760
        %2010 = vmatprep.mubr.f32.mxu0 %v2009
        %v2011 = vand.u32 %v657, 4294901760
        %2012 = vmatmul.mubr.f32.gmra.mrb[0].mxu0 %v2011
        %v2013 = vpop.f32.mrb[0].mxu0
        %v2014 = vadd.f32 %v1729, %v2013
        %v2015 = vpop.f32.mrb[0].mxu0
        %v2016 = vand.u32 %v717, 4294901760
        %2017 = vmatprep.mubr.f32.mxu0 %v2016
        %v2018 = vand.u32 %v659, 4294901760
        %2019 = vmatmul.mubr.f32.gmra.mrb[0].mxu0 %v2018
        %v2020 = vpop.f32.mrb[0].mxu0
        %v2021 = vadd.f32 %v1740, %v2020
        %v2022 = vpop.f32.mrb[0].mxu0
        %v2023 = vand.u32 %v720, 4294901760
        %2024 = vmatprep.mubr.f32.mxu0 %v2023
        %v2025 = vand.u32 %v661, 4294901760
        %2026 = vmatmul.mubr.f32.gmra.mrb[0].mxu0 %v2025
        %v2027 = vpop.f32.mrb[0].mxu0
        %v2028 = vadd.f32 %v1751, %v2027
        %v2029 = vpop.f32.mrb[0].mxu0
        %v2030 = vand.u32 %v723, 4294901760
        %2031 = vmatprep.mubr.f32.mxu0 %v2030
        %v2032 = vand.u32 %v663, 4294901760
        %2033 = vmatmul.mubr.f32.gmra.mrb[0].mxu0 %v2032
        %v2034 = vpop.f32.mrb[0].mxu0
        %v2035 = vadd.f32 %v1762, %v2034
        %v2036 = vpop.f32.mrb[0].mxu0
        %v2037 = vand.u32 %v726, 4294901760
        %2038 = vmatprep.mubr.f32.mxu0 %v2037
        %v2039 = vand.u32 %v665, 4294901760
        %2040 = vmatmul.mubr.f32.gmra.mrb[0].mxu0 %v2039
        %v2041 = vpop.f32.mrb[0].mxu0
        %v2042 = vadd.f32 %v1773, %v2041
        %v2043 = vpop.f32.mrb[0].mxu0
        %v2044 = vand.u32 %v729, 4294901760
        %2045 = vmatprep.mubr.f32.mxu0 %v2044
        %v2046 = vand.u32 %v667, 4294901760
        %2047 = vmatmul.mubr.f32.gmra.mrb[0].mxu0 %v2046
        %v2048 = vpop.f32.mrb[0].mxu0
        %v2049 = vadd.f32 %v1784, %v2048
        %v2050 = vpop.f32.mrb[0].mxu0
        %v2051 = vand.u32 %v732, 4294901760
        %2052 = vmatprep.mubr.f32.mxu0 %v2051
        %v2053 = vand.u32 %v669, 4294901760
        %2054 = vmatmul.mubr.f32.gmra.mrb[0].mxu0 %v2053
        %v2055 = vpop.f32.mrb[0].mxu0
        %v2056 = vadd.f32 %v1795, %v2055
        %v2057 = vpop.f32.mrb[0].mxu0
        %v2058 = vand.u32 %v735, 4294901760
        %2059 = vmatprep.mubr.f32.mxu0 %v2058
        %v2060 = vand.u32 %v671, 4294901760
        %2061 = vmatmul.mubr.f32.gmra.mrb[0].mxu0 %v2060
        %v2062 = vpop.f32.mrb[0].mxu0
        %v2063 = vadd.f32 %v1806, %v2062
        %v2064 = vpop.f32.mrb[0].mxu0
        %v2065 = vand.u32 %v738, 4294901760
        %2066 = vmatprep.mubr.f32.mxu0 %v2065
        %v2067 = vand.u32 %v673, 4294901760
        %2068 = vmatmul.mubr.f32.gmra.mrb[0].mxu0 %v2067
        %v2069 = vpop.f32.mrb[0].mxu0
        %v2070 = vadd.f32 %v1817, %v2069
        %v2071 = vpop.f32.mrb[0].mxu0
        %v2072 = vand.u32 %v741, 4294901760
        %2073 = vmatprep.mubr.f32.mxu0 %v2072
        %v2074 = vand.u32 %v675, 4294901760
        %2075 = vmatmul.mubr.f32.gmra.mrb[0].mxu0 %v2074
        %v2076 = vpop.f32.mrb[0].mxu0
        %v2077 = vadd.f32 %v1828, %v2076
        %v2078 = vpop.f32.mrb[0].mxu0
        %v2079 = vand.u32 %v744, 4294901760
        %2080 = vmatprep.mubr.f32.mxu0 %v2079
        %v2081 = vand.u32 %v677, 4294901760
        %2082 = vmatmul.mubr.f32.gmra.mrb[0].mxu0 %v2081
        %v2083 = vpop.f32.mrb[0].mxu0
        %v2084 = vadd.f32 %v1839, %v2083
        %v2085 = vpop.f32.mrb[0].mxu0
        %v2086 = vand.u32 %v747, 4294901760
        %2087 = vmatprep.mubr.f32.mxu0 %v2086
        %v2088 = vand.u32 %v679, 4294901760
        %2089 = vmatmul.mubr.f32.gmra.mrb[0].mxu0 %v2088
        %v2090 = vpop.f32.mrb[0].mxu0
        %v2091 = vadd.f32 %v1850, %v2090
        %v2092 = vpop.f32.mrb[0].mxu0
        %v2093 = vand.u32 %v750, 4294901760
        %2094 = vmatprep.mubr.f32.mxu0 %v2093
        %v2095 = vand.u32 %v681, 4294901760
        %2096 = vmatmul.mubr.f32.gmra.mrb[0].mxu0 %v2095
        %v2097 = vpop.f32.mrb[0].mxu0
        %v2098 = vadd.f32 %v1861, %v2097
        %v2099 = vpop.f32.mrb[0].mxu0
        %2100 = vdwg.mxu0
        %2101 = vmatprep.subr.mxu0 0.0
        %v2102 = vand.u32 %v683, 4294901760
        %2103 = vmatpush1.msra.mxu0 %v2102
        %2104 = vmatprep.subr.mxu0 0.0
        %v2105 = vand.u32 %v684, 4294901760
        %2106 = vmatpush1.msra.mxu0 %v2105
        %2107 = vmatprep.subr.mxu0 0.0
        %v2108 = vand.u32 %v685, 4294901760
        %2109 = vmatpush1.msra.mxu0 %v2108
        %2110 = vmatprep.subr.mxu0 0.0
        %v2111 = vand.u32 %v686, 4294901760
        %2112 = vmatpush1.msra.mxu0 %v2111
        %2113 = vmatprep.subr.mxu0 0.0
        %v2114 = vand.u32 %v687, 4294901760
        %2115 = vmatpush1.msra.mxu0 %v2114
        %2116 = vmatprep.subr.mxu0 0.0
        %v2117 = vand.u32 %v688, 4294901760
        %2118 = vmatpush1.msra.mxu0 %v2117
        %2119 = vmatprep.subr.mxu0 0.0
        %v2120 = vand.u32 %v689, 4294901760
        %2121 = vmatpush1.msra.mxu0 %v2120
        %2122 = vmatprep.subr.mxu0 0.0
        %v2123 = vand.u32 %v690, 4294901760
        %2124 = vmatpush1.msra.mxu0 %v2123
        %2125 = vmatprep.subr.mxu0 0.0
        %v2126 = vand.u32 %v691, 4294901760
        %2127 = vmatpush1.msra.mxu0 %v2126
        %2128 = vmatprep.subr.mxu0 0.0
        %v2129 = vand.u32 %v692, 4294901760
        %2130 = vmatpush1.msra.mxu0 %v2129
        %2131 = vmatprep.subr.mxu0 0.0
        %v2132 = vand.u32 %v693, 4294901760
        %2133 = vmatpush1.msra.mxu0 %v2132
        %2134 = vmatprep.subr.mxu0 0.0
        %v2135 = vand.u32 %v694, 4294901760
        %2136 = vmatpush1.msra.mxu0 %v2135
        %2137 = vmatprep.subr.mxu0 0.0
        %v2138 = vand.u32 %v695, 4294901760
        %2139 = vmatpush1.msra.mxu0 %v2138
        %2140 = vmatprep.subr.mxu0 0.0
        %v2141 = vand.u32 %v696, 4294901760
        %2142 = vmatpush1.msra.mxu0 %v2141
        %2143 = vmatprep.subr.mxu0 0.0
        %v2144 = vand.u32 %v697, 4294901760
        %2145 = vmatpush1.msra.mxu0 %v2144
        %2146 = vmatprep.subr.mxu0 0.0
        %v2147 = vand.u32 %v698, 4294901760
        %2148 = vmatpush1.msra.mxu0 %v2147
        %2149 = vmatprep.subr.mxu0 0.0
        %v2150 = vand.u32 %v699, 4294901760
        %2151 = vmatpush1.msra.mxu0 %v2150
        %2152 = vmatprep.subr.mxu0 0.0
        %v2153 = vand.u32 %v700, 4294901760
        %2154 = vmatpush1.msra.mxu0 %v2153
        %2155 = vmatprep.subr.mxu0 0.0
        %v2156 = vand.u32 %v701, 4294901760
        %2157 = vmatpush1.msra.mxu0 %v2156
        %2158 = vmatprep.subr.mxu0 0.0
        %v2159 = vand.u32 %v702, 4294901760
        %2160 = vmatpush1.msra.mxu0 %v2159
        %2161 = vmatprep.subr.mxu0 0.0
        %2162 = vmatpush1.msra.mxu0 0.0
        %2163 = vmatprep.subr.mxu0 0.0
        %2164 = vmatpush1.msra.mxu0 0.0
        %2165 = vmatprep.subr.mxu0 0.0
        %2166 = vmatpush1.msra.mxu0 0.0
        %2167 = vmatprep.subr.mxu0 0.0
        %2168 = vmatpush1.msra.mxu0 0.0
        %2169 = vmatprep.subr.mxu0 0.0
        %2170 = vmatpush1.msra.mxu0 0.0
        %2171 = vmatprep.subr.mxu0 0.0
        %2172 = vmatpush1.msra.mxu0 0.0
        %2173 = vmatprep.subr.mxu0 0.0
        %2174 = vmatpush1.msra.mxu0 0.0
        %2175 = vmatprep.subr.mxu0 0.0
        %2176 = vmatpush1.msra.mxu0 0.0
        %2177 = vmatprep.subr.mxu0 0.0
        %2178 = vmatpush1.msra.mxu0 0.0
        %2179 = vmatprep.subr.mxu0 0.0
        %2180 = vmatpush1.msra.mxu0 0.0
        %2181 = vmatprep.subr.mxu0 0.0
        %2182 = vmatpush1.msra.mxu0 0.0
        %2183 = vmatprep.subr.mxu0 0.0
        %2184 = vmatpush1.msra.mxu0 0.0
        %v2185 = vand.u32 %v705, 4294901760
        %2186 = vmatprep.mubr.f32.mxu0 %v2185
        %v2187 = vand.u32 %v651, 4294901760
        %2188 = vmatmul.mubr.f32.gmra.mrb[0].mxu0 %v2187
        %v2189 = vpop.f32.mrb[0].mxu0
        %v2190 = vadd.f32 %v1993, %v2189
        %v2191 = vpop.f32.mrb[0].mxu0
        %v2192 = vand.u32 %v708, 4294901760
        %2193 = vmatprep.mubr.f32.mxu0 %v2192
        %v2194 = vand.u32 %v653, 4294901760
        %2195 = vmatmul.mubr.f32.gmra.mrb[0].mxu0 %v2194
        %v2196 = vpop.f32.mrb[0].mxu0
        %v2197 = vadd.f32 %v2000, %v2196
        %v2198 = vpop.f32.mrb[0].mxu0
        %v2199 = vand.u32 %v711, 4294901760
        %2200 = vmatprep.mubr.f32.mxu0 %v2199
        %v2201 = vand.u32 %v655, 4294901760
        %2202 = vmatmul.mubr.f32.gmra.mrb[0].mxu0 %v2201
        %v2203 = vpop.f32.mrb[0].mxu0
        %v2204 = vadd.f32 %v2007, %v2203
        %v2205 = vpop.f32.mrb[0].mxu0
        %v2206 = vand.u32 %v714, 4294901760
        %2207 = vmatprep.mubr.f32.mxu0 %v2206
        %v2208 = vand.u32 %v657, 4294901760
        %2209 = vmatmul.mubr.f32.gmra.mrb[0].mxu0 %v2208
        %v2210 = vpop.f32.mrb[0].mxu0
        %v2211 = vadd.f32 %v2014, %v2210
        %v2212 = vpop.f32.mrb[0].mxu0
        %v2213 = vand.u32 %v717, 4294901760
        %2214 = vmatprep.mubr.f32.mxu0 %v2213
        %v2215 = vand.u32 %v659, 4294901760
        %2216 = vmatmul.mubr.f32.gmra.mrb[0].mxu0 %v2215
        %v2217 = vpop.f32.mrb[0].mxu0
        %v2218 = vadd.f32 %v2021, %v2217
        %v2219 = vpop.f32.mrb[0].mxu0
        %v2220 = vand.u32 %v720, 4294901760
        %2221 = vmatprep.mubr.f32.mxu0 %v2220
        %v2222 = vand.u32 %v661, 4294901760
        %2223 = vmatmul.mubr.f32.gmra.mrb[0].mxu0 %v2222
        %v2224 = vpop.f32.mrb[0].mxu0
        %v2225 = vadd.f32 %v2028, %v2224
        %v2226 = vpop.f32.mrb[0].mxu0
        %v2227 = vand.u32 %v723, 4294901760
        %2228 = vmatprep.mubr.f32.mxu0 %v2227
        %v2229 = vand.u32 %v663, 4294901760
        %2230 = vmatmul.mubr.f32.gmra.mrb[0].mxu0 %v2229
        %v2231 = vpop.f32.mrb[0].mxu0
        %v2232 = vadd.f32 %v2035, %v2231
        %v2233 = vpop.f32.mrb[0].mxu0
        %v2234 = vand.u32 %v726, 4294901760
        %2235 = vmatprep.mubr.f32.mxu0 %v2234
        %v2236 = vand.u32 %v665, 4294901760
        %2237 = vmatmul.mubr.f32.gmra.mrb[0].mxu0 %v2236
        %v2238 = vpop.f32.mrb[0].mxu0
        %v2239 = vadd.f32 %v2042, %v2238
        %v2240 = vpop.f32.mrb[0].mxu0
        %v2241 = vand.u32 %v729, 4294901760
        %2242 = vmatprep.mubr.f32.mxu0 %v2241
        %v2243 = vand.u32 %v667, 4294901760
        %2244 = vmatmul.mubr.f32.gmra.mrb[0].mxu0 %v2243
        %v2245 = vpop.f32.mrb[0].mxu0
        %v2246 = vadd.f32 %v2049, %v2245
        %v2247 = vpop.f32.mrb[0].mxu0
        %v2248 = vand.u32 %v732, 4294901760
        %2249 = vmatprep.mubr.f32.mxu0 %v2248
        %v2250 = vand.u32 %v669, 4294901760
        %2251 = vmatmul.mubr.f32.gmra.mrb[0].mxu0 %v2250
        %v2252 = vpop.f32.mrb[0].mxu0
        %v2253 = vadd.f32 %v2056, %v2252
        %v2254 = vpop.f32.mrb[0].mxu0
        %v2255 = vand.u32 %v735, 4294901760
        %2256 = vmatprep.mubr.f32.mxu0 %v2255
        %v2257 = vand.u32 %v671, 4294901760
        %2258 = vmatmul.mubr.f32.gmra.mrb[0].mxu0 %v2257
        %v2259 = vpop.f32.mrb[0].mxu0
        %v2260 = vadd.f32 %v2063, %v2259
        %v2261 = vpop.f32.mrb[0].mxu0
        %v2262 = vand.u32 %v738, 4294901760
        %2263 = vmatprep.mubr.f32.mxu0 %v2262
        %v2264 = vand.u32 %v673, 4294901760
        %2265 = vmatmul.mubr.f32.gmra.mrb[0].mxu0 %v2264
        %v2266 = vpop.f32.mrb[0].mxu0
        %v2267 = vadd.f32 %v2070, %v2266
        %v2268 = vpop.f32.mrb[0].mxu0
        %v2269 = vand.u32 %v741, 4294901760
        %2270 = vmatprep.mubr.f32.mxu0 %v2269
        %v2271 = vand.u32 %v675, 4294901760
        %2272 = vmatmul.mubr.f32.gmra.mrb[0].mxu0 %v2271
        %v2273 = vpop.f32.mrb[0].mxu0
        %v2274 = vadd.f32 %v2077, %v2273
        %v2275 = vpop.f32.mrb[0].mxu0
        %v2276 = vand.u32 %v744, 4294901760
        %2277 = vmatprep.mubr.f32.mxu0 %v2276
        %v2278 = vand.u32 %v677, 4294901760
        %2279 = vmatmul.mubr.f32.gmra.mrb[0].mxu0 %v2278
        %v2280 = vpop.f32.mrb[0].mxu0
        %v2281 = vadd.f32 %v2084, %v2280
        %v2282 = vpop.f32.mrb[0].mxu0
        %v2283 = vand.u32 %v747, 4294901760
        %2284 = vmatprep.mubr.f32.mxu0 %v2283
        %v2285 = vand.u32 %v679, 4294901760
        %2286 = vmatmul.mubr.f32.gmra.mrb[0].mxu0 %v2285
        %v2287 = vpop.f32.mrb[0].mxu0
        %v2288 = vadd.f32 %v2091, %v2287
        %v2289 = vpop.f32.mrb[0].mxu0
        %v2290 = vand.u32 %v750, 4294901760
        %2291 = vmatprep.mubr.f32.mxu0 %v2290
        %v2292 = vand.u32 %v681, 4294901760
        %2293 = vmatmul.mubr.f32.gmra.mrb[0].mxu0 %v2292
        %v2294 = vpop.f32.mrb[0].mxu0
        %v2295 = vadd.f32 %v2098, %v2294
        %v2296 = vpop.f32.mrb[0].mxu0
        %2297 = vdwg.mxu0
        %vm2298 = vcmask 523264
        %v2300 = vsel %vm2298, %v498, 0
        %v2303 = vsel %vm2298, %v499, 0
        %v2306 = vsel %vm2298, %v500, 0
        %v2309 = vsel %vm2298, %v501, 0
        %v2312 = vsel %vm2298, %v502, 0
        %v2315 = vsel %vm2298, %v503, 0
        %v2318 = vsel %vm2298, %v504, 0
        %v2321 = vsel %vm2298, %v505, 0
        %v2324 = vsel %vm2298, %v506, 0
        %v2327 = vsel %vm2298, %v507, 0
        %v2330 = vsel %vm2298, %v508, 0
        %v2333 = vsel %vm2298, %v509, 0
        %v2336 = vsel %vm2298, %v510, 0
        %v2339 = vsel %vm2298, %v511, 0
        %v2342 = vsel %vm2298, %v512, 0
        %v2345 = vsel %vm2298, %v513, 0
        %2347 = vmatprep.subr.mxu0 0.0
        %v2348 = vand.u32 %v514, 4294901760
        %2349 = vmatpush1.msra.mxu0 %v2348
        %2350 = vmatprep.subr.mxu0 0.0
        %v2351 = vand.u32 %v515, 4294901760
        %2352 = vmatpush1.msra.mxu0 %v2351
        %2353 = vmatprep.subr.mxu0 0.0
        %v2354 = vand.u32 %v516, 4294901760
        %2355 = vmatpush1.msra.mxu0 %v2354
        %2356 = vmatprep.subr.mxu0 0.0
        %v2357 = vand.u32 %v517, 4294901760
        %2358 = vmatpush1.msra.mxu0 %v2357
        %2359 = vmatprep.subr.mxu0 0.0
        %v2360 = vand.u32 %v518, 4294901760
        %2361 = vmatpush1.msra.mxu0 %v2360
        %2362 = vmatprep.subr.mxu0 0.0
        %v2363 = vand.u32 %v519, 4294901760
        %2364 = vmatpush1.msra.mxu0 %v2363
        %2365 = vmatprep.subr.mxu0 0.0
        %v2366 = vand.u32 %v520, 4294901760
        %2367 = vmatpush1.msra.mxu0 %v2366
        %2368 = vmatprep.subr.mxu0 0.0
        %v2369 = vand.u32 %v521, 4294901760
        %2370 = vmatpush1.msra.mxu0 %v2369
        %2371 = vmatprep.subr.mxu0 0.0
        %2372 = vmatpush1.msra.mxu0 0.0
        %2373 = vmatprep.subr.mxu0 0.0
        %2374 = vmatpush1.msra.mxu0 0.0
        %2375 = vmatprep.subr.mxu0 0.0
        %2376 = vmatpush1.msra.mxu0 0.0
        %2377 = vmatprep.subr.mxu0 0.0
        %2378 = vmatpush1.msra.mxu0 0.0
        %2379 = vmatprep.subr.mxu0 0.0
        %2380 = vmatpush1.msra.mxu0 0.0
        %2381 = vmatprep.subr.mxu0 0.0
        %2382 = vmatpush1.msra.mxu0 0.0
        %2383 = vmatprep.subr.mxu0 0.0
        %2384 = vmatpush1.msra.mxu0 0.0
        %2385 = vmatprep.subr.mxu0 0.0
        %2386 = vmatpush1.msra.mxu0 0.0
        %2387 = vmatprep.subr.mxu0 0.0
        %2388 = vmatpush1.msra.mxu0 0.0
        %2389 = vmatprep.subr.mxu0 0.0
        %2390 = vmatpush1.msra.mxu0 0.0
        %2391 = vmatprep.subr.mxu0 0.0
        %2392 = vmatpush1.msra.mxu0 0.0
        %2393 = vmatprep.subr.mxu0 0.0
        %2394 = vmatpush1.msra.mxu0 0.0
        %2395 = vmatprep.subr.mxu0 0.0
        %2396 = vmatpush1.msra.mxu0 0.0
        %2397 = vmatprep.subr.mxu0 0.0
        %2398 = vmatpush1.msra.mxu0 0.0
        %2399 = vmatprep.subr.mxu0 0.0
        %2400 = vmatpush1.msra.mxu0 0.0
        %2401 = vmatprep.subr.mxu0 0.0
        %2402 = vmatpush1.msra.mxu0 0.0
        %2403 = vmatprep.subr.mxu0 0.0
        %2404 = vmatpush1.msra.mxu0 0.0
        %2405 = vmatprep.subr.mxu0 0.0
        %2406 = vmatpush1.msra.mxu0 0.0
        %2407 = vmatprep.subr.mxu0 0.0
        %2408 = vmatpush1.msra.mxu0 0.0
        %2409 = vmatprep.subr.mxu0 0.0
        %2410 = vmatpush1.msra.mxu0 0.0
        %2411 = vmatprep.subr.mxu0 0.0
        %2412 = vmatpush1.msra.mxu0 0.0
        %2413 = vmatprep.subr.mxu0 0.0
        %2414 = vmatpush1.msra.mxu0 0.0
        %2415 = vmatprep.subr.mxu0 0.0
        %2416 = vmatpush1.msra.mxu0 0.0
        %2417 = vmatprep.subr.mxu0 0.0
        %2418 = vmatpush1.msra.mxu0 0.0
        %2419 = vmatprep.mubr.f32.mxu0 0.0
        %v2420 = vand.u32 %v2300, 4294901760
        %v2421 = vsub.f32 %v2300, %v2420
        %v2422 = vand.u32 %v2421, 4294901760
        %v2423 = vsub.f32 %v2421, %v2422
        %v2424 = vand.u32 %v2423, 4294901760
        %2425 = vmatmul.mubr.f32.gmra.mrb[0].mxu0 %v2424
        %v2426 = vpop.f32.mrb[0].mxu0
        %v2427 = vadd.f32 %v2190, %v2426
        %v2428 = vpop.f32.mrb[0].mxu0
        %2429 = vmatprep.mubr.f32.mxu0 0.0
        %v2430 = vand.u32 %v2303, 4294901760
        %v2431 = vsub.f32 %v2303, %v2430
        %v2432 = vand.u32 %v2431, 4294901760
        %v2433 = vsub.f32 %v2431, %v2432
        %v2434 = vand.u32 %v2433, 4294901760
        %2435 = vmatmul.mubr.f32.gmra.mrb[0].mxu0 %v2434
        %v2436 = vpop.f32.mrb[0].mxu0
        %v2437 = vadd.f32 %v2197, %v2436
        %v2438 = vpop.f32.mrb[0].mxu0
        %2439 = vmatprep.mubr.f32.mxu0 0.0
        %v2440 = vand.u32 %v2306, 4294901760
        %v2441 = vsub.f32 %v2306, %v2440
        %v2442 = vand.u32 %v2441, 4294901760
        %v2443 = vsub.f32 %v2441, %v2442
        %v2444 = vand.u32 %v2443, 4294901760
        %2445 = vmatmul.mubr.f32.gmra.mrb[0].mxu0 %v2444
        %v2446 = vpop.f32.mrb[0].mxu0
        %v2447 = vadd.f32 %v2204, %v2446
        %v2448 = vpop.f32.mrb[0].mxu0
        %2449 = vmatprep.mubr.f32.mxu0 0.0
        %v2450 = vand.u32 %v2309, 4294901760
        %v2451 = vsub.f32 %v2309, %v2450
        %v2452 = vand.u32 %v2451, 4294901760
        %v2453 = vsub.f32 %v2451, %v2452
        %v2454 = vand.u32 %v2453, 4294901760
        %2455 = vmatmul.mubr.f32.gmra.mrb[0].mxu0 %v2454
        %v2456 = vpop.f32.mrb[0].mxu0
        %v2457 = vadd.f32 %v2211, %v2456
        %v2458 = vpop.f32.mrb[0].mxu0
        %2459 = vmatprep.mubr.f32.mxu0 0.0
        %v2460 = vand.u32 %v2312, 4294901760
        %v2461 = vsub.f32 %v2312, %v2460
        %v2462 = vand.u32 %v2461, 4294901760
        %v2463 = vsub.f32 %v2461, %v2462
        %v2464 = vand.u32 %v2463, 4294901760
        %2465 = vmatmul.mubr.f32.gmra.mrb[0].mxu0 %v2464
        %v2466 = vpop.f32.mrb[0].mxu0
        %v2467 = vadd.f32 %v2218, %v2466
        %v2468 = vpop.f32.mrb[0].mxu0
        %2469 = vmatprep.mubr.f32.mxu0 0.0
        %v2470 = vand.u32 %v2315, 4294901760
        %v2471 = vsub.f32 %v2315, %v2470
        %v2472 = vand.u32 %v2471, 4294901760
        %v2473 = vsub.f32 %v2471, %v2472
        %v2474 = vand.u32 %v2473, 4294901760
        %2475 = vmatmul.mubr.f32.gmra.mrb[0].mxu0 %v2474
        %v2476 = vpop.f32.mrb[0].mxu0
        %v2477 = vadd.f32 %v2225, %v2476
        %v2478 = vpop.f32.mrb[0].mxu0
        %2479 = vmatprep.mubr.f32.mxu0 0.0
        %v2480 = vand.u32 %v2318, 4294901760
        %v2481 = vsub.f32 %v2318, %v2480
        %v2482 = vand.u32 %v2481, 4294901760
        %v2483 = vsub.f32 %v2481, %v2482
        %v2484 = vand.u32 %v2483, 4294901760
        %2485 = vmatmul.mubr.f32.gmra.mrb[0].mxu0 %v2484
        %v2486 = vpop.f32.mrb[0].mxu0
        %v2487 = vadd.f32 %v2232, %v2486
        %v2488 = vpop.f32.mrb[0].mxu0
        %2489 = vmatprep.mubr.f32.mxu0 0.0
        %v2490 = vand.u32 %v2321, 4294901760
        %v2491 = vsub.f32 %v2321, %v2490
        %v2492 = vand.u32 %v2491, 4294901760
        %v2493 = vsub.f32 %v2491, %v2492
        %v2494 = vand.u32 %v2493, 4294901760
        %2495 = vmatmul.mubr.f32.gmra.mrb[0].mxu0 %v2494
        %v2496 = vpop.f32.mrb[0].mxu0
        %v2497 = vadd.f32 %v2239, %v2496
        %v2498 = vpop.f32.mrb[0].mxu0
        %2499 = vmatprep.mubr.f32.mxu0 0.0
        %v2500 = vand.u32 %v2324, 4294901760
        %v2501 = vsub.f32 %v2324, %v2500
        %v2502 = vand.u32 %v2501, 4294901760
        %v2503 = vsub.f32 %v2501, %v2502
        %v2504 = vand.u32 %v2503, 4294901760
        %2505 = vmatmul.mubr.f32.gmra.mrb[0].mxu0 %v2504
        %v2506 = vpop.f32.mrb[0].mxu0
        %v2507 = vadd.f32 %v2246, %v2506
        %v2508 = vpop.f32.mrb[0].mxu0
        %2509 = vmatprep.mubr.f32.mxu0 0.0
        %v2510 = vand.u32 %v2327, 4294901760
        %v2511 = vsub.f32 %v2327, %v2510
        %v2512 = vand.u32 %v2511, 4294901760
        %v2513 = vsub.f32 %v2511, %v2512
        %v2514 = vand.u32 %v2513, 4294901760
        %2515 = vmatmul.mubr.f32.gmra.mrb[0].mxu0 %v2514
        %v2516 = vpop.f32.mrb[0].mxu0
        %v2517 = vadd.f32 %v2253, %v2516
        %v2518 = vpop.f32.mrb[0].mxu0
        %2519 = vmatprep.mubr.f32.mxu0 0.0
        %v2520 = vand.u32 %v2330, 4294901760
        %v2521 = vsub.f32 %v2330, %v2520
        %v2522 = vand.u32 %v2521, 4294901760
        %v2523 = vsub.f32 %v2521, %v2522
        %v2524 = vand.u32 %v2523, 4294901760
        %2525 = vmatmul.mubr.f32.gmra.mrb[0].mxu0 %v2524
        %v2526 = vpop.f32.mrb[0].mxu0
        %v2527 = vadd.f32 %v2260, %v2526
        %v2528 = vpop.f32.mrb[0].mxu0
        %2529 = vmatprep.mubr.f32.mxu0 0.0
        %v2530 = vand.u32 %v2333, 4294901760
        %v2531 = vsub.f32 %v2333, %v2530
        %v2532 = vand.u32 %v2531, 4294901760
        %v2533 = vsub.f32 %v2531, %v2532
        %v2534 = vand.u32 %v2533, 4294901760
        %2535 = vmatmul.mubr.f32.gmra.mrb[0].mxu0 %v2534
        %v2536 = vpop.f32.mrb[0].mxu0
        %v2537 = vadd.f32 %v2267, %v2536
        %v2538 = vpop.f32.mrb[0].mxu0
        %2539 = vmatprep.mubr.f32.mxu0 0.0
        %v2540 = vand.u32 %v2336, 4294901760
        %v2541 = vsub.f32 %v2336, %v2540
        %v2542 = vand.u32 %v2541, 4294901760
        %v2543 = vsub.f32 %v2541, %v2542
        %v2544 = vand.u32 %v2543, 4294901760
        %2545 = vmatmul.mubr.f32.gmra.mrb[0].mxu0 %v2544
        %v2546 = vpop.f32.mrb[0].mxu0
        %v2547 = vadd.f32 %v2274, %v2546
        %v2548 = vpop.f32.mrb[0].mxu0
        %2549 = vmatprep.mubr.f32.mxu0 0.0
        %v2550 = vand.u32 %v2339, 4294901760
        %v2551 = vsub.f32 %v2339, %v2550
        %v2552 = vand.u32 %v2551, 4294901760
        %v2553 = vsub.f32 %v2551, %v2552
        %v2554 = vand.u32 %v2553, 4294901760
        %2555 = vmatmul.mubr.f32.gmra.mrb[0].mxu0 %v2554
        %v2556 = vpop.f32.mrb[0].mxu0
        %v2557 = vadd.f32 %v2281, %v2556
        %v2558 = vpop.f32.mrb[0].mxu0
        %2559 = vmatprep.mubr.f32.mxu0 0.0
        %v2560 = vand.u32 %v2342, 4294901760
        %v2561 = vsub.f32 %v2342, %v2560
        %v2562 = vand.u32 %v2561, 4294901760
        %v2563 = vsub.f32 %v2561, %v2562
        %v2564 = vand.u32 %v2563, 4294901760
        %2565 = vmatmul.mubr.f32.gmra.mrb[0].mxu0 %v2564
        %v2566 = vpop.f32.mrb[0].mxu0
        %v2567 = vadd.f32 %v2288, %v2566
        %v2568 = vpop.f32.mrb[0].mxu0
        %2569 = vmatprep.mubr.f32.mxu0 0.0
        %v2570 = vand.u32 %v2345, 4294901760
        %v2571 = vsub.f32 %v2345, %v2570
        %v2572 = vand.u32 %v2571, 4294901760
        %v2573 = vsub.f32 %v2571, %v2572
        %v2574 = vand.u32 %v2573, 4294901760
        %2575 = vmatmul.mubr.f32.gmra.mrb[0].mxu0 %v2574
        %v2576 = vpop.f32.mrb[0].mxu0
        %v2577 = vadd.f32 %v2295, %v2576
        %v2578 = vpop.f32.mrb[0].mxu0
        %2579 = vdwg.mxu0
        %2580 = vmatprep.subr.mxu0 0.0
        %v2581 = vand.u32 %v514, 4294901760
        %v2582 = vsub.f32 %v514, %v2581
        %v2583 = vand.u32 %v2582, 4294901760
        %v2584 = vsub.f32 %v2582, %v2583
        %v2585 = vand.u32 %v2584, 4294901760
        %2586 = vmatpush1.msra.mxu0 %v2585
        %2587 = vmatprep.subr.mxu0 0.0
        %v2588 = vand.u32 %v515, 4294901760
        %v2589 = vsub.f32 %v515, %v2588
        %v2590 = vand.u32 %v2589, 4294901760
        %v2591 = vsub.f32 %v2589, %v2590
        %v2592 = vand.u32 %v2591, 4294901760
        %2593 = vmatpush1.msra.mxu0 %v2592
        %2594 = vmatprep.subr.mxu0 0.0
        %v2595 = vand.u32 %v516, 4294901760
        %v2596 = vsub.f32 %v516, %v2595
        %v2597 = vand.u32 %v2596, 4294901760
        %v2598 = vsub.f32 %v2596, %v2597
        %v2599 = vand.u32 %v2598, 4294901760
        %2600 = vmatpush1.msra.mxu0 %v2599
        %2601 = vmatprep.subr.mxu0 0.0
        %v2602 = vand.u32 %v517, 4294901760
        %v2603 = vsub.f32 %v517, %v2602
        %v2604 = vand.u32 %v2603, 4294901760
        %v2605 = vsub.f32 %v2603, %v2604
        %v2606 = vand.u32 %v2605, 4294901760
        %2607 = vmatpush1.msra.mxu0 %v2606
        %2608 = vmatprep.subr.mxu0 0.0
        %v2609 = vand.u32 %v518, 4294901760
        %v2610 = vsub.f32 %v518, %v2609
        %v2611 = vand.u32 %v2610, 4294901760
        %v2612 = vsub.f32 %v2610, %v2611
        %v2613 = vand.u32 %v2612, 4294901760
        %2614 = vmatpush1.msra.mxu0 %v2613
        %2615 = vmatprep.subr.mxu0 0.0
        %v2616 = vand.u32 %v519, 4294901760
        %v2617 = vsub.f32 %v519, %v2616
        %v2618 = vand.u32 %v2617, 4294901760
        %v2619 = vsub.f32 %v2617, %v2618
        %v2620 = vand.u32 %v2619, 4294901760
        %2621 = vmatpush1.msra.mxu0 %v2620
        %2622 = vmatprep.subr.mxu0 0.0
        %v2623 = vand.u32 %v520, 4294901760
        %v2624 = vsub.f32 %v520, %v2623
        %v2625 = vand.u32 %v2624, 4294901760
        %v2626 = vsub.f32 %v2624, %v2625
        %v2627 = vand.u32 %v2626, 4294901760
        %2628 = vmatpush1.msra.mxu0 %v2627
        %2629 = vmatprep.subr.mxu0 0.0
        %v2630 = vand.u32 %v521, 4294901760
        %v2631 = vsub.f32 %v521, %v2630
        %v2632 = vand.u32 %v2631, 4294901760
        %v2633 = vsub.f32 %v2631, %v2632
        %v2634 = vand.u32 %v2633, 4294901760
        %2635 = vmatpush1.msra.mxu0 %v2634
        %2636 = vmatprep.subr.mxu0 0.0
        %2637 = vmatpush1.msra.mxu0 0.0
        %2638 = vmatprep.subr.mxu0 0.0
        %2639 = vmatpush1.msra.mxu0 0.0
        %2640 = vmatprep.subr.mxu0 0.0
        %2641 = vmatpush1.msra.mxu0 0.0
        %2642 = vmatprep.subr.mxu0 0.0
        %2643 = vmatpush1.msra.mxu0 0.0
        %2644 = vmatprep.subr.mxu0 0.0
        %2645 = vmatpush1.msra.mxu0 0.0
        %2646 = vmatprep.subr.mxu0 0.0
        %2647 = vmatpush1.msra.mxu0 0.0
        %2648 = vmatprep.subr.mxu0 0.0
        %2649 = vmatpush1.msra.mxu0 0.0
        %2650 = vmatprep.subr.mxu0 0.0
        %2651 = vmatpush1.msra.mxu0 0.0
        %2652 = vmatprep.subr.mxu0 0.0
        %2653 = vmatpush1.msra.mxu0 0.0
        %2654 = vmatprep.subr.mxu0 0.0
        %2655 = vmatpush1.msra.mxu0 0.0
        %2656 = vmatprep.subr.mxu0 0.0
        %2657 = vmatpush1.msra.mxu0 0.0
        %2658 = vmatprep.subr.mxu0 0.0
        %2659 = vmatpush1.msra.mxu0 0.0
        %2660 = vmatprep.subr.mxu0 0.0
        %2661 = vmatpush1.msra.mxu0 0.0
        %2662 = vmatprep.subr.mxu0 0.0
        %2663 = vmatpush1.msra.mxu0 0.0
        %2664 = vmatprep.subr.mxu0 0.0
        %2665 = vmatpush1.msra.mxu0 0.0
        %2666 = vmatprep.subr.mxu0 0.0
        %2667 = vmatpush1.msra.mxu0 0.0
        %2668 = vmatprep.subr.mxu0 0.0
        %2669 = vmatpush1.msra.mxu0 0.0
        %2670 = vmatprep.subr.mxu0 0.0
        %2671 = vmatpush1.msra.mxu0 0.0
        %2672 = vmatprep.subr.mxu0 0.0
        %2673 = vmatpush1.msra.mxu0 0.0
        %2674 = vmatprep.subr.mxu0 0.0
        %2675 = vmatpush1.msra.mxu0 0.0
        %2676 = vmatprep.subr.mxu0 0.0
        %2677 = vmatpush1.msra.mxu0 0.0
        %2678 = vmatprep.subr.mxu0 0.0
        %2679 = vmatpush1.msra.mxu0 0.0
        %2680 = vmatprep.subr.mxu0 0.0
        %2681 = vmatpush1.msra.mxu0 0.0
        %2682 = vmatprep.subr.mxu0 0.0
        %2683 = vmatpush1.msra.mxu0 0.0
        %2684 = vmatprep.mubr.f32.mxu0 0.0
        %v2685 = vand.u32 %v2300, 4294901760
        %2686 = vmatmul.mubr.f32.gmra.mrb[0].mxu0 %v2685
        %v2687 = vpop.f32.mrb[0].mxu0
        %v2688 = vadd.f32 %v2427, %v2687
        %v2689 = vpop.f32.mrb[0].mxu0
        %2690 = vmatprep.mubr.f32.mxu0 0.0
        %v2691 = vand.u32 %v2303, 4294901760
        %2692 = vmatmul.mubr.f32.gmra.mrb[0].mxu0 %v2691
        %v2693 = vpop.f32.mrb[0].mxu0
        %v2694 = vadd.f32 %v2437, %v2693
        %v2695 = vpop.f32.mrb[0].mxu0
        %2696 = vmatprep.mubr.f32.mxu0 0.0
        %v2697 = vand.u32 %v2306, 4294901760
        %2698 = vmatmul.mubr.f32.gmra.mrb[0].mxu0 %v2697
        %v2699 = vpop.f32.mrb[0].mxu0
        %v2700 = vadd.f32 %v2447, %v2699
        %v2701 = vpop.f32.mrb[0].mxu0
        %2702 = vmatprep.mubr.f32.mxu0 0.0
        %v2703 = vand.u32 %v2309, 4294901760
        %2704 = vmatmul.mubr.f32.gmra.mrb[0].mxu0 %v2703
        %v2705 = vpop.f32.mrb[0].mxu0
        %v2706 = vadd.f32 %v2457, %v2705
        %v2707 = vpop.f32.mrb[0].mxu0
        %2708 = vmatprep.mubr.f32.mxu0 0.0
        %v2709 = vand.u32 %v2312, 4294901760
        %2710 = vmatmul.mubr.f32.gmra.mrb[0].mxu0 %v2709
        %v2711 = vpop.f32.mrb[0].mxu0
        %v2712 = vadd.f32 %v2467, %v2711
        %v2713 = vpop.f32.mrb[0].mxu0
        %2714 = vmatprep.mubr.f32.mxu0 0.0
        %v2715 = vand.u32 %v2315, 4294901760
        %2716 = vmatmul.mubr.f32.gmra.mrb[0].mxu0 %v2715
        %v2717 = vpop.f32.mrb[0].mxu0
        %v2718 = vadd.f32 %v2477, %v2717
        %v2719 = vpop.f32.mrb[0].mxu0
        %2720 = vmatprep.mubr.f32.mxu0 0.0
        %v2721 = vand.u32 %v2318, 4294901760
        %2722 = vmatmul.mubr.f32.gmra.mrb[0].mxu0 %v2721
        %v2723 = vpop.f32.mrb[0].mxu0
        %v2724 = vadd.f32 %v2487, %v2723
        %v2725 = vpop.f32.mrb[0].mxu0
        %2726 = vmatprep.mubr.f32.mxu0 0.0
        %v2727 = vand.u32 %v2321, 4294901760
        %2728 = vmatmul.mubr.f32.gmra.mrb[0].mxu0 %v2727
        %v2729 = vpop.f32.mrb[0].mxu0
        %v2730 = vadd.f32 %v2497, %v2729
        %v2731 = vpop.f32.mrb[0].mxu0
        %2732 = vmatprep.mubr.f32.mxu0 0.0
        %v2733 = vand.u32 %v2324, 4294901760
        %2734 = vmatmul.mubr.f32.gmra.mrb[0].mxu0 %v2733
        %v2735 = vpop.f32.mrb[0].mxu0
        %v2736 = vadd.f32 %v2507, %v2735
        %v2737 = vpop.f32.mrb[0].mxu0
        %2738 = vmatprep.mubr.f32.mxu0 0.0
        %v2739 = vand.u32 %v2327, 4294901760
        %2740 = vmatmul.mubr.f32.gmra.mrb[0].mxu0 %v2739
        %v2741 = vpop.f32.mrb[0].mxu0
        %v2742 = vadd.f32 %v2517, %v2741
        %v2743 = vpop.f32.mrb[0].mxu0
        %2744 = vmatprep.mubr.f32.mxu0 0.0
        %v2745 = vand.u32 %v2330, 4294901760
        %2746 = vmatmul.mubr.f32.gmra.mrb[0].mxu0 %v2745
        %v2747 = vpop.f32.mrb[0].mxu0
        %v2748 = vadd.f32 %v2527, %v2747
        %v2749 = vpop.f32.mrb[0].mxu0
        %2750 = vmatprep.mubr.f32.mxu0 0.0
        %v2751 = vand.u32 %v2333, 4294901760
        %2752 = vmatmul.mubr.f32.gmra.mrb[0].mxu0 %v2751
        %v2753 = vpop.f32.mrb[0].mxu0
        %v2754 = vadd.f32 %v2537, %v2753
        %v2755 = vpop.f32.mrb[0].mxu0
        %2756 = vmatprep.mubr.f32.mxu0 0.0
        %v2757 = vand.u32 %v2336, 4294901760
        %2758 = vmatmul.mubr.f32.gmra.mrb[0].mxu0 %v2757
        %v2759 = vpop.f32.mrb[0].mxu0
        %v2760 = vadd.f32 %v2547, %v2759
        %v2761 = vpop.f32.mrb[0].mxu0
        %2762 = vmatprep.mubr.f32.mxu0 0.0
        %v2763 = vand.u32 %v2339, 4294901760
        %2764 = vmatmul.mubr.f32.gmra.mrb[0].mxu0 %v2763
        %v2765 = vpop.f32.mrb[0].mxu0
        %v2766 = vadd.f32 %v2557, %v2765
        %v2767 = vpop.f32.mrb[0].mxu0
        %2768 = vmatprep.mubr.f32.mxu0 0.0
        %v2769 = vand.u32 %v2342, 4294901760
        %2770 = vmatmul.mubr.f32.gmra.mrb[0].mxu0 %v2769
        %v2771 = vpop.f32.mrb[0].mxu0
        %v2772 = vadd.f32 %v2567, %v2771
        %v2773 = vpop.f32.mrb[0].mxu0
        %2774 = vmatprep.mubr.f32.mxu0 0.0
        %v2775 = vand.u32 %v2345, 4294901760
        %2776 = vmatmul.mubr.f32.gmra.mrb[0].mxu0 %v2775
        %v2777 = vpop.f32.mrb[0].mxu0
        %v2778 = vadd.f32 %v2577, %v2777
        %v2779 = vpop.f32.mrb[0].mxu0
        %2780 = vdwg.mxu0
        %2781 = vmatprep.subr.mxu0 0.0
        %v2782 = vand.u32 %v514, 4294901760
        %v2783 = vsub.f32 %v514, %v2782
        %2784 = vmatpush1.msra.mxu0 %v2783
        %2785 = vmatprep.subr.mxu0 0.0
        %v2786 = vand.u32 %v515, 4294901760
        %v2787 = vsub.f32 %v515, %v2786
        %2788 = vmatpush1.msra.mxu0 %v2787
        %2789 = vmatprep.subr.mxu0 0.0
        %v2790 = vand.u32 %v516, 4294901760
        %v2791 = vsub.f32 %v516, %v2790
        %2792 = vmatpush1.msra.mxu0 %v2791
        %2793 = vmatprep.subr.mxu0 0.0
        %v2794 = vand.u32 %v517, 4294901760
        %v2795 = vsub.f32 %v517, %v2794
        %2796 = vmatpush1.msra.mxu0 %v2795
        %2797 = vmatprep.subr.mxu0 0.0
        %v2798 = vand.u32 %v518, 4294901760
        %v2799 = vsub.f32 %v518, %v2798
        %2800 = vmatpush1.msra.mxu0 %v2799
        %2801 = vmatprep.subr.mxu0 0.0
        %v2802 = vand.u32 %v519, 4294901760
        %v2803 = vsub.f32 %v519, %v2802
        %2804 = vmatpush1.msra.mxu0 %v2803
        %2805 = vmatprep.subr.mxu0 0.0
        %v2806 = vand.u32 %v520, 4294901760
        %v2807 = vsub.f32 %v520, %v2806
        %2808 = vmatpush1.msra.mxu0 %v2807
        %2809 = vmatprep.subr.mxu0 0.0
        %v2810 = vand.u32 %v521, 4294901760
        %v2811 = vsub.f32 %v521, %v2810
        %2812 = vmatpush1.msra.mxu0 %v2811
        %2813 = vmatprep.subr.mxu0 0.0
        %2814 = vmatpush1.msra.mxu0 0.0
        %2815 = vmatprep.subr.mxu0 0.0
        %2816 = vmatpush1.msra.mxu0 0.0
        %2817 = vmatprep.subr.mxu0 0.0
        %2818 = vmatpush1.msra.mxu0 0.0
        %2819 = vmatprep.subr.mxu0 0.0
        %2820 = vmatpush1.msra.mxu0 0.0
        %2821 = vmatprep.subr.mxu0 0.0
        %2822 = vmatpush1.msra.mxu0 0.0
        %2823 = vmatprep.subr.mxu0 0.0
        %2824 = vmatpush1.msra.mxu0 0.0
        %2825 = vmatprep.subr.mxu0 0.0
        %2826 = vmatpush1.msra.mxu0 0.0
        %2827 = vmatprep.subr.mxu0 0.0
        %2828 = vmatpush1.msra.mxu0 0.0
        %2829 = vmatprep.subr.mxu0 0.0
        %2830 = vmatpush1.msra.mxu0 0.0
        %2831 = vmatprep.subr.mxu0 0.0
        %2832 = vmatpush1.msra.mxu0 0.0
        %2833 = vmatprep.subr.mxu0 0.0
        %2834 = vmatpush1.msra.mxu0 0.0
        %2835 = vmatprep.subr.mxu0 0.0
        %2836 = vmatpush1.msra.mxu0 0.0
        %2837 = vmatprep.subr.mxu0 0.0
        %2838 = vmatpush1.msra.mxu0 0.0
        %2839 = vmatprep.subr.mxu0 0.0
        %2840 = vmatpush1.msra.mxu0 0.0
        %2841 = vmatprep.subr.mxu0 0.0
        %2842 = vmatpush1.msra.mxu0 0.0
        %2843 = vmatprep.subr.mxu0 0.0
        %2844 = vmatpush1.msra.mxu0 0.0
        %2845 = vmatprep.subr.mxu0 0.0
        %2846 = vmatpush1.msra.mxu0 0.0
        %2847 = vmatprep.subr.mxu0 0.0
        %2848 = vmatpush1.msra.mxu0 0.0
        %2849 = vmatprep.subr.mxu0 0.0
        %2850 = vmatpush1.msra.mxu0 0.0
        %2851 = vmatprep.subr.mxu0 0.0
        %2852 = vmatpush1.msra.mxu0 0.0
        %2853 = vmatprep.subr.mxu0 0.0
        %2854 = vmatpush1.msra.mxu0 0.0
        %2855 = vmatprep.subr.mxu0 0.0
        %2856 = vmatpush1.msra.mxu0 0.0
        %2857 = vmatprep.subr.mxu0 0.0
        %2858 = vmatpush1.msra.mxu0 0.0
        %2859 = vmatprep.subr.mxu0 0.0
        %2860 = vmatpush1.msra.mxu0 0.0
        %2861 = vmatprep.mubr.f32.mxu0 0.0
        %v2862 = vand.u32 %v2300, 4294901760
        %v2863 = vsub.f32 %v2300, %v2862
        %2864 = vmatmul.mubr.f32.gmra.mrb[0].mxu0 %v2863
        %v2865 = vpop.f32.mrb[0].mxu0
        %v2866 = vadd.f32 %v2688, %v2865
        %v2867 = vpop.f32.mrb[0].mxu0
        %2868 = vmatprep.mubr.f32.mxu0 0.0
        %v2869 = vand.u32 %v2303, 4294901760
        %v2870 = vsub.f32 %v2303, %v2869
        %2871 = vmatmul.mubr.f32.gmra.mrb[0].mxu0 %v2870
        %v2872 = vpop.f32.mrb[0].mxu0
        %v2873 = vadd.f32 %v2694, %v2872
        %v2874 = vpop.f32.mrb[0].mxu0
        %2875 = vmatprep.mubr.f32.mxu0 0.0
        %v2876 = vand.u32 %v2306, 4294901760
        %v2877 = vsub.f32 %v2306, %v2876
        %2878 = vmatmul.mubr.f32.gmra.mrb[0].mxu0 %v2877
        %v2879 = vpop.f32.mrb[0].mxu0
        %v2880 = vadd.f32 %v2700, %v2879
        %v2881 = vpop.f32.mrb[0].mxu0
        %2882 = vmatprep.mubr.f32.mxu0 0.0
        %v2883 = vand.u32 %v2309, 4294901760
        %v2884 = vsub.f32 %v2309, %v2883
        %2885 = vmatmul.mubr.f32.gmra.mrb[0].mxu0 %v2884
        %v2886 = vpop.f32.mrb[0].mxu0
        %v2887 = vadd.f32 %v2706, %v2886
        %v2888 = vpop.f32.mrb[0].mxu0
        %2889 = vmatprep.mubr.f32.mxu0 0.0
        %v2890 = vand.u32 %v2312, 4294901760
        %v2891 = vsub.f32 %v2312, %v2890
        %2892 = vmatmul.mubr.f32.gmra.mrb[0].mxu0 %v2891
        %v2893 = vpop.f32.mrb[0].mxu0
        %v2894 = vadd.f32 %v2712, %v2893
        %v2895 = vpop.f32.mrb[0].mxu0
        %2896 = vmatprep.mubr.f32.mxu0 0.0
        %v2897 = vand.u32 %v2315, 4294901760
        %v2898 = vsub.f32 %v2315, %v2897
        %2899 = vmatmul.mubr.f32.gmra.mrb[0].mxu0 %v2898
        %v2900 = vpop.f32.mrb[0].mxu0
        %v2901 = vadd.f32 %v2718, %v2900
        %v2902 = vpop.f32.mrb[0].mxu0
        %2903 = vmatprep.mubr.f32.mxu0 0.0
        %v2904 = vand.u32 %v2318, 4294901760
        %v2905 = vsub.f32 %v2318, %v2904
        %2906 = vmatmul.mubr.f32.gmra.mrb[0].mxu0 %v2905
        %v2907 = vpop.f32.mrb[0].mxu0
        %v2908 = vadd.f32 %v2724, %v2907
        %v2909 = vpop.f32.mrb[0].mxu0
        %2910 = vmatprep.mubr.f32.mxu0 0.0
        %v2911 = vand.u32 %v2321, 4294901760
        %v2912 = vsub.f32 %v2321, %v2911
        %2913 = vmatmul.mubr.f32.gmra.mrb[0].mxu0 %v2912
        %v2914 = vpop.f32.mrb[0].mxu0
        %v2915 = vadd.f32 %v2730, %v2914
        %v2916 = vpop.f32.mrb[0].mxu0
        %2917 = vmatprep.mubr.f32.mxu0 0.0
        %v2918 = vand.u32 %v2324, 4294901760
        %v2919 = vsub.f32 %v2324, %v2918
        %2920 = vmatmul.mubr.f32.gmra.mrb[0].mxu0 %v2919
        %v2921 = vpop.f32.mrb[0].mxu0
        %v2922 = vadd.f32 %v2736, %v2921
        %v2923 = vpop.f32.mrb[0].mxu0
        %2924 = vmatprep.mubr.f32.mxu0 0.0
        %v2925 = vand.u32 %v2327, 4294901760
        %v2926 = vsub.f32 %v2327, %v2925
        %2927 = vmatmul.mubr.f32.gmra.mrb[0].mxu0 %v2926
        %v2928 = vpop.f32.mrb[0].mxu0
        %v2929 = vadd.f32 %v2742, %v2928
        %v2930 = vpop.f32.mrb[0].mxu0
        %2931 = vmatprep.mubr.f32.mxu0 0.0
        %v2932 = vand.u32 %v2330, 4294901760
        %v2933 = vsub.f32 %v2330, %v2932
        %2934 = vmatmul.mubr.f32.gmra.mrb[0].mxu0 %v2933
        %v2935 = vpop.f32.mrb[0].mxu0
        %v2936 = vadd.f32 %v2748, %v2935
        %v2937 = vpop.f32.mrb[0].mxu0
        %2938 = vmatprep.mubr.f32.mxu0 0.0
        %v2939 = vand.u32 %v2333, 4294901760
        %v2940 = vsub.f32 %v2333, %v2939
        %2941 = vmatmul.mubr.f32.gmra.mrb[0].mxu0 %v2940
        %v2942 = vpop.f32.mrb[0].mxu0
        %v2943 = vadd.f32 %v2754, %v2942
        %v2944 = vpop.f32.mrb[0].mxu0
        %2945 = vmatprep.mubr.f32.mxu0 0.0
        %v2946 = vand.u32 %v2336, 4294901760
        %v2947 = vsub.f32 %v2336, %v2946
        %2948 = vmatmul.mubr.f32.gmra.mrb[0].mxu0 %v2947
        %v2949 = vpop.f32.mrb[0].mxu0
        %v2950 = vadd.f32 %v2760, %v2949
        %v2951 = vpop.f32.mrb[0].mxu0
        %2952 = vmatprep.mubr.f32.mxu0 0.0
        %v2953 = vand.u32 %v2339, 4294901760
        %v2954 = vsub.f32 %v2339, %v2953
        %2955 = vmatmul.mubr.f32.gmra.mrb[0].mxu0 %v2954
        %v2956 = vpop.f32.mrb[0].mxu0
        %v2957 = vadd.f32 %v2766, %v2956
        %v2958 = vpop.f32.mrb[0].mxu0
        %2959 = vmatprep.mubr.f32.mxu0 0.0
        %v2960 = vand.u32 %v2342, 4294901760
        %v2961 = vsub.f32 %v2342, %v2960
        %2962 = vmatmul.mubr.f32.gmra.mrb[0].mxu0 %v2961
        %v2963 = vpop.f32.mrb[0].mxu0
        %v2964 = vadd.f32 %v2772, %v2963
        %v2965 = vpop.f32.mrb[0].mxu0
        %2966 = vmatprep.mubr.f32.mxu0 0.0
        %v2967 = vand.u32 %v2345, 4294901760
        %v2968 = vsub.f32 %v2345, %v2967
        %2969 = vmatmul.mubr.f32.gmra.mrb[0].mxu0 %v2968
        %v2970 = vpop.f32.mrb[0].mxu0
        %v2971 = vadd.f32 %v2778, %v2970
        %v2972 = vpop.f32.mrb[0].mxu0
        %2973 = vdwg.mxu0
        %2974 = vmatprep.subr.mxu0 0.0
        %v2975 = vand.u32 %v514, 4294901760
        %2976 = vmatpush1.msra.mxu0 %v2975
        %2977 = vmatprep.subr.mxu0 0.0
        %v2978 = vand.u32 %v515, 4294901760
        %2979 = vmatpush1.msra.mxu0 %v2978
        %2980 = vmatprep.subr.mxu0 0.0
        %v2981 = vand.u32 %v516, 4294901760
        %2982 = vmatpush1.msra.mxu0 %v2981
        %2983 = vmatprep.subr.mxu0 0.0
        %v2984 = vand.u32 %v517, 4294901760
        %2985 = vmatpush1.msra.mxu0 %v2984
        %2986 = vmatprep.subr.mxu0 0.0
        %v2987 = vand.u32 %v518, 4294901760
        %2988 = vmatpush1.msra.mxu0 %v2987
        %2989 = vmatprep.subr.mxu0 0.0
        %v2990 = vand.u32 %v519, 4294901760
        %2991 = vmatpush1.msra.mxu0 %v2990
        %2992 = vmatprep.subr.mxu0 0.0
        %v2993 = vand.u32 %v520, 4294901760
        %2994 = vmatpush1.msra.mxu0 %v2993
        %2995 = vmatprep.subr.mxu0 0.0
        %v2996 = vand.u32 %v521, 4294901760
        %2997 = vmatpush1.msra.mxu0 %v2996
        %2998 = vmatprep.subr.mxu0 0.0
        %2999 = vmatpush1.msra.mxu0 0.0
        %3000 = vmatprep.subr.mxu0 0.0
        %3001 = vmatpush1.msra.mxu0 0.0
        %3002 = vmatprep.subr.mxu0 0.0
        %3003 = vmatpush1.msra.mxu0 0.0
        %3004 = vmatprep.subr.mxu0 0.0
        %3005 = vmatpush1.msra.mxu0 0.0
        %3006 = vmatprep.subr.mxu0 0.0
        %3007 = vmatpush1.msra.mxu0 0.0
        %3008 = vmatprep.subr.mxu0 0.0
        %3009 = vmatpush1.msra.mxu0 0.0
        %3010 = vmatprep.subr.mxu0 0.0
        %3011 = vmatpush1.msra.mxu0 0.0
        %3012 = vmatprep.subr.mxu0 0.0
        %3013 = vmatpush1.msra.mxu0 0.0
        %3014 = vmatprep.subr.mxu0 0.0
        %3015 = vmatpush1.msra.mxu0 0.0
        %3016 = vmatprep.subr.mxu0 0.0
        %3017 = vmatpush1.msra.mxu0 0.0
        %3018 = vmatprep.subr.mxu0 0.0
        %3019 = vmatpush1.msra.mxu0 0.0
        %3020 = vmatprep.subr.mxu0 0.0
        %3021 = vmatpush1.msra.mxu0 0.0
        %3022 = vmatprep.subr.mxu0 0.0
        %3023 = vmatpush1.msra.mxu0 0.0
        %3024 = vmatprep.subr.mxu0 0.0
        %3025 = vmatpush1.msra.mxu0 0.0
        %3026 = vmatprep.subr.mxu0 0.0
        %3027 = vmatpush1.msra.mxu0 0.0
        %3028 = vmatprep.subr.mxu0 0.0
        %3029 = vmatpush1.msra.mxu0 0.0
        %3030 = vmatprep.subr.mxu0 0.0
        %3031 = vmatpush1.msra.mxu0 0.0
        %3032 = vmatprep.subr.mxu0 0.0
        %3033 = vmatpush1.msra.mxu0 0.0
        %3034 = vmatprep.subr.mxu0 0.0
        %3035 = vmatpush1.msra.mxu0 0.0
        %3036 = vmatprep.subr.mxu0 0.0
        %3037 = vmatpush1.msra.mxu0 0.0
        %3038 = vmatprep.subr.mxu0 0.0
        %3039 = vmatpush1.msra.mxu0 0.0
        %3040 = vmatprep.subr.mxu0 0.0
        %3041 = vmatpush1.msra.mxu0 0.0
        %3042 = vmatprep.subr.mxu0 0.0
        %3043 = vmatpush1.msra.mxu0 0.0
        %3044 = vmatprep.subr.mxu0 0.0
        %3045 = vmatpush1.msra.mxu0 0.0
        %3046 = vmatprep.mubr.f32.mxu0 0.0
        %v3047 = vand.u32 %v2300, 4294901760
        %v3048 = vsub.f32 %v2300, %v3047
        %v3049 = vand.u32 %v3048, 4294901760
        %3050 = vmatmul.mubr.f32.gmra.mrb[0].mxu0 %v3049
        %v3051 = vpop.f32.mrb[0].mxu0
        %v3052 = vadd.f32 %v2866, %v3051
        %v3053 = vpop.f32.mrb[0].mxu0
        %3054 = vmatprep.mubr.f32.mxu0 0.0
        %v3055 = vand.u32 %v2303, 4294901760
        %v3056 = vsub.f32 %v2303, %v3055
        %v3057 = vand.u32 %v3056, 4294901760
        %3058 = vmatmul.mubr.f32.gmra.mrb[0].mxu0 %v3057
        %v3059 = vpop.f32.mrb[0].mxu0
        %v3060 = vadd.f32 %v2873, %v3059
        %v3061 = vpop.f32.mrb[0].mxu0
        %3062 = vmatprep.mubr.f32.mxu0 0.0
        %v3063 = vand.u32 %v2306, 4294901760
        %v3064 = vsub.f32 %v2306, %v3063
        %v3065 = vand.u32 %v3064, 4294901760
        %3066 = vmatmul.mubr.f32.gmra.mrb[0].mxu0 %v3065
        %v3067 = vpop.f32.mrb[0].mxu0
        %v3068 = vadd.f32 %v2880, %v3067
        %v3069 = vpop.f32.mrb[0].mxu0
        %3070 = vmatprep.mubr.f32.mxu0 0.0
        %v3071 = vand.u32 %v2309, 4294901760
        %v3072 = vsub.f32 %v2309, %v3071
        %v3073 = vand.u32 %v3072, 4294901760
        %3074 = vmatmul.mubr.f32.gmra.mrb[0].mxu0 %v3073
        %v3075 = vpop.f32.mrb[0].mxu0
        %v3076 = vadd.f32 %v2887, %v3075
        %v3077 = vpop.f32.mrb[0].mxu0
        %3078 = vmatprep.mubr.f32.mxu0 0.0
        %v3079 = vand.u32 %v2312, 4294901760
        %v3080 = vsub.f32 %v2312, %v3079
        %v3081 = vand.u32 %v3080, 4294901760
        %3082 = vmatmul.mubr.f32.gmra.mrb[0].mxu0 %v3081
        %v3083 = vpop.f32.mrb[0].mxu0
        %v3084 = vadd.f32 %v2894, %v3083
        %v3085 = vpop.f32.mrb[0].mxu0
        %3086 = vmatprep.mubr.f32.mxu0 0.0
        %v3087 = vand.u32 %v2315, 4294901760
        %v3088 = vsub.f32 %v2315, %v3087
        %v3089 = vand.u32 %v3088, 4294901760
        %3090 = vmatmul.mubr.f32.gmra.mrb[0].mxu0 %v3089
        %v3091 = vpop.f32.mrb[0].mxu0
        %v3092 = vadd.f32 %v2901, %v3091
        %v3093 = vpop.f32.mrb[0].mxu0
        %3094 = vmatprep.mubr.f32.mxu0 0.0
        %v3095 = vand.u32 %v2318, 4294901760
        %v3096 = vsub.f32 %v2318, %v3095
        %v3097 = vand.u32 %v3096, 4294901760
        %3098 = vmatmul.mubr.f32.gmra.mrb[0].mxu0 %v3097
        %v3099 = vpop.f32.mrb[0].mxu0
        %v3100 = vadd.f32 %v2908, %v3099
        %v3101 = vpop.f32.mrb[0].mxu0
        %3102 = vmatprep.mubr.f32.mxu0 0.0
        %v3103 = vand.u32 %v2321, 4294901760
        %v3104 = vsub.f32 %v2321, %v3103
        %v3105 = vand.u32 %v3104, 4294901760
        %3106 = vmatmul.mubr.f32.gmra.mrb[0].mxu0 %v3105
        %v3107 = vpop.f32.mrb[0].mxu0
        %v3108 = vadd.f32 %v2915, %v3107
        %v3109 = vpop.f32.mrb[0].mxu0
        %3110 = vmatprep.mubr.f32.mxu0 0.0
        %v3111 = vand.u32 %v2324, 4294901760
        %v3112 = vsub.f32 %v2324, %v3111
        %v3113 = vand.u32 %v3112, 4294901760
        %3114 = vmatmul.mubr.f32.gmra.mrb[0].mxu0 %v3113
        %v3115 = vpop.f32.mrb[0].mxu0
        %v3116 = vadd.f32 %v2922, %v3115
        %v3117 = vpop.f32.mrb[0].mxu0
        %3118 = vmatprep.mubr.f32.mxu0 0.0
        %v3119 = vand.u32 %v2327, 4294901760
        %v3120 = vsub.f32 %v2327, %v3119
        %v3121 = vand.u32 %v3120, 4294901760
        %3122 = vmatmul.mubr.f32.gmra.mrb[0].mxu0 %v3121
        %v3123 = vpop.f32.mrb[0].mxu0
        %v3124 = vadd.f32 %v2929, %v3123
        %v3125 = vpop.f32.mrb[0].mxu0
        %3126 = vmatprep.mubr.f32.mxu0 0.0
        %v3127 = vand.u32 %v2330, 4294901760
        %v3128 = vsub.f32 %v2330, %v3127
        %v3129 = vand.u32 %v3128, 4294901760
        %3130 = vmatmul.mubr.f32.gmra.mrb[0].mxu0 %v3129
        %v3131 = vpop.f32.mrb[0].mxu0
        %v3132 = vadd.f32 %v2936, %v3131
        %v3133 = vpop.f32.mrb[0].mxu0
        %3134 = vmatprep.mubr.f32.mxu0 0.0
        %v3135 = vand.u32 %v2333, 4294901760
        %v3136 = vsub.f32 %v2333, %v3135
        %v3137 = vand.u32 %v3136, 4294901760
        %3138 = vmatmul.mubr.f32.gmra.mrb[0].mxu0 %v3137
        %v3139 = vpop.f32.mrb[0].mxu0
        %v3140 = vadd.f32 %v2943, %v3139
        %v3141 = vpop.f32.mrb[0].mxu0
        %3142 = vmatprep.mubr.f32.mxu0 0.0
        %v3143 = vand.u32 %v2336, 4294901760
        %v3144 = vsub.f32 %v2336, %v3143
        %v3145 = vand.u32 %v3144, 4294901760
        %3146 = vmatmul.mubr.f32.gmra.mrb[0].mxu0 %v3145
        %v3147 = vpop.f32.mrb[0].mxu0
        %v3148 = vadd.f32 %v2950, %v3147
        %v3149 = vpop.f32.mrb[0].mxu0
        %3150 = vmatprep.mubr.f32.mxu0 0.0
        %v3151 = vand.u32 %v2339, 4294901760
        %v3152 = vsub.f32 %v2339, %v3151
        %v3153 = vand.u32 %v3152, 4294901760
        %3154 = vmatmul.mubr.f32.gmra.mrb[0].mxu0 %v3153
        %v3155 = vpop.f32.mrb[0].mxu0
        %v3156 = vadd.f32 %v2957, %v3155
        %v3157 = vpop.f32.mrb[0].mxu0
        %3158 = vmatprep.mubr.f32.mxu0 0.0
        %v3159 = vand.u32 %v2342, 4294901760
        %v3160 = vsub.f32 %v2342, %v3159
        %v3161 = vand.u32 %v3160, 4294901760
        %3162 = vmatmul.mubr.f32.gmra.mrb[0].mxu0 %v3161
        %v3163 = vpop.f32.mrb[0].mxu0
        %v3164 = vadd.f32 %v2964, %v3163
        %v3165 = vpop.f32.mrb[0].mxu0
        %3166 = vmatprep.mubr.f32.mxu0 0.0
        %v3167 = vand.u32 %v2345, 4294901760
        %v3168 = vsub.f32 %v2345, %v3167
        %v3169 = vand.u32 %v3168, 4294901760
        %3170 = vmatmul.mubr.f32.gmra.mrb[0].mxu0 %v3169
        %v3171 = vpop.f32.mrb[0].mxu0
        %v3172 = vadd.f32 %v2971, %v3171
        %v3173 = vpop.f32.mrb[0].mxu0
        %3174 = vdwg.mxu0
        %3175 = vmatprep.subr.mxu0 0.0
        %v3176 = vand.u32 %v514, 4294901760
        %v3177 = vsub.f32 %v514, %v3176
        %v3178 = vand.u32 %v3177, 4294901760
        %3179 = vmatpush1.msra.mxu0 %v3178
        %3180 = vmatprep.subr.mxu0 0.0
        %v3181 = vand.u32 %v515, 4294901760
        %v3182 = vsub.f32 %v515, %v3181
        %v3183 = vand.u32 %v3182, 4294901760
        %3184 = vmatpush1.msra.mxu0 %v3183
        %3185 = vmatprep.subr.mxu0 0.0
        %v3186 = vand.u32 %v516, 4294901760
        %v3187 = vsub.f32 %v516, %v3186
        %v3188 = vand.u32 %v3187, 4294901760
        %3189 = vmatpush1.msra.mxu0 %v3188
        %3190 = vmatprep.subr.mxu0 0.0
        %v3191 = vand.u32 %v517, 4294901760
        %v3192 = vsub.f32 %v517, %v3191
        %v3193 = vand.u32 %v3192, 4294901760
        %3194 = vmatpush1.msra.mxu0 %v3193
        %3195 = vmatprep.subr.mxu0 0.0
        %v3196 = vand.u32 %v518, 4294901760
        %v3197 = vsub.f32 %v518, %v3196
        %v3198 = vand.u32 %v3197, 4294901760
        %3199 = vmatpush1.msra.mxu0 %v3198
        %3200 = vmatprep.subr.mxu0 0.0
        %v3201 = vand.u32 %v519, 4294901760
        %v3202 = vsub.f32 %v519, %v3201
        %v3203 = vand.u32 %v3202, 4294901760
        %3204 = vmatpush1.msra.mxu0 %v3203
        %3205 = vmatprep.subr.mxu0 0.0
        %v3206 = vand.u32 %v520, 4294901760
        %v3207 = vsub.f32 %v520, %v3206
        %v3208 = vand.u32 %v3207, 4294901760
        %3209 = vmatpush1.msra.mxu0 %v3208
        %3210 = vmatprep.subr.mxu0 0.0
        %v3211 = vand.u32 %v521, 4294901760
        %v3212 = vsub.f32 %v521, %v3211
        %v3213 = vand.u32 %v3212, 4294901760
        %3214 = vmatpush1.msra.mxu0 %v3213
        %3215 = vmatprep.subr.mxu0 0.0
        %3216 = vmatpush1.msra.mxu0 0.0
        %3217 = vmatprep.subr.mxu0 0.0
        %3218 = vmatpush1.msra.mxu0 0.0
        %3219 = vmatprep.subr.mxu0 0.0
        %3220 = vmatpush1.msra.mxu0 0.0
        %3221 = vmatprep.subr.mxu0 0.0
        %3222 = vmatpush1.msra.mxu0 0.0
        %3223 = vmatprep.subr.mxu0 0.0
        %3224 = vmatpush1.msra.mxu0 0.0
        %3225 = vmatprep.subr.mxu0 0.0
        %3226 = vmatpush1.msra.mxu0 0.0
        %3227 = vmatprep.subr.mxu0 0.0
        %3228 = vmatpush1.msra.mxu0 0.0
        %3229 = vmatprep.subr.mxu0 0.0
        %3230 = vmatpush1.msra.mxu0 0.0
        %3231 = vmatprep.subr.mxu0 0.0
        %3232 = vmatpush1.msra.mxu0 0.0
        %3233 = vmatprep.subr.mxu0 0.0
        %3234 = vmatpush1.msra.mxu0 0.0
        %3235 = vmatprep.subr.mxu0 0.0
        %3236 = vmatpush1.msra.mxu0 0.0
        %3237 = vmatprep.subr.mxu0 0.0
        %3238 = vmatpush1.msra.mxu0 0.0
        %3239 = vmatprep.subr.mxu0 0.0
        %3240 = vmatpush1.msra.mxu0 0.0
        %3241 = vmatprep.subr.mxu0 0.0
        %3242 = vmatpush1.msra.mxu0 0.0
        %3243 = vmatprep.subr.mxu0 0.0
        %3244 = vmatpush1.msra.mxu0 0.0
        %3245 = vmatprep.subr.mxu0 0.0
        %3246 = vmatpush1.msra.mxu0 0.0
        %3247 = vmatprep.subr.mxu0 0.0
        %3248 = vmatpush1.msra.mxu0 0.0
        %3249 = vmatprep.subr.mxu0 0.0
        %3250 = vmatpush1.msra.mxu0 0.0
        %3251 = vmatprep.subr.mxu0 0.0
        %3252 = vmatpush1.msra.mxu0 0.0
        %3253 = vmatprep.subr.mxu0 0.0
        %3254 = vmatpush1.msra.mxu0 0.0
        %3255 = vmatprep.subr.mxu0 0.0
        %3256 = vmatpush1.msra.mxu0 0.0
        %3257 = vmatprep.subr.mxu0 0.0
        %3258 = vmatpush1.msra.mxu0 0.0
        %3259 = vmatprep.subr.mxu0 0.0
        %3260 = vmatpush1.msra.mxu0 0.0
        %3261 = vmatprep.subr.mxu0 0.0
        %3262 = vmatpush1.msra.mxu0 0.0
        %3263 = vmatprep.mubr.f32.mxu0 0.0
        %v3264 = vand.u32 %v2300, 4294901760
        %3265 = vmatmul.mubr.f32.gmra.mrb[0].mxu0 %v3264
        %v3266 = vpop.f32.mrb[0].mxu0
        %v3267 = vadd.f32 %v3052, %v3266
        %v3268 = vpop.f32.mrb[0].mxu0
        %3269 = vmatprep.mubr.f32.mxu0 0.0
        %v3270 = vand.u32 %v2303, 4294901760
        %3271 = vmatmul.mubr.f32.gmra.mrb[0].mxu0 %v3270
        %v3272 = vpop.f32.mrb[0].mxu0
        %v3273 = vadd.f32 %v3060, %v3272
        %v3274 = vpop.f32.mrb[0].mxu0
        %3275 = vmatprep.mubr.f32.mxu0 0.0
        %v3276 = vand.u32 %v2306, 4294901760
        %3277 = vmatmul.mubr.f32.gmra.mrb[0].mxu0 %v3276
        %v3278 = vpop.f32.mrb[0].mxu0
        %v3279 = vadd.f32 %v3068, %v3278
        %v3280 = vpop.f32.mrb[0].mxu0
        %3281 = vmatprep.mubr.f32.mxu0 0.0
        %v3282 = vand.u32 %v2309, 4294901760
        %3283 = vmatmul.mubr.f32.gmra.mrb[0].mxu0 %v3282
        %v3284 = vpop.f32.mrb[0].mxu0
        %v3285 = vadd.f32 %v3076, %v3284
        %v3286 = vpop.f32.mrb[0].mxu0
        %3287 = vmatprep.mubr.f32.mxu0 0.0
        %v3288 = vand.u32 %v2312, 4294901760
        %3289 = vmatmul.mubr.f32.gmra.mrb[0].mxu0 %v3288
        %v3290 = vpop.f32.mrb[0].mxu0
        %v3291 = vadd.f32 %v3084, %v3290
        %v3292 = vpop.f32.mrb[0].mxu0
        %3293 = vmatprep.mubr.f32.mxu0 0.0
        %v3294 = vand.u32 %v2315, 4294901760
        %3295 = vmatmul.mubr.f32.gmra.mrb[0].mxu0 %v3294
        %v3296 = vpop.f32.mrb[0].mxu0
        %v3297 = vadd.f32 %v3092, %v3296
        %v3298 = vpop.f32.mrb[0].mxu0
        %3299 = vmatprep.mubr.f32.mxu0 0.0
        %v3300 = vand.u32 %v2318, 4294901760
        %3301 = vmatmul.mubr.f32.gmra.mrb[0].mxu0 %v3300
        %v3302 = vpop.f32.mrb[0].mxu0
        %v3303 = vadd.f32 %v3100, %v3302
        %v3304 = vpop.f32.mrb[0].mxu0
        %3305 = vmatprep.mubr.f32.mxu0 0.0
        %v3306 = vand.u32 %v2321, 4294901760
        %3307 = vmatmul.mubr.f32.gmra.mrb[0].mxu0 %v3306
        %v3308 = vpop.f32.mrb[0].mxu0
        %v3309 = vadd.f32 %v3108, %v3308
        %v3310 = vpop.f32.mrb[0].mxu0
        %3311 = vmatprep.mubr.f32.mxu0 0.0
        %v3312 = vand.u32 %v2324, 4294901760
        %3313 = vmatmul.mubr.f32.gmra.mrb[0].mxu0 %v3312
        %v3314 = vpop.f32.mrb[0].mxu0
        %v3315 = vadd.f32 %v3116, %v3314
        %v3316 = vpop.f32.mrb[0].mxu0
        %3317 = vmatprep.mubr.f32.mxu0 0.0
        %v3318 = vand.u32 %v2327, 4294901760
        %3319 = vmatmul.mubr.f32.gmra.mrb[0].mxu0 %v3318
        %v3320 = vpop.f32.mrb[0].mxu0
        %v3321 = vadd.f32 %v3124, %v3320
        %v3322 = vpop.f32.mrb[0].mxu0
        %3323 = vmatprep.mubr.f32.mxu0 0.0
        %v3324 = vand.u32 %v2330, 4294901760
        %3325 = vmatmul.mubr.f32.gmra.mrb[0].mxu0 %v3324
        %v3326 = vpop.f32.mrb[0].mxu0
        %v3327 = vadd.f32 %v3132, %v3326
        %v3328 = vpop.f32.mrb[0].mxu0
        %3329 = vmatprep.mubr.f32.mxu0 0.0
        %v3330 = vand.u32 %v2333, 4294901760
        %3331 = vmatmul.mubr.f32.gmra.mrb[0].mxu0 %v3330
        %v3332 = vpop.f32.mrb[0].mxu0
        %v3333 = vadd.f32 %v3140, %v3332
        %v3334 = vpop.f32.mrb[0].mxu0
        %3335 = vmatprep.mubr.f32.mxu0 0.0
        %v3336 = vand.u32 %v2336, 4294901760
        %3337 = vmatmul.mubr.f32.gmra.mrb[0].mxu0 %v3336
        %v3338 = vpop.f32.mrb[0].mxu0
        %v3339 = vadd.f32 %v3148, %v3338
        %v3340 = vpop.f32.mrb[0].mxu0
        %3341 = vmatprep.mubr.f32.mxu0 0.0
        %v3342 = vand.u32 %v2339, 4294901760
        %3343 = vmatmul.mubr.f32.gmra.mrb[0].mxu0 %v3342
        %v3344 = vpop.f32.mrb[0].mxu0
        %v3345 = vadd.f32 %v3156, %v3344
        %v3346 = vpop.f32.mrb[0].mxu0
        %3347 = vmatprep.mubr.f32.mxu0 0.0
        %v3348 = vand.u32 %v2342, 4294901760
        %3349 = vmatmul.mubr.f32.gmra.mrb[0].mxu0 %v3348
        %v3350 = vpop.f32.mrb[0].mxu0
        %v3351 = vadd.f32 %v3164, %v3350
        %v3352 = vpop.f32.mrb[0].mxu0
        %3353 = vmatprep.mubr.f32.mxu0 0.0
        %v3354 = vand.u32 %v2345, 4294901760
        %3355 = vmatmul.mubr.f32.gmra.mrb[0].mxu0 %v3354
        %v3356 = vpop.f32.mrb[0].mxu0
        %v3357 = vadd.f32 %v3172, %v3356
        %v3358 = vpop.f32.mrb[0].mxu0
        %3359 = vdwg.mxu0
        %3360 = vmatprep.subr.mxu0 0.0
        %v3361 = vand.u32 %v514, 4294901760
        %3362 = vmatpush1.msra.mxu0 %v3361
        %3363 = vmatprep.subr.mxu0 0.0
        %v3364 = vand.u32 %v515, 4294901760
        %3365 = vmatpush1.msra.mxu0 %v3364
        %3366 = vmatprep.subr.mxu0 0.0
        %v3367 = vand.u32 %v516, 4294901760
        %3368 = vmatpush1.msra.mxu0 %v3367
        %3369 = vmatprep.subr.mxu0 0.0
        %v3370 = vand.u32 %v517, 4294901760
        %3371 = vmatpush1.msra.mxu0 %v3370
        %3372 = vmatprep.subr.mxu0 0.0
        %v3373 = vand.u32 %v518, 4294901760
        %3374 = vmatpush1.msra.mxu0 %v3373
        %3375 = vmatprep.subr.mxu0 0.0
        %v3376 = vand.u32 %v519, 4294901760
        %3377 = vmatpush1.msra.mxu0 %v3376
        %3378 = vmatprep.subr.mxu0 0.0
        %v3379 = vand.u32 %v520, 4294901760
        %3380 = vmatpush1.msra.mxu0 %v3379
        %3381 = vmatprep.subr.mxu0 0.0
        %v3382 = vand.u32 %v521, 4294901760
        %3383 = vmatpush1.msra.mxu0 %v3382
        %3384 = vmatprep.subr.mxu0 0.0
        %3385 = vmatpush1.msra.mxu0 0.0
        %3386 = vmatprep.subr.mxu0 0.0
        %3387 = vmatpush1.msra.mxu0 0.0
        %3388 = vmatprep.subr.mxu0 0.0
        %3389 = vmatpush1.msra.mxu0 0.0
        %3390 = vmatprep.subr.mxu0 0.0
        %3391 = vmatpush1.msra.mxu0 0.0
        %3392 = vmatprep.subr.mxu0 0.0
        %3393 = vmatpush1.msra.mxu0 0.0
        %3394 = vmatprep.subr.mxu0 0.0
        %3395 = vmatpush1.msra.mxu0 0.0
        %3396 = vmatprep.subr.mxu0 0.0
        %3397 = vmatpush1.msra.mxu0 0.0
        %3398 = vmatprep.subr.mxu0 0.0
        %3399 = vmatpush1.msra.mxu0 0.0
        %3400 = vmatprep.subr.mxu0 0.0
        %3401 = vmatpush1.msra.mxu0 0.0
        %3402 = vmatprep.subr.mxu0 0.0
        %3403 = vmatpush1.msra.mxu0 0.0
        %3404 = vmatprep.subr.mxu0 0.0
        %3405 = vmatpush1.msra.mxu0 0.0
        %3406 = vmatprep.subr.mxu0 0.0
        %3407 = vmatpush1.msra.mxu0 0.0
        %3408 = vmatprep.subr.mxu0 0.0
        %3409 = vmatpush1.msra.mxu0 0.0
        %3410 = vmatprep.subr.mxu0 0.0
        %3411 = vmatpush1.msra.mxu0 0.0
        %3412 = vmatprep.subr.mxu0 0.0
        %3413 = vmatpush1.msra.mxu0 0.0
        %3414 = vmatprep.subr.mxu0 0.0
        %3415 = vmatpush1.msra.mxu0 0.0
        %3416 = vmatprep.subr.mxu0 0.0
        %3417 = vmatpush1.msra.mxu0 0.0
        %3418 = vmatprep.subr.mxu0 0.0
        %3419 = vmatpush1.msra.mxu0 0.0
        %3420 = vmatprep.subr.mxu0 0.0
        %3421 = vmatpush1.msra.mxu0 0.0
        %3422 = vmatprep.subr.mxu0 0.0
        %3423 = vmatpush1.msra.mxu0 0.0
        %3424 = vmatprep.subr.mxu0 0.0
        %3425 = vmatpush1.msra.mxu0 0.0
        %3426 = vmatprep.subr.mxu0 0.0
        %3427 = vmatpush1.msra.mxu0 0.0
        %3428 = vmatprep.subr.mxu0 0.0
        %3429 = vmatpush1.msra.mxu0 0.0
        %3430 = vmatprep.subr.mxu0 0.0
        %3431 = vmatpush1.msra.mxu0 0.0
        %3432 = vmatprep.mubr.f32.mxu0 0.0
        %v3433 = vand.u32 %v2300, 4294901760
        %3434 = vmatmul.mubr.f32.gmra.mrb[0].mxu0 %v3433
        %v3435 = vpop.f32.mrb[0].mxu0
        %v3436 = vadd.f32 %v3267, %v3435
        %v3437 = vpop.f32.mrb[0].mxu0
        %3438 = vmatprep.mubr.f32.mxu0 0.0
        %v3439 = vand.u32 %v2303, 4294901760
        %3440 = vmatmul.mubr.f32.gmra.mrb[0].mxu0 %v3439
        %v3441 = vpop.f32.mrb[0].mxu0
        %v3442 = vadd.f32 %v3273, %v3441
        %v3443 = vpop.f32.mrb[0].mxu0
        %3444 = vmatprep.mubr.f32.mxu0 0.0
        %v3445 = vand.u32 %v2306, 4294901760
        %3446 = vmatmul.mubr.f32.gmra.mrb[0].mxu0 %v3445
        %v3447 = vpop.f32.mrb[0].mxu0
        %v3448 = vadd.f32 %v3279, %v3447
        %v3449 = vpop.f32.mrb[0].mxu0
        %3450 = vmatprep.mubr.f32.mxu0 0.0
        %v3451 = vand.u32 %v2309, 4294901760
        %3452 = vmatmul.mubr.f32.gmra.mrb[0].mxu0 %v3451
        %v3453 = vpop.f32.mrb[0].mxu0
        %v3454 = vadd.f32 %v3285, %v3453
        %v3455 = vpop.f32.mrb[0].mxu0
        %3456 = vmatprep.mubr.f32.mxu0 0.0
        %v3457 = vand.u32 %v2312, 4294901760
        %3458 = vmatmul.mubr.f32.gmra.mrb[0].mxu0 %v3457
        %v3459 = vpop.f32.mrb[0].mxu0
        %v3460 = vadd.f32 %v3291, %v3459
        %v3461 = vpop.f32.mrb[0].mxu0
        %3462 = vmatprep.mubr.f32.mxu0 0.0
        %v3463 = vand.u32 %v2315, 4294901760
        %3464 = vmatmul.mubr.f32.gmra.mrb[0].mxu0 %v3463
        %v3465 = vpop.f32.mrb[0].mxu0
        %v3466 = vadd.f32 %v3297, %v3465
        %v3467 = vpop.f32.mrb[0].mxu0
        %3468 = vmatprep.mubr.f32.mxu0 0.0
        %v3469 = vand.u32 %v2318, 4294901760
        %3470 = vmatmul.mubr.f32.gmra.mrb[0].mxu0 %v3469
        %v3471 = vpop.f32.mrb[0].mxu0
        %v3472 = vadd.f32 %v3303, %v3471
        %v3473 = vpop.f32.mrb[0].mxu0
        %3474 = vmatprep.mubr.f32.mxu0 0.0
        %v3475 = vand.u32 %v2321, 4294901760
        %3476 = vmatmul.mubr.f32.gmra.mrb[0].mxu0 %v3475
        %v3477 = vpop.f32.mrb[0].mxu0
        %v3478 = vadd.f32 %v3309, %v3477
        %v3479 = vpop.f32.mrb[0].mxu0
        %3480 = vmatprep.mubr.f32.mxu0 0.0
        %v3481 = vand.u32 %v2324, 4294901760
        %3482 = vmatmul.mubr.f32.gmra.mrb[0].mxu0 %v3481
        %v3483 = vpop.f32.mrb[0].mxu0
        %v3484 = vadd.f32 %v3315, %v3483
        %v3485 = vpop.f32.mrb[0].mxu0
        %3486 = vmatprep.mubr.f32.mxu0 0.0
        %v3487 = vand.u32 %v2327, 4294901760
        %3488 = vmatmul.mubr.f32.gmra.mrb[0].mxu0 %v3487
        %v3489 = vpop.f32.mrb[0].mxu0
        %v3490 = vadd.f32 %v3321, %v3489
        %v3491 = vpop.f32.mrb[0].mxu0
        %3492 = vmatprep.mubr.f32.mxu0 0.0
        %v3493 = vand.u32 %v2330, 4294901760
        %3494 = vmatmul.mubr.f32.gmra.mrb[0].mxu0 %v3493
        %v3495 = vpop.f32.mrb[0].mxu0
        %v3496 = vadd.f32 %v3327, %v3495
        %v3497 = vpop.f32.mrb[0].mxu0
        %3498 = vmatprep.mubr.f32.mxu0 0.0
        %v3499 = vand.u32 %v2333, 4294901760
        %3500 = vmatmul.mubr.f32.gmra.mrb[0].mxu0 %v3499
        %v3501 = vpop.f32.mrb[0].mxu0
        %v3502 = vadd.f32 %v3333, %v3501
        %v3503 = vpop.f32.mrb[0].mxu0
        %3504 = vmatprep.mubr.f32.mxu0 0.0
        %v3505 = vand.u32 %v2336, 4294901760
        %3506 = vmatmul.mubr.f32.gmra.mrb[0].mxu0 %v3505
        %v3507 = vpop.f32.mrb[0].mxu0
        %v3508 = vadd.f32 %v3339, %v3507
        %v3509 = vpop.f32.mrb[0].mxu0
        %3510 = vmatprep.mubr.f32.mxu0 0.0
        %v3511 = vand.u32 %v2339, 4294901760
        %3512 = vmatmul.mubr.f32.gmra.mrb[0].mxu0 %v3511
        %v3513 = vpop.f32.mrb[0].mxu0
        %v3514 = vadd.f32 %v3345, %v3513
        %v3515 = vpop.f32.mrb[0].mxu0
        %3516 = vmatprep.mubr.f32.mxu0 0.0
        %v3517 = vand.u32 %v2342, 4294901760
        %3518 = vmatmul.mubr.f32.gmra.mrb[0].mxu0 %v3517
        %v3519 = vpop.f32.mrb[0].mxu0
        %v3520 = vadd.f32 %v3351, %v3519
        %v3521 = vpop.f32.mrb[0].mxu0
        %3522 = vmatprep.mubr.f32.mxu0 0.0
        %v3523 = vand.u32 %v2345, 4294901760
        %3524 = vmatmul.mubr.f32.gmra.mrb[0].mxu0 %v3523
        %v3525 = vpop.f32.mrb[0].mxu0
        %v3526 = vadd.f32 %v3357, %v3525
        %v3527 = vpop.f32.mrb[0].mxu0
        %3528 = vdwg.mxu0
        %v3529 = vld [vmem:[%s385] sm:$0xff]
        %v3530 = vld [vmem:[%s385 + $0x8] sm:$0xff]
        %v3531 = vld [vmem:[%s385 + $0x10] sm:$0xff]
        %v3532 = vld [vmem:[%s385 + $0x18] sm:$0xff]
        %v3533 = vld [vmem:[%s385 + $0x20] sm:$0xff]
        %v3534 = vld [vmem:[%s385 + $0x28] sm:$0xff]
        %v3535 = vld [vmem:[%s385 + $0x30] sm:$0xff]
        %v3536 = vld [vmem:[%s385 + $0x38] sm:$0xff]
        %v3537 = vld [vmem:[%s385 + $0x40] sm:$0xff]
        %v3538 = vld [vmem:[%s385 + $0x48] sm:$0xff]
        %v3539 = vld [vmem:[%s385 + $0x50] sm:$0xff]
        %v3540 = vld [vmem:[%s385 + $0x58] sm:$0xff]
        %v3541 = vld [vmem:[%s385 + $0x60] sm:$0xff]
        %v3542 = vld [vmem:[%s385 + $0x68] sm:$0xff]
        %v3543 = vld [vmem:[%s385 + $0x70] sm:$0xff]
        %v3544 = vld [vmem:[%s385 + $0x78] sm:$0xff]
        %3545 = vset.pattern.permute.xlu0 0
        %3546 = vperm.xlu0 %3545, %v3529
        %v3547 = vpop.permute.xlu0 %3546
        %3548 = vset.pattern.permute.xlu0 0
        %3549 = vperm.xlu0 %3548, %v3530
        %v3550 = vpop.permute.xlu0 %3549
        %3551 = vset.pattern.permute.xlu0 0
        %3552 = vperm.xlu0 %3551, %v3531
        %v3553 = vpop.permute.xlu0 %3552
        %3554 = vset.pattern.permute.xlu0 0
        %3555 = vperm.xlu0 %3554, %v3532
        %v3556 = vpop.permute.xlu0 %3555
        %3557 = vset.pattern.permute.xlu0 0
        %3558 = vperm.xlu0 %3557, %v3533
        %v3559 = vpop.permute.xlu0 %3558
        %3560 = vset.pattern.permute.xlu0 0
        %3561 = vperm.xlu0 %3560, %v3534
        %v3562 = vpop.permute.xlu0 %3561
        %3563 = vset.pattern.permute.xlu0 0
        %3564 = vperm.xlu0 %3563, %v3535
        %v3565 = vpop.permute.xlu0 %3564
        %3566 = vset.pattern.permute.xlu0 0
        %3567 = vperm.xlu0 %3566, %v3536
        %v3568 = vpop.permute.xlu0 %3567
        %3569 = vset.pattern.permute.xlu0 0
        %3570 = vperm.xlu0 %3569, %v3537
        %v3571 = vpop.permute.xlu0 %3570
        %3572 = vset.pattern.permute.xlu0 0
        %3573 = vperm.xlu0 %3572, %v3538
        %v3574 = vpop.permute.xlu0 %3573
        %3575 = vset.pattern.permute.xlu0 0
        %3576 = vperm.xlu0 %3575, %v3539
        %v3577 = vpop.permute.xlu0 %3576
        %3578 = vset.pattern.permute.xlu0 0
        %3579 = vperm.xlu0 %3578, %v3540
        %v3580 = vpop.permute.xlu0 %3579
        %3581 = vset.pattern.permute.xlu0 0
        %3582 = vperm.xlu0 %3581, %v3541
        %v3583 = vpop.permute.xlu0 %3582
        %3584 = vset.pattern.permute.xlu0 0
        %3585 = vperm.xlu0 %3584, %v3542
        %v3586 = vpop.permute.xlu0 %3585
        %3587 = vset.pattern.permute.xlu0 0
        %3588 = vperm.xlu0 %3587, %v3543
        %v3589 = vpop.permute.xlu0 %3588
        %3590 = vset.pattern.permute.xlu0 0
        %3591 = vperm.xlu0 %3590, %v3544
        %v3592 = vpop.permute.xlu0 %3591
        %vm3593 = vcmp.eq.s32.totalorder %v401, %v3547
        %vm3594 = vcmp.eq.s32.totalorder %v401, %v3550
        %vm3595 = vcmp.eq.s32.totalorder %v401, %v3553
        %vm3596 = vcmp.eq.s32.totalorder %v401, %v3556
        %vm3597 = vcmp.eq.s32.totalorder %v401, %v3559
        %vm3598 = vcmp.eq.s32.totalorder %v401, %v3562
        %vm3599 = vcmp.eq.s32.totalorder %v401, %v3565
        %vm3600 = vcmp.eq.s32.totalorder %v401, %v3568
        %vm3601 = vcmp.eq.s32.totalorder %v401, %v3571
        %vm3602 = vcmp.eq.s32.totalorder %v401, %v3574
        %vm3603 = vcmp.eq.s32.totalorder %v401, %v3577
        %vm3604 = vcmp.eq.s32.totalorder %v401, %v3580
        %vm3605 = vcmp.eq.s32.totalorder %v401, %v3583
        %vm3606 = vcmp.eq.s32.totalorder %v401, %v3586
        %vm3607 = vcmp.eq.s32.totalorder %v401, %v3589
        %vm3608 = vcmp.eq.s32.totalorder %v401, %v3592
        %v3609 = vsel %vm3593, 1, 0
        %v3610 = vsel %vm3594, 1, 0
        %v3611 = vsel %vm3595, 1, 0
        %v3612 = vsel %vm3596, 1, 0
        %v3613 = vsel %vm3597, 1, 0
        %v3614 = vsel %vm3598, 1, 0
        %v3615 = vsel %vm3599, 1, 0
        %v3616 = vsel %vm3600, 1, 0
        %v3617 = vsel %vm3601, 1, 0
        %v3618 = vsel %vm3602, 1, 0
        %v3619 = vsel %vm3603, 1, 0
        %v3620 = vsel %vm3604, 1, 0
        %v3621 = vsel %vm3605, 1, 0
        %v3622 = vsel %vm3606, 1, 0
        %v3623 = vsel %vm3607, 1, 0
        %v3624 = vsel %vm3608, 1, 0
        %v3625 = vcvt.s32.f32 %v3609
        %v3626 = vcvt.s32.f32 %v3610
        %v3627 = vcvt.s32.f32 %v3611
        %v3628 = vcvt.s32.f32 %v3612
        %v3629 = vcvt.s32.f32 %v3613
        %v3630 = vcvt.s32.f32 %v3614
        %v3631 = vcvt.s32.f32 %v3615
        %v3632 = vcvt.s32.f32 %v3616
        %v3633 = vcvt.s32.f32 %v3617
        %v3634 = vcvt.s32.f32 %v3618
        %v3635 = vcvt.s32.f32 %v3619
        %v3636 = vcvt.s32.f32 %v3620
        %v3637 = vcvt.s32.f32 %v3621
        %v3638 = vcvt.s32.f32 %v3622
        %v3639 = vcvt.s32.f32 %v3623
        %v3640 = vcvt.s32.f32 %v3624
        %v3641 = vld [vmem:[%s5] sm:$0xff]
        %v3642 = vld [vmem:[%s5 + $0x8] sm:$0xff]
        %v3643 = vld [vmem:[%s5 + $0x10] sm:$0xff]
        %v3644 = vld [vmem:[%s5 + $0x18] sm:$0xff]
        %v3646 = vsel %vm703, %v3625, 0
        %v3649 = vsel %vm703, %v3626, 0
        %v3652 = vsel %vm703, %v3627, 0
        %v3655 = vsel %vm703, %v3628, 0
        %v3658 = vsel %vm703, %v3629, 0
        %v3661 = vsel %vm703, %v3630, 0
        %v3664 = vsel %vm703, %v3631, 0
        %v3667 = vsel %vm703, %v3632, 0
        %v3670 = vsel %vm703, %v3633, 0
        %v3673 = vsel %vm703, %v3634, 0
        %v3676 = vsel %vm703, %v3635, 0
        %v3679 = vsel %vm703, %v3636, 0
        %v3682 = vsel %vm703, %v3637, 0
        %v3685 = vsel %vm703, %v3638, 0
        %v3688 = vsel %vm703, %v3639, 0
        %v3691 = vsel %vm703, %v3640, 0
        %3693 = vmatprep.subr.mxu0 0.0
        %v3694 = vand.u32 %v3641, 4294901760
        %3695 = vmatpush1.msra.mxu0 %v3694
        %3696 = vmatprep.subr.mxu0 0.0
        %v3697 = vand.u32 %v3642, 4294901760
        %3698 = vmatpush1.msra.mxu0 %v3697
        %3699 = vmatprep.subr.mxu0 0.0
        %v3700 = vand.u32 %v3643, 4294901760
        %3701 = vmatpush1.msra.mxu0 %v3700
        %3702 = vmatprep.subr.mxu0 0.0
        %v3703 = vand.u32 %v3644, 4294901760
        %3704 = vmatpush1.msra.mxu0 %v3703
        %3705 = vmatprep.subr.mxu0 0.0
        %3706 = vmatpush1.msra.mxu0 0.0
        %3707 = vmatprep.subr.mxu0 0.0
        %3708 = vmatpush1.msra.mxu0 0.0
        %3709 = vmatprep.subr.mxu0 0.0
        %3710 = vmatpush1.msra.mxu0 0.0
        %3711 = vmatprep.subr.mxu0 0.0
        %3712 = vmatpush1.msra.mxu0 0.0
        %3713 = vmatprep.subr.mxu0 0.0
        %3714 = vmatpush1.msra.mxu0 0.0
        %3715 = vmatprep.subr.mxu0 0.0
        %3716 = vmatpush1.msra.mxu0 0.0
        %3717 = vmatprep.subr.mxu0 0.0
        %3718 = vmatpush1.msra.mxu0 0.0
        %3719 = vmatprep.subr.mxu0 0.0
        %3720 = vmatpush1.msra.mxu0 0.0
        %3721 = vmatprep.subr.mxu0 0.0
        %3722 = vmatpush1.msra.mxu0 0.0
        %3723 = vmatprep.subr.mxu0 0.0
        %3724 = vmatpush1.msra.mxu0 0.0
        %3725 = vmatprep.subr.mxu0 0.0
        %3726 = vmatpush1.msra.mxu0 0.0
        %3727 = vmatprep.subr.mxu0 0.0
        %3728 = vmatpush1.msra.mxu0 0.0
        %3729 = vmatprep.subr.mxu0 0.0
        %3730 = vmatpush1.msra.mxu0 0.0
        %3731 = vmatprep.subr.mxu0 0.0
        %3732 = vmatpush1.msra.mxu0 0.0
        %3733 = vmatprep.subr.mxu0 0.0
        %3734 = vmatpush1.msra.mxu0 0.0
        %3735 = vmatprep.subr.mxu0 0.0
        %3736 = vmatpush1.msra.mxu0 0.0
        %3737 = vmatprep.subr.mxu0 0.0
        %3738 = vmatpush1.msra.mxu0 0.0
        %3739 = vmatprep.subr.mxu0 0.0
        %3740 = vmatpush1.msra.mxu0 0.0
        %3741 = vmatprep.subr.mxu0 0.0
        %3742 = vmatpush1.msra.mxu0 0.0
        %3743 = vmatprep.subr.mxu0 0.0
        %3744 = vmatpush1.msra.mxu0 0.0
        %3745 = vmatprep.subr.mxu0 0.0
        %3746 = vmatpush1.msra.mxu0 0.0
        %3747 = vmatprep.subr.mxu0 0.0
        %3748 = vmatpush1.msra.mxu0 0.0
        %3749 = vmatprep.subr.mxu0 0.0
        %3750 = vmatpush1.msra.mxu0 0.0
        %3751 = vmatprep.subr.mxu0 0.0
        %3752 = vmatpush1.msra.mxu0 0.0
        %3753 = vmatprep.subr.mxu0 0.0
        %3754 = vmatpush1.msra.mxu0 0.0
        %3755 = vmatprep.subr.mxu0 0.0
        %3756 = vmatpush1.msra.mxu0 0.0
        %3757 = vmatprep.subr.mxu0 0.0
        %3758 = vmatpush1.msra.mxu0 0.0
        %3759 = vmatprep.subr.mxu0 0.0
        %3760 = vmatpush1.msra.mxu0 0.0
        %3761 = vmatprep.mubr.f32.mxu0 0.0
        %v3762 = vand.u32 %v3646, 4294901760
        %v3763 = vsub.f32 %v3646, %v3762
        %v3764 = vand.u32 %v3763, 4294901760
        %v3765 = vsub.f32 %v3763, %v3764
        %v3766 = vand.u32 %v3765, 4294901760
        %3767 = vmatmul.mubr.f32.gmra.mrb[0].mxu0 %v3766
        %v3768 = vpop.f32.mrb[0].mxu0
        %v3769 = vadd.f32 0.0, %v3768
        %v3770 = vpop.f32.mrb[0].mxu0
        %3771 = vmatprep.mubr.f32.mxu0 0.0
        %v3772 = vand.u32 %v3649, 4294901760
        %v3773 = vsub.f32 %v3649, %v3772
        %v3774 = vand.u32 %v3773, 4294901760
        %v3775 = vsub.f32 %v3773, %v3774
        %v3776 = vand.u32 %v3775, 4294901760
        %3777 = vmatmul.mubr.f32.gmra.mrb[0].mxu0 %v3776
        %v3778 = vpop.f32.mrb[0].mxu0
        %v3779 = vadd.f32 0.0, %v3778
        %v3780 = vpop.f32.mrb[0].mxu0
        %3781 = vmatprep.mubr.f32.mxu0 0.0
        %v3782 = vand.u32 %v3652, 4294901760
        %v3783 = vsub.f32 %v3652, %v3782
        %v3784 = vand.u32 %v3783, 4294901760
        %v3785 = vsub.f32 %v3783, %v3784
        %v3786 = vand.u32 %v3785, 4294901760
        %3787 = vmatmul.mubr.f32.gmra.mrb[0].mxu0 %v3786
        %v3788 = vpop.f32.mrb[0].mxu0
        %v3789 = vadd.f32 0.0, %v3788
        %v3790 = vpop.f32.mrb[0].mxu0
        %3791 = vmatprep.mubr.f32.mxu0 0.0
        %v3792 = vand.u32 %v3655, 4294901760
        %v3793 = vsub.f32 %v3655, %v3792
        %v3794 = vand.u32 %v3793, 4294901760
        %v3795 = vsub.f32 %v3793, %v3794
        %v3796 = vand.u32 %v3795, 4294901760
        %3797 = vmatmul.mubr.f32.gmra.mrb[0].mxu0 %v3796
        %v3798 = vpop.f32.mrb[0].mxu0
        %v3799 = vadd.f32 0.0, %v3798
        %v3800 = vpop.f32.mrb[0].mxu0
        %3801 = vmatprep.mubr.f32.mxu0 0.0
        %v3802 = vand.u32 %v3658, 4294901760
        %v3803 = vsub.f32 %v3658, %v3802
        %v3804 = vand.u32 %v3803, 4294901760
        %v3805 = vsub.f32 %v3803, %v3804
        %v3806 = vand.u32 %v3805, 4294901760
        %3807 = vmatmul.mubr.f32.gmra.mrb[0].mxu0 %v3806
        %v3808 = vpop.f32.mrb[0].mxu0
        %v3809 = vadd.f32 0.0, %v3808
        %v3810 = vpop.f32.mrb[0].mxu0
        %3811 = vmatprep.mubr.f32.mxu0 0.0
        %v3812 = vand.u32 %v3661, 4294901760
        %v3813 = vsub.f32 %v3661, %v3812
        %v3814 = vand.u32 %v3813, 4294901760
        %v3815 = vsub.f32 %v3813, %v3814
        %v3816 = vand.u32 %v3815, 4294901760
        %3817 = vmatmul.mubr.f32.gmra.mrb[0].mxu0 %v3816
        %v3818 = vpop.f32.mrb[0].mxu0
        %v3819 = vadd.f32 0.0, %v3818
        %v3820 = vpop.f32.mrb[0].mxu0
        %3821 = vmatprep.mubr.f32.mxu0 0.0
        %v3822 = vand.u32 %v3664, 4294901760
        %v3823 = vsub.f32 %v3664, %v3822
        %v3824 = vand.u32 %v3823, 4294901760
        %v3825 = vsub.f32 %v3823, %v3824
        %v3826 = vand.u32 %v3825, 4294901760
        %3827 = vmatmul.mubr.f32.gmra.mrb[0].mxu0 %v3826
        %v3828 = vpop.f32.mrb[0].mxu0
        %v3829 = vadd.f32 0.0, %v3828
        %v3830 = vpop.f32.mrb[0].mxu0
        %3831 = vmatprep.mubr.f32.mxu0 0.0
        %v3832 = vand.u32 %v3667, 4294901760
        %v3833 = vsub.f32 %v3667, %v3832
        %v3834 = vand.u32 %v3833, 4294901760
        %v3835 = vsub.f32 %v3833, %v3834
        %v3836 = vand.u32 %v3835, 4294901760
        %3837 = vmatmul.mubr.f32.gmra.mrb[0].mxu0 %v3836
        %v3838 = vpop.f32.mrb[0].mxu0
        %v3839 = vadd.f32 0.0, %v3838
        %v3840 = vpop.f32.mrb[0].mxu0
        %3841 = vmatprep.mubr.f32.mxu0 0.0
        %v3842 = vand.u32 %v3670, 4294901760
        %v3843 = vsub.f32 %v3670, %v3842
        %v3844 = vand.u32 %v3843, 4294901760
        %v3845 = vsub.f32 %v3843, %v3844
        %v3846 = vand.u32 %v3845, 4294901760
        %3847 = vmatmul.mubr.f32.gmra.mrb[0].mxu0 %v3846
        %v3848 = vpop.f32.mrb[0].mxu0
        %v3849 = vadd.f32 0.0, %v3848
        %v3850 = vpop.f32.mrb[0].mxu0
        %3851 = vmatprep.mubr.f32.mxu0 0.0
        %v3852 = vand.u32 %v3673, 4294901760
        %v3853 = vsub.f32 %v3673, %v3852
        %v3854 = vand.u32 %v3853, 4294901760
        %v3855 = vsub.f32 %v3853, %v3854
        %v3856 = vand.u32 %v3855, 4294901760
        %3857 = vmatmul.mubr.f32.gmra.mrb[0].mxu0 %v3856
        %v3858 = vpop.f32.mrb[0].mxu0
        %v3859 = vadd.f32 0.0, %v3858
        %v3860 = vpop.f32.mrb[0].mxu0
        %3861 = vmatprep.mubr.f32.mxu0 0.0
        %v3862 = vand.u32 %v3676, 4294901760
        %v3863 = vsub.f32 %v3676, %v3862
        %v3864 = vand.u32 %v3863, 4294901760
        %v3865 = vsub.f32 %v3863, %v3864
        %v3866 = vand.u32 %v3865, 4294901760
        %3867 = vmatmul.mubr.f32.gmra.mrb[0].mxu0 %v3866
        %v3868 = vpop.f32.mrb[0].mxu0
        %v3869 = vadd.f32 0.0, %v3868
        %v3870 = vpop.f32.mrb[0].mxu0
        %3871 = vmatprep.mubr.f32.mxu0 0.0
        %v3872 = vand.u32 %v3679, 4294901760
        %v3873 = vsub.f32 %v3679, %v3872
        %v3874 = vand.u32 %v3873, 4294901760
        %v3875 = vsub.f32 %v3873, %v3874
        %v3876 = vand.u32 %v3875, 4294901760
        %3877 = vmatmul.mubr.f32.gmra.mrb[0].mxu0 %v3876
        %v3878 = vpop.f32.mrb[0].mxu0
        %v3879 = vadd.f32 0.0, %v3878
        %v3880 = vpop.f32.mrb[0].mxu0
        %3881 = vmatprep.mubr.f32.mxu0 0.0
        %v3882 = vand.u32 %v3682, 4294901760
        %v3883 = vsub.f32 %v3682, %v3882
        %v3884 = vand.u32 %v3883, 4294901760
        %v3885 = vsub.f32 %v3883, %v3884
        %v3886 = vand.u32 %v3885, 4294901760
        %3887 = vmatmul.mubr.f32.gmra.mrb[0].mxu0 %v3886
        %v3888 = vpop.f32.mrb[0].mxu0
        %v3889 = vadd.f32 0.0, %v3888
        %v3890 = vpop.f32.mrb[0].mxu0
        %3891 = vmatprep.mubr.f32.mxu0 0.0
        %v3892 = vand.u32 %v3685, 4294901760
        %v3893 = vsub.f32 %v3685, %v3892
        %v3894 = vand.u32 %v3893, 4294901760
        %v3895 = vsub.f32 %v3893, %v3894
        %v3896 = vand.u32 %v3895, 4294901760
        %3897 = vmatmul.mubr.f32.gmra.mrb[0].mxu0 %v3896
        %v3898 = vpop.f32.mrb[0].mxu0
        %v3899 = vadd.f32 0.0, %v3898
        %v3900 = vpop.f32.mrb[0].mxu0
        %3901 = vmatprep.mubr.f32.mxu0 0.0
        %v3902 = vand.u32 %v3688, 4294901760
        %v3903 = vsub.f32 %v3688, %v3902
        %v3904 = vand.u32 %v3903, 4294901760
        %v3905 = vsub.f32 %v3903, %v3904
        %v3906 = vand.u32 %v3905, 4294901760
        %3907 = vmatmul.mubr.f32.gmra.mrb[0].mxu0 %v3906
        %v3908 = vpop.f32.mrb[0].mxu0
        %v3909 = vadd.f32 0.0, %v3908
        %v3910 = vpop.f32.mrb[0].mxu0
        %3911 = vmatprep.mubr.f32.mxu0 0.0
        %v3912 = vand.u32 %v3691, 4294901760
        %v3913 = vsub.f32 %v3691, %v3912
        %v3914 = vand.u32 %v3913, 4294901760
        %v3915 = vsub.f32 %v3913, %v3914
        %v3916 = vand.u32 %v3915, 4294901760
        %3917 = vmatmul.mubr.f32.gmra.mrb[0].mxu0 %v3916
        %v3918 = vpop.f32.mrb[0].mxu0
        %v3919 = vadd.f32 0.0, %v3918
        %v3920 = vpop.f32.mrb[0].mxu0
        %3921 = vdwg.mxu0
        %3922 = vmatprep.subr.mxu0 0.0
        %v3923 = vand.u32 %v3641, 4294901760
        %v3924 = vsub.f32 %v3641, %v3923
        %v3925 = vand.u32 %v3924, 4294901760
        %v3926 = vsub.f32 %v3924, %v3925
        %v3927 = vand.u32 %v3926, 4294901760
        %3928 = vmatpush1.msra.mxu0 %v3927
        %3929 = vmatprep.subr.mxu0 0.0
        %v3930 = vand.u32 %v3642, 4294901760
        %v3931 = vsub.f32 %v3642, %v3930
        %v3932 = vand.u32 %v3931, 4294901760
        %v3933 = vsub.f32 %v3931, %v3932
        %v3934 = vand.u32 %v3933, 4294901760
        %3935 = vmatpush1.msra.mxu0 %v3934
        %3936 = vmatprep.subr.mxu0 0.0
        %v3937 = vand.u32 %v3643, 4294901760
        %v3938 = vsub.f32 %v3643, %v3937
        %v3939 = vand.u32 %v3938, 4294901760
        %v3940 = vsub.f32 %v3938, %v3939
        %v3941 = vand.u32 %v3940, 4294901760
        %3942 = vmatpush1.msra.mxu0 %v3941
        %3943 = vmatprep.subr.mxu0 0.0
        %v3944 = vand.u32 %v3644, 4294901760
        %v3945 = vsub.f32 %v3644, %v3944
        %v3946 = vand.u32 %v3945, 4294901760
        %v3947 = vsub.f32 %v3945, %v3946
        %v3948 = vand.u32 %v3947, 4294901760
        %3949 = vmatpush1.msra.mxu0 %v3948
        %3950 = vmatprep.subr.mxu0 0.0
        %3951 = vmatpush1.msra.mxu0 0.0
        %3952 = vmatprep.subr.mxu0 0.0
        %3953 = vmatpush1.msra.mxu0 0.0
        %3954 = vmatprep.subr.mxu0 0.0
        %3955 = vmatpush1.msra.mxu0 0.0
        %3956 = vmatprep.subr.mxu0 0.0
        %3957 = vmatpush1.msra.mxu0 0.0
        %3958 = vmatprep.subr.mxu0 0.0
        %3959 = vmatpush1.msra.mxu0 0.0
        %3960 = vmatprep.subr.mxu0 0.0
        %3961 = vmatpush1.msra.mxu0 0.0
        %3962 = vmatprep.subr.mxu0 0.0
        %3963 = vmatpush1.msra.mxu0 0.0
        %3964 = vmatprep.subr.mxu0 0.0
        %3965 = vmatpush1.msra.mxu0 0.0
        %3966 = vmatprep.subr.mxu0 0.0
        %3967 = vmatpush1.msra.mxu0 0.0
        %3968 = vmatprep.subr.mxu0 0.0
        %3969 = vmatpush1.msra.mxu0 0.0
        %3970 = vmatprep.subr.mxu0 0.0
        %3971 = vmatpush1.msra.mxu0 0.0
        %3972 = vmatprep.subr.mxu0 0.0
        %3973 = vmatpush1.msra.mxu0 0.0
        %3974 = vmatprep.subr.mxu0 0.0
        %3975 = vmatpush1.msra.mxu0 0.0
        %3976 = vmatprep.subr.mxu0 0.0
        %3977 = vmatpush1.msra.mxu0 0.0
        %3978 = vmatprep.subr.mxu0 0.0
        %3979 = vmatpush1.msra.mxu0 0.0
        %3980 = vmatprep.subr.mxu0 0.0
        %3981 = vmatpush1.msra.mxu0 0.0
        %3982 = vmatprep.subr.mxu0 0.0
        %3983 = vmatpush1.msra.mxu0 0.0
        %3984 = vmatprep.subr.mxu0 0.0
        %3985 = vmatpush1.msra.mxu0 0.0
        %3986 = vmatprep.subr.mxu0 0.0
        %3987 = vmatpush1.msra.mxu0 0.0
        %3988 = vmatprep.subr.mxu0 0.0
        %3989 = vmatpush1.msra.mxu0 0.0
        %3990 = vmatprep.subr.mxu0 0.0
        %3991 = vmatpush1.msra.mxu0 0.0
        %3992 = vmatprep.subr.mxu0 0.0
        %3993 = vmatpush1.msra.mxu0 0.0
        %3994 = vmatprep.subr.mxu0 0.0
        %3995 = vmatpush1.msra.mxu0 0.0
        %3996 = vmatprep.subr.mxu0 0.0
        %3997 = vmatpush1.msra.mxu0 0.0
        %3998 = vmatprep.subr.mxu0 0.0
        %3999 = vmatpush1.msra.mxu0 0.0
        %4000 = vmatprep.subr.mxu0 0.0
        %4001 = vmatpush1.msra.mxu0 0.0
        %4002 = vmatprep.subr.mxu0 0.0
        %4003 = vmatpush1.msra.mxu0 0.0
        %4004 = vmatprep.subr.mxu0 0.0
        %4005 = vmatpush1.msra.mxu0 0.0
        %4006 = vmatprep.mubr.f32.mxu0 0.0
        %v4007 = vand.u32 %v3646, 4294901760
        %4008 = vmatmul.mubr.f32.gmra.mrb[0].mxu0 %v4007
        %v4009 = vpop.f32.mrb[0].mxu0
        %v4010 = vadd.f32 %v3769, %v4009
        %v4011 = vpop.f32.mrb[0].mxu0
        %4012 = vmatprep.mubr.f32.mxu0 0.0
        %v4013 = vand.u32 %v3649, 4294901760
        %4014 = vmatmul.mubr.f32.gmra.mrb[0].mxu0 %v4013
        %v4015 = vpop.f32.mrb[0].mxu0
        %v4016 = vadd.f32 %v3779, %v4015
        %v4017 = vpop.f32.mrb[0].mxu0
        %4018 = vmatprep.mubr.f32.mxu0 0.0
        %v4019 = vand.u32 %v3652, 4294901760
        %4020 = vmatmul.mubr.f32.gmra.mrb[0].mxu0 %v4019
        %v4021 = vpop.f32.mrb[0].mxu0
        %v4022 = vadd.f32 %v3789, %v4021
        %v4023 = vpop.f32.mrb[0].mxu0
        %4024 = vmatprep.mubr.f32.mxu0 0.0
        %v4025 = vand.u32 %v3655, 4294901760
        %4026 = vmatmul.mubr.f32.gmra.mrb[0].mxu0 %v4025
        %v4027 = vpop.f32.mrb[0].mxu0
        %v4028 = vadd.f32 %v3799, %v4027
        %v4029 = vpop.f32.mrb[0].mxu0
        %4030 = vmatprep.mubr.f32.mxu0 0.0
        %v4031 = vand.u32 %v3658, 4294901760
        %4032 = vmatmul.mubr.f32.gmra.mrb[0].mxu0 %v4031
        %v4033 = vpop.f32.mrb[0].mxu0
        %v4034 = vadd.f32 %v3809, %v4033
        %v4035 = vpop.f32.mrb[0].mxu0
        %4036 = vmatprep.mubr.f32.mxu0 0.0
        %v4037 = vand.u32 %v3661, 4294901760
        %4038 = vmatmul.mubr.f32.gmra.mrb[0].mxu0 %v4037
        %v4039 = vpop.f32.mrb[0].mxu0
        %v4040 = vadd.f32 %v3819, %v4039
        %v4041 = vpop.f32.mrb[0].mxu0
        %4042 = vmatprep.mubr.f32.mxu0 0.0
        %v4043 = vand.u32 %v3664, 4294901760
        %4044 = vmatmul.mubr.f32.gmra.mrb[0].mxu0 %v4043
        %v4045 = vpop.f32.mrb[0].mxu0
        %v4046 = vadd.f32 %v3829, %v4045
        %v4047 = vpop.f32.mrb[0].mxu0
        %4048 = vmatprep.mubr.f32.mxu0 0.0
        %v4049 = vand.u32 %v3667, 4294901760
        %4050 = vmatmul.mubr.f32.gmra.mrb[0].mxu0 %v4049
        %v4051 = vpop.f32.mrb[0].mxu0
        %v4052 = vadd.f32 %v3839, %v4051
        %v4053 = vpop.f32.mrb[0].mxu0
        %4054 = vmatprep.mubr.f32.mxu0 0.0
        %v4055 = vand.u32 %v3670, 4294901760
        %4056 = vmatmul.mubr.f32.gmra.mrb[0].mxu0 %v4055
        %v4057 = vpop.f32.mrb[0].mxu0
        %v4058 = vadd.f32 %v3849, %v4057
        %v4059 = vpop.f32.mrb[0].mxu0
        %4060 = vmatprep.mubr.f32.mxu0 0.0
        %v4061 = vand.u32 %v3673, 4294901760
        %4062 = vmatmul.mubr.f32.gmra.mrb[0].mxu0 %v4061
        %v4063 = vpop.f32.mrb[0].mxu0
        %v4064 = vadd.f32 %v3859, %v4063
        %v4065 = vpop.f32.mrb[0].mxu0
        %4066 = vmatprep.mubr.f32.mxu0 0.0
        %v4067 = vand.u32 %v3676, 4294901760
        %4068 = vmatmul.mubr.f32.gmra.mrb[0].mxu0 %v4067
        %v4069 = vpop.f32.mrb[0].mxu0
        %v4070 = vadd.f32 %v3869, %v4069
        %v4071 = vpop.f32.mrb[0].mxu0
        %4072 = vmatprep.mubr.f32.mxu0 0.0
        %v4073 = vand.u32 %v3679, 4294901760
        %4074 = vmatmul.mubr.f32.gmra.mrb[0].mxu0 %v4073
        %v4075 = vpop.f32.mrb[0].mxu0
        %v4076 = vadd.f32 %v3879, %v4075
        %v4077 = vpop.f32.mrb[0].mxu0
        %4078 = vmatprep.mubr.f32.mxu0 0.0
        %v4079 = vand.u32 %v3682, 4294901760
        %4080 = vmatmul.mubr.f32.gmra.mrb[0].mxu0 %v4079
        %v4081 = vpop.f32.mrb[0].mxu0
        %v4082 = vadd.f32 %v3889, %v4081
        %v4083 = vpop.f32.mrb[0].mxu0
        %4084 = vmatprep.mubr.f32.mxu0 0.0
        %v4085 = vand.u32 %v3685, 4294901760
        %4086 = vmatmul.mubr.f32.gmra.mrb[0].mxu0 %v4085
        %v4087 = vpop.f32.mrb[0].mxu0
        %v4088 = vadd.f32 %v3899, %v4087
        %v4089 = vpop.f32.mrb[0].mxu0
        %4090 = vmatprep.mubr.f32.mxu0 0.0
        %v4091 = vand.u32 %v3688, 4294901760
        %4092 = vmatmul.mubr.f32.gmra.mrb[0].mxu0 %v4091
        %v4093 = vpop.f32.mrb[0].mxu0
        %v4094 = vadd.f32 %v3909, %v4093
        %v4095 = vpop.f32.mrb[0].mxu0
        %4096 = vmatprep.mubr.f32.mxu0 0.0
        %v4097 = vand.u32 %v3691, 4294901760
        %4098 = vmatmul.mubr.f32.gmra.mrb[0].mxu0 %v4097
        %v4099 = vpop.f32.mrb[0].mxu0
        %v4100 = vadd.f32 %v3919, %v4099
        %v4101 = vpop.f32.mrb[0].mxu0
        %4102 = vdwg.mxu0
        %4103 = vmatprep.subr.mxu0 0.0
        %v4104 = vand.u32 %v3641, 4294901760
        %v4105 = vsub.f32 %v3641, %v4104
        %4106 = vmatpush1.msra.mxu0 %v4105
        %4107 = vmatprep.subr.mxu0 0.0
        %v4108 = vand.u32 %v3642, 4294901760
        %v4109 = vsub.f32 %v3642, %v4108
        %4110 = vmatpush1.msra.mxu0 %v4109
        %4111 = vmatprep.subr.mxu0 0.0
        %v4112 = vand.u32 %v3643, 4294901760
        %v4113 = vsub.f32 %v3643, %v4112
        %4114 = vmatpush1.msra.mxu0 %v4113
        %4115 = vmatprep.subr.mxu0 0.0
        %v4116 = vand.u32 %v3644, 4294901760
        %v4117 = vsub.f32 %v3644, %v4116
        %4118 = vmatpush1.msra.mxu0 %v4117
        %4119 = vmatprep.subr.mxu0 0.0
        %4120 = vmatpush1.msra.mxu0 0.0
        %4121 = vmatprep.subr.mxu0 0.0
        %4122 = vmatpush1.msra.mxu0 0.0
        %4123 = vmatprep.subr.mxu0 0.0
        %4124 = vmatpush1.msra.mxu0 0.0
        %4125 = vmatprep.subr.mxu0 0.0
        %4126 = vmatpush1.msra.mxu0 0.0
        %4127 = vmatprep.subr.mxu0 0.0
        %4128 = vmatpush1.msra.mxu0 0.0
        %4129 = vmatprep.subr.mxu0 0.0
        %4130 = vmatpush1.msra.mxu0 0.0
        %4131 = vmatprep.subr.mxu0 0.0
        %4132 = vmatpush1.msra.mxu0 0.0
        %4133 = vmatprep.subr.mxu0 0.0
        %4134 = vmatpush1.msra.mxu0 0.0
        %4135 = vmatprep.subr.mxu0 0.0
        %4136 = vmatpush1.msra.mxu0 0.0
        %4137 = vmatprep.subr.mxu0 0.0
        %4138 = vmatpush1.msra.mxu0 0.0
        %4139 = vmatprep.subr.mxu0 0.0
        %4140 = vmatpush1.msra.mxu0 0.0
        %4141 = vmatprep.subr.mxu0 0.0
        %4142 = vmatpush1.msra.mxu0 0.0
        %4143 = vmatprep.subr.mxu0 0.0
        %4144 = vmatpush1.msra.mxu0 0.0
        %4145 = vmatprep.subr.mxu0 0.0
        %4146 = vmatpush1.msra.mxu0 0.0
        %4147 = vmatprep.subr.mxu0 0.0
        %4148 = vmatpush1.msra.mxu0 0.0
        %4149 = vmatprep.subr.mxu0 0.0
        %4150 = vmatpush1.msra.mxu0 0.0
        %4151 = vmatprep.subr.mxu0 0.0
        %4152 = vmatpush1.msra.mxu0 0.0
        %4153 = vmatprep.subr.mxu0 0.0
        %4154 = vmatpush1.msra.mxu0 0.0
        %4155 = vmatprep.subr.mxu0 0.0
        %4156 = vmatpush1.msra.mxu0 0.0
        %4157 = vmatprep.subr.mxu0 0.0
        %4158 = vmatpush1.msra.mxu0 0.0
        %4159 = vmatprep.subr.mxu0 0.0
        %4160 = vmatpush1.msra.mxu0 0.0
        %4161 = vmatprep.subr.mxu0 0.0
        %4162 = vmatpush1.msra.mxu0 0.0
        %4163 = vmatprep.subr.mxu0 0.0
        %4164 = vmatpush1.msra.mxu0 0.0
        %4165 = vmatprep.subr.mxu0 0.0
        %4166 = vmatpush1.msra.mxu0 0.0
        %4167 = vmatprep.subr.mxu0 0.0
        %4168 = vmatpush1.msra.mxu0 0.0
        %4169 = vmatprep.subr.mxu0 0.0
        %4170 = vmatpush1.msra.mxu0 0.0
        %4171 = vmatprep.subr.mxu0 0.0
        %4172 = vmatpush1.msra.mxu0 0.0
        %4173 = vmatprep.subr.mxu0 0.0
        %4174 = vmatpush1.msra.mxu0 0.0
        %4175 = vmatprep.mubr.f32.mxu0 0.0
        %v4176 = vand.u32 %v3646, 4294901760
        %v4177 = vsub.f32 %v3646, %v4176
        %4178 = vmatmul.mubr.f32.gmra.mrb[0].mxu0 %v4177
        %v4179 = vpop.f32.mrb[0].mxu0
        %v4180 = vadd.f32 %v4010, %v4179
        %v4181 = vpop.f32.mrb[0].mxu0
        %4182 = vmatprep.mubr.f32.mxu0 0.0
        %v4183 = vand.u32 %v3649, 4294901760
        %v4184 = vsub.f32 %v3649, %v4183
        %4185 = vmatmul.mubr.f32.gmra.mrb[0].mxu0 %v4184
        %v4186 = vpop.f32.mrb[0].mxu0
        %v4187 = vadd.f32 %v4016, %v4186
        %v4188 = vpop.f32.mrb[0].mxu0
        %4189 = vmatprep.mubr.f32.mxu0 0.0
        %v4190 = vand.u32 %v3652, 4294901760
        %v4191 = vsub.f32 %v3652, %v4190
        %4192 = vmatmul.mubr.f32.gmra.mrb[0].mxu0 %v4191
        %v4193 = vpop.f32.mrb[0].mxu0
        %v4194 = vadd.f32 %v4022, %v4193
        %v4195 = vpop.f32.mrb[0].mxu0
        %4196 = vmatprep.mubr.f32.mxu0 0.0
        %v4197 = vand.u32 %v3655, 4294901760
        %v4198 = vsub.f32 %v3655, %v4197
        %4199 = vmatmul.mubr.f32.gmra.mrb[0].mxu0 %v4198
        %v4200 = vpop.f32.mrb[0].mxu0
        %v4201 = vadd.f32 %v4028, %v4200
        %v4202 = vpop.f32.mrb[0].mxu0
        %4203 = vmatprep.mubr.f32.mxu0 0.0
        %v4204 = vand.u32 %v3658, 4294901760
        %v4205 = vsub.f32 %v3658, %v4204
        %4206 = vmatmul.mubr.f32.gmra.mrb[0].mxu0 %v4205
        %v4207 = vpop.f32.mrb[0].mxu0
        %v4208 = vadd.f32 %v4034, %v4207
        %v4209 = vpop.f32.mrb[0].mxu0
        %4210 = vmatprep.mubr.f32.mxu0 0.0
        %v4211 = vand.u32 %v3661, 4294901760
        %v4212 = vsub.f32 %v3661, %v4211
        %4213 = vmatmul.mubr.f32.gmra.mrb[0].mxu0 %v4212
        %v4214 = vpop.f32.mrb[0].mxu0
        %v4215 = vadd.f32 %v4040, %v4214
        %v4216 = vpop.f32.mrb[0].mxu0
        %4217 = vmatprep.mubr.f32.mxu0 0.0
        %v4218 = vand.u32 %v3664, 4294901760
        %v4219 = vsub.f32 %v3664, %v4218
        %4220 = vmatmul.mubr.f32.gmra.mrb[0].mxu0 %v4219
        %v4221 = vpop.f32.mrb[0].mxu0
        %v4222 = vadd.f32 %v4046, %v4221
        %v4223 = vpop.f32.mrb[0].mxu0
        %4224 = vmatprep.mubr.f32.mxu0 0.0
        %v4225 = vand.u32 %v3667, 4294901760
        %v4226 = vsub.f32 %v3667, %v4225
        %4227 = vmatmul.mubr.f32.gmra.mrb[0].mxu0 %v4226
        %v4228 = vpop.f32.mrb[0].mxu0
        %v4229 = vadd.f32 %v4052, %v4228
        %v4230 = vpop.f32.mrb[0].mxu0
        %4231 = vmatprep.mubr.f32.mxu0 0.0
        %v4232 = vand.u32 %v3670, 4294901760
        %v4233 = vsub.f32 %v3670, %v4232
        %4234 = vmatmul.mubr.f32.gmra.mrb[0].mxu0 %v4233
        %v4235 = vpop.f32.mrb[0].mxu0
        %v4236 = vadd.f32 %v4058, %v4235
        %v4237 = vpop.f32.mrb[0].mxu0
        %4238 = vmatprep.mubr.f32.mxu0 0.0
        %v4239 = vand.u32 %v3673, 4294901760
        %v4240 = vsub.f32 %v3673, %v4239
        %4241 = vmatmul.mubr.f32.gmra.mrb[0].mxu0 %v4240
        %v4242 = vpop.f32.mrb[0].mxu0
        %v4243 = vadd.f32 %v4064, %v4242
        %v4244 = vpop.f32.mrb[0].mxu0
        %4245 = vmatprep.mubr.f32.mxu0 0.0
        %v4246 = vand.u32 %v3676, 4294901760
        %v4247 = vsub.f32 %v3676, %v4246
        %4248 = vmatmul.mubr.f32.gmra.mrb[0].mxu0 %v4247
        %v4249 = vpop.f32.mrb[0].mxu0
        %v4250 = vadd.f32 %v4070, %v4249
        %v4251 = vpop.f32.mrb[0].mxu0
        %4252 = vmatprep.mubr.f32.mxu0 0.0
        %v4253 = vand.u32 %v3679, 4294901760
        %v4254 = vsub.f32 %v3679, %v4253
        %4255 = vmatmul.mubr.f32.gmra.mrb[0].mxu0 %v4254
        %v4256 = vpop.f32.mrb[0].mxu0
        %v4257 = vadd.f32 %v4076, %v4256
        %v4258 = vpop.f32.mrb[0].mxu0
        %4259 = vmatprep.mubr.f32.mxu0 0.0
        %v4260 = vand.u32 %v3682, 4294901760
        %v4261 = vsub.f32 %v3682, %v4260
        %4262 = vmatmul.mubr.f32.gmra.mrb[0].mxu0 %v4261
        %v4263 = vpop.f32.mrb[0].mxu0
        %v4264 = vadd.f32 %v4082, %v4263
        %v4265 = vpop.f32.mrb[0].mxu0
        %4266 = vmatprep.mubr.f32.mxu0 0.0
        %v4267 = vand.u32 %v3685, 4294901760
        %v4268 = vsub.f32 %v3685, %v4267
        %4269 = vmatmul.mubr.f32.gmra.mrb[0].mxu0 %v4268
        %v4270 = vpop.f32.mrb[0].mxu0
        %v4271 = vadd.f32 %v4088, %v4270
        %v4272 = vpop.f32.mrb[0].mxu0
        %4273 = vmatprep.mubr.f32.mxu0 0.0
        %v4274 = vand.u32 %v3688, 4294901760
        %v4275 = vsub.f32 %v3688, %v4274
        %4276 = vmatmul.mubr.f32.gmra.mrb[0].mxu0 %v4275
        %v4277 = vpop.f32.mrb[0].mxu0
        %v4278 = vadd.f32 %v4094, %v4277
        %v4279 = vpop.f32.mrb[0].mxu0
        %4280 = vmatprep.mubr.f32.mxu0 0.0
        %v4281 = vand.u32 %v3691, 4294901760
        %v4282 = vsub.f32 %v3691, %v4281
        %4283 = vmatmul.mubr.f32.gmra.mrb[0].mxu0 %v4282
        %v4284 = vpop.f32.mrb[0].mxu0
        %v4285 = vadd.f32 %v4100, %v4284
        %v4286 = vpop.f32.mrb[0].mxu0
        %4287 = vdwg.mxu0
        %4288 = vmatprep.subr.mxu0 0.0
        %v4289 = vand.u32 %v3641, 4294901760
        %4290 = vmatpush1.msra.mxu0 %v4289
        %4291 = vmatprep.subr.mxu0 0.0
        %v4292 = vand.u32 %v3642, 4294901760
        %4293 = vmatpush1.msra.mxu0 %v4292
        %4294 = vmatprep.subr.mxu0 0.0
        %v4295 = vand.u32 %v3643, 4294901760
        %4296 = vmatpush1.msra.mxu0 %v4295
        %4297 = vmatprep.subr.mxu0 0.0
        %v4298 = vand.u32 %v3644, 4294901760
        %4299 = vmatpush1.msra.mxu0 %v4298
        %4300 = vmatprep.subr.mxu0 0.0
        %4301 = vmatpush1.msra.mxu0 0.0
        %4302 = vmatprep.subr.mxu0 0.0
        %4303 = vmatpush1.msra.mxu0 0.0
        %4304 = vmatprep.subr.mxu0 0.0
        %4305 = vmatpush1.msra.mxu0 0.0
        %4306 = vmatprep.subr.mxu0 0.0
        %4307 = vmatpush1.msra.mxu0 0.0
        %4308 = vmatprep.subr.mxu0 0.0
        %4309 = vmatpush1.msra.mxu0 0.0
        %4310 = vmatprep.subr.mxu0 0.0
        %4311 = vmatpush1.msra.mxu0 0.0
        %4312 = vmatprep.subr.mxu0 0.0
        %4313 = vmatpush1.msra.mxu0 0.0
        %4314 = vmatprep.subr.mxu0 0.0
        %4315 = vmatpush1.msra.mxu0 0.0
        %4316 = vmatprep.subr.mxu0 0.0
        %4317 = vmatpush1.msra.mxu0 0.0
        %4318 = vmatprep.subr.mxu0 0.0
        %4319 = vmatpush1.msra.mxu0 0.0
        %4320 = vmatprep.subr.mxu0 0.0
        %4321 = vmatpush1.msra.mxu0 0.0
        %4322 = vmatprep.subr.mxu0 0.0
        %4323 = vmatpush1.msra.mxu0 0.0
        %4324 = vmatprep.subr.mxu0 0.0
        %4325 = vmatpush1.msra.mxu0 0.0
        %4326 = vmatprep.subr.mxu0 0.0
        %4327 = vmatpush1.msra.mxu0 0.0
        %4328 = vmatprep.subr.mxu0 0.0
        %4329 = vmatpush1.msra.mxu0 0.0
        %4330 = vmatprep.subr.mxu0 0.0
        %4331 = vmatpush1.msra.mxu0 0.0
        %4332 = vmatprep.subr.mxu0 0.0
        %4333 = vmatpush1.msra.mxu0 0.0
        %4334 = vmatprep.subr.mxu0 0.0
        %4335 = vmatpush1.msra.mxu0 0.0
        %4336 = vmatprep.subr.mxu0 0.0
        %4337 = vmatpush1.msra.mxu0 0.0
        %4338 = vmatprep.subr.mxu0 0.0
        %4339 = vmatpush1.msra.mxu0 0.0
        %4340 = vmatprep.subr.mxu0 0.0
        %4341 = vmatpush1.msra.mxu0 0.0
        %4342 = vmatprep.subr.mxu0 0.0
        %4343 = vmatpush1.msra.mxu0 0.0
        %4344 = vmatprep.subr.mxu0 0.0
        %4345 = vmatpush1.msra.mxu0 0.0
        %4346 = vmatprep.subr.mxu0 0.0
        %4347 = vmatpush1.msra.mxu0 0.0
        %4348 = vmatprep.subr.mxu0 0.0
        %4349 = vmatpush1.msra.mxu0 0.0
        %4350 = vmatprep.subr.mxu0 0.0
        %4351 = vmatpush1.msra.mxu0 0.0
        %4352 = vmatprep.subr.mxu0 0.0
        %4353 = vmatpush1.msra.mxu0 0.0
        %4354 = vmatprep.subr.mxu0 0.0
        %4355 = vmatpush1.msra.mxu0 0.0
        %4356 = vmatprep.mubr.f32.mxu0 0.0
        %v4357 = vand.u32 %v3646, 4294901760
        %v4358 = vsub.f32 %v3646, %v4357
        %v4359 = vand.u32 %v4358, 4294901760
        %4360 = vmatmul.mubr.f32.gmra.mrb[0].mxu0 %v4359
        %v4361 = vpop.f32.mrb[0].mxu0
        %v4362 = vadd.f32 %v4180, %v4361
        %v4363 = vpop.f32.mrb[0].mxu0
        %4364 = vmatprep.mubr.f32.mxu0 0.0
        %v4365 = vand.u32 %v3649, 4294901760
        %v4366 = vsub.f32 %v3649, %v4365
        %v4367 = vand.u32 %v4366, 4294901760
        %4368 = vmatmul.mubr.f32.gmra.mrb[0].mxu0 %v4367
        %v4369 = vpop.f32.mrb[0].mxu0
        %v4370 = vadd.f32 %v4187, %v4369
        %v4371 = vpop.f32.mrb[0].mxu0
        %4372 = vmatprep.mubr.f32.mxu0 0.0
        %v4373 = vand.u32 %v3652, 4294901760
        %v4374 = vsub.f32 %v3652, %v4373
        %v4375 = vand.u32 %v4374, 4294901760
        %4376 = vmatmul.mubr.f32.gmra.mrb[0].mxu0 %v4375
        %v4377 = vpop.f32.mrb[0].mxu0
        %v4378 = vadd.f32 %v4194, %v4377
        %v4379 = vpop.f32.mrb[0].mxu0
        %4380 = vmatprep.mubr.f32.mxu0 0.0
        %v4381 = vand.u32 %v3655, 4294901760
        %v4382 = vsub.f32 %v3655, %v4381
        %v4383 = vand.u32 %v4382, 4294901760
        %4384 = vmatmul.mubr.f32.gmra.mrb[0].mxu0 %v4383
        %v4385 = vpop.f32.mrb[0].mxu0
        %v4386 = vadd.f32 %v4201, %v4385
        %v4387 = vpop.f32.mrb[0].mxu0
        %4388 = vmatprep.mubr.f32.mxu0 0.0
        %v4389 = vand.u32 %v3658, 4294901760
        %v4390 = vsub.f32 %v3658, %v4389
        %v4391 = vand.u32 %v4390, 4294901760
        %4392 = vmatmul.mubr.f32.gmra.mrb[0].mxu0 %v4391
        %v4393 = vpop.f32.mrb[0].mxu0
        %v4394 = vadd.f32 %v4208, %v4393
        %v4395 = vpop.f32.mrb[0].mxu0
        %4396 = vmatprep.mubr.f32.mxu0 0.0
        %v4397 = vand.u32 %v3661, 4294901760
        %v4398 = vsub.f32 %v3661, %v4397
        %v4399 = vand.u32 %v4398, 4294901760
        %4400 = vmatmul.mubr.f32.gmra.mrb[0].mxu0 %v4399
        %v4401 = vpop.f32.mrb[0].mxu0
        %v4402 = vadd.f32 %v4215, %v4401
        %v4403 = vpop.f32.mrb[0].mxu0
        %4404 = vmatprep.mubr.f32.mxu0 0.0
        %v4405 = vand.u32 %v3664, 4294901760
        %v4406 = vsub.f32 %v3664, %v4405
        %v4407 = vand.u32 %v4406, 4294901760
        %4408 = vmatmul.mubr.f32.gmra.mrb[0].mxu0 %v4407
        %v4409 = vpop.f32.mrb[0].mxu0
        %v4410 = vadd.f32 %v4222, %v4409
        %v4411 = vpop.f32.mrb[0].mxu0
        %4412 = vmatprep.mubr.f32.mxu0 0.0
        %v4413 = vand.u32 %v3667, 4294901760
        %v4414 = vsub.f32 %v3667, %v4413
        %v4415 = vand.u32 %v4414, 4294901760
        %4416 = vmatmul.mubr.f32.gmra.mrb[0].mxu0 %v4415
        %v4417 = vpop.f32.mrb[0].mxu0
        %v4418 = vadd.f32 %v4229, %v4417
        %v4419 = vpop.f32.mrb[0].mxu0
        %4420 = vmatprep.mubr.f32.mxu0 0.0
        %v4421 = vand.u32 %v3670, 4294901760
        %v4422 = vsub.f32 %v3670, %v4421
        %v4423 = vand.u32 %v4422, 4294901760
        %4424 = vmatmul.mubr.f32.gmra.mrb[0].mxu0 %v4423
        %v4425 = vpop.f32.mrb[0].mxu0
        %v4426 = vadd.f32 %v4236, %v4425
        %v4427 = vpop.f32.mrb[0].mxu0
        %4428 = vmatprep.mubr.f32.mxu0 0.0
        %v4429 = vand.u32 %v3673, 4294901760
        %v4430 = vsub.f32 %v3673, %v4429
        %v4431 = vand.u32 %v4430, 4294901760
        %4432 = vmatmul.mubr.f32.gmra.mrb[0].mxu0 %v4431
        %v4433 = vpop.f32.mrb[0].mxu0
        %v4434 = vadd.f32 %v4243, %v4433
        %v4435 = vpop.f32.mrb[0].mxu0
        %4436 = vmatprep.mubr.f32.mxu0 0.0
        %v4437 = vand.u32 %v3676, 4294901760
        %v4438 = vsub.f32 %v3676, %v4437
        %v4439 = vand.u32 %v4438, 4294901760
        %4440 = vmatmul.mubr.f32.gmra.mrb[0].mxu0 %v4439
        %v4441 = vpop.f32.mrb[0].mxu0
        %v4442 = vadd.f32 %v4250, %v4441
        %v4443 = vpop.f32.mrb[0].mxu0
        %4444 = vmatprep.mubr.f32.mxu0 0.0
        %v4445 = vand.u32 %v3679, 4294901760
        %v4446 = vsub.f32 %v3679, %v4445
        %v4447 = vand.u32 %v4446, 4294901760
        %4448 = vmatmul.mubr.f32.gmra.mrb[0].mxu0 %v4447
        %v4449 = vpop.f32.mrb[0].mxu0
        %v4450 = vadd.f32 %v4257, %v4449
        %v4451 = vpop.f32.mrb[0].mxu0
        %4452 = vmatprep.mubr.f32.mxu0 0.0
        %v4453 = vand.u32 %v3682, 4294901760
        %v4454 = vsub.f32 %v3682, %v4453
        %v4455 = vand.u32 %v4454, 4294901760
        %4456 = vmatmul.mubr.f32.gmra.mrb[0].mxu0 %v4455
        %v4457 = vpop.f32.mrb[0].mxu0
        %v4458 = vadd.f32 %v4264, %v4457
        %v4459 = vpop.f32.mrb[0].mxu0
        %4460 = vmatprep.mubr.f32.mxu0 0.0
        %v4461 = vand.u32 %v3685, 4294901760
        %v4462 = vsub.f32 %v3685, %v4461
        %v4463 = vand.u32 %v4462, 4294901760
        %4464 = vmatmul.mubr.f32.gmra.mrb[0].mxu0 %v4463
        %v4465 = vpop.f32.mrb[0].mxu0
        %v4466 = vadd.f32 %v4271, %v4465
        %v4467 = vpop.f32.mrb[0].mxu0
        %4468 = vmatprep.mubr.f32.mxu0 0.0
        %v4469 = vand.u32 %v3688, 4294901760
        %v4470 = vsub.f32 %v3688, %v4469
        %v4471 = vand.u32 %v4470, 4294901760
        %4472 = vmatmul.mubr.f32.gmra.mrb[0].mxu0 %v4471
        %v4473 = vpop.f32.mrb[0].mxu0
        %v4474 = vadd.f32 %v4278, %v4473
        %v4475 = vpop.f32.mrb[0].mxu0
        %4476 = vmatprep.mubr.f32.mxu0 0.0
        %v4477 = vand.u32 %v3691, 4294901760
        %v4478 = vsub.f32 %v3691, %v4477
        %v4479 = vand.u32 %v4478, 4294901760
        %4480 = vmatmul.mubr.f32.gmra.mrb[0].mxu0 %v4479
        %v4481 = vpop.f32.mrb[0].mxu0
        %v4482 = vadd.f32 %v4285, %v4481
        %v4483 = vpop.f32.mrb[0].mxu0
        %4484 = vdwg.mxu0
        %4485 = vmatprep.subr.mxu0 0.0
        %v4486 = vand.u32 %v3641, 4294901760
        %v4487 = vsub.f32 %v3641, %v4486
        %v4488 = vand.u32 %v4487, 4294901760
        %4489 = vmatpush1.msra.mxu0 %v4488
        %4490 = vmatprep.subr.mxu0 0.0
        %v4491 = vand.u32 %v3642, 4294901760
        %v4492 = vsub.f32 %v3642, %v4491
        %v4493 = vand.u32 %v4492, 4294901760
        %4494 = vmatpush1.msra.mxu0 %v4493
        %4495 = vmatprep.subr.mxu0 0.0
        %v4496 = vand.u32 %v3643, 4294901760
        %v4497 = vsub.f32 %v3643, %v4496
        %v4498 = vand.u32 %v4497, 4294901760
        %4499 = vmatpush1.msra.mxu0 %v4498
        %4500 = vmatprep.subr.mxu0 0.0
        %v4501 = vand.u32 %v3644, 4294901760
        %v4502 = vsub.f32 %v3644, %v4501
        %v4503 = vand.u32 %v4502, 4294901760
        %4504 = vmatpush1.msra.mxu0 %v4503
        %4505 = vmatprep.subr.mxu0 0.0
        %4506 = vmatpush1.msra.mxu0 0.0
        %4507 = vmatprep.subr.mxu0 0.0
        %4508 = vmatpush1.msra.mxu0 0.0
        %4509 = vmatprep.subr.mxu0 0.0
        %4510 = vmatpush1.msra.mxu0 0.0
        %4511 = vmatprep.subr.mxu0 0.0
        %4512 = vmatpush1.msra.mxu0 0.0
        %4513 = vmatprep.subr.mxu0 0.0
        %4514 = vmatpush1.msra.mxu0 0.0
        %4515 = vmatprep.subr.mxu0 0.0
        %4516 = vmatpush1.msra.mxu0 0.0
        %4517 = vmatprep.subr.mxu0 0.0
        %4518 = vmatpush1.msra.mxu0 0.0
        %4519 = vmatprep.subr.mxu0 0.0
        %4520 = vmatpush1.msra.mxu0 0.0
        %4521 = vmatprep.subr.mxu0 0.0
        %4522 = vmatpush1.msra.mxu0 0.0
        %4523 = vmatprep.subr.mxu0 0.0
        %4524 = vmatpush1.msra.mxu0 0.0
        %4525 = vmatprep.subr.mxu0 0.0
        %4526 = vmatpush1.msra.mxu0 0.0
        %4527 = vmatprep.subr.mxu0 0.0
        %4528 = vmatpush1.msra.mxu0 0.0
        %4529 = vmatprep.subr.mxu0 0.0
        %4530 = vmatpush1.msra.mxu0 0.0
        %4531 = vmatprep.subr.mxu0 0.0
        %4532 = vmatpush1.msra.mxu0 0.0
        %4533 = vmatprep.subr.mxu0 0.0
        %4534 = vmatpush1.msra.mxu0 0.0
        %4535 = vmatprep.subr.mxu0 0.0
        %4536 = vmatpush1.msra.mxu0 0.0
        %4537 = vmatprep.subr.mxu0 0.0
        %4538 = vmatpush1.msra.mxu0 0.0
        %4539 = vmatprep.subr.mxu0 0.0
        %4540 = vmatpush1.msra.mxu0 0.0
        %4541 = vmatprep.subr.mxu0 0.0
        %4542 = vmatpush1.msra.mxu0 0.0
        %4543 = vmatprep.subr.mxu0 0.0
        %4544 = vmatpush1.msra.mxu0 0.0
        %4545 = vmatprep.subr.mxu0 0.0
        %4546 = vmatpush1.msra.mxu0 0.0
        %4547 = vmatprep.subr.mxu0 0.0
        %4548 = vmatpush1.msra.mxu0 0.0
        %4549 = vmatprep.subr.mxu0 0.0
        %4550 = vmatpush1.msra.mxu0 0.0
        %4551 = vmatprep.subr.mxu0 0.0
        %4552 = vmatpush1.msra.mxu0 0.0
        %4553 = vmatprep.subr.mxu0 0.0
        %4554 = vmatpush1.msra.mxu0 0.0
        %4555 = vmatprep.subr.mxu0 0.0
        %4556 = vmatpush1.msra.mxu0 0.0
        %4557 = vmatprep.subr.mxu0 0.0
        %4558 = vmatpush1.msra.mxu0 0.0
        %4559 = vmatprep.subr.mxu0 0.0
        %4560 = vmatpush1.msra.mxu0 0.0
        %4561 = vmatprep.mubr.f32.mxu0 0.0
        %v4562 = vand.u32 %v3646, 4294901760
        %4563 = vmatmul.mubr.f32.gmra.mrb[0].mxu0 %v4562
        %v4564 = vpop.f32.mrb[0].mxu0
        %v4565 = vadd.f32 %v4362, %v4564
        %v4566 = vpop.f32.mrb[0].mxu0
        %4567 = vmatprep.mubr.f32.mxu0 0.0
        %v4568 = vand.u32 %v3649, 4294901760
        %4569 = vmatmul.mubr.f32.gmra.mrb[0].mxu0 %v4568
        %v4570 = vpop.f32.mrb[0].mxu0
        %v4571 = vadd.f32 %v4370, %v4570
        %v4572 = vpop.f32.mrb[0].mxu0
        %4573 = vmatprep.mubr.f32.mxu0 0.0
        %v4574 = vand.u32 %v3652, 4294901760
        %4575 = vmatmul.mubr.f32.gmra.mrb[0].mxu0 %v4574
        %v4576 = vpop.f32.mrb[0].mxu0
        %v4577 = vadd.f32 %v4378, %v4576
        %v4578 = vpop.f32.mrb[0].mxu0
        %4579 = vmatprep.mubr.f32.mxu0 0.0
        %v4580 = vand.u32 %v3655, 4294901760
        %4581 = vmatmul.mubr.f32.gmra.mrb[0].mxu0 %v4580
        %v4582 = vpop.f32.mrb[0].mxu0
        %v4583 = vadd.f32 %v4386, %v4582
        %v4584 = vpop.f32.mrb[0].mxu0
        %4585 = vmatprep.mubr.f32.mxu0 0.0
        %v4586 = vand.u32 %v3658, 4294901760
        %4587 = vmatmul.mubr.f32.gmra.mrb[0].mxu0 %v4586
        %v4588 = vpop.f32.mrb[0].mxu0
        %v4589 = vadd.f32 %v4394, %v4588
        %v4590 = vpop.f32.mrb[0].mxu0
        %4591 = vmatprep.mubr.f32.mxu0 0.0
        %v4592 = vand.u32 %v3661, 4294901760
        %4593 = vmatmul.mubr.f32.gmra.mrb[0].mxu0 %v4592
        %v4594 = vpop.f32.mrb[0].mxu0
        %v4595 = vadd.f32 %v4402, %v4594
        %v4596 = vpop.f32.mrb[0].mxu0
        %4597 = vmatprep.mubr.f32.mxu0 0.0
        %v4598 = vand.u32 %v3664, 4294901760
        %4599 = vmatmul.mubr.f32.gmra.mrb[0].mxu0 %v4598
        %v4600 = vpop.f32.mrb[0].mxu0
        %v4601 = vadd.f32 %v4410, %v4600
        %v4602 = vpop.f32.mrb[0].mxu0
        %4603 = vmatprep.mubr.f32.mxu0 0.0
        %v4604 = vand.u32 %v3667, 4294901760
        %4605 = vmatmul.mubr.f32.gmra.mrb[0].mxu0 %v4604
        %v4606 = vpop.f32.mrb[0].mxu0
        %v4607 = vadd.f32 %v4418, %v4606
        %v4608 = vpop.f32.mrb[0].mxu0
        %4609 = vmatprep.mubr.f32.mxu0 0.0
        %v4610 = vand.u32 %v3670, 4294901760
        %4611 = vmatmul.mubr.f32.gmra.mrb[0].mxu0 %v4610
        %v4612 = vpop.f32.mrb[0].mxu0
        %v4613 = vadd.f32 %v4426, %v4612
        %v4614 = vpop.f32.mrb[0].mxu0
        %4615 = vmatprep.mubr.f32.mxu0 0.0
        %v4616 = vand.u32 %v3673, 4294901760
        %4617 = vmatmul.mubr.f32.gmra.mrb[0].mxu0 %v4616
        %v4618 = vpop.f32.mrb[0].mxu0
        %v4619 = vadd.f32 %v4434, %v4618
        %v4620 = vpop.f32.mrb[0].mxu0
        %4621 = vmatprep.mubr.f32.mxu0 0.0
        %v4622 = vand.u32 %v3676, 4294901760
        %4623 = vmatmul.mubr.f32.gmra.mrb[0].mxu0 %v4622
        %v4624 = vpop.f32.mrb[0].mxu0
        %v4625 = vadd.f32 %v4442, %v4624
        %v4626 = vpop.f32.mrb[0].mxu0
        %4627 = vmatprep.mubr.f32.mxu0 0.0
        %v4628 = vand.u32 %v3679, 4294901760
        %4629 = vmatmul.mubr.f32.gmra.mrb[0].mxu0 %v4628
        %v4630 = vpop.f32.mrb[0].mxu0
        %v4631 = vadd.f32 %v4450, %v4630
        %v4632 = vpop.f32.mrb[0].mxu0
        %4633 = vmatprep.mubr.f32.mxu0 0.0
        %v4634 = vand.u32 %v3682, 4294901760
        %4635 = vmatmul.mubr.f32.gmra.mrb[0].mxu0 %v4634
        %v4636 = vpop.f32.mrb[0].mxu0
        %v4637 = vadd.f32 %v4458, %v4636
        %v4638 = vpop.f32.mrb[0].mxu0
        %4639 = vmatprep.mubr.f32.mxu0 0.0
        %v4640 = vand.u32 %v3685, 4294901760
        %4641 = vmatmul.mubr.f32.gmra.mrb[0].mxu0 %v4640
        %v4642 = vpop.f32.mrb[0].mxu0
        %v4643 = vadd.f32 %v4466, %v4642
        %v4644 = vpop.f32.mrb[0].mxu0
        %4645 = vmatprep.mubr.f32.mxu0 0.0
        %v4646 = vand.u32 %v3688, 4294901760
        %4647 = vmatmul.mubr.f32.gmra.mrb[0].mxu0 %v4646
        %v4648 = vpop.f32.mrb[0].mxu0
        %v4649 = vadd.f32 %v4474, %v4648
        %v4650 = vpop.f32.mrb[0].mxu0
        %4651 = vmatprep.mubr.f32.mxu0 0.0
        %v4652 = vand.u32 %v3691, 4294901760
        %4653 = vmatmul.mubr.f32.gmra.mrb[0].mxu0 %v4652
        %v4654 = vpop.f32.mrb[0].mxu0
        %v4655 = vadd.f32 %v4482, %v4654
        %v4656 = vpop.f32.mrb[0].mxu0
        %4657 = vdwg.mxu0
        %4658 = vmatprep.subr.mxu0 0.0
        %v4659 = vand.u32 %v3641, 4294901760
        %4660 = vmatpush1.msra.mxu0 %v4659
        %4661 = vmatprep.subr.mxu0 0.0
        %v4662 = vand.u32 %v3642, 4294901760
        %4663 = vmatpush1.msra.mxu0 %v4662
        %4664 = vmatprep.subr.mxu0 0.0
        %v4665 = vand.u32 %v3643, 4294901760
        %4666 = vmatpush1.msra.mxu0 %v4665
        %4667 = vmatprep.subr.mxu0 0.0
        %v4668 = vand.u32 %v3644, 4294901760
        %4669 = vmatpush1.msra.mxu0 %v4668
        %4670 = vmatprep.subr.mxu0 0.0
        %4671 = vmatpush1.msra.mxu0 0.0
        %4672 = vmatprep.subr.mxu0 0.0
        %4673 = vmatpush1.msra.mxu0 0.0
        %4674 = vmatprep.subr.mxu0 0.0
        %4675 = vmatpush1.msra.mxu0 0.0
        %4676 = vmatprep.subr.mxu0 0.0
        %4677 = vmatpush1.msra.mxu0 0.0
        %4678 = vmatprep.subr.mxu0 0.0
        %4679 = vmatpush1.msra.mxu0 0.0
        %4680 = vmatprep.subr.mxu0 0.0
        %4681 = vmatpush1.msra.mxu0 0.0
        %4682 = vmatprep.subr.mxu0 0.0
        %4683 = vmatpush1.msra.mxu0 0.0
        %4684 = vmatprep.subr.mxu0 0.0
        %4685 = vmatpush1.msra.mxu0 0.0
        %4686 = vmatprep.subr.mxu0 0.0
        %4687 = vmatpush1.msra.mxu0 0.0
        %4688 = vmatprep.subr.mxu0 0.0
        %4689 = vmatpush1.msra.mxu0 0.0
        %4690 = vmatprep.subr.mxu0 0.0
        %4691 = vmatpush1.msra.mxu0 0.0
        %4692 = vmatprep.subr.mxu0 0.0
        %4693 = vmatpush1.msra.mxu0 0.0
        %4694 = vmatprep.subr.mxu0 0.0
        %4695 = vmatpush1.msra.mxu0 0.0
        %4696 = vmatprep.subr.mxu0 0.0
        %4697 = vmatpush1.msra.mxu0 0.0
        %4698 = vmatprep.subr.mxu0 0.0
        %4699 = vmatpush1.msra.mxu0 0.0
        %4700 = vmatprep.subr.mxu0 0.0
        %4701 = vmatpush1.msra.mxu0 0.0
        %4702 = vmatprep.subr.mxu0 0.0
        %4703 = vmatpush1.msra.mxu0 0.0
        %4704 = vmatprep.subr.mxu0 0.0
        %4705 = vmatpush1.msra.mxu0 0.0
        %4706 = vmatprep.subr.mxu0 0.0
        %4707 = vmatpush1.msra.mxu0 0.0
        %4708 = vmatprep.subr.mxu0 0.0
        %4709 = vmatpush1.msra.mxu0 0.0
        %4710 = vmatprep.subr.mxu0 0.0
        %4711 = vmatpush1.msra.mxu0 0.0
        %4712 = vmatprep.subr.mxu0 0.0
        %4713 = vmatpush1.msra.mxu0 0.0
        %4714 = vmatprep.subr.mxu0 0.0
        %4715 = vmatpush1.msra.mxu0 0.0
        %4716 = vmatprep.subr.mxu0 0.0
        %4717 = vmatpush1.msra.mxu0 0.0
        %4718 = vmatprep.subr.mxu0 0.0
        %4719 = vmatpush1.msra.mxu0 0.0
        %4720 = vmatprep.subr.mxu0 0.0
        %4721 = vmatpush1.msra.mxu0 0.0
        %4722 = vmatprep.subr.mxu0 0.0
        %4723 = vmatpush1.msra.mxu0 0.0
        %4724 = vmatprep.subr.mxu0 0.0
        %4725 = vmatpush1.msra.mxu0 0.0
        %4726 = vmatprep.mubr.f32.mxu0 0.0
        %v4727 = vand.u32 %v3646, 4294901760
        %4728 = vmatmul.mubr.f32.gmra.mrb[0].mxu0 %v4727
        %v4729 = vpop.f32.mrb[0].mxu0
        %v4730 = vadd.f32 %v4565, %v4729
        %v4731 = vpop.f32.mrb[0].mxu0
        %4732 = vmatprep.mubr.f32.mxu0 0.0
        %v4733 = vand.u32 %v3649, 4294901760
        %4734 = vmatmul.mubr.f32.gmra.mrb[0].mxu0 %v4733
        %v4735 = vpop.f32.mrb[0].mxu0
        %v4736 = vadd.f32 %v4571, %v4735
        %v4737 = vpop.f32.mrb[0].mxu0
        %4738 = vmatprep.mubr.f32.mxu0 0.0
        %v4739 = vand.u32 %v3652, 4294901760
        %4740 = vmatmul.mubr.f32.gmra.mrb[0].mxu0 %v4739
        %v4741 = vpop.f32.mrb[0].mxu0
        %v4742 = vadd.f32 %v4577, %v4741
        %v4743 = vpop.f32.mrb[0].mxu0
        %4744 = vmatprep.mubr.f32.mxu0 0.0
        %v4745 = vand.u32 %v3655, 4294901760
        %4746 = vmatmul.mubr.f32.gmra.mrb[0].mxu0 %v4745
        %v4747 = vpop.f32.mrb[0].mxu0
        %v4748 = vadd.f32 %v4583, %v4747
        %v4749 = vpop.f32.mrb[0].mxu0
        %4750 = vmatprep.mubr.f32.mxu0 0.0
        %v4751 = vand.u32 %v3658, 4294901760
        %4752 = vmatmul.mubr.f32.gmra.mrb[0].mxu0 %v4751
        %v4753 = vpop.f32.mrb[0].mxu0
        %v4754 = vadd.f32 %v4589, %v4753
        %v4755 = vpop.f32.mrb[0].mxu0
        %4756 = vmatprep.mubr.f32.mxu0 0.0
        %v4757 = vand.u32 %v3661, 4294901760
        %4758 = vmatmul.mubr.f32.gmra.mrb[0].mxu0 %v4757
        %v4759 = vpop.f32.mrb[0].mxu0
        %v4760 = vadd.f32 %v4595, %v4759
        %v4761 = vpop.f32.mrb[0].mxu0
        %4762 = vmatprep.mubr.f32.mxu0 0.0
        %v4763 = vand.u32 %v3664, 4294901760
        %4764 = vmatmul.mubr.f32.gmra.mrb[0].mxu0 %v4763
        %v4765 = vpop.f32.mrb[0].mxu0
        %v4766 = vadd.f32 %v4601, %v4765
        %v4767 = vpop.f32.mrb[0].mxu0
        %4768 = vmatprep.mubr.f32.mxu0 0.0
        %v4769 = vand.u32 %v3667, 4294901760
        %4770 = vmatmul.mubr.f32.gmra.mrb[0].mxu0 %v4769
        %v4771 = vpop.f32.mrb[0].mxu0
        %v4772 = vadd.f32 %v4607, %v4771
        %v4773 = vpop.f32.mrb[0].mxu0
        %4774 = vmatprep.mubr.f32.mxu0 0.0
        %v4775 = vand.u32 %v3670, 4294901760
        %4776 = vmatmul.mubr.f32.gmra.mrb[0].mxu0 %v4775
        %v4777 = vpop.f32.mrb[0].mxu0
        %v4778 = vadd.f32 %v4613, %v4777
        %v4779 = vpop.f32.mrb[0].mxu0
        %4780 = vmatprep.mubr.f32.mxu0 0.0
        %v4781 = vand.u32 %v3673, 4294901760
        %4782 = vmatmul.mubr.f32.gmra.mrb[0].mxu0 %v4781
        %v4783 = vpop.f32.mrb[0].mxu0
        %v4784 = vadd.f32 %v4619, %v4783
        %v4785 = vpop.f32.mrb[0].mxu0
        %4786 = vmatprep.mubr.f32.mxu0 0.0
        %v4787 = vand.u32 %v3676, 4294901760
        %4788 = vmatmul.mubr.f32.gmra.mrb[0].mxu0 %v4787
        %v4789 = vpop.f32.mrb[0].mxu0
        %v4790 = vadd.f32 %v4625, %v4789
        %v4791 = vpop.f32.mrb[0].mxu0
        %4792 = vmatprep.mubr.f32.mxu0 0.0
        %v4793 = vand.u32 %v3679, 4294901760
        %4794 = vmatmul.mubr.f32.gmra.mrb[0].mxu0 %v4793
        %v4795 = vpop.f32.mrb[0].mxu0
        %v4796 = vadd.f32 %v4631, %v4795
        %v4797 = vpop.f32.mrb[0].mxu0
        %4798 = vmatprep.mubr.f32.mxu0 0.0
        %v4799 = vand.u32 %v3682, 4294901760
        %4800 = vmatmul.mubr.f32.gmra.mrb[0].mxu0 %v4799
        %v4801 = vpop.f32.mrb[0].mxu0
        %v4802 = vadd.f32 %v4637, %v4801
        %v4803 = vpop.f32.mrb[0].mxu0
        %4804 = vmatprep.mubr.f32.mxu0 0.0
        %v4805 = vand.u32 %v3685, 4294901760
        %4806 = vmatmul.mubr.f32.gmra.mrb[0].mxu0 %v4805
        %v4807 = vpop.f32.mrb[0].mxu0
        %v4808 = vadd.f32 %v4643, %v4807
        %v4809 = vpop.f32.mrb[0].mxu0
        %4810 = vmatprep.mubr.f32.mxu0 0.0
        %v4811 = vand.u32 %v3688, 4294901760
        %4812 = vmatmul.mubr.f32.gmra.mrb[0].mxu0 %v4811
        %v4813 = vpop.f32.mrb[0].mxu0
        %v4814 = vadd.f32 %v4649, %v4813
        %v4815 = vpop.f32.mrb[0].mxu0
        %4816 = vmatprep.mubr.f32.mxu0 0.0
        %v4817 = vand.u32 %v3691, 4294901760
        %4818 = vmatmul.mubr.f32.gmra.mrb[0].mxu0 %v4817
        %v4819 = vpop.f32.mrb[0].mxu0
        %v4820 = vadd.f32 %v4655, %v4819
        %v4821 = vpop.f32.mrb[0].mxu0
        %4822 = vdwg.mxu0
        %v4823 = vadd.f32 %v3436, %v4730
        %v4824 = vadd.f32 %v3442, %v4736
        %v4825 = vadd.f32 %v3448, %v4742
        %v4826 = vadd.f32 %v3454, %v4748
        %v4827 = vadd.f32 %v3460, %v4754
        %v4828 = vadd.f32 %v3466, %v4760
        %v4829 = vadd.f32 %v3472, %v4766
        %v4830 = vadd.f32 %v3478, %v4772
        %v4831 = vadd.f32 %v3484, %v4778
        %v4832 = vadd.f32 %v3490, %v4784
        %v4833 = vadd.f32 %v3496, %v4790
        %v4834 = vadd.f32 %v3502, %v4796
        %v4835 = vadd.f32 %v3508, %v4802
        %v4836 = vadd.f32 %v3514, %v4808
        %v4837 = vadd.f32 %v3520, %v4814
        %v4838 = vadd.f32 %v3526, %v4820
        %v4839 = vld [vmem:[%s397] sm:$0xff]
        %v4840 = vld [vmem:[%s397 + $0x8] sm:$0xff]
        %v4841 = vld [vmem:[%s397 + $0x10] sm:$0xff]
        %v4842 = vld [vmem:[%s397 + $0x18] sm:$0xff]
        %v4843 = vld [vmem:[%s397 + $0x20] sm:$0xff]
        %v4844 = vld [vmem:[%s397 + $0x28] sm:$0xff]
        %v4845 = vld [vmem:[%s397 + $0x30] sm:$0xff]
        %v4846 = vld [vmem:[%s397 + $0x38] sm:$0xff]
        %v4847 = vld [vmem:[%s397 + $0x40] sm:$0xff]
        %v4848 = vld [vmem:[%s397 + $0x48] sm:$0xff]
        %v4849 = vld [vmem:[%s397 + $0x50] sm:$0xff]
        %v4850 = vld [vmem:[%s397 + $0x58] sm:$0xff]
        %v4851 = vld [vmem:[%s397 + $0x60] sm:$0xff]
        %v4852 = vld [vmem:[%s397 + $0x68] sm:$0xff]
        %v4853 = vld [vmem:[%s397 + $0x70] sm:$0xff]
        %v4854 = vld [vmem:[%s397 + $0x78] sm:$0xff]
        %4855 = vset.pattern.permute.xlu0 0
        %4856 = vperm.xlu0 %4855, %v4839
        %v4857 = vpop.permute.xlu0 %4856
        %4858 = vset.pattern.permute.xlu0 0
        %4859 = vperm.xlu0 %4858, %v4840
        %v4860 = vpop.permute.xlu0 %4859
        %4861 = vset.pattern.permute.xlu0 0
        %4862 = vperm.xlu0 %4861, %v4841
        %v4863 = vpop.permute.xlu0 %4862
        %4864 = vset.pattern.permute.xlu0 0
        %4865 = vperm.xlu0 %4864, %v4842
        %v4866 = vpop.permute.xlu0 %4865
        %4867 = vset.pattern.permute.xlu0 0
        %4868 = vperm.xlu0 %4867, %v4843
        %v4869 = vpop.permute.xlu0 %4868
        %4870 = vset.pattern.permute.xlu0 0
        %4871 = vperm.xlu0 %4870, %v4844
        %v4872 = vpop.permute.xlu0 %4871
        %4873 = vset.pattern.permute.xlu0 0
        %4874 = vperm.xlu0 %4873, %v4845
        %v4875 = vpop.permute.xlu0 %4874
        %4876 = vset.pattern.permute.xlu0 0
        %4877 = vperm.xlu0 %4876, %v4846
        %v4878 = vpop.permute.xlu0 %4877
        %4879 = vset.pattern.permute.xlu0 0
        %4880 = vperm.xlu0 %4879, %v4847
        %v4881 = vpop.permute.xlu0 %4880
        %4882 = vset.pattern.permute.xlu0 0
        %4883 = vperm.xlu0 %4882, %v4848
        %v4884 = vpop.permute.xlu0 %4883
        %4885 = vset.pattern.permute.xlu0 0
        %4886 = vperm.xlu0 %4885, %v4849
        %v4887 = vpop.permute.xlu0 %4886
        %4888 = vset.pattern.permute.xlu0 0
        %4889 = vperm.xlu0 %4888, %v4850
        %v4890 = vpop.permute.xlu0 %4889
        %4891 = vset.pattern.permute.xlu0 0
        %4892 = vperm.xlu0 %4891, %v4851
        %v4893 = vpop.permute.xlu0 %4892
        %4894 = vset.pattern.permute.xlu0 0
        %4895 = vperm.xlu0 %4894, %v4852
        %v4896 = vpop.permute.xlu0 %4895
        %4897 = vset.pattern.permute.xlu0 0
        %4898 = vperm.xlu0 %4897, %v4853
        %v4899 = vpop.permute.xlu0 %4898
        %4900 = vset.pattern.permute.xlu0 0
        %4901 = vperm.xlu0 %4900, %v4854
        %v4902 = vpop.permute.xlu0 %4901
        %vm4903 = vcmp.eq.s32.totalorder %v401, %v4857
        %vm4904 = vcmp.eq.s32.totalorder %v522, %v4857
        %vm4905 = vcmp.eq.s32.totalorder %v401, %v4860
        %vm4906 = vcmp.eq.s32.totalorder %v522, %v4860
        %vm4907 = vcmp.eq.s32.totalorder %v401, %v4863
        %vm4908 = vcmp.eq.s32.totalorder %v522, %v4863
        %vm4909 = vcmp.eq.s32.totalorder %v401, %v4866
        %vm4910 = vcmp.eq.s32.totalorder %v522, %v4866
        %vm4911 = vcmp.eq.s32.totalorder %v401, %v4869
        %vm4912 = vcmp.eq.s32.totalorder %v522, %v4869
        %vm4913 = vcmp.eq.s32.totalorder %v401, %v4872
        %vm4914 = vcmp.eq.s32.totalorder %v522, %v4872
        %vm4915 = vcmp.eq.s32.totalorder %v401, %v4875
        %vm4916 = vcmp.eq.s32.totalorder %v522, %v4875
        %vm4917 = vcmp.eq.s32.totalorder %v401, %v4878
        %vm4918 = vcmp.eq.s32.totalorder %v522, %v4878
        %vm4919 = vcmp.eq.s32.totalorder %v401, %v4881
        %vm4920 = vcmp.eq.s32.totalorder %v522, %v4881
        %vm4921 = vcmp.eq.s32.totalorder %v401, %v4884
        %vm4922 = vcmp.eq.s32.totalorder %v522, %v4884
        %vm4923 = vcmp.eq.s32.totalorder %v401, %v4887
        %vm4924 = vcmp.eq.s32.totalorder %v522, %v4887
        %vm4925 = vcmp.eq.s32.totalorder %v401, %v4890
        %vm4926 = vcmp.eq.s32.totalorder %v522, %v4890
        %vm4927 = vcmp.eq.s32.totalorder %v401, %v4893
        %vm4928 = vcmp.eq.s32.totalorder %v522, %v4893
        %vm4929 = vcmp.eq.s32.totalorder %v401, %v4896
        %vm4930 = vcmp.eq.s32.totalorder %v522, %v4896
        %vm4931 = vcmp.eq.s32.totalorder %v401, %v4899
        %vm4932 = vcmp.eq.s32.totalorder %v522, %v4899
        %vm4933 = vcmp.eq.s32.totalorder %v401, %v4902
        %vm4934 = vcmp.eq.s32.totalorder %v522, %v4902
        %v4935 = vsel %vm4903, 1, 0
        %v4936 = vsel %vm4904, 1, 0
        %v4937 = vsel %vm4905, 1, 0
        %v4938 = vsel %vm4906, 1, 0
        %v4939 = vsel %vm4907, 1, 0
        %v4940 = vsel %vm4908, 1, 0
        %v4941 = vsel %vm4909, 1, 0
        %v4942 = vsel %vm4910, 1, 0
        %v4943 = vsel %vm4911, 1, 0
        %v4944 = vsel %vm4912, 1, 0
        %v4945 = vsel %vm4913, 1, 0
        %v4946 = vsel %vm4914, 1, 0
        %v4947 = vsel %vm4915, 1, 0
        %v4948 = vsel %vm4916, 1, 0
        %v4949 = vsel %vm4917, 1, 0
        %v4950 = vsel %vm4918, 1, 0
        %v4951 = vsel %vm4919, 1, 0
        %v4952 = vsel %vm4920, 1, 0
        %v4953 = vsel %vm4921, 1, 0
        %v4954 = vsel %vm4922, 1, 0
        %v4955 = vsel %vm4923, 1, 0
        %v4956 = vsel %vm4924, 1, 0
        %v4957 = vsel %vm4925, 1, 0
        %v4958 = vsel %vm4926, 1, 0
        %v4959 = vsel %vm4927, 1, 0
        %v4960 = vsel %vm4928, 1, 0
        %v4961 = vsel %vm4929, 1, 0
        %v4962 = vsel %vm4930, 1, 0
        %v4963 = vsel %vm4931, 1, 0
        %v4964 = vsel %vm4932, 1, 0
        %v4965 = vsel %vm4933, 1, 0
        %v4966 = vsel %vm4934, 1, 0
        %v4967 = vcvt.s32.f32 %v4935
        %v4968 = vcvt.s32.f32 %v4936
        %v4969 = vcvt.s32.f32 %v4937
        %v4970 = vcvt.s32.f32 %v4938
        %v4971 = vcvt.s32.f32 %v4939
        %v4972 = vcvt.s32.f32 %v4940
        %v4973 = vcvt.s32.f32 %v4941
        %v4974 = vcvt.s32.f32 %v4942
        %v4975 = vcvt.s32.f32 %v4943
        %v4976 = vcvt.s32.f32 %v4944
        %v4977 = vcvt.s32.f32 %v4945
        %v4978 = vcvt.s32.f32 %v4946
        %v4979 = vcvt.s32.f32 %v4947
        %v4980 = vcvt.s32.f32 %v4948
        %v4981 = vcvt.s32.f32 %v4949
        %v4982 = vcvt.s32.f32 %v4950
        %v4983 = vcvt.s32.f32 %v4951
        %v4984 = vcvt.s32.f32 %v4952
        %v4985 = vcvt.s32.f32 %v4953
        %v4986 = vcvt.s32.f32 %v4954
        %v4987 = vcvt.s32.f32 %v4955
        %v4988 = vcvt.s32.f32 %v4956
        %v4989 = vcvt.s32.f32 %v4957
        %v4990 = vcvt.s32.f32 %v4958
        %v4991 = vcvt.s32.f32 %v4959
        %v4992 = vcvt.s32.f32 %v4960
        %v4993 = vcvt.s32.f32 %v4961
        %v4994 = vcvt.s32.f32 %v4962
        %v4995 = vcvt.s32.f32 %v4963
        %v4996 = vcvt.s32.f32 %v4964
        %v4997 = vcvt.s32.f32 %v4965
        %v4998 = vcvt.s32.f32 %v4966
        %v5000 = vsel %vm703, %v4968, 0
        %v5003 = vsel %vm703, %v4970, 0
        %v5006 = vsel %vm703, %v4972, 0
        %v5009 = vsel %vm703, %v4974, 0
        %v5012 = vsel %vm703, %v4976, 0
        %v5015 = vsel %vm703, %v4978, 0
        %v5018 = vsel %vm703, %v4980, 0
        %v5021 = vsel %vm703, %v4982, 0
        %v5024 = vsel %vm703, %v4984, 0
        %v5027 = vsel %vm703, %v4986, 0
        %v5030 = vsel %vm703, %v4988, 0
        %v5033 = vsel %vm703, %v4990, 0
        %v5036 = vsel %vm703, %v4992, 0
        %v5039 = vsel %vm703, %v4994, 0
        %v5042 = vsel %vm703, %v4996, 0
        %v5045 = vsel %vm703, %v4998, 0
        %5047 = vmatprep.subr.mxu0 0.0
        %v5048 = vand.u32 %v683, 4294901760
        %5049 = vmatpush1.msra.mxu0 %v5048
        %5050 = vmatprep.subr.mxu0 0.0
        %v5051 = vand.u32 %v684, 4294901760
        %5052 = vmatpush1.msra.mxu0 %v5051
        %5053 = vmatprep.subr.mxu0 0.0
        %v5054 = vand.u32 %v685, 4294901760
        %5055 = vmatpush1.msra.mxu0 %v5054
        %5056 = vmatprep.subr.mxu0 0.0
        %v5057 = vand.u32 %v686, 4294901760
        %5058 = vmatpush1.msra.mxu0 %v5057
        %5059 = vmatprep.subr.mxu0 0.0
        %v5060 = vand.u32 %v687, 4294901760
        %5061 = vmatpush1.msra.mxu0 %v5060
        %5062 = vmatprep.subr.mxu0 0.0
        %v5063 = vand.u32 %v688, 4294901760
        %5064 = vmatpush1.msra.mxu0 %v5063
        %5065 = vmatprep.subr.mxu0 0.0
        %v5066 = vand.u32 %v689, 4294901760
        %5067 = vmatpush1.msra.mxu0 %v5066
        %5068 = vmatprep.subr.mxu0 0.0
        %v5069 = vand.u32 %v690, 4294901760
        %5070 = vmatpush1.msra.mxu0 %v5069
        %5071 = vmatprep.subr.mxu0 0.0
        %v5072 = vand.u32 %v691, 4294901760
        %5073 = vmatpush1.msra.mxu0 %v5072
        %5074 = vmatprep.subr.mxu0 0.0
        %v5075 = vand.u32 %v692, 4294901760
        %5076 = vmatpush1.msra.mxu0 %v5075
        %5077 = vmatprep.subr.mxu0 0.0
        %v5078 = vand.u32 %v693, 4294901760
        %5079 = vmatpush1.msra.mxu0 %v5078
        %5080 = vmatprep.subr.mxu0 0.0
        %v5081 = vand.u32 %v694, 4294901760
        %5082 = vmatpush1.msra.mxu0 %v5081
        %5083 = vmatprep.subr.mxu0 0.0
        %v5084 = vand.u32 %v695, 4294901760
        %5085 = vmatpush1.msra.mxu0 %v5084
        %5086 = vmatprep.subr.mxu0 0.0
        %v5087 = vand.u32 %v696, 4294901760
        %5088 = vmatpush1.msra.mxu0 %v5087
        %5089 = vmatprep.subr.mxu0 0.0
        %v5090 = vand.u32 %v697, 4294901760
        %5091 = vmatpush1.msra.mxu0 %v5090
        %5092 = vmatprep.subr.mxu0 0.0
        %v5093 = vand.u32 %v698, 4294901760
        %5094 = vmatpush1.msra.mxu0 %v5093
        %5095 = vmatprep.subr.mxu0 0.0
        %v5096 = vand.u32 %v699, 4294901760
        %5097 = vmatpush1.msra.mxu0 %v5096
        %5098 = vmatprep.subr.mxu0 0.0
        %v5099 = vand.u32 %v700, 4294901760
        %5100 = vmatpush1.msra.mxu0 %v5099
        %5101 = vmatprep.subr.mxu0 0.0
        %v5102 = vand.u32 %v701, 4294901760
        %5103 = vmatpush1.msra.mxu0 %v5102
        %5104 = vmatprep.subr.mxu0 0.0
        %v5105 = vand.u32 %v702, 4294901760
        %5106 = vmatpush1.msra.mxu0 %v5105
        %5107 = vmatprep.subr.mxu0 0.0
        %5108 = vmatpush1.msra.mxu0 0.0
        %5109 = vmatprep.subr.mxu0 0.0
        %5110 = vmatpush1.msra.mxu0 0.0
        %5111 = vmatprep.subr.mxu0 0.0
        %5112 = vmatpush1.msra.mxu0 0.0
        %5113 = vmatprep.subr.mxu0 0.0
        %5114 = vmatpush1.msra.mxu0 0.0
        %5115 = vmatprep.subr.mxu0 0.0
        %5116 = vmatpush1.msra.mxu0 0.0
        %5117 = vmatprep.subr.mxu0 0.0
        %5118 = vmatpush1.msra.mxu0 0.0
        %5119 = vmatprep.subr.mxu0 0.0
        %5120 = vmatpush1.msra.mxu0 0.0
        %5121 = vmatprep.subr.mxu0 0.0
        %5122 = vmatpush1.msra.mxu0 0.0
        %5123 = vmatprep.subr.mxu0 0.0
        %5124 = vmatpush1.msra.mxu0 0.0
        %5125 = vmatprep.subr.mxu0 0.0
        %5126 = vmatpush1.msra.mxu0 0.0
        %5127 = vmatprep.subr.mxu0 0.0
        %5128 = vmatpush1.msra.mxu0 0.0
        %5129 = vmatprep.subr.mxu0 0.0
        %5130 = vmatpush1.msra.mxu0 0.0
        %v5131 = vand.u32 %v5000, 4294901760
        %v5132 = vsub.f32 %v5000, %v5131
        %v5133 = vand.u32 %v5132, 4294901760
        %v5134 = vsub.f32 %v5132, %v5133
        %v5135 = vand.u32 %v5134, 4294901760
        %5136 = vmatprep.mubr.f32.mxu0 %v5135
        %v5137 = vand.u32 %v4967, 4294901760
        %v5138 = vsub.f32 %v4967, %v5137
        %v5139 = vand.u32 %v5138, 4294901760
        %v5140 = vsub.f32 %v5138, %v5139
        %v5141 = vand.u32 %v5140, 4294901760
        %5142 = vmatmul.mubr.f32.gmra.mrb[0].mxu0 %v5141
        %v5143 = vpop.f32.mrb[0].mxu0
        %v5144 = vadd.f32 0.0, %v5143
        %v5145 = vpop.f32.mrb[0].mxu0
        %v5146 = vand.u32 %v5003, 4294901760
        %v5147 = vsub.f32 %v5003, %v5146
        %v5148 = vand.u32 %v5147, 4294901760
        %v5149 = vsub.f32 %v5147, %v5148
        %v5150 = vand.u32 %v5149, 4294901760
        %5151 = vmatprep.mubr.f32.mxu0 %v5150
        %v5152 = vand.u32 %v4969, 4294901760
        %v5153 = vsub.f32 %v4969, %v5152
        %v5154 = vand.u32 %v5153, 4294901760
        %v5155 = vsub.f32 %v5153, %v5154
        %v5156 = vand.u32 %v5155, 4294901760
        %5157 = vmatmul.mubr.f32.gmra.mrb[0].mxu0 %v5156
        %v5158 = vpop.f32.mrb[0].mxu0
        %v5159 = vadd.f32 0.0, %v5158
        %v5160 = vpop.f32.mrb[0].mxu0
        %v5161 = vand.u32 %v5006, 4294901760
        %v5162 = vsub.f32 %v5006, %v5161
        %v5163 = vand.u32 %v5162, 4294901760
        %v5164 = vsub.f32 %v5162, %v5163
        %v5165 = vand.u32 %v5164, 4294901760
        %5166 = vmatprep.mubr.f32.mxu0 %v5165
        %v5167 = vand.u32 %v4971, 4294901760
        %v5168 = vsub.f32 %v4971, %v5167
        %v5169 = vand.u32 %v5168, 4294901760
        %v5170 = vsub.f32 %v5168, %v5169
        %v5171 = vand.u32 %v5170, 4294901760
        %5172 = vmatmul.mubr.f32.gmra.mrb[0].mxu0 %v5171
        %v5173 = vpop.f32.mrb[0].mxu0
        %v5174 = vadd.f32 0.0, %v5173
        %v5175 = vpop.f32.mrb[0].mxu0
        %v5176 = vand.u32 %v5009, 4294901760
        %v5177 = vsub.f32 %v5009, %v5176
        %v5178 = vand.u32 %v5177, 4294901760
        %v5179 = vsub.f32 %v5177, %v5178
        %v5180 = vand.u32 %v5179, 4294901760
        %5181 = vmatprep.mubr.f32.mxu0 %v5180
        %v5182 = vand.u32 %v4973, 4294901760
        %v5183 = vsub.f32 %v4973, %v5182
        %v5184 = vand.u32 %v5183, 4294901760
        %v5185 = vsub.f32 %v5183, %v5184
        %v5186 = vand.u32 %v5185, 4294901760
        %5187 = vmatmul.mubr.f32.gmra.mrb[0].mxu0 %v5186
        %v5188 = vpop.f32.mrb[0].mxu0
        %v5189 = vadd.f32 0.0, %v5188
        %v5190 = vpop.f32.mrb[0].mxu0
        %v5191 = vand.u32 %v5012, 4294901760
        %v5192 = vsub.f32 %v5012, %v5191
        %v5193 = vand.u32 %v5192, 4294901760
        %v5194 = vsub.f32 %v5192, %v5193
        %v5195 = vand.u32 %v5194, 4294901760
        %5196 = vmatprep.mubr.f32.mxu0 %v5195
        %v5197 = vand.u32 %v4975, 4294901760
        %v5198 = vsub.f32 %v4975, %v5197
        %v5199 = vand.u32 %v5198, 4294901760
        %v5200 = vsub.f32 %v5198, %v5199
        %v5201 = vand.u32 %v5200, 4294901760
        %5202 = vmatmul.mubr.f32.gmra.mrb[0].mxu0 %v5201
        %v5203 = vpop.f32.mrb[0].mxu0
        %v5204 = vadd.f32 0.0, %v5203
        %v5205 = vpop.f32.mrb[0].mxu0
        %v5206 = vand.u32 %v5015, 4294901760
        %v5207 = vsub.f32 %v5015, %v5206
        %v5208 = vand.u32 %v5207, 4294901760
        %v5209 = vsub.f32 %v5207, %v5208
        %v5210 = vand.u32 %v5209, 4294901760
        %5211 = vmatprep.mubr.f32.mxu0 %v5210
        %v5212 = vand.u32 %v4977, 4294901760
        %v5213 = vsub.f32 %v4977, %v5212
        %v5214 = vand.u32 %v5213, 4294901760
        %v5215 = vsub.f32 %v5213, %v5214
        %v5216 = vand.u32 %v5215, 4294901760
        %5217 = vmatmul.mubr.f32.gmra.mrb[0].mxu0 %v5216
        %v5218 = vpop.f32.mrb[0].mxu0
        %v5219 = vadd.f32 0.0, %v5218
        %v5220 = vpop.f32.mrb[0].mxu0
        %v5221 = vand.u32 %v5018, 4294901760
        %v5222 = vsub.f32 %v5018, %v5221
        %v5223 = vand.u32 %v5222, 4294901760
        %v5224 = vsub.f32 %v5222, %v5223
        %v5225 = vand.u32 %v5224, 4294901760
        %5226 = vmatprep.mubr.f32.mxu0 %v5225
        %v5227 = vand.u32 %v4979, 4294901760
        %v5228 = vsub.f32 %v4979, %v5227
        %v5229 = vand.u32 %v5228, 4294901760
        %v5230 = vsub.f32 %v5228, %v5229
        %v5231 = vand.u32 %v5230, 4294901760
        %5232 = vmatmul.mubr.f32.gmra.mrb[0].mxu0 %v5231
        %v5233 = vpop.f32.mrb[0].mxu0
        %v5234 = vadd.f32 0.0, %v5233
        %v5235 = vpop.f32.mrb[0].mxu0
        %v5236 = vand.u32 %v5021, 4294901760
        %v5237 = vsub.f32 %v5021, %v5236
        %v5238 = vand.u32 %v5237, 4294901760
        %v5239 = vsub.f32 %v5237, %v5238
        %v5240 = vand.u32 %v5239, 4294901760
        %5241 = vmatprep.mubr.f32.mxu0 %v5240
        %v5242 = vand.u32 %v4981, 4294901760
        %v5243 = vsub.f32 %v4981, %v5242
        %v5244 = vand.u32 %v5243, 4294901760
        %v5245 = vsub.f32 %v5243, %v5244
        %v5246 = vand.u32 %v5245, 4294901760
        %5247 = vmatmul.mubr.f32.gmra.mrb[0].mxu0 %v5246
        %v5248 = vpop.f32.mrb[0].mxu0
        %v5249 = vadd.f32 0.0, %v5248
        %v5250 = vpop.f32.mrb[0].mxu0
        %v5251 = vand.u32 %v5024, 4294901760
        %v5252 = vsub.f32 %v5024, %v5251
        %v5253 = vand.u32 %v5252, 4294901760
        %v5254 = vsub.f32 %v5252, %v5253
        %v5255 = vand.u32 %v5254, 4294901760
        %5256 = vmatprep.mubr.f32.mxu0 %v5255
        %v5257 = vand.u32 %v4983, 4294901760
        %v5258 = vsub.f32 %v4983, %v5257
        %v5259 = vand.u32 %v5258, 4294901760
        %v5260 = vsub.f32 %v5258, %v5259
        %v5261 = vand.u32 %v5260, 4294901760
        %5262 = vmatmul.mubr.f32.gmra.mrb[0].mxu0 %v5261
        %v5263 = vpop.f32.mrb[0].mxu0
        %v5264 = vadd.f32 0.0, %v5263
        %v5265 = vpop.f32.mrb[0].mxu0
        %v5266 = vand.u32 %v5027, 4294901760
        %v5267 = vsub.f32 %v5027, %v5266
        %v5268 = vand.u32 %v5267, 4294901760
        %v5269 = vsub.f32 %v5267, %v5268
        %v5270 = vand.u32 %v5269, 4294901760
        %5271 = vmatprep.mubr.f32.mxu0 %v5270
        %v5272 = vand.u32 %v4985, 4294901760
        %v5273 = vsub.f32 %v4985, %v5272
        %v5274 = vand.u32 %v5273, 4294901760
        %v5275 = vsub.f32 %v5273, %v5274
        %v5276 = vand.u32 %v5275, 4294901760
        %5277 = vmatmul.mubr.f32.gmra.mrb[0].mxu0 %v5276
        %v5278 = vpop.f32.mrb[0].mxu0
        %v5279 = vadd.f32 0.0, %v5278
        %v5280 = vpop.f32.mrb[0].mxu0
        %v5281 = vand.u32 %v5030, 4294901760
        %v5282 = vsub.f32 %v5030, %v5281
        %v5283 = vand.u32 %v5282, 4294901760
        %v5284 = vsub.f32 %v5282, %v5283
        %v5285 = vand.u32 %v5284, 4294901760
        %5286 = vmatprep.mubr.f32.mxu0 %v5285
        %v5287 = vand.u32 %v4987, 4294901760
        %v5288 = vsub.f32 %v4987, %v5287
        %v5289 = vand.u32 %v5288, 4294901760
        %v5290 = vsub.f32 %v5288, %v5289
        %v5291 = vand.u32 %v5290, 4294901760
        %5292 = vmatmul.mubr.f32.gmra.mrb[0].mxu0 %v5291
        %v5293 = vpop.f32.mrb[0].mxu0
        %v5294 = vadd.f32 0.0, %v5293
        %v5295 = vpop.f32.mrb[0].mxu0
        %v5296 = vand.u32 %v5033, 4294901760
        %v5297 = vsub.f32 %v5033, %v5296
        %v5298 = vand.u32 %v5297, 4294901760
        %v5299 = vsub.f32 %v5297, %v5298
        %v5300 = vand.u32 %v5299, 4294901760
        %5301 = vmatprep.mubr.f32.mxu0 %v5300
        %v5302 = vand.u32 %v4989, 4294901760
        %v5303 = vsub.f32 %v4989, %v5302
        %v5304 = vand.u32 %v5303, 4294901760
        %v5305 = vsub.f32 %v5303, %v5304
        %v5306 = vand.u32 %v5305, 4294901760
        %5307 = vmatmul.mubr.f32.gmra.mrb[0].mxu0 %v5306
        %v5308 = vpop.f32.mrb[0].mxu0
        %v5309 = vadd.f32 0.0, %v5308
        %v5310 = vpop.f32.mrb[0].mxu0
        %v5311 = vand.u32 %v5036, 4294901760
        %v5312 = vsub.f32 %v5036, %v5311
        %v5313 = vand.u32 %v5312, 4294901760
        %v5314 = vsub.f32 %v5312, %v5313
        %v5315 = vand.u32 %v5314, 4294901760
        %5316 = vmatprep.mubr.f32.mxu0 %v5315
        %v5317 = vand.u32 %v4991, 4294901760
        %v5318 = vsub.f32 %v4991, %v5317
        %v5319 = vand.u32 %v5318, 4294901760
        %v5320 = vsub.f32 %v5318, %v5319
        %v5321 = vand.u32 %v5320, 4294901760
        %5322 = vmatmul.mubr.f32.gmra.mrb[0].mxu0 %v5321
        %v5323 = vpop.f32.mrb[0].mxu0
        %v5324 = vadd.f32 0.0, %v5323
        %v5325 = vpop.f32.mrb[0].mxu0
        %v5326 = vand.u32 %v5039, 4294901760
        %v5327 = vsub.f32 %v5039, %v5326
        %v5328 = vand.u32 %v5327, 4294901760
        %v5329 = vsub.f32 %v5327, %v5328
        %v5330 = vand.u32 %v5329, 4294901760
        %5331 = vmatprep.mubr.f32.mxu0 %v5330
        %v5332 = vand.u32 %v4993, 4294901760
        %v5333 = vsub.f32 %v4993, %v5332
        %v5334 = vand.u32 %v5333, 4294901760
        %v5335 = vsub.f32 %v5333, %v5334
        %v5336 = vand.u32 %v5335, 4294901760
        %5337 = vmatmul.mubr.f32.gmra.mrb[0].mxu0 %v5336
        %v5338 = vpop.f32.mrb[0].mxu0
        %v5339 = vadd.f32 0.0, %v5338
        %v5340 = vpop.f32.mrb[0].mxu0
        %v5341 = vand.u32 %v5042, 4294901760
        %v5342 = vsub.f32 %v5042, %v5341
        %v5343 = vand.u32 %v5342, 4294901760
        %v5344 = vsub.f32 %v5342, %v5343
        %v5345 = vand.u32 %v5344, 4294901760
        %5346 = vmatprep.mubr.f32.mxu0 %v5345
        %v5347 = vand.u32 %v4995, 4294901760
        %v5348 = vsub.f32 %v4995, %v5347
        %v5349 = vand.u32 %v5348, 4294901760
        %v5350 = vsub.f32 %v5348, %v5349
        %v5351 = vand.u32 %v5350, 4294901760
        %5352 = vmatmul.mubr.f32.gmra.mrb[0].mxu0 %v5351
        %v5353 = vpop.f32.mrb[0].mxu0
        %v5354 = vadd.f32 0.0, %v5353
        %v5355 = vpop.f32.mrb[0].mxu0
        %v5356 = vand.u32 %v5045, 4294901760
        %v5357 = vsub.f32 %v5045, %v5356
        %v5358 = vand.u32 %v5357, 4294901760
        %v5359 = vsub.f32 %v5357, %v5358
        %v5360 = vand.u32 %v5359, 4294901760
        %5361 = vmatprep.mubr.f32.mxu0 %v5360
        %v5362 = vand.u32 %v4997, 4294901760
        %v5363 = vsub.f32 %v4997, %v5362
        %v5364 = vand.u32 %v5363, 4294901760
        %v5365 = vsub.f32 %v5363, %v5364
        %v5366 = vand.u32 %v5365, 4294901760
        %5367 = vmatmul.mubr.f32.gmra.mrb[0].mxu0 %v5366
        %v5368 = vpop.f32.mrb[0].mxu0
        %v5369 = vadd.f32 0.0, %v5368
        %v5370 = vpop.f32.mrb[0].mxu0
        %5371 = vdwg.mxu0
        %5372 = vmatprep.subr.mxu0 0.0
        %v5373 = vand.u32 %v683, 4294901760
        %v5374 = vsub.f32 %v683, %v5373
        %v5375 = vand.u32 %v5374, 4294901760
        %v5376 = vsub.f32 %v5374, %v5375
        %v5377 = vand.u32 %v5376, 4294901760
        %5378 = vmatpush1.msra.mxu0 %v5377
        %5379 = vmatprep.subr.mxu0 0.0
        %v5380 = vand.u32 %v684, 4294901760
        %v5381 = vsub.f32 %v684, %v5380
        %v5382 = vand.u32 %v5381, 4294901760
        %v5383 = vsub.f32 %v5381, %v5382
        %v5384 = vand.u32 %v5383, 4294901760
        %5385 = vmatpush1.msra.mxu0 %v5384
        %5386 = vmatprep.subr.mxu0 0.0
        %v5387 = vand.u32 %v685, 4294901760
        %v5388 = vsub.f32 %v685, %v5387
        %v5389 = vand.u32 %v5388, 4294901760
        %v5390 = vsub.f32 %v5388, %v5389
        %v5391 = vand.u32 %v5390, 4294901760
        %5392 = vmatpush1.msra.mxu0 %v5391
        %5393 = vmatprep.subr.mxu0 0.0
        %v5394 = vand.u32 %v686, 4294901760
        %v5395 = vsub.f32 %v686, %v5394
        %v5396 = vand.u32 %v5395, 4294901760
        %v5397 = vsub.f32 %v5395, %v5396
        %v5398 = vand.u32 %v5397, 4294901760
        %5399 = vmatpush1.msra.mxu0 %v5398
        %5400 = vmatprep.subr.mxu0 0.0
        %v5401 = vand.u32 %v687, 4294901760
        %v5402 = vsub.f32 %v687, %v5401
        %v5403 = vand.u32 %v5402, 4294901760
        %v5404 = vsub.f32 %v5402, %v5403
        %v5405 = vand.u32 %v5404, 4294901760
        %5406 = vmatpush1.msra.mxu0 %v5405
        %5407 = vmatprep.subr.mxu0 0.0
        %v5408 = vand.u32 %v688, 4294901760
        %v5409 = vsub.f32 %v688, %v5408
        %v5410 = vand.u32 %v5409, 4294901760
        %v5411 = vsub.f32 %v5409, %v5410
        %v5412 = vand.u32 %v5411, 4294901760
        %5413 = vmatpush1.msra.mxu0 %v5412
        %5414 = vmatprep.subr.mxu0 0.0
        %v5415 = vand.u32 %v689, 4294901760
        %v5416 = vsub.f32 %v689, %v5415
        %v5417 = vand.u32 %v5416, 4294901760
        %v5418 = vsub.f32 %v5416, %v5417
        %v5419 = vand.u32 %v5418, 4294901760
        %5420 = vmatpush1.msra.mxu0 %v5419
        %5421 = vmatprep.subr.mxu0 0.0
        %v5422 = vand.u32 %v690, 4294901760
        %v5423 = vsub.f32 %v690, %v5422
        %v5424 = vand.u32 %v5423, 4294901760
        %v5425 = vsub.f32 %v5423, %v5424
        %v5426 = vand.u32 %v5425, 4294901760
        %5427 = vmatpush1.msra.mxu0 %v5426
        %5428 = vmatprep.subr.mxu0 0.0
        %v5429 = vand.u32 %v691, 4294901760
        %v5430 = vsub.f32 %v691, %v5429
        %v5431 = vand.u32 %v5430, 4294901760
        %v5432 = vsub.f32 %v5430, %v5431
        %v5433 = vand.u32 %v5432, 4294901760
        %5434 = vmatpush1.msra.mxu0 %v5433
        %5435 = vmatprep.subr.mxu0 0.0
        %v5436 = vand.u32 %v692, 4294901760
        %v5437 = vsub.f32 %v692, %v5436
        %v5438 = vand.u32 %v5437, 4294901760
        %v5439 = vsub.f32 %v5437, %v5438
        %v5440 = vand.u32 %v5439, 4294901760
        %5441 = vmatpush1.msra.mxu0 %v5440
        %5442 = vmatprep.subr.mxu0 0.0
        %v5443 = vand.u32 %v693, 4294901760
        %v5444 = vsub.f32 %v693, %v5443
        %v5445 = vand.u32 %v5444, 4294901760
        %v5446 = vsub.f32 %v5444, %v5445
        %v5447 = vand.u32 %v5446, 4294901760
        %5448 = vmatpush1.msra.mxu0 %v5447
        %5449 = vmatprep.subr.mxu0 0.0
        %v5450 = vand.u32 %v694, 4294901760
        %v5451 = vsub.f32 %v694, %v5450
        %v5452 = vand.u32 %v5451, 4294901760
        %v5453 = vsub.f32 %v5451, %v5452
        %v5454 = vand.u32 %v5453, 4294901760
        %5455 = vmatpush1.msra.mxu0 %v5454
        %5456 = vmatprep.subr.mxu0 0.0
        %v5457 = vand.u32 %v695, 4294901760
        %v5458 = vsub.f32 %v695, %v5457
        %v5459 = vand.u32 %v5458, 4294901760
        %v5460 = vsub.f32 %v5458, %v5459
        %v5461 = vand.u32 %v5460, 4294901760
        %5462 = vmatpush1.msra.mxu0 %v5461
        %5463 = vmatprep.subr.mxu0 0.0
        %v5464 = vand.u32 %v696, 4294901760
        %v5465 = vsub.f32 %v696, %v5464
        %v5466 = vand.u32 %v5465, 4294901760
        %v5467 = vsub.f32 %v5465, %v5466
        %v5468 = vand.u32 %v5467, 4294901760
        %5469 = vmatpush1.msra.mxu0 %v5468
        %5470 = vmatprep.subr.mxu0 0.0
        %v5471 = vand.u32 %v697, 4294901760
        %v5472 = vsub.f32 %v697, %v5471
        %v5473 = vand.u32 %v5472, 4294901760
        %v5474 = vsub.f32 %v5472, %v5473
        %v5475 = vand.u32 %v5474, 4294901760
        %5476 = vmatpush1.msra.mxu0 %v5475
        %5477 = vmatprep.subr.mxu0 0.0
        %v5478 = vand.u32 %v698, 4294901760
        %v5479 = vsub.f32 %v698, %v5478
        %v5480 = vand.u32 %v5479, 4294901760
        %v5481 = vsub.f32 %v5479, %v5480
        %v5482 = vand.u32 %v5481, 4294901760
        %5483 = vmatpush1.msra.mxu0 %v5482
        %5484 = vmatprep.subr.mxu0 0.0
        %v5485 = vand.u32 %v699, 4294901760
        %v5486 = vsub.f32 %v699, %v5485
        %v5487 = vand.u32 %v5486, 4294901760
        %v5488 = vsub.f32 %v5486, %v5487
        %v5489 = vand.u32 %v5488, 4294901760
        %5490 = vmatpush1.msra.mxu0 %v5489
        %5491 = vmatprep.subr.mxu0 0.0
        %v5492 = vand.u32 %v700, 4294901760
        %v5493 = vsub.f32 %v700, %v5492
        %v5494 = vand.u32 %v5493, 4294901760
        %v5495 = vsub.f32 %v5493, %v5494
        %v5496 = vand.u32 %v5495, 4294901760
        %5497 = vmatpush1.msra.mxu0 %v5496
        %5498 = vmatprep.subr.mxu0 0.0
        %v5499 = vand.u32 %v701, 4294901760
        %v5500 = vsub.f32 %v701, %v5499
        %v5501 = vand.u32 %v5500, 4294901760
        %v5502 = vsub.f32 %v5500, %v5501
        %v5503 = vand.u32 %v5502, 4294901760
        %5504 = vmatpush1.msra.mxu0 %v5503
        %5505 = vmatprep.subr.mxu0 0.0
        %v5506 = vand.u32 %v702, 4294901760
        %v5507 = vsub.f32 %v702, %v5506
        %v5508 = vand.u32 %v5507, 4294901760
        %v5509 = vsub.f32 %v5507, %v5508
        %v5510 = vand.u32 %v5509, 4294901760
        %5511 = vmatpush1.msra.mxu0 %v5510
        %5512 = vmatprep.subr.mxu0 0.0
        %5513 = vmatpush1.msra.mxu0 0.0
        %5514 = vmatprep.subr.mxu0 0.0
        %5515 = vmatpush1.msra.mxu0 0.0
        %5516 = vmatprep.subr.mxu0 0.0
        %5517 = vmatpush1.msra.mxu0 0.0
        %5518 = vmatprep.subr.mxu0 0.0
        %5519 = vmatpush1.msra.mxu0 0.0
        %5520 = vmatprep.subr.mxu0 0.0
        %5521 = vmatpush1.msra.mxu0 0.0
        %5522 = vmatprep.subr.mxu0 0.0
        %5523 = vmatpush1.msra.mxu0 0.0
        %5524 = vmatprep.subr.mxu0 0.0
        %5525 = vmatpush1.msra.mxu0 0.0
        %5526 = vmatprep.subr.mxu0 0.0
        %5527 = vmatpush1.msra.mxu0 0.0
        %5528 = vmatprep.subr.mxu0 0.0
        %5529 = vmatpush1.msra.mxu0 0.0
        %5530 = vmatprep.subr.mxu0 0.0
        %5531 = vmatpush1.msra.mxu0 0.0
        %5532 = vmatprep.subr.mxu0 0.0
        %5533 = vmatpush1.msra.mxu0 0.0
        %5534 = vmatprep.subr.mxu0 0.0
        %5535 = vmatpush1.msra.mxu0 0.0
        %v5536 = vand.u32 %v5000, 4294901760
        %5537 = vmatprep.mubr.f32.mxu0 %v5536
        %v5538 = vand.u32 %v4967, 4294901760
        %5539 = vmatmul.mubr.f32.gmra.mrb[0].mxu0 %v5538
        %v5540 = vpop.f32.mrb[0].mxu0
        %v5541 = vadd.f32 %v5144, %v5540
        %v5542 = vpop.f32.mrb[0].mxu0
        %v5543 = vand.u32 %v5003, 4294901760
        %5544 = vmatprep.mubr.f32.mxu0 %v5543
        %v5545 = vand.u32 %v4969, 4294901760
        %5546 = vmatmul.mubr.f32.gmra.mrb[0].mxu0 %v5545
        %v5547 = vpop.f32.mrb[0].mxu0
        %v5548 = vadd.f32 %v5159, %v5547
        %v5549 = vpop.f32.mrb[0].mxu0
        %v5550 = vand.u32 %v5006, 4294901760
        %5551 = vmatprep.mubr.f32.mxu0 %v5550
        %v5552 = vand.u32 %v4971, 4294901760
        %5553 = vmatmul.mubr.f32.gmra.mrb[0].mxu0 %v5552
        %v5554 = vpop.f32.mrb[0].mxu0
        %v5555 = vadd.f32 %v5174, %v5554
        %v5556 = vpop.f32.mrb[0].mxu0
        %v5557 = vand.u32 %v5009, 4294901760
        %5558 = vmatprep.mubr.f32.mxu0 %v5557
        %v5559 = vand.u32 %v4973, 4294901760
        %5560 = vmatmul.mubr.f32.gmra.mrb[0].mxu0 %v5559
        %v5561 = vpop.f32.mrb[0].mxu0
        %v5562 = vadd.f32 %v5189, %v5561
        %v5563 = vpop.f32.mrb[0].mxu0
        %v5564 = vand.u32 %v5012, 4294901760
        %5565 = vmatprep.mubr.f32.mxu0 %v5564
        %v5566 = vand.u32 %v4975, 4294901760
        %5567 = vmatmul.mubr.f32.gmra.mrb[0].mxu0 %v5566
        %v5568 = vpop.f32.mrb[0].mxu0
        %v5569 = vadd.f32 %v5204, %v5568
        %v5570 = vpop.f32.mrb[0].mxu0
        %v5571 = vand.u32 %v5015, 4294901760
        %5572 = vmatprep.mubr.f32.mxu0 %v5571
        %v5573 = vand.u32 %v4977, 4294901760
        %5574 = vmatmul.mubr.f32.gmra.mrb[0].mxu0 %v5573
        %v5575 = vpop.f32.mrb[0].mxu0
        %v5576 = vadd.f32 %v5219, %v5575
        %v5577 = vpop.f32.mrb[0].mxu0
        %v5578 = vand.u32 %v5018, 4294901760
        %5579 = vmatprep.mubr.f32.mxu0 %v5578
        %v5580 = vand.u32 %v4979, 4294901760
        %5581 = vmatmul.mubr.f32.gmra.mrb[0].mxu0 %v5580
        %v5582 = vpop.f32.mrb[0].mxu0
        %v5583 = vadd.f32 %v5234, %v5582
        %v5584 = vpop.f32.mrb[0].mxu0
        %v5585 = vand.u32 %v5021, 4294901760
        %5586 = vmatprep.mubr.f32.mxu0 %v5585
        %v5587 = vand.u32 %v4981, 4294901760
        %5588 = vmatmul.mubr.f32.gmra.mrb[0].mxu0 %v5587
        %v5589 = vpop.f32.mrb[0].mxu0
        %v5590 = vadd.f32 %v5249, %v5589
        %v5591 = vpop.f32.mrb[0].mxu0
        %v5592 = vand.u32 %v5024, 4294901760
        %5593 = vmatprep.mubr.f32.mxu0 %v5592
        %v5594 = vand.u32 %v4983, 4294901760
        %5595 = vmatmul.mubr.f32.gmra.mrb[0].mxu0 %v5594
        %v5596 = vpop.f32.mrb[0].mxu0
        %v5597 = vadd.f32 %v5264, %v5596
        %v5598 = vpop.f32.mrb[0].mxu0
        %v5599 = vand.u32 %v5027, 4294901760
        %5600 = vmatprep.mubr.f32.mxu0 %v5599
        %v5601 = vand.u32 %v4985, 4294901760
        %5602 = vmatmul.mubr.f32.gmra.mrb[0].mxu0 %v5601
        %v5603 = vpop.f32.mrb[0].mxu0
        %v5604 = vadd.f32 %v5279, %v5603
        %v5605 = vpop.f32.mrb[0].mxu0
        %v5606 = vand.u32 %v5030, 4294901760
        %5607 = vmatprep.mubr.f32.mxu0 %v5606
        %v5608 = vand.u32 %v4987, 4294901760
        %5609 = vmatmul.mubr.f32.gmra.mrb[0].mxu0 %v5608
        %v5610 = vpop.f32.mrb[0].mxu0
        %v5611 = vadd.f32 %v5294, %v5610
        %v5612 = vpop.f32.mrb[0].mxu0
        %v5613 = vand.u32 %v5033, 4294901760
        %5614 = vmatprep.mubr.f32.mxu0 %v5613
        %v5615 = vand.u32 %v4989, 4294901760
        %5616 = vmatmul.mubr.f32.gmra.mrb[0].mxu0 %v5615
        %v5617 = vpop.f32.mrb[0].mxu0
        %v5618 = vadd.f32 %v5309, %v5617
        %v5619 = vpop.f32.mrb[0].mxu0
        %v5620 = vand.u32 %v5036, 4294901760
        %5621 = vmatprep.mubr.f32.mxu0 %v5620
        %v5622 = vand.u32 %v4991, 4294901760
        %5623 = vmatmul.mubr.f32.gmra.mrb[0].mxu0 %v5622
        %v5624 = vpop.f32.mrb[0].mxu0
        %v5625 = vadd.f32 %v5324, %v5624
        %v5626 = vpop.f32.mrb[0].mxu0
        %v5627 = vand.u32 %v5039, 4294901760
        %5628 = vmatprep.mubr.f32.mxu0 %v5627
        %v5629 = vand.u32 %v4993, 4294901760
        %5630 = vmatmul.mubr.f32.gmra.mrb[0].mxu0 %v5629
        %v5631 = vpop.f32.mrb[0].mxu0
        %v5632 = vadd.f32 %v5339, %v5631
        %v5633 = vpop.f32.mrb[0].mxu0
        %v5634 = vand.u32 %v5042, 4294901760
        %5635 = vmatprep.mubr.f32.mxu0 %v5634
        %v5636 = vand.u32 %v4995, 4294901760
        %5637 = vmatmul.mubr.f32.gmra.mrb[0].mxu0 %v5636
        %v5638 = vpop.f32.mrb[0].mxu0
        %v5639 = vadd.f32 %v5354, %v5638
        %v5640 = vpop.f32.mrb[0].mxu0
        %v5641 = vand.u32 %v5045, 4294901760
        %5642 = vmatprep.mubr.f32.mxu0 %v5641
        %v5643 = vand.u32 %v4997, 4294901760
        %5644 = vmatmul.mubr.f32.gmra.mrb[0].mxu0 %v5643
        %v5645 = vpop.f32.mrb[0].mxu0
        %v5646 = vadd.f32 %v5369, %v5645
        %v5647 = vpop.f32.mrb[0].mxu0
        %5648 = vdwg.mxu0
        %5649 = vmatprep.subr.mxu0 0.0
        %v5650 = vand.u32 %v683, 4294901760
        %v5651 = vsub.f32 %v683, %v5650
        %5652 = vmatpush1.msra.mxu0 %v5651
        %5653 = vmatprep.subr.mxu0 0.0
        %v5654 = vand.u32 %v684, 4294901760
        %v5655 = vsub.f32 %v684, %v5654
        %5656 = vmatpush1.msra.mxu0 %v5655
        %5657 = vmatprep.subr.mxu0 0.0
        %v5658 = vand.u32 %v685, 4294901760
        %v5659 = vsub.f32 %v685, %v5658
        %5660 = vmatpush1.msra.mxu0 %v5659
        %5661 = vmatprep.subr.mxu0 0.0
        %v5662 = vand.u32 %v686, 4294901760
        %v5663 = vsub.f32 %v686, %v5662
        %5664 = vmatpush1.msra.mxu0 %v5663
        %5665 = vmatprep.subr.mxu0 0.0
        %v5666 = vand.u32 %v687, 4294901760
        %v5667 = vsub.f32 %v687, %v5666
        %5668 = vmatpush1.msra.mxu0 %v5667
        %5669 = vmatprep.subr.mxu0 0.0
        %v5670 = vand.u32 %v688, 4294901760
        %v5671 = vsub.f32 %v688, %v5670
        %5672 = vmatpush1.msra.mxu0 %v5671
        %5673 = vmatprep.subr.mxu0 0.0
        %v5674 = vand.u32 %v689, 4294901760
        %v5675 = vsub.f32 %v689, %v5674
        %5676 = vmatpush1.msra.mxu0 %v5675
        %5677 = vmatprep.subr.mxu0 0.0
        %v5678 = vand.u32 %v690, 4294901760
        %v5679 = vsub.f32 %v690, %v5678
        %5680 = vmatpush1.msra.mxu0 %v5679
        %5681 = vmatprep.subr.mxu0 0.0
        %v5682 = vand.u32 %v691, 4294901760
        %v5683 = vsub.f32 %v691, %v5682
        %5684 = vmatpush1.msra.mxu0 %v5683
        %5685 = vmatprep.subr.mxu0 0.0
        %v5686 = vand.u32 %v692, 4294901760
        %v5687 = vsub.f32 %v692, %v5686
        %5688 = vmatpush1.msra.mxu0 %v5687
        %5689 = vmatprep.subr.mxu0 0.0
        %v5690 = vand.u32 %v693, 4294901760
        %v5691 = vsub.f32 %v693, %v5690
        %5692 = vmatpush1.msra.mxu0 %v5691
        %5693 = vmatprep.subr.mxu0 0.0
        %v5694 = vand.u32 %v694, 4294901760
        %v5695 = vsub.f32 %v694, %v5694
        %5696 = vmatpush1.msra.mxu0 %v5695
        %5697 = vmatprep.subr.mxu0 0.0
        %v5698 = vand.u32 %v695, 4294901760
        %v5699 = vsub.f32 %v695, %v5698
        %5700 = vmatpush1.msra.mxu0 %v5699
        %5701 = vmatprep.subr.mxu0 0.0
        %v5702 = vand.u32 %v696, 4294901760
        %v5703 = vsub.f32 %v696, %v5702
        %5704 = vmatpush1.msra.mxu0 %v5703
        %5705 = vmatprep.subr.mxu0 0.0
        %v5706 = vand.u32 %v697, 4294901760
        %v5707 = vsub.f32 %v697, %v5706
        %5708 = vmatpush1.msra.mxu0 %v5707
        %5709 = vmatprep.subr.mxu0 0.0
        %v5710 = vand.u32 %v698, 4294901760
        %v5711 = vsub.f32 %v698, %v5710
        %5712 = vmatpush1.msra.mxu0 %v5711
        %5713 = vmatprep.subr.mxu0 0.0
        %v5714 = vand.u32 %v699, 4294901760
        %v5715 = vsub.f32 %v699, %v5714
        %5716 = vmatpush1.msra.mxu0 %v5715
        %5717 = vmatprep.subr.mxu0 0.0
        %v5718 = vand.u32 %v700, 4294901760
        %v5719 = vsub.f32 %v700, %v5718
        %5720 = vmatpush1.msra.mxu0 %v5719
        %5721 = vmatprep.subr.mxu0 0.0
        %v5722 = vand.u32 %v701, 4294901760
        %v5723 = vsub.f32 %v701, %v5722
        %5724 = vmatpush1.msra.mxu0 %v5723
        %5725 = vmatprep.subr.mxu0 0.0
        %v5726 = vand.u32 %v702, 4294901760
        %v5727 = vsub.f32 %v702, %v5726
        %5728 = vmatpush1.msra.mxu0 %v5727
        %5729 = vmatprep.subr.mxu0 0.0
        %5730 = vmatpush1.msra.mxu0 0.0
        %5731 = vmatprep.subr.mxu0 0.0
        %5732 = vmatpush1.msra.mxu0 0.0
        %5733 = vmatprep.subr.mxu0 0.0
        %5734 = vmatpush1.msra.mxu0 0.0
        %5735 = vmatprep.subr.mxu0 0.0
        %5736 = vmatpush1.msra.mxu0 0.0
        %5737 = vmatprep.subr.mxu0 0.0
        %5738 = vmatpush1.msra.mxu0 0.0
        %5739 = vmatprep.subr.mxu0 0.0
        %5740 = vmatpush1.msra.mxu0 0.0
        %5741 = vmatprep.subr.mxu0 0.0
        %5742 = vmatpush1.msra.mxu0 0.0
        %5743 = vmatprep.subr.mxu0 0.0
        %5744 = vmatpush1.msra.mxu0 0.0
        %5745 = vmatprep.subr.mxu0 0.0
        %5746 = vmatpush1.msra.mxu0 0.0
        %5747 = vmatprep.subr.mxu0 0.0
        %5748 = vmatpush1.msra.mxu0 0.0
        %5749 = vmatprep.subr.mxu0 0.0
        %5750 = vmatpush1.msra.mxu0 0.0
        %5751 = vmatprep.subr.mxu0 0.0
        %5752 = vmatpush1.msra.mxu0 0.0
        %v5753 = vand.u32 %v5000, 4294901760
        %v5754 = vsub.f32 %v5000, %v5753
        %5755 = vmatprep.mubr.f32.mxu0 %v5754
        %v5756 = vand.u32 %v4967, 4294901760
        %v5757 = vsub.f32 %v4967, %v5756
        %5758 = vmatmul.mubr.f32.gmra.mrb[0].mxu0 %v5757
        %v5759 = vpop.f32.mrb[0].mxu0
        %v5760 = vadd.f32 %v5541, %v5759
        %v5761 = vpop.f32.mrb[0].mxu0
        %v5762 = vand.u32 %v5003, 4294901760
        %v5763 = vsub.f32 %v5003, %v5762
        %5764 = vmatprep.mubr.f32.mxu0 %v5763
        %v5765 = vand.u32 %v4969, 4294901760
        %v5766 = vsub.f32 %v4969, %v5765
        %5767 = vmatmul.mubr.f32.gmra.mrb[0].mxu0 %v5766
        %v5768 = vpop.f32.mrb[0].mxu0
        %v5769 = vadd.f32 %v5548, %v5768
        %v5770 = vpop.f32.mrb[0].mxu0
        %v5771 = vand.u32 %v5006, 4294901760
        %v5772 = vsub.f32 %v5006, %v5771
        %5773 = vmatprep.mubr.f32.mxu0 %v5772
        %v5774 = vand.u32 %v4971, 4294901760
        %v5775 = vsub.f32 %v4971, %v5774
        %5776 = vmatmul.mubr.f32.gmra.mrb[0].mxu0 %v5775
        %v5777 = vpop.f32.mrb[0].mxu0
        %v5778 = vadd.f32 %v5555, %v5777
        %v5779 = vpop.f32.mrb[0].mxu0
        %v5780 = vand.u32 %v5009, 4294901760
        %v5781 = vsub.f32 %v5009, %v5780
        %5782 = vmatprep.mubr.f32.mxu0 %v5781
        %v5783 = vand.u32 %v4973, 4294901760
        %v5784 = vsub.f32 %v4973, %v5783
        %5785 = vmatmul.mubr.f32.gmra.mrb[0].mxu0 %v5784
        %v5786 = vpop.f32.mrb[0].mxu0
        %v5787 = vadd.f32 %v5562, %v5786
        %v5788 = vpop.f32.mrb[0].mxu0
        %v5789 = vand.u32 %v5012, 4294901760
        %v5790 = vsub.f32 %v5012, %v5789
        %5791 = vmatprep.mubr.f32.mxu0 %v5790
        %v5792 = vand.u32 %v4975, 4294901760
        %v5793 = vsub.f32 %v4975, %v5792
        %5794 = vmatmul.mubr.f32.gmra.mrb[0].mxu0 %v5793
        %v5795 = vpop.f32.mrb[0].mxu0
        %v5796 = vadd.f32 %v5569, %v5795
        %v5797 = vpop.f32.mrb[0].mxu0
        %v5798 = vand.u32 %v5015, 4294901760
        %v5799 = vsub.f32 %v5015, %v5798
        %5800 = vmatprep.mubr.f32.mxu0 %v5799
        %v5801 = vand.u32 %v4977, 4294901760
        %v5802 = vsub.f32 %v4977, %v5801
        %5803 = vmatmul.mubr.f32.gmra.mrb[0].mxu0 %v5802
        %v5804 = vpop.f32.mrb[0].mxu0
        %v5805 = vadd.f32 %v5576, %v5804
        %v5806 = vpop.f32.mrb[0].mxu0
        %v5807 = vand.u32 %v5018, 4294901760
        %v5808 = vsub.f32 %v5018, %v5807
        %5809 = vmatprep.mubr.f32.mxu0 %v5808
        %v5810 = vand.u32 %v4979, 4294901760
        %v5811 = vsub.f32 %v4979, %v5810
        %5812 = vmatmul.mubr.f32.gmra.mrb[0].mxu0 %v5811
        %v5813 = vpop.f32.mrb[0].mxu0
        %v5814 = vadd.f32 %v5583, %v5813
        %v5815 = vpop.f32.mrb[0].mxu0
        %v5816 = vand.u32 %v5021, 4294901760
        %v5817 = vsub.f32 %v5021, %v5816
        %5818 = vmatprep.mubr.f32.mxu0 %v5817
        %v5819 = vand.u32 %v4981, 4294901760
        %v5820 = vsub.f32 %v4981, %v5819
        %5821 = vmatmul.mubr.f32.gmra.mrb[0].mxu0 %v5820
        %v5822 = vpop.f32.mrb[0].mxu0
        %v5823 = vadd.f32 %v5590, %v5822
        %v5824 = vpop.f32.mrb[0].mxu0
        %v5825 = vand.u32 %v5024, 4294901760
        %v5826 = vsub.f32 %v5024, %v5825
        %5827 = vmatprep.mubr.f32.mxu0 %v5826
        %v5828 = vand.u32 %v4983, 4294901760
        %v5829 = vsub.f32 %v4983, %v5828
        %5830 = vmatmul.mubr.f32.gmra.mrb[0].mxu0 %v5829
        %v5831 = vpop.f32.mrb[0].mxu0
        %v5832 = vadd.f32 %v5597, %v5831
        %v5833 = vpop.f32.mrb[0].mxu0
        %v5834 = vand.u32 %v5027, 4294901760
        %v5835 = vsub.f32 %v5027, %v5834
        %5836 = vmatprep.mubr.f32.mxu0 %v5835
        %v5837 = vand.u32 %v4985, 4294901760
        %v5838 = vsub.f32 %v4985, %v5837
        %5839 = vmatmul.mubr.f32.gmra.mrb[0].mxu0 %v5838
        %v5840 = vpop.f32.mrb[0].mxu0
        %v5841 = vadd.f32 %v5604, %v5840
        %v5842 = vpop.f32.mrb[0].mxu0
        %v5843 = vand.u32 %v5030, 4294901760
        %v5844 = vsub.f32 %v5030, %v5843
        %5845 = vmatprep.mubr.f32.mxu0 %v5844
        %v5846 = vand.u32 %v4987, 4294901760
        %v5847 = vsub.f32 %v4987, %v5846
        %5848 = vmatmul.mubr.f32.gmra.mrb[0].mxu0 %v5847
        %v5849 = vpop.f32.mrb[0].mxu0
        %v5850 = vadd.f32 %v5611, %v5849
        %v5851 = vpop.f32.mrb[0].mxu0
        %v5852 = vand.u32 %v5033, 4294901760
        %v5853 = vsub.f32 %v5033, %v5852
        %5854 = vmatprep.mubr.f32.mxu0 %v5853
        %v5855 = vand.u32 %v4989, 4294901760
        %v5856 = vsub.f32 %v4989, %v5855
        %5857 = vmatmul.mubr.f32.gmra.mrb[0].mxu0 %v5856
        %v5858 = vpop.f32.mrb[0].mxu0
        %v5859 = vadd.f32 %v5618, %v5858
        %v5860 = vpop.f32.mrb[0].mxu0
        %v5861 = vand.u32 %v5036, 4294901760
        %v5862 = vsub.f32 %v5036, %v5861
        %5863 = vmatprep.mubr.f32.mxu0 %v5862
        %v5864 = vand.u32 %v4991, 4294901760
        %v5865 = vsub.f32 %v4991, %v5864
        %5866 = vmatmul.mubr.f32.gmra.mrb[0].mxu0 %v5865
        %v5867 = vpop.f32.mrb[0].mxu0
        %v5868 = vadd.f32 %v5625, %v5867
        %v5869 = vpop.f32.mrb[0].mxu0
        %v5870 = vand.u32 %v5039, 4294901760
        %v5871 = vsub.f32 %v5039, %v5870
        %5872 = vmatprep.mubr.f32.mxu0 %v5871
        %v5873 = vand.u32 %v4993, 4294901760
        %v5874 = vsub.f32 %v4993, %v5873
        %5875 = vmatmul.mubr.f32.gmra.mrb[0].mxu0 %v5874
        %v5876 = vpop.f32.mrb[0].mxu0
        %v5877 = vadd.f32 %v5632, %v5876
        %v5878 = vpop.f32.mrb[0].mxu0
        %v5879 = vand.u32 %v5042, 4294901760
        %v5880 = vsub.f32 %v5042, %v5879
        %5881 = vmatprep.mubr.f32.mxu0 %v5880
        %v5882 = vand.u32 %v4995, 4294901760
        %v5883 = vsub.f32 %v4995, %v5882
        %5884 = vmatmul.mubr.f32.gmra.mrb[0].mxu0 %v5883
        %v5885 = vpop.f32.mrb[0].mxu0
        %v5886 = vadd.f32 %v5639, %v5885
        %v5887 = vpop.f32.mrb[0].mxu0
        %v5888 = vand.u32 %v5045, 4294901760
        %v5889 = vsub.f32 %v5045, %v5888
        %5890 = vmatprep.mubr.f32.mxu0 %v5889
        %v5891 = vand.u32 %v4997, 4294901760
        %v5892 = vsub.f32 %v4997, %v5891
        %5893 = vmatmul.mubr.f32.gmra.mrb[0].mxu0 %v5892
        %v5894 = vpop.f32.mrb[0].mxu0
        %v5895 = vadd.f32 %v5646, %v5894
        %v5896 = vpop.f32.mrb[0].mxu0
        %5897 = vdwg.mxu0
        %5898 = vmatprep.subr.mxu0 0.0
        %v5899 = vand.u32 %v683, 4294901760
        %5900 = vmatpush1.msra.mxu0 %v5899
        %5901 = vmatprep.subr.mxu0 0.0
        %v5902 = vand.u32 %v684, 4294901760
        %5903 = vmatpush1.msra.mxu0 %v5902
        %5904 = vmatprep.subr.mxu0 0.0
        %v5905 = vand.u32 %v685, 4294901760
        %5906 = vmatpush1.msra.mxu0 %v5905
        %5907 = vmatprep.subr.mxu0 0.0
        %v5908 = vand.u32 %v686, 4294901760
        %5909 = vmatpush1.msra.mxu0 %v5908
        %5910 = vmatprep.subr.mxu0 0.0
        %v5911 = vand.u32 %v687, 4294901760
        %5912 = vmatpush1.msra.mxu0 %v5911
        %5913 = vmatprep.subr.mxu0 0.0
        %v5914 = vand.u32 %v688, 4294901760
        %5915 = vmatpush1.msra.mxu0 %v5914
        %5916 = vmatprep.subr.mxu0 0.0
        %v5917 = vand.u32 %v689, 4294901760
        %5918 = vmatpush1.msra.mxu0 %v5917
        %5919 = vmatprep.subr.mxu0 0.0
        %v5920 = vand.u32 %v690, 4294901760
        %5921 = vmatpush1.msra.mxu0 %v5920
        %5922 = vmatprep.subr.mxu0 0.0
        %v5923 = vand.u32 %v691, 4294901760
        %5924 = vmatpush1.msra.mxu0 %v5923
        %5925 = vmatprep.subr.mxu0 0.0
        %v5926 = vand.u32 %v692, 4294901760
        %5927 = vmatpush1.msra.mxu0 %v5926
        %5928 = vmatprep.subr.mxu0 0.0
        %v5929 = vand.u32 %v693, 4294901760
        %5930 = vmatpush1.msra.mxu0 %v5929
        %5931 = vmatprep.subr.mxu0 0.0
        %v5932 = vand.u32 %v694, 4294901760
        %5933 = vmatpush1.msra.mxu0 %v5932
        %5934 = vmatprep.subr.mxu0 0.0
        %v5935 = vand.u32 %v695, 4294901760
        %5936 = vmatpush1.msra.mxu0 %v5935
        %5937 = vmatprep.subr.mxu0 0.0
        %v5938 = vand.u32 %v696, 4294901760
        %5939 = vmatpush1.msra.mxu0 %v5938
        %5940 = vmatprep.subr.mxu0 0.0
        %v5941 = vand.u32 %v697, 4294901760
        %5942 = vmatpush1.msra.mxu0 %v5941
        %5943 = vmatprep.subr.mxu0 0.0
        %v5944 = vand.u32 %v698, 4294901760
        %5945 = vmatpush1.msra.mxu0 %v5944
        %5946 = vmatprep.subr.mxu0 0.0
        %v5947 = vand.u32 %v699, 4294901760
        %5948 = vmatpush1.msra.mxu0 %v5947
        %5949 = vmatprep.subr.mxu0 0.0
        %v5950 = vand.u32 %v700, 4294901760
        %5951 = vmatpush1.msra.mxu0 %v5950
        %5952 = vmatprep.subr.mxu0 0.0
        %v5953 = vand.u32 %v701, 4294901760
        %5954 = vmatpush1.msra.mxu0 %v5953
        %5955 = vmatprep.subr.mxu0 0.0
        %v5956 = vand.u32 %v702, 4294901760
        %5957 = vmatpush1.msra.mxu0 %v5956
        %5958 = vmatprep.subr.mxu0 0.0
        %5959 = vmatpush1.msra.mxu0 0.0
        %5960 = vmatprep.subr.mxu0 0.0
        %5961 = vmatpush1.msra.mxu0 0.0
        %5962 = vmatprep.subr.mxu0 0.0
        %5963 = vmatpush1.msra.mxu0 0.0
        %5964 = vmatprep.subr.mxu0 0.0
        %5965 = vmatpush1.msra.mxu0 0.0
        %5966 = vmatprep.subr.mxu0 0.0
        %5967 = vmatpush1.msra.mxu0 0.0
        %5968 = vmatprep.subr.mxu0 0.0
        %5969 = vmatpush1.msra.mxu0 0.0
        %5970 = vmatprep.subr.mxu0 0.0
        %5971 = vmatpush1.msra.mxu0 0.0
        %5972 = vmatprep.subr.mxu0 0.0
        %5973 = vmatpush1.msra.mxu0 0.0
        %5974 = vmatprep.subr.mxu0 0.0
        %5975 = vmatpush1.msra.mxu0 0.0
        %5976 = vmatprep.subr.mxu0 0.0
        %5977 = vmatpush1.msra.mxu0 0.0
        %5978 = vmatprep.subr.mxu0 0.0
        %5979 = vmatpush1.msra.mxu0 0.0
        %5980 = vmatprep.subr.mxu0 0.0
        %5981 = vmatpush1.msra.mxu0 0.0
        %v5982 = vand.u32 %v5000, 4294901760
        %v5983 = vsub.f32 %v5000, %v5982
        %v5984 = vand.u32 %v5983, 4294901760
        %5985 = vmatprep.mubr.f32.mxu0 %v5984
        %v5986 = vand.u32 %v4967, 4294901760
        %v5987 = vsub.f32 %v4967, %v5986
        %v5988 = vand.u32 %v5987, 4294901760
        %5989 = vmatmul.mubr.f32.gmra.mrb[0].mxu0 %v5988
        %v5990 = vpop.f32.mrb[0].mxu0
        %v5991 = vadd.f32 %v5760, %v5990
        %v5992 = vpop.f32.mrb[0].mxu0
        %v5993 = vand.u32 %v5003, 4294901760
        %v5994 = vsub.f32 %v5003, %v5993
        %v5995 = vand.u32 %v5994, 4294901760
        %5996 = vmatprep.mubr.f32.mxu0 %v5995
        %v5997 = vand.u32 %v4969, 4294901760
        %v5998 = vsub.f32 %v4969, %v5997
        %v5999 = vand.u32 %v5998, 4294901760
        %6000 = vmatmul.mubr.f32.gmra.mrb[0].mxu0 %v5999
        %v6001 = vpop.f32.mrb[0].mxu0
        %v6002 = vadd.f32 %v5769, %v6001
        %v6003 = vpop.f32.mrb[0].mxu0
        %v6004 = vand.u32 %v5006, 4294901760
        %v6005 = vsub.f32 %v5006, %v6004
        %v6006 = vand.u32 %v6005, 4294901760
        %6007 = vmatprep.mubr.f32.mxu0 %v6006
        %v6008 = vand.u32 %v4971, 4294901760
        %v6009 = vsub.f32 %v4971, %v6008
        %v6010 = vand.u32 %v6009, 4294901760
        %6011 = vmatmul.mubr.f32.gmra.mrb[0].mxu0 %v6010
        %v6012 = vpop.f32.mrb[0].mxu0
        %v6013 = vadd.f32 %v5778, %v6012
        %v6014 = vpop.f32.mrb[0].mxu0
        %v6015 = vand.u32 %v5009, 4294901760
        %v6016 = vsub.f32 %v5009, %v6015
        %v6017 = vand.u32 %v6016, 4294901760
        %6018 = vmatprep.mubr.f32.mxu0 %v6017
        %v6019 = vand.u32 %v4973, 4294901760
        %v6020 = vsub.f32 %v4973, %v6019
        %v6021 = vand.u32 %v6020, 4294901760
        %6022 = vmatmul.mubr.f32.gmra.mrb[0].mxu0 %v6021
        %v6023 = vpop.f32.mrb[0].mxu0
        %v6024 = vadd.f32 %v5787, %v6023
        %v6025 = vpop.f32.mrb[0].mxu0
        %v6026 = vand.u32 %v5012, 4294901760
        %v6027 = vsub.f32 %v5012, %v6026
        %v6028 = vand.u32 %v6027, 4294901760
        %6029 = vmatprep.mubr.f32.mxu0 %v6028
        %v6030 = vand.u32 %v4975, 4294901760
        %v6031 = vsub.f32 %v4975, %v6030
        %v6032 = vand.u32 %v6031, 4294901760
        %6033 = vmatmul.mubr.f32.gmra.mrb[0].mxu0 %v6032
        %v6034 = vpop.f32.mrb[0].mxu0
        %v6035 = vadd.f32 %v5796, %v6034
        %v6036 = vpop.f32.mrb[0].mxu0
        %v6037 = vand.u32 %v5015, 4294901760
        %v6038 = vsub.f32 %v5015, %v6037
        %v6039 = vand.u32 %v6038, 4294901760
        %6040 = vmatprep.mubr.f32.mxu0 %v6039
        %v6041 = vand.u32 %v4977, 4294901760
        %v6042 = vsub.f32 %v4977, %v6041
        %v6043 = vand.u32 %v6042, 4294901760
        %6044 = vmatmul.mubr.f32.gmra.mrb[0].mxu0 %v6043
        %v6045 = vpop.f32.mrb[0].mxu0
        %v6046 = vadd.f32 %v5805, %v6045
        %v6047 = vpop.f32.mrb[0].mxu0
        %v6048 = vand.u32 %v5018, 4294901760
        %v6049 = vsub.f32 %v5018, %v6048
        %v6050 = vand.u32 %v6049, 4294901760
        %6051 = vmatprep.mubr.f32.mxu0 %v6050
        %v6052 = vand.u32 %v4979, 4294901760
        %v6053 = vsub.f32 %v4979, %v6052
        %v6054 = vand.u32 %v6053, 4294901760
        %6055 = vmatmul.mubr.f32.gmra.mrb[0].mxu0 %v6054
        %v6056 = vpop.f32.mrb[0].mxu0
        %v6057 = vadd.f32 %v5814, %v6056
        %v6058 = vpop.f32.mrb[0].mxu0
        %v6059 = vand.u32 %v5021, 4294901760
        %v6060 = vsub.f32 %v5021, %v6059
        %v6061 = vand.u32 %v6060, 4294901760
        %6062 = vmatprep.mubr.f32.mxu0 %v6061
        %v6063 = vand.u32 %v4981, 4294901760
        %v6064 = vsub.f32 %v4981, %v6063
        %v6065 = vand.u32 %v6064, 4294901760
        %6066 = vmatmul.mubr.f32.gmra.mrb[0].mxu0 %v6065
        %v6067 = vpop.f32.mrb[0].mxu0
        %v6068 = vadd.f32 %v5823, %v6067
        %v6069 = vpop.f32.mrb[0].mxu0
        %v6070 = vand.u32 %v5024, 4294901760
        %v6071 = vsub.f32 %v5024, %v6070
        %v6072 = vand.u32 %v6071, 4294901760
        %6073 = vmatprep.mubr.f32.mxu0 %v6072
        %v6074 = vand.u32 %v4983, 4294901760
        %v6075 = vsub.f32 %v4983, %v6074
        %v6076 = vand.u32 %v6075, 4294901760
        %6077 = vmatmul.mubr.f32.gmra.mrb[0].mxu0 %v6076
        %v6078 = vpop.f32.mrb[0].mxu0
        %v6079 = vadd.f32 %v5832, %v6078
        %v6080 = vpop.f32.mrb[0].mxu0
        %v6081 = vand.u32 %v5027, 4294901760
        %v6082 = vsub.f32 %v5027, %v6081
        %v6083 = vand.u32 %v6082, 4294901760
        %6084 = vmatprep.mubr.f32.mxu0 %v6083
        %v6085 = vand.u32 %v4985, 4294901760
        %v6086 = vsub.f32 %v4985, %v6085
        %v6087 = vand.u32 %v6086, 4294901760
        %6088 = vmatmul.mubr.f32.gmra.mrb[0].mxu0 %v6087
        %v6089 = vpop.f32.mrb[0].mxu0
        %v6090 = vadd.f32 %v5841, %v6089
        %v6091 = vpop.f32.mrb[0].mxu0
        %v6092 = vand.u32 %v5030, 4294901760
        %v6093 = vsub.f32 %v5030, %v6092
        %v6094 = vand.u32 %v6093, 4294901760
        %6095 = vmatprep.mubr.f32.mxu0 %v6094
        %v6096 = vand.u32 %v4987, 4294901760
        %v6097 = vsub.f32 %v4987, %v6096
        %v6098 = vand.u32 %v6097, 4294901760
        %6099 = vmatmul.mubr.f32.gmra.mrb[0].mxu0 %v6098
        %v6100 = vpop.f32.mrb[0].mxu0
        %v6101 = vadd.f32 %v5850, %v6100
        %v6102 = vpop.f32.mrb[0].mxu0
        %v6103 = vand.u32 %v5033, 4294901760
        %v6104 = vsub.f32 %v5033, %v6103
        %v6105 = vand.u32 %v6104, 4294901760
        %6106 = vmatprep.mubr.f32.mxu0 %v6105
        %v6107 = vand.u32 %v4989, 4294901760
        %v6108 = vsub.f32 %v4989, %v6107
        %v6109 = vand.u32 %v6108, 4294901760
        %6110 = vmatmul.mubr.f32.gmra.mrb[0].mxu0 %v6109
        %v6111 = vpop.f32.mrb[0].mxu0
        %v6112 = vadd.f32 %v5859, %v6111
        %v6113 = vpop.f32.mrb[0].mxu0
        %v6114 = vand.u32 %v5036, 4294901760
        %v6115 = vsub.f32 %v5036, %v6114
        %v6116 = vand.u32 %v6115, 4294901760
        %6117 = vmatprep.mubr.f32.mxu0 %v6116
        %v6118 = vand.u32 %v4991, 4294901760
        %v6119 = vsub.f32 %v4991, %v6118
        %v6120 = vand.u32 %v6119, 4294901760
        %6121 = vmatmul.mubr.f32.gmra.mrb[0].mxu0 %v6120
        %v6122 = vpop.f32.mrb[0].mxu0
        %v6123 = vadd.f32 %v5868, %v6122
        %v6124 = vpop.f32.mrb[0].mxu0
        %v6125 = vand.u32 %v5039, 4294901760
        %v6126 = vsub.f32 %v5039, %v6125
        %v6127 = vand.u32 %v6126, 4294901760
        %6128 = vmatprep.mubr.f32.mxu0 %v6127
        %v6129 = vand.u32 %v4993, 4294901760
        %v6130 = vsub.f32 %v4993, %v6129
        %v6131 = vand.u32 %v6130, 4294901760
        %6132 = vmatmul.mubr.f32.gmra.mrb[0].mxu0 %v6131
        %v6133 = vpop.f32.mrb[0].mxu0
        %v6134 = vadd.f32 %v5877, %v6133
        %v6135 = vpop.f32.mrb[0].mxu0
        %v6136 = vand.u32 %v5042, 4294901760
        %v6137 = vsub.f32 %v5042, %v6136
        %v6138 = vand.u32 %v6137, 4294901760
        %6139 = vmatprep.mubr.f32.mxu0 %v6138
        %v6140 = vand.u32 %v4995, 4294901760
        %v6141 = vsub.f32 %v4995, %v6140
        %v6142 = vand.u32 %v6141, 4294901760
        %6143 = vmatmul.mubr.f32.gmra.mrb[0].mxu0 %v6142
        %v6144 = vpop.f32.mrb[0].mxu0
        %v6145 = vadd.f32 %v5886, %v6144
        %v6146 = vpop.f32.mrb[0].mxu0
        %v6147 = vand.u32 %v5045, 4294901760
        %v6148 = vsub.f32 %v5045, %v6147
        %v6149 = vand.u32 %v6148, 4294901760
        %6150 = vmatprep.mubr.f32.mxu0 %v6149
        %v6151 = vand.u32 %v4997, 4294901760
        %v6152 = vsub.f32 %v4997, %v6151
        %v6153 = vand.u32 %v6152, 4294901760
        %6154 = vmatmul.mubr.f32.gmra.mrb[0].mxu0 %v6153
        %v6155 = vpop.f32.mrb[0].mxu0
        %v6156 = vadd.f32 %v5895, %v6155
        %v6157 = vpop.f32.mrb[0].mxu0
        %6158 = vdwg.mxu0
        %6159 = vmatprep.subr.mxu0 0.0
        %v6160 = vand.u32 %v683, 4294901760
        %v6161 = vsub.f32 %v683, %v6160
        %v6162 = vand.u32 %v6161, 4294901760
        %6163 = vmatpush1.msra.mxu0 %v6162
        %6164 = vmatprep.subr.mxu0 0.0
        %v6165 = vand.u32 %v684, 4294901760
        %v6166 = vsub.f32 %v684, %v6165
        %v6167 = vand.u32 %v6166, 4294901760
        %6168 = vmatpush1.msra.mxu0 %v6167
        %6169 = vmatprep.subr.mxu0 0.0
        %v6170 = vand.u32 %v685, 4294901760
        %v6171 = vsub.f32 %v685, %v6170
        %v6172 = vand.u32 %v6171, 4294901760
        %6173 = vmatpush1.msra.mxu0 %v6172
        %6174 = vmatprep.subr.mxu0 0.0
        %v6175 = vand.u32 %v686, 4294901760
        %v6176 = vsub.f32 %v686, %v6175
        %v6177 = vand.u32 %v6176, 4294901760
        %6178 = vmatpush1.msra.mxu0 %v6177
        %6179 = vmatprep.subr.mxu0 0.0
        %v6180 = vand.u32 %v687, 4294901760
        %v6181 = vsub.f32 %v687, %v6180
        %v6182 = vand.u32 %v6181, 4294901760
        %6183 = vmatpush1.msra.mxu0 %v6182
        %6184 = vmatprep.subr.mxu0 0.0
        %v6185 = vand.u32 %v688, 4294901760
        %v6186 = vsub.f32 %v688, %v6185
        %v6187 = vand.u32 %v6186, 4294901760
        %6188 = vmatpush1.msra.mxu0 %v6187
        %6189 = vmatprep.subr.mxu0 0.0
        %v6190 = vand.u32 %v689, 4294901760
        %v6191 = vsub.f32 %v689, %v6190
        %v6192 = vand.u32 %v6191, 4294901760
        %6193 = vmatpush1.msra.mxu0 %v6192
        %6194 = vmatprep.subr.mxu0 0.0
        %v6195 = vand.u32 %v690, 4294901760
        %v6196 = vsub.f32 %v690, %v6195
        %v6197 = vand.u32 %v6196, 4294901760
        %6198 = vmatpush1.msra.mxu0 %v6197
        %6199 = vmatprep.subr.mxu0 0.0
        %v6200 = vand.u32 %v691, 4294901760
        %v6201 = vsub.f32 %v691, %v6200
        %v6202 = vand.u32 %v6201, 4294901760
        %6203 = vmatpush1.msra.mxu0 %v6202
        %6204 = vmatprep.subr.mxu0 0.0
        %v6205 = vand.u32 %v692, 4294901760
        %v6206 = vsub.f32 %v692, %v6205
        %v6207 = vand.u32 %v6206, 4294901760
        %6208 = vmatpush1.msra.mxu0 %v6207
        %6209 = vmatprep.subr.mxu0 0.0
        %v6210 = vand.u32 %v693, 4294901760
        %v6211 = vsub.f32 %v693, %v6210
        %v6212 = vand.u32 %v6211, 4294901760
        %6213 = vmatpush1.msra.mxu0 %v6212
        %6214 = vmatprep.subr.mxu0 0.0
        %v6215 = vand.u32 %v694, 4294901760
        %v6216 = vsub.f32 %v694, %v6215
        %v6217 = vand.u32 %v6216, 4294901760
        %6218 = vmatpush1.msra.mxu0 %v6217
        %6219 = vmatprep.subr.mxu0 0.0
        %v6220 = vand.u32 %v695, 4294901760
        %v6221 = vsub.f32 %v695, %v6220
        %v6222 = vand.u32 %v6221, 4294901760
        %6223 = vmatpush1.msra.mxu0 %v6222
        %6224 = vmatprep.subr.mxu0 0.0
        %v6225 = vand.u32 %v696, 4294901760
        %v6226 = vsub.f32 %v696, %v6225
        %v6227 = vand.u32 %v6226, 4294901760
        %6228 = vmatpush1.msra.mxu0 %v6227
        %6229 = vmatprep.subr.mxu0 0.0
        %v6230 = vand.u32 %v697, 4294901760
        %v6231 = vsub.f32 %v697, %v6230
        %v6232 = vand.u32 %v6231, 4294901760
        %6233 = vmatpush1.msra.mxu0 %v6232
        %6234 = vmatprep.subr.mxu0 0.0
        %v6235 = vand.u32 %v698, 4294901760
        %v6236 = vsub.f32 %v698, %v6235
        %v6237 = vand.u32 %v6236, 4294901760
        %6238 = vmatpush1.msra.mxu0 %v6237
        %6239 = vmatprep.subr.mxu0 0.0
        %v6240 = vand.u32 %v699, 4294901760
        %v6241 = vsub.f32 %v699, %v6240
        %v6242 = vand.u32 %v6241, 4294901760
        %6243 = vmatpush1.msra.mxu0 %v6242
        %6244 = vmatprep.subr.mxu0 0.0
        %v6245 = vand.u32 %v700, 4294901760
        %v6246 = vsub.f32 %v700, %v6245
        %v6247 = vand.u32 %v6246, 4294901760
        %6248 = vmatpush1.msra.mxu0 %v6247
        %6249 = vmatprep.subr.mxu0 0.0
        %v6250 = vand.u32 %v701, 4294901760
        %v6251 = vsub.f32 %v701, %v6250
        %v6252 = vand.u32 %v6251, 4294901760
        %6253 = vmatpush1.msra.mxu0 %v6252
        %6254 = vmatprep.subr.mxu0 0.0
        %v6255 = vand.u32 %v702, 4294901760
        %v6256 = vsub.f32 %v702, %v6255
        %v6257 = vand.u32 %v6256, 4294901760
        %6258 = vmatpush1.msra.mxu0 %v6257
        %6259 = vmatprep.subr.mxu0 0.0
        %6260 = vmatpush1.msra.mxu0 0.0
        %6261 = vmatprep.subr.mxu0 0.0
        %6262 = vmatpush1.msra.mxu0 0.0
        %6263 = vmatprep.subr.mxu0 0.0
        %6264 = vmatpush1.msra.mxu0 0.0
        %6265 = vmatprep.subr.mxu0 0.0
        %6266 = vmatpush1.msra.mxu0 0.0
        %6267 = vmatprep.subr.mxu0 0.0
        %6268 = vmatpush1.msra.mxu0 0.0
        %6269 = vmatprep.subr.mxu0 0.0
        %6270 = vmatpush1.msra.mxu0 0.0
        %6271 = vmatprep.subr.mxu0 0.0
        %6272 = vmatpush1.msra.mxu0 0.0
        %6273 = vmatprep.subr.mxu0 0.0
        %6274 = vmatpush1.msra.mxu0 0.0
        %6275 = vmatprep.subr.mxu0 0.0
        %6276 = vmatpush1.msra.mxu0 0.0
        %6277 = vmatprep.subr.mxu0 0.0
        %6278 = vmatpush1.msra.mxu0 0.0
        %6279 = vmatprep.subr.mxu0 0.0
        %6280 = vmatpush1.msra.mxu0 0.0
        %6281 = vmatprep.subr.mxu0 0.0
        %6282 = vmatpush1.msra.mxu0 0.0
        %v6283 = vand.u32 %v5000, 4294901760
        %6284 = vmatprep.mubr.f32.mxu0 %v6283
        %v6285 = vand.u32 %v4967, 4294901760
        %6286 = vmatmul.mubr.f32.gmra.mrb[0].mxu0 %v6285
        %v6287 = vpop.f32.mrb[0].mxu0
        %v6288 = vadd.f32 %v5991, %v6287
        %v6289 = vpop.f32.mrb[0].mxu0
        %v6290 = vand.u32 %v5003, 4294901760
        %6291 = vmatprep.mubr.f32.mxu0 %v6290
        %v6292 = vand.u32 %v4969, 4294901760
        %6293 = vmatmul.mubr.f32.gmra.mrb[0].mxu0 %v6292
        %v6294 = vpop.f32.mrb[0].mxu0
        %v6295 = vadd.f32 %v6002, %v6294
        %v6296 = vpop.f32.mrb[0].mxu0
        %v6297 = vand.u32 %v5006, 4294901760
        %6298 = vmatprep.mubr.f32.mxu0 %v6297
        %v6299 = vand.u32 %v4971, 4294901760
        %6300 = vmatmul.mubr.f32.gmra.mrb[0].mxu0 %v6299
        %v6301 = vpop.f32.mrb[0].mxu0
        %v6302 = vadd.f32 %v6013, %v6301
        %v6303 = vpop.f32.mrb[0].mxu0
        %v6304 = vand.u32 %v5009, 4294901760
        %6305 = vmatprep.mubr.f32.mxu0 %v6304
        %v6306 = vand.u32 %v4973, 4294901760
        %6307 = vmatmul.mubr.f32.gmra.mrb[0].mxu0 %v6306
        %v6308 = vpop.f32.mrb[0].mxu0
        %v6309 = vadd.f32 %v6024, %v6308
        %v6310 = vpop.f32.mrb[0].mxu0
        %v6311 = vand.u32 %v5012, 4294901760
        %6312 = vmatprep.mubr.f32.mxu0 %v6311
        %v6313 = vand.u32 %v4975, 4294901760
        %6314 = vmatmul.mubr.f32.gmra.mrb[0].mxu0 %v6313
        %v6315 = vpop.f32.mrb[0].mxu0
        %v6316 = vadd.f32 %v6035, %v6315
        %v6317 = vpop.f32.mrb[0].mxu0
        %v6318 = vand.u32 %v5015, 4294901760
        %6319 = vmatprep.mubr.f32.mxu0 %v6318
        %v6320 = vand.u32 %v4977, 4294901760
        %6321 = vmatmul.mubr.f32.gmra.mrb[0].mxu0 %v6320
        %v6322 = vpop.f32.mrb[0].mxu0
        %v6323 = vadd.f32 %v6046, %v6322
        %v6324 = vpop.f32.mrb[0].mxu0
        %v6325 = vand.u32 %v5018, 4294901760
        %6326 = vmatprep.mubr.f32.mxu0 %v6325
        %v6327 = vand.u32 %v4979, 4294901760
        %6328 = vmatmul.mubr.f32.gmra.mrb[0].mxu0 %v6327
        %v6329 = vpop.f32.mrb[0].mxu0
        %v6330 = vadd.f32 %v6057, %v6329
        %v6331 = vpop.f32.mrb[0].mxu0
        %v6332 = vand.u32 %v5021, 4294901760
        %6333 = vmatprep.mubr.f32.mxu0 %v6332
        %v6334 = vand.u32 %v4981, 4294901760
        %6335 = vmatmul.mubr.f32.gmra.mrb[0].mxu0 %v6334
        %v6336 = vpop.f32.mrb[0].mxu0
        %v6337 = vadd.f32 %v6068, %v6336
        %v6338 = vpop.f32.mrb[0].mxu0
        %v6339 = vand.u32 %v5024, 4294901760
        %6340 = vmatprep.mubr.f32.mxu0 %v6339
        %v6341 = vand.u32 %v4983, 4294901760
        %6342 = vmatmul.mubr.f32.gmra.mrb[0].mxu0 %v6341
        %v6343 = vpop.f32.mrb[0].mxu0
        %v6344 = vadd.f32 %v6079, %v6343
        %v6345 = vpop.f32.mrb[0].mxu0
        %v6346 = vand.u32 %v5027, 4294901760
        %6347 = vmatprep.mubr.f32.mxu0 %v6346
        %v6348 = vand.u32 %v4985, 4294901760
        %6349 = vmatmul.mubr.f32.gmra.mrb[0].mxu0 %v6348
        %v6350 = vpop.f32.mrb[0].mxu0
        %v6351 = vadd.f32 %v6090, %v6350
        %v6352 = vpop.f32.mrb[0].mxu0
        %v6353 = vand.u32 %v5030, 4294901760
        %6354 = vmatprep.mubr.f32.mxu0 %v6353
        %v6355 = vand.u32 %v4987, 4294901760
        %6356 = vmatmul.mubr.f32.gmra.mrb[0].mxu0 %v6355
        %v6357 = vpop.f32.mrb[0].mxu0
        %v6358 = vadd.f32 %v6101, %v6357
        %v6359 = vpop.f32.mrb[0].mxu0
        %v6360 = vand.u32 %v5033, 4294901760
        %6361 = vmatprep.mubr.f32.mxu0 %v6360
        %v6362 = vand.u32 %v4989, 4294901760
        %6363 = vmatmul.mubr.f32.gmra.mrb[0].mxu0 %v6362
        %v6364 = vpop.f32.mrb[0].mxu0
        %v6365 = vadd.f32 %v6112, %v6364
        %v6366 = vpop.f32.mrb[0].mxu0
        %v6367 = vand.u32 %v5036, 4294901760
        %6368 = vmatprep.mubr.f32.mxu0 %v6367
        %v6369 = vand.u32 %v4991, 4294901760
        %6370 = vmatmul.mubr.f32.gmra.mrb[0].mxu0 %v6369
        %v6371 = vpop.f32.mrb[0].mxu0
        %v6372 = vadd.f32 %v6123, %v6371
        %v6373 = vpop.f32.mrb[0].mxu0
        %v6374 = vand.u32 %v5039, 4294901760
        %6375 = vmatprep.mubr.f32.mxu0 %v6374
        %v6376 = vand.u32 %v4993, 4294901760
        %6377 = vmatmul.mubr.f32.gmra.mrb[0].mxu0 %v6376
        %v6378 = vpop.f32.mrb[0].mxu0
        %v6379 = vadd.f32 %v6134, %v6378
        %v6380 = vpop.f32.mrb[0].mxu0
        %v6381 = vand.u32 %v5042, 4294901760
        %6382 = vmatprep.mubr.f32.mxu0 %v6381
        %v6383 = vand.u32 %v4995, 4294901760
        %6384 = vmatmul.mubr.f32.gmra.mrb[0].mxu0 %v6383
        %v6385 = vpop.f32.mrb[0].mxu0
        %v6386 = vadd.f32 %v6145, %v6385
        %v6387 = vpop.f32.mrb[0].mxu0
        %v6388 = vand.u32 %v5045, 4294901760
        %6389 = vmatprep.mubr.f32.mxu0 %v6388
        %v6390 = vand.u32 %v4997, 4294901760
        %6391 = vmatmul.mubr.f32.gmra.mrb[0].mxu0 %v6390
        %v6392 = vpop.f32.mrb[0].mxu0
        %v6393 = vadd.f32 %v6156, %v6392
        %v6394 = vpop.f32.mrb[0].mxu0
        %6395 = vdwg.mxu0
        %6396 = vmatprep.subr.mxu0 0.0
        %v6397 = vand.u32 %v683, 4294901760
        %6398 = vmatpush1.msra.mxu0 %v6397
        %6399 = vmatprep.subr.mxu0 0.0
        %v6400 = vand.u32 %v684, 4294901760
        %6401 = vmatpush1.msra.mxu0 %v6400
        %6402 = vmatprep.subr.mxu0 0.0
        %v6403 = vand.u32 %v685, 4294901760
        %6404 = vmatpush1.msra.mxu0 %v6403
        %6405 = vmatprep.subr.mxu0 0.0
        %v6406 = vand.u32 %v686, 4294901760
        %6407 = vmatpush1.msra.mxu0 %v6406
        %6408 = vmatprep.subr.mxu0 0.0
        %v6409 = vand.u32 %v687, 4294901760
        %6410 = vmatpush1.msra.mxu0 %v6409
        %6411 = vmatprep.subr.mxu0 0.0
        %v6412 = vand.u32 %v688, 4294901760
        %6413 = vmatpush1.msra.mxu0 %v6412
        %6414 = vmatprep.subr.mxu0 0.0
        %v6415 = vand.u32 %v689, 4294901760
        %6416 = vmatpush1.msra.mxu0 %v6415
        %6417 = vmatprep.subr.mxu0 0.0
        %v6418 = vand.u32 %v690, 4294901760
        %6419 = vmatpush1.msra.mxu0 %v6418
        %6420 = vmatprep.subr.mxu0 0.0
        %v6421 = vand.u32 %v691, 4294901760
        %6422 = vmatpush1.msra.mxu0 %v6421
        %6423 = vmatprep.subr.mxu0 0.0
        %v6424 = vand.u32 %v692, 4294901760
        %6425 = vmatpush1.msra.mxu0 %v6424
        %6426 = vmatprep.subr.mxu0 0.0
        %v6427 = vand.u32 %v693, 4294901760
        %6428 = vmatpush1.msra.mxu0 %v6427
        %6429 = vmatprep.subr.mxu0 0.0
        %v6430 = vand.u32 %v694, 4294901760
        %6431 = vmatpush1.msra.mxu0 %v6430
        %6432 = vmatprep.subr.mxu0 0.0
        %v6433 = vand.u32 %v695, 4294901760
        %6434 = vmatpush1.msra.mxu0 %v6433
        %6435 = vmatprep.subr.mxu0 0.0
        %v6436 = vand.u32 %v696, 4294901760
        %6437 = vmatpush1.msra.mxu0 %v6436
        %6438 = vmatprep.subr.mxu0 0.0
        %v6439 = vand.u32 %v697, 4294901760
        %6440 = vmatpush1.msra.mxu0 %v6439
        %6441 = vmatprep.subr.mxu0 0.0
        %v6442 = vand.u32 %v698, 4294901760
        %6443 = vmatpush1.msra.mxu0 %v6442
        %6444 = vmatprep.subr.mxu0 0.0
        %v6445 = vand.u32 %v699, 4294901760
        %6446 = vmatpush1.msra.mxu0 %v6445
        %6447 = vmatprep.subr.mxu0 0.0
        %v6448 = vand.u32 %v700, 4294901760
        %6449 = vmatpush1.msra.mxu0 %v6448
        %6450 = vmatprep.subr.mxu0 0.0
        %v6451 = vand.u32 %v701, 4294901760
        %6452 = vmatpush1.msra.mxu0 %v6451
        %6453 = vmatprep.subr.mxu0 0.0
        %v6454 = vand.u32 %v702, 4294901760
        %6455 = vmatpush1.msra.mxu0 %v6454
        %6456 = vmatprep.subr.mxu0 0.0
        %6457 = vmatpush1.msra.mxu0 0.0
        %6458 = vmatprep.subr.mxu0 0.0
        %6459 = vmatpush1.msra.mxu0 0.0
        %6460 = vmatprep.subr.mxu0 0.0
        %6461 = vmatpush1.msra.mxu0 0.0
        %6462 = vmatprep.subr.mxu0 0.0
        %6463 = vmatpush1.msra.mxu0 0.0
        %6464 = vmatprep.subr.mxu0 0.0
        %6465 = vmatpush1.msra.mxu0 0.0
        %6466 = vmatprep.subr.mxu0 0.0
        %6467 = vmatpush1.msra.mxu0 0.0
        %6468 = vmatprep.subr.mxu0 0.0
        %6469 = vmatpush1.msra.mxu0 0.0
        %6470 = vmatprep.subr.mxu0 0.0
        %6471 = vmatpush1.msra.mxu0 0.0
        %6472 = vmatprep.subr.mxu0 0.0
        %6473 = vmatpush1.msra.mxu0 0.0
        %6474 = vmatprep.subr.mxu0 0.0
        %6475 = vmatpush1.msra.mxu0 0.0
        %6476 = vmatprep.subr.mxu0 0.0
        %6477 = vmatpush1.msra.mxu0 0.0
        %6478 = vmatprep.subr.mxu0 0.0
        %6479 = vmatpush1.msra.mxu0 0.0
        %v6480 = vand.u32 %v5000, 4294901760
        %6481 = vmatprep.mubr.f32.mxu0 %v6480
        %v6482 = vand.u32 %v4967, 4294901760
        %6483 = vmatmul.mubr.f32.gmra.mrb[0].mxu0 %v6482
        %v6484 = vpop.f32.mrb[0].mxu0
        %v6485 = vadd.f32 %v6288, %v6484
        %v6486 = vpop.f32.mrb[0].mxu0
        %v6487 = vand.u32 %v5003, 4294901760
        %6488 = vmatprep.mubr.f32.mxu0 %v6487
        %v6489 = vand.u32 %v4969, 4294901760
        %6490 = vmatmul.mubr.f32.gmra.mrb[0].mxu0 %v6489
        %v6491 = vpop.f32.mrb[0].mxu0
        %v6492 = vadd.f32 %v6295, %v6491
        %v6493 = vpop.f32.mrb[0].mxu0
        %v6494 = vand.u32 %v5006, 4294901760
        %6495 = vmatprep.mubr.f32.mxu0 %v6494
        %v6496 = vand.u32 %v4971, 4294901760
        %6497 = vmatmul.mubr.f32.gmra.mrb[0].mxu0 %v6496
        %v6498 = vpop.f32.mrb[0].mxu0
        %v6499 = vadd.f32 %v6302, %v6498
        %v6500 = vpop.f32.mrb[0].mxu0
        %v6501 = vand.u32 %v5009, 4294901760
        %6502 = vmatprep.mubr.f32.mxu0 %v6501
        %v6503 = vand.u32 %v4973, 4294901760
        %6504 = vmatmul.mubr.f32.gmra.mrb[0].mxu0 %v6503
        %v6505 = vpop.f32.mrb[0].mxu0
        %v6506 = vadd.f32 %v6309, %v6505
        %v6507 = vpop.f32.mrb[0].mxu0
        %v6508 = vand.u32 %v5012, 4294901760
        %6509 = vmatprep.mubr.f32.mxu0 %v6508
        %v6510 = vand.u32 %v4975, 4294901760
        %6511 = vmatmul.mubr.f32.gmra.mrb[0].mxu0 %v6510
        %v6512 = vpop.f32.mrb[0].mxu0
        %v6513 = vadd.f32 %v6316, %v6512
        %v6514 = vpop.f32.mrb[0].mxu0
        %v6515 = vand.u32 %v5015, 4294901760
        %6516 = vmatprep.mubr.f32.mxu0 %v6515
        %v6517 = vand.u32 %v4977, 4294901760
        %6518 = vmatmul.mubr.f32.gmra.mrb[0].mxu0 %v6517
        %v6519 = vpop.f32.mrb[0].mxu0
        %v6520 = vadd.f32 %v6323, %v6519
        %v6521 = vpop.f32.mrb[0].mxu0
        %v6522 = vand.u32 %v5018, 4294901760
        %6523 = vmatprep.mubr.f32.mxu0 %v6522
        %v6524 = vand.u32 %v4979, 4294901760
        %6525 = vmatmul.mubr.f32.gmra.mrb[0].mxu0 %v6524
        %v6526 = vpop.f32.mrb[0].mxu0
        %v6527 = vadd.f32 %v6330, %v6526
        %v6528 = vpop.f32.mrb[0].mxu0
        %v6529 = vand.u32 %v5021, 4294901760
        %6530 = vmatprep.mubr.f32.mxu0 %v6529
        %v6531 = vand.u32 %v4981, 4294901760
        %6532 = vmatmul.mubr.f32.gmra.mrb[0].mxu0 %v6531
        %v6533 = vpop.f32.mrb[0].mxu0
        %v6534 = vadd.f32 %v6337, %v6533
        %v6535 = vpop.f32.mrb[0].mxu0
        %v6536 = vand.u32 %v5024, 4294901760
        %6537 = vmatprep.mubr.f32.mxu0 %v6536
        %v6538 = vand.u32 %v4983, 4294901760
        %6539 = vmatmul.mubr.f32.gmra.mrb[0].mxu0 %v6538
        %v6540 = vpop.f32.mrb[0].mxu0
        %v6541 = vadd.f32 %v6344, %v6540
        %v6542 = vpop.f32.mrb[0].mxu0
        %v6543 = vand.u32 %v5027, 4294901760
        %6544 = vmatprep.mubr.f32.mxu0 %v6543
        %v6545 = vand.u32 %v4985, 4294901760
        %6546 = vmatmul.mubr.f32.gmra.mrb[0].mxu0 %v6545
        %v6547 = vpop.f32.mrb[0].mxu0
        %v6548 = vadd.f32 %v6351, %v6547
        %v6549 = vpop.f32.mrb[0].mxu0
        %v6550 = vand.u32 %v5030, 4294901760
        %6551 = vmatprep.mubr.f32.mxu0 %v6550
        %v6552 = vand.u32 %v4987, 4294901760
        %6553 = vmatmul.mubr.f32.gmra.mrb[0].mxu0 %v6552
        %v6554 = vpop.f32.mrb[0].mxu0
        %v6555 = vadd.f32 %v6358, %v6554
        %v6556 = vpop.f32.mrb[0].mxu0
        %v6557 = vand.u32 %v5033, 4294901760
        %6558 = vmatprep.mubr.f32.mxu0 %v6557
        %v6559 = vand.u32 %v4989, 4294901760
        %6560 = vmatmul.mubr.f32.gmra.mrb[0].mxu0 %v6559
        %v6561 = vpop.f32.mrb[0].mxu0
        %v6562 = vadd.f32 %v6365, %v6561
        %v6563 = vpop.f32.mrb[0].mxu0
        %v6564 = vand.u32 %v5036, 4294901760
        %6565 = vmatprep.mubr.f32.mxu0 %v6564
        %v6566 = vand.u32 %v4991, 4294901760
        %6567 = vmatmul.mubr.f32.gmra.mrb[0].mxu0 %v6566
        %v6568 = vpop.f32.mrb[0].mxu0
        %v6569 = vadd.f32 %v6372, %v6568
        %v6570 = vpop.f32.mrb[0].mxu0
        %v6571 = vand.u32 %v5039, 4294901760
        %6572 = vmatprep.mubr.f32.mxu0 %v6571
        %v6573 = vand.u32 %v4993, 4294901760
        %6574 = vmatmul.mubr.f32.gmra.mrb[0].mxu0 %v6573
        %v6575 = vpop.f32.mrb[0].mxu0
        %v6576 = vadd.f32 %v6379, %v6575
        %v6577 = vpop.f32.mrb[0].mxu0
        %v6578 = vand.u32 %v5042, 4294901760
        %6579 = vmatprep.mubr.f32.mxu0 %v6578
        %v6580 = vand.u32 %v4995, 4294901760
        %6581 = vmatmul.mubr.f32.gmra.mrb[0].mxu0 %v6580
        %v6582 = vpop.f32.mrb[0].mxu0
        %v6583 = vadd.f32 %v6386, %v6582
        %v6584 = vpop.f32.mrb[0].mxu0
        %v6585 = vand.u32 %v5045, 4294901760
        %6586 = vmatprep.mubr.f32.mxu0 %v6585
        %v6587 = vand.u32 %v4997, 4294901760
        %6588 = vmatmul.mubr.f32.gmra.mrb[0].mxu0 %v6587
        %v6589 = vpop.f32.mrb[0].mxu0
        %v6590 = vadd.f32 %v6393, %v6589
        %v6591 = vpop.f32.mrb[0].mxu0
        %6592 = vdwg.mxu0
        %v6593 = vadd.f32 %v4823, %v6485
        %v6594 = vadd.f32 %v4824, %v6492
        %v6595 = vadd.f32 %v4825, %v6499
        %v6596 = vadd.f32 %v4826, %v6506
        %v6597 = vadd.f32 %v4827, %v6513
        %v6598 = vadd.f32 %v4828, %v6520
        %v6599 = vadd.f32 %v4829, %v6527
        %v6600 = vadd.f32 %v4830, %v6534
        %v6601 = vadd.f32 %v4831, %v6541
        %v6602 = vadd.f32 %v4832, %v6548
        %v6603 = vadd.f32 %v4833, %v6555
        %v6604 = vadd.f32 %v4834, %v6562
        %v6605 = vadd.f32 %v4835, %v6569
        %v6606 = vadd.f32 %v4836, %v6576
        %v6607 = vadd.f32 %v4837, %v6583
        %v6608 = vadd.f32 %v4838, %v6590
        %6609 = vadd.xlane.f32.xlu0 %v6593
        %v6610 = vpop.xlane.xlu0 %6609
        %6611 = vadd.xlane.f32.xlu0 %v6594
        %v6612 = vpop.xlane.xlu0 %6611
        %6613 = vadd.xlane.f32.xlu0 %v6595
        %v6614 = vpop.xlane.xlu0 %6613
        %6615 = vadd.xlane.f32.xlu0 %v6596
        %v6616 = vpop.xlane.xlu0 %6615
        %6617 = vadd.xlane.f32.xlu0 %v6597
        %v6618 = vpop.xlane.xlu0 %6617
        %6619 = vadd.xlane.f32.xlu0 %v6598
        %v6620 = vpop.xlane.xlu0 %6619
        %6621 = vadd.xlane.f32.xlu0 %v6599
        %v6622 = vpop.xlane.xlu0 %6621
        %6623 = vadd.xlane.f32.xlu0 %v6600
        %v6624 = vpop.xlane.xlu0 %6623
        %6625 = vadd.xlane.f32.xlu0 %v6601
        %v6626 = vpop.xlane.xlu0 %6625
        %6627 = vadd.xlane.f32.xlu0 %v6602
        %v6628 = vpop.xlane.xlu0 %6627
        %6629 = vadd.xlane.f32.xlu0 %v6603
        %v6630 = vpop.xlane.xlu0 %6629
        %6631 = vadd.xlane.f32.xlu0 %v6604
        %v6632 = vpop.xlane.xlu0 %6631
        %6633 = vadd.xlane.f32.xlu0 %v6605
        %v6634 = vpop.xlane.xlu0 %6633
        %6635 = vadd.xlane.f32.xlu0 %v6606
        %v6636 = vpop.xlane.xlu0 %6635
        %6637 = vadd.xlane.f32.xlu0 %v6607
        %v6638 = vpop.xlane.xlu0 %6637
        %6639 = vadd.xlane.f32.xlu0 %v6608
        %v6640 = vpop.xlane.xlu0 %6639
        %v6641 = vrcp.pop 128.0
        %v6642 = vmul.f32 %v6610, %v6641
        %v6643 = vmul.f32 %v6612, %v6641
        %v6644 = vmul.f32 %v6614, %v6641
        %v6645 = vmul.f32 %v6616, %v6641
        %v6646 = vmul.f32 %v6618, %v6641
        %v6647 = vmul.f32 %v6620, %v6641
        %v6648 = vmul.f32 %v6622, %v6641
        %v6649 = vmul.f32 %v6624, %v6641
        %v6650 = vmul.f32 %v6626, %v6641
        %v6651 = vmul.f32 %v6628, %v6641
        %v6652 = vmul.f32 %v6630, %v6641
        %v6653 = vmul.f32 %v6632, %v6641
        %v6654 = vmul.f32 %v6634, %v6641
        %v6655 = vmul.f32 %v6636, %v6641
        %v6656 = vmul.f32 %v6638, %v6641
        %v6657 = vmul.f32 %v6640, %v6641
        %v6658 = vsub.f32 %v6593, %v6642
        %v6659 = vsub.f32 %v6594, %v6643
        %v6660 = vsub.f32 %v6595, %v6644
        %v6661 = vsub.f32 %v6596, %v6645
        %v6662 = vsub.f32 %v6597, %v6646
        %v6663 = vsub.f32 %v6598, %v6647
        %v6664 = vsub.f32 %v6599, %v6648
        %v6665 = vsub.f32 %v6600, %v6649
        %v6666 = vsub.f32 %v6601, %v6650
        %v6667 = vsub.f32 %v6602, %v6651
        %v6668 = vsub.f32 %v6603, %v6652
        %v6669 = vsub.f32 %v6604, %v6653
        %v6670 = vsub.f32 %v6605, %v6654
        %v6671 = vsub.f32 %v6606, %v6655
        %v6672 = vsub.f32 %v6607, %v6656
        %v6673 = vsub.f32 %v6608, %v6657
        %v6674 = vmul.f32 %v6658, %v6658
        %v6675 = vmul.f32 %v6659, %v6659
        %v6676 = vmul.f32 %v6660, %v6660
        %v6677 = vmul.f32 %v6661, %v6661
        %v6678 = vmul.f32 %v6662, %v6662
        %v6679 = vmul.f32 %v6663, %v6663
        %v6680 = vmul.f32 %v6664, %v6664
        %v6681 = vmul.f32 %v6665, %v6665
        %v6682 = vmul.f32 %v6666, %v6666
        %v6683 = vmul.f32 %v6667, %v6667
        %v6684 = vmul.f32 %v6668, %v6668
        %v6685 = vmul.f32 %v6669, %v6669
        %v6686 = vmul.f32 %v6670, %v6670
        %v6687 = vmul.f32 %v6671, %v6671
        %v6688 = vmul.f32 %v6672, %v6672
        %v6689 = vmul.f32 %v6673, %v6673
        %6690 = vadd.xlane.f32.xlu0 %v6674
        %v6691 = vpop.xlane.xlu0 %6690
        %6692 = vadd.xlane.f32.xlu0 %v6675
        %v6693 = vpop.xlane.xlu0 %6692
        %6694 = vadd.xlane.f32.xlu0 %v6676
        %v6695 = vpop.xlane.xlu0 %6694
        %6696 = vadd.xlane.f32.xlu0 %v6677
        %v6697 = vpop.xlane.xlu0 %6696
        %6698 = vadd.xlane.f32.xlu0 %v6678
        %v6699 = vpop.xlane.xlu0 %6698
        %6700 = vadd.xlane.f32.xlu0 %v6679
        %v6701 = vpop.xlane.xlu0 %6700
        %6702 = vadd.xlane.f32.xlu0 %v6680
        %v6703 = vpop.xlane.xlu0 %6702
        %6704 = vadd.xlane.f32.xlu0 %v6681
        %v6705 = vpop.xlane.xlu0 %6704
        %6706 = vadd.xlane.f32.xlu0 %v6682
        %v6707 = vpop.xlane.xlu0 %6706
        %6708 = vadd.xlane.f32.xlu0 %v6683
        %v6709 = vpop.xlane.xlu0 %6708
        %6710 = vadd.xlane.f32.xlu0 %v6684
        %v6711 = vpop.xlane.xlu0 %6710
        %6712 = vadd.xlane.f32.xlu0 %v6685
        %v6713 = vpop.xlane.xlu0 %6712
        %6714 = vadd.xlane.f32.xlu0 %v6686
        %v6715 = vpop.xlane.xlu0 %6714
        %6716 = vadd.xlane.f32.xlu0 %v6687
        %v6717 = vpop.xlane.xlu0 %6716
        %6718 = vadd.xlane.f32.xlu0 %v6688
        %v6719 = vpop.xlane.xlu0 %6718
        %6720 = vadd.xlane.f32.xlu0 %v6689
        %v6721 = vpop.xlane.xlu0 %6720
        %v6722 = vmul.f32 %v6691, %v6641
        %v6723 = vmul.f32 %v6693, %v6641
        %v6724 = vmul.f32 %v6695, %v6641
        %v6725 = vmul.f32 %v6697, %v6641
        %v6726 = vmul.f32 %v6699, %v6641
        %v6727 = vmul.f32 %v6701, %v6641
        %v6728 = vmul.f32 %v6703, %v6641
        %v6729 = vmul.f32 %v6705, %v6641
        %v6730 = vmul.f32 %v6707, %v6641
        %v6731 = vmul.f32 %v6709, %v6641
        %v6732 = vmul.f32 %v6711, %v6641
        %v6733 = vmul.f32 %v6713, %v6641
        %v6734 = vmul.f32 %v6715, %v6641
        %v6735 = vmul.f32 %v6717, %v6641
        %v6736 = vmul.f32 %v6719, %v6641
        %v6737 = vmul.f32 %v6721, %v6641
        %v6738 = vadd.f32 %v6722, 1e-12
        %v6739 = vadd.f32 %v6723, 1e-12
        %v6740 = vadd.f32 %v6724, 1e-12
        %v6741 = vadd.f32 %v6725, 1e-12
        %v6742 = vadd.f32 %v6726, 1e-12
        %v6743 = vadd.f32 %v6727, 1e-12
        %v6744 = vadd.f32 %v6728, 1e-12
        %v6745 = vadd.f32 %v6729, 1e-12
        %v6746 = vadd.f32 %v6730, 1e-12
        %v6747 = vadd.f32 %v6731, 1e-12
        %v6748 = vadd.f32 %v6732, 1e-12
        %v6749 = vadd.f32 %v6733, 1e-12
        %v6750 = vadd.f32 %v6734, 1e-12
        %v6751 = vadd.f32 %v6735, 1e-12
        %v6752 = vadd.f32 %v6736, 1e-12
        %v6753 = vadd.f32 %v6737, 1e-12
        %v6754 = vrsqrt.pop %v6738
        %v6755 = vrsqrt.pop %v6739
        %v6756 = vrsqrt.pop %v6740
        %v6757 = vrsqrt.pop %v6741
        %v6758 = vrsqrt.pop %v6742
        %v6759 = vrsqrt.pop %v6743
        %v6760 = vrsqrt.pop %v6744
        %v6761 = vrsqrt.pop %v6745
        %v6762 = vrsqrt.pop %v6746
        %v6763 = vrsqrt.pop %v6747
        %v6764 = vrsqrt.pop %v6748
        %v6765 = vrsqrt.pop %v6749
        %v6766 = vrsqrt.pop %v6750
        %v6767 = vrsqrt.pop %v6751
        %v6768 = vrsqrt.pop %v6752
        %v6769 = vrsqrt.pop %v6753
        %v6770 = vmul.f32 %v6658, %v6754
        %v6771 = vmul.f32 %v6659, %v6755
        %v6772 = vmul.f32 %v6660, %v6756
        %v6773 = vmul.f32 %v6661, %v6757
        %v6774 = vmul.f32 %v6662, %v6758
        %v6775 = vmul.f32 %v6663, %v6759
        %v6776 = vmul.f32 %v6664, %v6760
        %v6777 = vmul.f32 %v6665, %v6761
        %v6778 = vmul.f32 %v6666, %v6762
        %v6779 = vmul.f32 %v6667, %v6763
        %v6780 = vmul.f32 %v6668, %v6764
        %v6781 = vmul.f32 %v6669, %v6765
        %v6782 = vmul.f32 %v6670, %v6766
        %v6783 = vmul.f32 %v6671, %v6767
        %v6784 = vmul.f32 %v6672, %v6768
        %v6785 = vmul.f32 %v6673, %v6769
        %v6786 = vld [vmem:[%s7] sm:$0x1]
        %v6788 = vlaneseq
        %v6789 = vshrl.u32 %v6788, 7
        %v6790 = vsub.s32 0, %v6789
        %v6791 = vrot.slane %v6786, %v6790
        %v6793 = vmul.f32 %v6770, %v6791
        %v6794 = vmul.f32 %v6771, %v6791
        %v6795 = vmul.f32 %v6772, %v6791
        %v6796 = vmul.f32 %v6773, %v6791
        %v6797 = vmul.f32 %v6774, %v6791
        %v6798 = vmul.f32 %v6775, %v6791
        %v6799 = vmul.f32 %v6776, %v6791
        %v6800 = vmul.f32 %v6777, %v6791
        %v6801 = vmul.f32 %v6778, %v6791
        %v6802 = vmul.f32 %v6779, %v6791
        %v6803 = vmul.f32 %v6780, %v6791
        %v6804 = vmul.f32 %v6781, %v6791
        %v6805 = vmul.f32 %v6782, %v6791
        %v6806 = vmul.f32 %v6783, %v6791
        %v6807 = vmul.f32 %v6784, %v6791
        %v6808 = vmul.f32 %v6785, %v6791
        %v6809 = vld [vmem:[%s8] sm:$0x1]
        %v6811 = vlaneseq
        %v6812 = vshrl.u32 %v6811, 7
        %v6813 = vsub.s32 0, %v6812
        %v6814 = vrot.slane %v6809, %v6813
        %v6816 = vadd.f32 %v6793, %v6814
        %v6817 = vadd.f32 %v6794, %v6814
        %v6818 = vadd.f32 %v6795, %v6814
        %v6819 = vadd.f32 %v6796, %v6814
        %v6820 = vadd.f32 %v6797, %v6814
        %v6821 = vadd.f32 %v6798, %v6814
        %v6822 = vadd.f32 %v6799, %v6814
        %v6823 = vadd.f32 %v6800, %v6814
        %v6824 = vadd.f32 %v6801, %v6814
        %v6825 = vadd.f32 %v6802, %v6814
        %v6826 = vadd.f32 %v6803, %v6814
        %v6827 = vadd.f32 %v6804, %v6814
        %v6828 = vadd.f32 %v6805, %v6814
        %v6829 = vadd.f32 %v6806, %v6814
        %v6830 = vadd.f32 %v6807, %v6814
        %v6831 = vadd.f32 %v6808, %v6814
        %6832 = vst [vmem:[%s374] sm:$0xff] %v6816
        %6833 = vst [vmem:[%s374 + $0x8] sm:$0xff] %v6817
        %6834 = vst [vmem:[%s374 + $0x10] sm:$0xff] %v6818
        %6835 = vst [vmem:[%s374 + $0x18] sm:$0xff] %v6819
        %6836 = vst [vmem:[%s374 + $0x20] sm:$0xff] %v6820
        %6837 = vst [vmem:[%s374 + $0x28] sm:$0xff] %v6821
        %6838 = vst [vmem:[%s374 + $0x30] sm:$0xff] %v6822
        %6839 = vst [vmem:[%s374 + $0x38] sm:$0xff] %v6823
        %6840 = vst [vmem:[%s374 + $0x40] sm:$0xff] %v6824
        %6841 = vst [vmem:[%s374 + $0x48] sm:$0xff] %v6825
        %6842 = vst [vmem:[%s374 + $0x50] sm:$0xff] %v6826
        %6843 = vst [vmem:[%s374 + $0x58] sm:$0xff] %v6827
        %6844 = vst [vmem:[%s374 + $0x60] sm:$0xff] %v6828
        %6845 = vst [vmem:[%s374 + $0x68] sm:$0xff] %v6829
        %6846 = vst [vmem:[%s374 + $0x70] sm:$0xff] %v6830
        %6847 = vst [vmem:[%s374 + $0x78] sm:$0xff] %v6831
        %s6848 = sand.u32 %s240, 1
        %s6849 = scalar_lea.sflag [#allocation3], %s6848
        %s6850 = sand.u32 %s240, 1
        %s6851 = smul.addr %s6850, 128
        %s6852 = scalar_lea.vmem [#allocation2], %s6851
        // Predicated region
        $region57: #{tpu_custom_call.1} parent=55 // pred_check
          %p6853 = pneg %p250
        $region58: #{tpu_custom_call.1} parent=55 // pred_check_branch
          %6855 = sbr.rel (%p6853) target = $region60
        $region59: #{tpu_custom_call.1} parent=55 // pred_region
          %s6856 = smul.u32 16, %s23
          %s6858 = ssub.s32 2048, 2048
          %6859 = vsyncadd %s6849, %s6858
          %s6860 = smul.addr %s6856, 128
          %s6861 = scalar_lea.hbm %s9, %s6860
          %s6862 = sshll.u32 %s6852, 4
          %s6863 = int_to_ptr.vmem [resolvable:$true] %s6862
          %6868 = dma.vmem_to_hbm [thread:$0]  %s6863, 2048, %s6861, %s6849, 128, 128, 8
        $region60: #{tpu_custom_call.1} parent=55 // pred_fallthru
          _
      $region56: #{tpu_custom_call.1} parent=5 // pred_fallthru
        _
      %p6869 = scmp.le.s32.totalorder 2, %s18
      // Predicated region
      $region61: #{tpu_custom_call.1} parent=5 // pred_check
        %p6870 = pneg %p6869
      $region62: #{tpu_custom_call.1} parent=5 // pred_check_branch
        %6872 = sbr.rel (%p6870) target = $region64
      $region63: #{tpu_custom_call.1} parent=5 // pred_region
        %s6873 = ssub.s32 %s18, 2
        // Predicated region
        $region65: #{tpu_custom_call.1} parent=63 // pred_check
          %p6874 = pneg %p256
        $region66: #{tpu_custom_call.1} parent=63 // pred_check_branch
          %6876 = sbr.rel (%p6874) target = $region68
        $region67: #{tpu_custom_call.1} parent=63 // pred_region
          %s6877 = sand.u32 %s241, 1
          %s6878 = scalar_lea.sflag [#allocation3], %s6877
          %s6879 = sand.u32 %s241, 1
          %s6880 = smul.addr %s6879, 128
          %s6881 = scalar_lea.vmem [#allocation2], %s6880
          %6882 = dma.done %s6878, 2048
        $region68: #{tpu_custom_call.1} parent=63 // pred_fallthru
          _
      $region64: #{tpu_custom_call.1} parent=5 // pred_fallthru
        _
    $region6: #{tpu_custom_call.1} parent=1 // loop_footer
      %s22 = sadd.s32 1, %s18
    $region7: #{tpu_custom_call.1} parent=1 // loop_footer_branch
      %17 = sbr.rel target = $region3
    $region8: #{tpu_custom_call.1} parent=1 // loop_exit
      _
    %6883 = vsyncpa [#allocation3], 1
    %s6884 = scalar_lea.sflag [#allocation3], 1
    %6885 = vsyncpa %s6884, 1

</llo_original>
